<compile_context>
chip_gen: v7x
topology: tpu7x:2x2x1
jax: 0.10.0
libtpu: 0.0.40
codegen_flags: <defaults>
</compile_context>

<pallas_src>
import functools

import jax
import jax.numpy as jnp
from jax import lax
from jax.experimental import pallas as pl
from jax.experimental.pallas import tpu as pltpu


def _attention_kernel(x_ref, maskp_ref, wqkv_ref, awqkv_ref, wcomb_ref,
                      bout_ref, outm_ref, *, heads, dim_head, scale, bt, np1,
                      nonneg_mask):
    dim = x_ref.shape[-1]
    inner = heads * dim_head
    d = dim_head
    rows = bt * np1

    x = x_ref[...]          # (bt, Np1, dim) f32
    maskp = maskp_ref[...]  # (bt, Np1, dim) f32; row 0 of each batch is zeros

    # ---- QKV projections: one MXU matmul each over the flattened row block.
    # (bt, Np1, dim) -> (bt*Np1, dim) merges leading dims only (layout-safe).
    # Operands cast to bf16 (MXU-native); accumulation stays f32.
    xf = x.reshape(rows, dim).astype(jnp.bfloat16)
    mf = maskp.reshape(rows, dim).astype(jnp.bfloat16)
    qkv = jnp.dot(xf, wqkv_ref[...], preferred_element_type=jnp.float32)
    qkv = qkv.reshape(bt, np1, 3 * inner)
    qkv_m = jnp.dot(mf, awqkv_ref[...], preferred_element_type=jnp.float32)
    qkv_m = qkv_m.reshape(bt, np1, 3 * inner)

    # CLS-row indicator (row 0 of each batch element).
    ridx = lax.broadcasted_iota(jnp.int32, (bt, np1, 1), 1)
    is_cls = ridx == 0

    # updated = 1 for the CLS row, else (mean(mask_row) > 0)  -- exact f32.
    updated = jnp.where(
        is_cls, 1.0,
        (jnp.mean(maskp, axis=-1, keepdims=True) > 0.0).astype(jnp.float32))
    updated = updated.reshape(rows, 1)

    # Per-(batch, feature) max over the sequence rows.  With a nonnegative
    # mask the zero-padded CLS row can never exceed the max, so the -inf
    # guard can be dropped; keep it if the mask may be negative.
    if nonneg_mask:
        mx = jnp.max(qkv_m, axis=1, keepdims=True)
    else:
        mx = jnp.max(jnp.where(is_cls, -jnp.inf, qkv_m), axis=1, keepdims=True)
    inv_mx = 1.0 / (1e-6 + mx)
    qm_full = jnp.where(is_cls, 1.0, qkv_m * inv_mx)   # (bt, Np1, 3I) f32

    # Elementwise q/k/v masking in f32 (VPU), then cast ONLY the matmul
    # operands to bf16.  qkv / qkv_m / eff die here, so the head loop only
    # carries four small bf16 arrays -> no f32 spill pressure.
    eff = qkv * qm_full
    q_eff = (eff[:, :, :inner] * scale).astype(jnp.bfloat16)   # scale folded in
    k_eff = eff[:, :, inner:2 * inner].astype(jnp.bfloat16)
    v_eff = eff[:, :, 2 * inner:].astype(jnp.bfloat16)          # v * v_m
    vm = qm_full[:, :, 2 * inner:].astype(jnp.bfloat16)         # v_m

    # Fused per-head accumulation of BOTH output projections into a single
    # (rows, 2*dim) register accumulator:
    #   columns [:dim]  accumulate  (attn @ (v*v_m)) @ W_out^T
    #   columns [dim:]  accumulate  (attn @  v_m   ) @ |W_out^T|
    acc = jnp.zeros((rows, 2 * dim), jnp.float32)
    for h in range(heads):          # static unroll; per-head temporaries small
        sl = slice(h * d, (h + 1) * d)
        dots = lax.dot_general(
            q_eff[:, :, sl], k_eff[:, :, sl],
            dimension_numbers=(((2,), (2,)), ((0,), (0,))),
            preferred_element_type=jnp.float32)          # (bt, Np1, Np1) f32
        dots = dots - jnp.max(dots, axis=-1, keepdims=True)
        p = jnp.exp(dots)
        inv_l = pl.reciprocal(jnp.sum(p, axis=-1, keepdims=True), approx=True)
        attn = (p * inv_l).astype(jnp.bfloat16)

        # Single fused value matmul: attn @ [v*v_m | v_m]  -> (bt, Np1, 2d).
        cv = jnp.concatenate([v_eff[:, :, sl], vm[:, :, sl]], axis=-1)
        ovm = lax.dot_general(
            attn, cv, dimension_numbers=(((2,), (1,)), ((0,), (0,))),
            preferred_element_type=jnp.float32)          # (bt, Np1, 2d) f32

        # Per-head slice of the block-diagonal combined output weight.
        wch = wcomb_ref[2 * d * h:2 * d * (h + 1), :]    # (2d, 2*dim) bf16
        acc = acc + jnp.dot(
            ovm.reshape(rows, 2 * d).astype(jnp.bfloat16), wch,
            preferred_element_type=jnp.float32)

    # Finalize: the `updated` row scaling (values in {0,1}) commutes with the
    # feature contraction; bias is pre-padded to [b_out | 0] in the wrapper so
    # one fused add covers both halves.  Single (rows, 2*dim) output store.
    outm_ref[...] = updated * acc + bout_ref[...]


def attention_pallas(x, mask, wqkvT, woutT, bout, *, heads, dim_head,
                     batch_block=16, min_grid=2, nonneg_mask=True,
                     vmem_limit_bytes=None):
    """x: (B, N+1, dim), mask: (B, N, dim).  Returns (out (B,N+1,dim), m (B,N,dim)).

    batch_block: max batch elements per grid step (sweep {8,16,32}); rows per
    step = 8*batch_block feed the MXU M dim.  min_grid=2 keeps both v7x
    TensorCores busy; it is a no-op cost on single-TC v5e/v6e.
    """
    B, Np1, dim = x.shape
    N = mask.shape[1]
    assert Np1 == N + 1
    inner = heads * dim_head
    assert wqkvT.shape == (dim, 3 * inner)
    assert woutT.shape == (inner, dim)
    d = dim_head
    scale = dim_head ** -0.5

    # Largest divisor of B <= batch_block that (if possible) keeps grid >= min_grid.
    divisors = [c for c in range(1, B + 1) if B % c == 0 and c <= batch_block]
    pref = [c for c in divisors if B // c >= min_grid]
    bt = max(pref) if pref else max(divisors)

    # Pad mask with a zero CLS row so its block matches x's Np1 rows; the
    # kernel forces that row's multipliers / `updated` to 1.
    maskp = jnp.concatenate([jnp.zeros((B, 1, dim), mask.dtype), mask], axis=1)

    # Resident weights, pre-cast to bf16 (MXU operands).
    wqkv_b = wqkvT.astype(jnp.bfloat16)
    awqkv_b = jnp.abs(wqkvT).astype(jnp.bfloat16)

    # Block-diagonal combined output-projection weight, per head:
    #   rows [2dh : 2dh+d]   = [ W_out^T rows of head h , 0 ]
    #   rows [2dh+d : 2d(h+1)] = [ 0 , |W_out^T| rows of head h ]
    wo = woutT.reshape(heads, d, dim)
    awo = jnp.abs(woutT).reshape(heads, d, dim)
    z = jnp.zeros_like(wo)
    wcomb = jnp.concatenate(
        [jnp.concatenate([wo, z], axis=-1),
         jnp.concatenate([z, awo], axis=-1)], axis=1)
    wcomb = wcomb.reshape(2 * inner, 2 * dim).astype(jnp.bfloat16)

    # Bias padded to [b_out | 0] so it only hits the `out` half of the slab.
    bout2 = jnp.concatenate(
        [bout.reshape(1, dim).astype(jnp.float32),
         jnp.zeros((1, dim), jnp.float32)], axis=-1)

    kernel = functools.partial(_attention_kernel, heads=heads,
                               dim_head=dim_head, scale=scale, bt=bt, np1=Np1,
                               nonneg_mask=nonneg_mask)

    rows = B * Np1
    cparams = dict(dimension_semantics=("parallel",))
    if vmem_limit_bytes is not None:   # only needed when pushing bt >= 64 on v5e
        cparams["vmem_limit_bytes"] = vmem_limit_bytes

    outm = pl.pallas_call(
        kernel,
        out_shape=jax.ShapeDtypeStruct((rows, 2 * dim), jnp.float32),
        grid=(B // bt,),
        in_specs=[
            pl.BlockSpec((bt, Np1, dim), lambda b: (b, 0, 0)),     # x block
            pl.BlockSpec((bt, Np1, dim), lambda b: (b, 0, 0)),     # padded mask
            pl.BlockSpec((dim, 3 * inner), lambda b: (0, 0)),      # W_qkv^T  (bf16, resident)
            pl.BlockSpec((dim, 3 * inner), lambda b: (0, 0)),      # |W_qkv^T| (bf16, resident)
            pl.BlockSpec((2 * inner, 2 * dim), lambda b: (0, 0)),  # combined W_out (bf16)
            pl.BlockSpec((1, 2 * dim), lambda b: (0, 0)),          # [b_out | 0]
        ],
        out_specs=pl.BlockSpec((bt * Np1, 2 * dim), lambda b: (b, 0)),  # fused [out|m]
        compiler_params=pltpu.CompilerParams(**cparams),
    )(x, maskp, wqkv_b, awqkv_b, wcomb, bout2)

    outm = outm.reshape(B, Np1, 2 * dim)
    out = outm[..., :dim]
    m = outm[:, 1:, dim:]          # drop CLS row in the wrapper (free slice)
    return out, m


def attention_ref(x, mask, wqkvT, woutT, bout, *, heads, dim_head):
    """Pure-JAX reference mirroring the PyTorch forward exactly (f32)."""
    B, Np1, dim = x.shape
    inner = heads * dim_head
    scale = dim_head ** -0.5

    qkv = x @ wqkvT                               # (B, Np1, 3I)
    qkv_m = mask @ jnp.abs(wqkvT)                 # (B, N,   3I)

    updated = (jnp.mean(mask, -1, keepdims=True) > 0.0).astype(jnp.float32)
    updated = jnp.concatenate([jnp.ones_like(updated[:, :1]), updated], 1)

    def split_heads(t):
        b, n, _ = t.shape
        return t.reshape(b, n, heads, dim_head).transpose(0, 2, 1, 3)

    q, k, v = [split_heads(c) for c in jnp.split(qkv, 3, -1)]
    q_m, k_m, v_m = [split_heads(c) for c in jnp.split(qkv_m, 3, -1)]

    def norm_cat(t):
        t = t / (1e-6 + jnp.max(t, axis=2, keepdims=True))
        return jnp.concatenate([jnp.ones_like(t[:, :, :1]), t], 2)

    q_m, k_m, v_m = norm_cat(q_m), norm_cat(k_m), norm_cat(v_m)

    dots = jnp.einsum('bhnd,bhmd->bhnm', q * q_m, k * k_m) * scale
    attn = jax.nn.softmax(dots, -1)
    out = jnp.einsum('bhnm,bhmd->bhnd', attn, v_m * v)
    out = out.transpose(0, 2, 1, 3).reshape(B, Np1, inner) * updated
    m = jnp.einsum('bhnm,bhmd->bhnd', attn, v_m)
    m = m.transpose(0, 2, 1, 3).reshape(B, Np1, inner) * updated
    m = m @ jnp.abs(woutT)
    return out @ woutT + bout, m[:, 1:]


if __name__ == "__main__":
    dim, heads, dim_head = 32, 4, 16
    inner = heads * dim_head
    B, N = 32, 7          # bt=16 -> grid=(2,), rows per step = 128
    Np1 = N + 1

    key = jax.random.PRNGKey(0)
    k1, k2, k3, k4, k5 = jax.random.split(key, 5)

    # Deterministic synthetic parameters (shapes from nn.Linear in __init__)
    W_qkv = jax.random.normal(k1, (3 * inner, dim), jnp.float32) * 0.1   # to_qkv.weight
    W_out = jax.random.normal(k2, (dim, inner), jnp.float32) * 0.1       # to_out.weight
    b_out = jax.random.normal(k3, (dim,), jnp.float32) * 0.1             # to_out.bias

    x = jax.random.normal(k4, (B, Np1, dim), jnp.float32)
    mask_raw = jax.random.uniform(k5, (B, N, dim), jnp.float32)
    row_keep = (jnp.arange(N) % 3 != 0).astype(jnp.float32)              # some fully-zero rows
    mask = mask_raw * row_keep[None, :, None]                            # nonnegative mask

    wqkvT = W_qkv.T      # (dim, 3*inner)
    woutT = W_out.T      # (inner, dim)

    out, m = attention_pallas(x, mask, wqkvT, woutT, b_out,
                              heads=heads, dim_head=dim_head,
                              batch_block=16, nonneg_mask=True)
    jax.block_until_ready((out, m))

    out_r, m_r = attention_ref(x, mask, wqkvT, woutT, b_out,
                               heads=heads, dim_head=dim_head)
    # Tolerance accounts for bf16 MXU operands (per perf review) plus the EUP
    # approximate reciprocal in the softmax denominator; reference is pure f32.
    assert jnp.allclose(out, out_r, rtol=2e-2, atol=2e-2), "out mismatch"
    assert jnp.allclose(m, m_r, rtol=2e-2, atol=2e-2), "m mismatch"

    print("KERNEL_OK")
</pallas_src>

<mosaic_0001>
module attributes {stable_mosaic.version = 11 : i64} {
  func.func @_attention_kernel(%arg0: i32, %arg1: memref<16x8x32xf32, #tpu.memory_space<vmem>>, %arg2: memref<16x8x32xf32, #tpu.memory_space<vmem>>, %arg3: memref<32x192xbf16, #tpu.memory_space<vmem>>, %arg4: memref<32x192xbf16, #tpu.memory_space<vmem>>, %arg5: memref<128x64xbf16, #tpu.memory_space<vmem>>, %arg6: memref<1x64xf32, #tpu.memory_space<vmem>>, %arg7: memref<128x64xf32, #tpu.memory_space<vmem>>) attributes {dimension_semantics = [#tpu.dimension_semantics<parallel>], iteration_bounds = array<i64: 2>, scalar_prefetch = 0 : i64, scratch_operands = 0 : i64, tpu.core_type = #tpu.core_type<tc>, window_params = [{transform_indices = @transform_0, window_bounds = array<i64: 16, 8, 32>}, {transform_indices = @transform_1, window_bounds = array<i64: 16, 8, 32>}, {pipeline_mode = #tpu.pipeline_mode<synchronous>, transform_indices = @transform_2, window_bounds = array<i64: 32, 192>}, {pipeline_mode = #tpu.pipeline_mode<synchronous>, transform_indices = @transform_3, window_bounds = array<i64: 32, 192>}, {pipeline_mode = #tpu.pipeline_mode<synchronous>, transform_indices = @transform_4, window_bounds = array<i64: 128, 64>}, {pipeline_mode = #tpu.pipeline_mode<synchronous>, transform_indices = @transform_5, window_bounds = array<i64: 1, 64>}, {transform_indices = @transform_6, window_bounds = array<i64: 128, 64>}]} {
    %c0 = arith.constant 0 : index
    %c0_0 = arith.constant 0 : index
    %c0_1 = arith.constant 0 : index
    %0 = vector.load %arg1[%c0, %c0_0, %c0_1] : memref<16x8x32xf32, #tpu.memory_space<vmem>>, vector<16x8x32xf32>
    %c0_2 = arith.constant 0 : index
    %c0_3 = arith.constant 0 : index
    %c0_4 = arith.constant 0 : index
    %1 = vector.load %arg2[%c0_2, %c0_3, %c0_4] : memref<16x8x32xf32, #tpu.memory_space<vmem>>, vector<16x8x32xf32>
    %2 = vector.shape_cast %0 : vector<16x8x32xf32> to vector<128x32xf32>
    %3 = arith.truncf %2 : vector<128x32xf32> to vector<128x32xbf16>
    %4 = vector.shape_cast %1 : vector<16x8x32xf32> to vector<128x32xf32>
    %5 = arith.truncf %4 : vector<128x32xf32> to vector<128x32xbf16>
    %c0_5 = arith.constant 0 : index
    %c0_6 = arith.constant 0 : index
    %6 = vector.load %arg3[%c0_5, %c0_6] : memref<32x192xbf16, #tpu.memory_space<vmem>>, vector<32x192xbf16>
    %cst = arith.constant dense<0.000000e+00> : vector<128x192xf32>
    %7 = tpu.matmul %3, %6, %cst {dimension_numbers = #tpu.dot_dimension_numbers<[1], [0], [0], [1], [0, 0, 1, 1], [], []>} : vector<128x32xbf16>, vector<32x192xbf16>, vector<128x192xf32> -> vector<128x192xf32>
    %8 = vector.shape_cast %7 : vector<128x192xf32> to vector<16x8x192xf32>
    %c0_7 = arith.constant 0 : index
    %c0_8 = arith.constant 0 : index
    %9 = vector.load %arg4[%c0_7, %c0_8] : memref<32x192xbf16, #tpu.memory_space<vmem>>, vector<32x192xbf16>
    %cst_9 = arith.constant dense<0.000000e+00> : vector<128x192xf32>
    %10 = tpu.matmul %5, %9, %cst_9 {dimension_numbers = #tpu.dot_dimension_numbers<[1], [0], [0], [1], [0, 0, 1, 1], [], []>} : vector<128x32xbf16>, vector<32x192xbf16>, vector<128x192xf32> -> vector<128x192xf32>
    %11 = vector.shape_cast %10 : vector<128x192xf32> to vector<16x8x192xf32>
    %12 = tpu.iota {dimensions = array<i32: 1>} : vector<16x8x1xi32>
    %c0_i32 = arith.constant 0 : i32
    %13 = vector.broadcast %c0_i32 : i32 to vector<16x8x1xi32>
    %14 = arith.cmpi eq, %12, %13 : vector<16x8x1xi32>
    %cst_10 = arith.constant dense<0.000000e+00> : vector<16x8xf32>
    %15 = vector.multi_reduction <add>, %1, %cst_10 [2] : vector<16x8x32xf32> to vector<16x8xf32>
    %16 = vector.shape_cast %15 : vector<16x8xf32> to vector<16x8x1xf32>
    %cst_11 = arith.constant 3.200000e+01 : f32
    %17 = vector.broadcast %cst_11 : f32 to vector<16x8x1xf32>
    %18 = arith.divf %16, %17 : vector<16x8x1xf32>
    %cst_12 = arith.constant 0.000000e+00 : f32
    %19 = vector.broadcast %cst_12 : f32 to vector<16x8x1xf32>
    %20 = arith.cmpf ogt, %18, %19 : vector<16x8x1xf32>
    %21 = arith.extui %20 : vector<16x8x1xi1> to vector<16x8x1xi32>
    %22 = arith.sitofp %21 : vector<16x8x1xi32> to vector<16x8x1xf32>
    %cst_13 = arith.constant 1.000000e+00 : f32
    %23 = vector.broadcast %cst_13 : f32 to vector<16x8x1xf32>
    %24 = arith.select %14, %23, %22 : vector<16x8x1xi1>, vector<16x8x1xf32>
    %25 = vector.shape_cast %24 : vector<16x8x1xf32> to vector<128x1xf32>
    %cst_14 = arith.constant dense<0xFF800000> : vector<16x192xf32>
    %26 = vector.multi_reduction <maximumf>, %11, %cst_14 [1] : vector<16x8x192xf32> to vector<16x192xf32>
    %27 = vector.shape_cast %26 : vector<16x192xf32> to vector<16x1x192xf32>
    %cst_15 = arith.constant 9.99999997E-7 : f32
    %28 = vector.broadcast %cst_15 : f32 to vector<16x1x192xf32>
    %29 = arith.addf %28, %27 : vector<16x1x192xf32>
    %cst_16 = arith.constant 1.000000e+00 : f32
    %30 = vector.broadcast %cst_16 : f32 to vector<16x1x192xf32>
    %31 = arith.divf %30, %29 : vector<16x1x192xf32>
    %32 = vector.broadcast %31 : vector<16x1x192xf32> to vector<16x8x192xf32>
    %33 = arith.mulf %11, %32 : vector<16x8x192xf32>
    %cst_17 = arith.constant 1.000000e+00 : f32
    %34 = vector.shape_cast %14 : vector<16x8x1xi1> to vector<16x8x1xi1>
    %35 = vector.broadcast %34 : vector<16x8x1xi1> to vector<16x8x192xi1>
    %36 = vector.broadcast %cst_17 : f32 to vector<16x8x192xf32>
    %37 = arith.select %35, %36, %33 : vector<16x8x192xi1>, vector<16x8x192xf32>
    %38 = arith.mulf %8, %37 : vector<16x8x192xf32>
    %39 = vector.extract_strided_slice %38 {offsets = [0, 0, 0], sizes = [16, 8, 64], strides = [1, 1, 1]} : vector<16x8x192xf32> to vector<16x8x64xf32>
    %cst_18 = arith.constant 2.500000e-01 : f32
    %40 = vector.broadcast %cst_18 : f32 to vector<16x8x64xf32>
    %41 = arith.mulf %39, %40 : vector<16x8x64xf32>
    %42 = arith.truncf %41 : vector<16x8x64xf32> to vector<16x8x64xbf16>
    %43 = vector.extract_strided_slice %38 {offsets = [0, 0, 64], sizes = [16, 8, 64], strides = [1, 1, 1]} : vector<16x8x192xf32> to vector<16x8x64xf32>
    %44 = arith.truncf %43 : vector<16x8x64xf32> to vector<16x8x64xbf16>
    %45 = vector.extract_strided_slice %38 {offsets = [0, 0, 128], sizes = [16, 8, 64], strides = [1, 1, 1]} : vector<16x8x192xf32> to vector<16x8x64xf32>
    %46 = arith.truncf %45 : vector<16x8x64xf32> to vector<16x8x64xbf16>
    %47 = vector.extract_strided_slice %37 {offsets = [0, 0, 128], sizes = [16, 8, 64], strides = [1, 1, 1]} : vector<16x8x192xf32> to vector<16x8x64xf32>
    %48 = arith.truncf %47 : vector<16x8x64xf32> to vector<16x8x64xbf16>
    %cst_19 = arith.constant 0.000000e+00 : f32
    %49 = vector.broadcast %cst_19 : f32 to vector<128x64xf32>
    %50 = vector.extract_strided_slice %42 {offsets = [0, 0, 0], sizes = [16, 8, 16], strides = [1, 1, 1]} : vector<16x8x64xbf16> to vector<16x8x16xbf16>
    %51 = vector.extract_strided_slice %44 {offsets = [0, 0, 0], sizes = [16, 8, 16], strides = [1, 1, 1]} : vector<16x8x64xbf16> to vector<16x8x16xbf16>
    %cst_20 = arith.constant dense<0.000000e+00> : vector<16x8x8xf32>
    %52 = tpu.matmul %50, %51, %cst_20 {dimension_numbers = #tpu.dot_dimension_numbers<[2], [2], [1], [1], [0, 0, 0, 1, 1, 1], [0], [0]>} : vector<16x8x16xbf16>, vector<16x8x16xbf16>, vector<16x8x8xf32> -> vector<16x8x8xf32>
    %cst_21 = arith.constant dense<0xFF800000> : vector<16x8xf32>
    %53 = vector.multi_reduction <maximumf>, %52, %cst_21 [2] : vector<16x8x8xf32> to vector<16x8xf32>
    %54 = vector.shape_cast %53 : vector<16x8xf32> to vector<16x8x1xf32>
    %55 = vector.broadcast %54 : vector<16x8x1xf32> to vector<16x8x8xf32>
    %56 = arith.subf %52, %55 : vector<16x8x8xf32>
    %57 = math.exp %56 : vector<16x8x8xf32>
    %cst_22 = arith.constant dense<0.000000e+00> : vector<16x8xf32>
    %58 = vector.multi_reduction <add>, %57, %cst_22 [2] : vector<16x8x8xf32> to vector<16x8xf32>
    %59 = vector.shape_cast %58 : vector<16x8xf32> to vector<16x8x1xf32>
    %60 = tpu.reciprocal %59 {approx = true} : vector<16x8x1xf32> -> vector<16x8x1xf32>
    %61 = vector.broadcast %60 : vector<16x8x1xf32> to vector<16x8x8xf32>
    %62 = arith.mulf %57, %61 : vector<16x8x8xf32>
    %63 = arith.truncf %62 : vector<16x8x8xf32> to vector<16x8x8xbf16>
    %64 = vector.extract_strided_slice %46 {offsets = [0, 0, 0], sizes = [16, 8, 16], strides = [1, 1, 1]} : vector<16x8x64xbf16> to vector<16x8x16xbf16>
    %65 = vector.extract_strided_slice %48 {offsets = [0, 0, 0], sizes = [16, 8, 16], strides = [1, 1, 1]} : vector<16x8x64xbf16> to vector<16x8x16xbf16>
    %66 = tpu.concatenate %64, %65 in 2 : vector<16x8x16xbf16>, vector<16x8x16xbf16> -> vector<16x8x32xbf16>
    %cst_23 = arith.constant dense<0.000000e+00> : vector<16x8x32xf32>
    %67 = tpu.matmul %63, %66, %cst_23 {dimension_numbers = #tpu.dot_dimension_numbers<[2], [1], [1], [2], [0, 0, 0, 1, 1, 2], [0], [0]>} : vector<16x8x8xbf16>, vector<16x8x32xbf16>, vector<16x8x32xf32> -> vector<16x8x32xf32>
    %c0_24 = arith.constant 0 : index
    %c0_25 = arith.constant 0 : index
    %68 = vector.load %arg5[%c0_24, %c0_25] : memref<128x64xbf16, #tpu.memory_space<vmem>>, vector<32x64xbf16>
    %69 = vector.shape_cast %67 : vector<16x8x32xf32> to vector<128x32xf32>
    %70 = arith.truncf %69 : vector<128x32xf32> to vector<128x32xbf16>
    %cst_26 = arith.constant dense<0.000000e+00> : vector<128x64xf32>
    %71 = tpu.matmul %70, %68, %cst_26 {dimension_numbers = #tpu.dot_dimension_numbers<[1], [0], [0], [1], [0, 0, 1, 1], [], []>} : vector<128x32xbf16>, vector<32x64xbf16>, vector<128x64xf32> -> vector<128x64xf32>
    %72 = arith.addf %49, %71 : vector<128x64xf32>
    %73 = vector.extract_strided_slice %42 {offsets = [0, 0, 16], sizes = [16, 8, 16], strides = [1, 1, 1]} : vector<16x8x64xbf16> to vector<16x8x16xbf16>
    %74 = vector.extract_strided_slice %44 {offsets = [0, 0, 16], sizes = [16, 8, 16], strides = [1, 1, 1]} : vector<16x8x64xbf16> to vector<16x8x16xbf16>
    %cst_27 = arith.constant dense<0.000000e+00> : vector<16x8x8xf32>
    %75 = tpu.matmul %73, %74, %cst_27 {dimension_numbers = #tpu.dot_dimension_numbers<[2], [2], [1], [1], [0, 0, 0, 1, 1, 1], [0], [0]>} : vector<16x8x16xbf16>, vector<16x8x16xbf16>, vector<16x8x8xf32> -> vector<16x8x8xf32>
    %cst_28 = arith.constant dense<0xFF800000> : vector<16x8xf32>
    %76 = vector.multi_reduction <maximumf>, %75, %cst_28 [2] : vector<16x8x8xf32> to vector<16x8xf32>
    %77 = vector.shape_cast %76 : vector<16x8xf32> to vector<16x8x1xf32>
    %78 = vector.broadcast %77 : vector<16x8x1xf32> to vector<16x8x8xf32>
    %79 = arith.subf %75, %78 : vector<16x8x8xf32>
    %80 = math.exp %79 : vector<16x8x8xf32>
    %cst_29 = arith.constant dense<0.000000e+00> : vector<16x8xf32>
    %81 = vector.multi_reduction <add>, %80, %cst_29 [2] : vector<16x8x8xf32> to vector<16x8xf32>
    %82 = vector.shape_cast %81 : vector<16x8xf32> to vector<16x8x1xf32>
    %83 = tpu.reciprocal %82 {approx = true} : vector<16x8x1xf32> -> vector<16x8x1xf32>
    %84 = vector.broadcast %83 : vector<16x8x1xf32> to vector<16x8x8xf32>
    %85 = arith.mulf %80, %84 : vector<16x8x8xf32>
    %86 = arith.truncf %85 : vector<16x8x8xf32> to vector<16x8x8xbf16>
    %87 = vector.extract_strided_slice %46 {offsets = [0, 0, 16], sizes = [16, 8, 16], strides = [1, 1, 1]} : vector<16x8x64xbf16> to vector<16x8x16xbf16>
    %88 = vector.extract_strided_slice %48 {offsets = [0, 0, 16], sizes = [16, 8, 16], strides = [1, 1, 1]} : vector<16x8x64xbf16> to vector<16x8x16xbf16>
    %89 = tpu.concatenate %87, %88 in 2 : vector<16x8x16xbf16>, vector<16x8x16xbf16> -> vector<16x8x32xbf16>
    %cst_30 = arith.constant dense<0.000000e+00> : vector<16x8x32xf32>
    %90 = tpu.matmul %86, %89, %cst_30 {dimension_numbers = #tpu.dot_dimension_numbers<[2], [1], [1], [2], [0, 0, 0, 1, 1, 2], [0], [0]>} : vector<16x8x8xbf16>, vector<16x8x32xbf16>, vector<16x8x32xf32> -> vector<16x8x32xf32>
    %c32 = arith.constant 32 : index
    %c0_31 = arith.constant 0 : index
    %91 = vector.load %arg5[%c32, %c0_31] : memref<128x64xbf16, #tpu.memory_space<vmem>>, vector<32x64xbf16>
    %92 = vector.shape_cast %90 : vector<16x8x32xf32> to vector<128x32xf32>
    %93 = arith.truncf %92 : vector<128x32xf32> to vector<128x32xbf16>
    %cst_32 = arith.constant dense<0.000000e+00> : vector<128x64xf32>
    %94 = tpu.matmul %93, %91, %cst_32 {dimension_numbers = #tpu.dot_dimension_numbers<[1], [0], [0], [1], [0, 0, 1, 1], [], []>} : vector<128x32xbf16>, vector<32x64xbf16>, vector<128x64xf32> -> vector<128x64xf32>
    %95 = arith.addf %72, %94 : vector<128x64xf32>
    %96 = vector.extract_strided_slice %42 {offsets = [0, 0, 32], sizes = [16, 8, 16], strides = [1, 1, 1]} : vector<16x8x64xbf16> to vector<16x8x16xbf16>
    %97 = vector.extract_strided_slice %44 {offsets = [0, 0, 32], sizes = [16, 8, 16], strides = [1, 1, 1]} : vector<16x8x64xbf16> to vector<16x8x16xbf16>
    %cst_33 = arith.constant dense<0.000000e+00> : vector<16x8x8xf32>
    %98 = tpu.matmul %96, %97, %cst_33 {dimension_numbers = #tpu.dot_dimension_numbers<[2], [2], [1], [1], [0, 0, 0, 1, 1, 1], [0], [0]>} : vector<16x8x16xbf16>, vector<16x8x16xbf16>, vector<16x8x8xf32> -> vector<16x8x8xf32>
    %cst_34 = arith.constant dense<0xFF800000> : vector<16x8xf32>
    %99 = vector.multi_reduction <maximumf>, %98, %cst_34 [2] : vector<16x8x8xf32> to vector<16x8xf32>
    %100 = vector.shape_cast %99 : vector<16x8xf32> to vector<16x8x1xf32>
    %101 = vector.broadcast %100 : vector<16x8x1xf32> to vector<16x8x8xf32>
    %102 = arith.subf %98, %101 : vector<16x8x8xf32>
    %103 = math.exp %102 : vector<16x8x8xf32>
    %cst_35 = arith.constant dense<0.000000e+00> : vector<16x8xf32>
    %104 = vector.multi_reduction <add>, %103, %cst_35 [2] : vector<16x8x8xf32> to vector<16x8xf32>
    %105 = vector.shape_cast %104 : vector<16x8xf32> to vector<16x8x1xf32>
    %106 = tpu.reciprocal %105 {approx = true} : vector<16x8x1xf32> -> vector<16x8x1xf32>
    %107 = vector.broadcast %106 : vector<16x8x1xf32> to vector<16x8x8xf32>
    %108 = arith.mulf %103, %107 : vector<16x8x8xf32>
    %109 = arith.truncf %108 : vector<16x8x8xf32> to vector<16x8x8xbf16>
    %110 = vector.extract_strided_slice %46 {offsets = [0, 0, 32], sizes = [16, 8, 16], strides = [1, 1, 1]} : vector<16x8x64xbf16> to vector<16x8x16xbf16>
    %111 = vector.extract_strided_slice %48 {offsets = [0, 0, 32], sizes = [16, 8, 16], strides = [1, 1, 1]} : vector<16x8x64xbf16> to vector<16x8x16xbf16>
    %112 = tpu.concatenate %110, %111 in 2 : vector<16x8x16xbf16>, vector<16x8x16xbf16> -> vector<16x8x32xbf16>
    %cst_36 = arith.constant dense<0.000000e+00> : vector<16x8x32xf32>
    %113 = tpu.matmul %109, %112, %cst_36 {dimension_numbers = #tpu.dot_dimension_numbers<[2], [1], [1], [2], [0, 0, 0, 1, 1, 2], [0], [0]>} : vector<16x8x8xbf16>, vector<16x8x32xbf16>, vector<16x8x32xf32> -> vector<16x8x32xf32>
    %c64 = arith.constant 64 : index
    %c0_37 = arith.constant 0 : index
    %114 = vector.load %arg5[%c64, %c0_37] : memref<128x64xbf16, #tpu.memory_space<vmem>>, vector<32x64xbf16>
    %115 = vector.shape_cast %113 : vector<16x8x32xf32> to vector<128x32xf32>
    %116 = arith.truncf %115 : vector<128x32xf32> to vector<128x32xbf16>
    %cst_38 = arith.constant dense<0.000000e+00> : vector<128x64xf32>
    %117 = tpu.matmul %116, %114, %cst_38 {dimension_numbers = #tpu.dot_dimension_numbers<[1], [0], [0], [1], [0, 0, 1, 1], [], []>} : vector<128x32xbf16>, vector<32x64xbf16>, vector<128x64xf32> -> vector<128x64xf32>
    %118 = arith.addf %95, %117 : vector<128x64xf32>
    %119 = vector.extract_strided_slice %42 {offsets = [0, 0, 48], sizes = [16, 8, 16], strides = [1, 1, 1]} : vector<16x8x64xbf16> to vector<16x8x16xbf16>
    %120 = vector.extract_strided_slice %44 {offsets = [0, 0, 48], sizes = [16, 8, 16], strides = [1, 1, 1]} : vector<16x8x64xbf16> to vector<16x8x16xbf16>
    %cst_39 = arith.constant dense<0.000000e+00> : vector<16x8x8xf32>
    %121 = tpu.matmul %119, %120, %cst_39 {dimension_numbers = #tpu.dot_dimension_numbers<[2], [2], [1], [1], [0, 0, 0, 1, 1, 1], [0], [0]>} : vector<16x8x16xbf16>, vector<16x8x16xbf16>, vector<16x8x8xf32> -> vector<16x8x8xf32>
    %cst_40 = arith.constant dense<0xFF800000> : vector<16x8xf32>
    %122 = vector.multi_reduction <maximumf>, %121, %cst_40 [2] : vector<16x8x8xf32> to vector<16x8xf32>
    %123 = vector.shape_cast %122 : vector<16x8xf32> to vector<16x8x1xf32>
    %124 = vector.broadcast %123 : vector<16x8x1xf32> to vector<16x8x8xf32>
    %125 = arith.subf %121, %124 : vector<16x8x8xf32>
    %126 = math.exp %125 : vector<16x8x8xf32>
    %cst_41 = arith.constant dense<0.000000e+00> : vector<16x8xf32>
    %127 = vector.multi_reduction <add>, %126, %cst_41 [2] : vector<16x8x8xf32> to vector<16x8xf32>
    %128 = vector.shape_cast %127 : vector<16x8xf32> to vector<16x8x1xf32>
    %129 = tpu.reciprocal %128 {approx = true} : vector<16x8x1xf32> -> vector<16x8x1xf32>
    %130 = vector.broadcast %129 : vector<16x8x1xf32> to vector<16x8x8xf32>
    %131 = arith.mulf %126, %130 : vector<16x8x8xf32>
    %132 = arith.truncf %131 : vector<16x8x8xf32> to vector<16x8x8xbf16>
    %133 = vector.extract_strided_slice %46 {offsets = [0, 0, 48], sizes = [16, 8, 16], strides = [1, 1, 1]} : vector<16x8x64xbf16> to vector<16x8x16xbf16>
    %134 = vector.extract_strided_slice %48 {offsets = [0, 0, 48], sizes = [16, 8, 16], strides = [1, 1, 1]} : vector<16x8x64xbf16> to vector<16x8x16xbf16>
    %135 = tpu.concatenate %133, %134 in 2 : vector<16x8x16xbf16>, vector<16x8x16xbf16> -> vector<16x8x32xbf16>
    %cst_42 = arith.constant dense<0.000000e+00> : vector<16x8x32xf32>
    %136 = tpu.matmul %132, %135, %cst_42 {dimension_numbers = #tpu.dot_dimension_numbers<[2], [1], [1], [2], [0, 0, 0, 1, 1, 2], [0], [0]>} : vector<16x8x8xbf16>, vector<16x8x32xbf16>, vector<16x8x32xf32> -> vector<16x8x32xf32>
    %c96 = arith.constant 96 : index
    %c0_43 = arith.constant 0 : index
    %137 = vector.load %arg5[%c96, %c0_43] : memref<128x64xbf16, #tpu.memory_space<vmem>>, vector<32x64xbf16>
    %138 = vector.shape_cast %136 : vector<16x8x32xf32> to vector<128x32xf32>
    %139 = arith.truncf %138 : vector<128x32xf32> to vector<128x32xbf16>
    %cst_44 = arith.constant dense<0.000000e+00> : vector<128x64xf32>
    %140 = tpu.matmul %139, %137, %cst_44 {dimension_numbers = #tpu.dot_dimension_numbers<[1], [0], [0], [1], [0, 0, 1, 1], [], []>} : vector<128x32xbf16>, vector<32x64xbf16>, vector<128x64xf32> -> vector<128x64xf32>
    %141 = arith.addf %118, %140 : vector<128x64xf32>
    %142 = vector.broadcast %25 : vector<128x1xf32> to vector<128x64xf32>
    %143 = arith.mulf %142, %141 : vector<128x64xf32>
    %c0_45 = arith.constant 0 : index
    %c0_46 = arith.constant 0 : index
    %144 = vector.load %arg6[%c0_45, %c0_46] : memref<1x64xf32, #tpu.memory_space<vmem>>, vector<1x64xf32>
    %145 = vector.broadcast %144 : vector<1x64xf32> to vector<128x64xf32>
    %146 = arith.addf %143, %145 : vector<128x64xf32>
    %c0_47 = arith.constant 0 : index
    %c0_48 = arith.constant 0 : index
    %147 = vector.load %arg7[%c0_47, %c0_48] : memref<128x64xf32, #tpu.memory_space<vmem>>, vector<128x64xf32>
    tpu.vector_store %arg7[%c0_47, %c0_48], %146 {strides = array<i32>} : memref<128x64xf32, #tpu.memory_space<vmem>>, vector<128x64xf32>,
    return
  }
  func.func @transform_0(%arg0: i32) -> (i32, i32, i32) {
    %c0_i32 = arith.constant 0 : i32
    %c0_i32_0 = arith.constant 0 : i32
    %c0_i32_1 = arith.constant 0 : i32
    return %arg0, %c0_i32, %c0_i32_0 : i32, i32, i32
  }
  func.func @transform_1(%arg0: i32) -> (i32, i32, i32) {
    %c0_i32 = arith.constant 0 : i32
    %c0_i32_0 = arith.constant 0 : i32
    %c0_i32_1 = arith.constant 0 : i32
    return %arg0, %c0_i32, %c0_i32_0 : i32, i32, i32
  }
  func.func @transform_2(%arg0: i32) -> (i32, i32) {
    %c0_i32 = arith.constant 0 : i32
    %c0_i32_0 = arith.constant 0 : i32
    %c0_i32_1 = arith.constant 0 : i32
    return %c0_i32, %c0_i32_0 : i32, i32
  }
  func.func @transform_3(%arg0: i32) -> (i32, i32) {
    %c0_i32 = arith.constant 0 : i32
    %c0_i32_0 = arith.constant 0 : i32
    %c0_i32_1 = arith.constant 0 : i32
    return %c0_i32, %c0_i32_0 : i32, i32
  }
  func.func @transform_4(%arg0: i32) -> (i32, i32) {
    %c0_i32 = arith.constant 0 : i32
    %c0_i32_0 = arith.constant 0 : i32
    %c0_i32_1 = arith.constant 0 : i32
    return %c0_i32, %c0_i32_0 : i32, i32
  }
  func.func @transform_5(%arg0: i32) -> (i32, i32) {
    %c0_i32 = arith.constant 0 : i32
    %c0_i32_0 = arith.constant 0 : i32
    %c0_i32_1 = arith.constant 0 : i32
    return %c0_i32, %c0_i32_0 : i32, i32
  }
  func.func @transform_6(%arg0: i32) -> (i32, i32) {
    %c0_i32 = arith.constant 0 : i32
    %c0_i32_0 = arith.constant 0 : i32
    return %arg0, %c0_i32 : i32, i32
  }
}

</mosaic_0001>

<llo_original>
// kernel: tpu_custom_call.1
$region0: #{tpu_custom_call.1}
  #allocation0 [shape = 'u32[]', space=smem, size = 0x4, offset = 0x4, fixed_abs, tag = 'smem constant byte address 0x4 - core index']
  #allocation1 [shape = 'u32[144,128]{1,0:T(1,128)}', space=vmem, size = 0x12000, scoped, tag = 'internal scratch']
  %s0 = inlined_call_operand.hbm [shape: f32[32,8,32], index: 0, kind: input, shape index: {}]
  %s1 = inlined_call_operand.hbm [shape: f32[32,8,32], index: 1, kind: input, shape index: {}]
  %s2 = inlined_call_operand.vmem [shape: bf16[32,192], index: 2, kind: input, shape index: {}]
  %s3 = inlined_call_operand.vmem [shape: bf16[32,192], index: 3, kind: input, shape index: {}]
  %s4 = inlined_call_operand.vmem [shape: bf16[128,64], index: 4, kind: input, shape index: {}]
  %s5 = inlined_call_operand.vmem [shape: f32[1,64], index: 5, kind: input, shape index: {}]
  %s6 = inlined_call_operand.vmem [shape: f32[256,64], index: 6, kind: output, shape index: {}]
  %s7 = sld [smem:[#allocation0]]
  $region65: #{tpu_custom_call.1} parent=0
    _
  %s9 = ssub.s32 1, %s7
  %s10 = scalar_select 0, %s9, %s7
  $region1: #{tpu_custom_call.1} parent=0
    #allocation2 [shape = 'u8[131072]{0}', space=vmem, size = 0x20000, scoped, tag = 'input window, operand 0']
    #allocation3 [shape = 's32[2]{0}', space=sflag, size = 0x8, scoped, tag = 'scoped memory for tpu_custom_call.1']
    #allocation4 [shape = 'u8[131072]{0}', space=vmem, size = 0x20000, scoped, tag = 'input window, operand 1']
    #allocation5 [shape = 's32[2]{0}', space=sflag, size = 0x8, scoped, tag = 'scoped memory for tpu_custom_call.1']
    %11 = vsyncpa [#allocation3], 0
    %s12 = scalar_lea.sflag [#allocation3], 1
    %13 = vsyncpa %s12, 0
    %14 = vsyncpa [#allocation5], 0
    %s15 = scalar_lea.sflag [#allocation5], 1
    %16 = vsyncpa %s15, 0
    loop: start=0, step=1, limit=4
    $region2: #{tpu_custom_call.1} parent=1 // loop_pre_header
      _
    $region3: #{tpu_custom_call.1} parent=1 // loop_header
      %s18 = sphi 0, %s22
      %p19 = scmp.ge.s32.totalorder %s18, 4
      %s28 = sphi 0, %s30
      %s31 = sphi 0, %s28
      %s32 = sphi 0, %s31
      %s48 = sphi 0, %s32
      %s54 = sphi 0, %s56
      %s57 = sphi 0, %s54
      %s58 = sphi 0, %s57
      %s74 = sphi 0, %s58
      %s78 = sphi 0, %s78
      %s80 = sphi 0, %s78
      %s81 = sphi 0, %s80
      %s95 = sphi 0, %s81
      %s99 = sphi 0, %s99
      %s101 = sphi 0, %s99
      %s102 = sphi 0, %s101
      %s116 = sphi 0, %s102
      %s120 = sphi 0, %s120
      %s122 = sphi 0, %s120
      %s123 = sphi 0, %s122
      %s137 = sphi 0, %s123
      %s141 = sphi 0, %s141
      %s143 = sphi 0, %s141
      %s144 = sphi 0, %s143
      %s158 = sphi 0, %s144
      %s164 = sphi 0, %s166
      %s167 = sphi 0, %s164
      %s168 = sphi 0, %s167
      %s184 = sphi 0, %s168
    $region4: #{tpu_custom_call.1} parent=1 // loop_header_branch
      %21 = sbr.rel (%p19) target = $region8
    $region5: #{tpu_custom_call.1} parent=1 // loop_body
      %s23 = ssub.s32 %s18, 1
      %s24 = ssub.s32 %s18, 2
      %s25 = sadd.s32 %s18, 1
      %s26 = ssub.s32 %s18, %s25
      %p27 = scmp.eq.s32.totalorder %s26, 0
      %s29 = sadd.s32 %s28, 1
      %s30 = scalar_select %p27, %s28, %s29
      %p33 = pneg %p27
      %p34 = scmp.eq.s32.totalorder %s18, 1
      %p35 = por %p33, %p34
      %p36 = scmp.ne.s32.totalorder %s28, %s31
      %p37 = scmp.eq.s32.totalorder %s18, 0
      %p38 = por %p36, %p37
      %p39 = scmp.ne.s32.totalorder %s28, %s31
      %p40 = scmp.eq.s32.totalorder %s23, 1
      %p41 = por %p39, %p40
      %p42 = scmp.ne.s32.totalorder %s31, %s32
      %p43 = scmp.eq.s32.totalorder %s23, 0
      %p44 = por %p42, %p43
      %p45 = scmp.ne.s32.totalorder %s31, %s32
      %p46 = scmp.eq.s32.totalorder %s24, 1
      %p47 = por %p45, %p46
      %p49 = scmp.ne.s32.totalorder %s32, %s48
      %p50 = scmp.eq.s32.totalorder %s24, 0
      %p51 = por %p49, %p50
      %s52 = ssub.s32 %s18, %s25
      %p53 = scmp.eq.s32.totalorder %s52, 0
      %s55 = sadd.s32 %s54, 1
      %s56 = scalar_select %p53, %s54, %s55
      %p59 = pneg %p53
      %p60 = scmp.eq.s32.totalorder %s18, 1
      %p61 = por %p59, %p60
      %p62 = scmp.ne.s32.totalorder %s54, %s57
      %p63 = scmp.eq.s32.totalorder %s18, 0
      %p64 = por %p62, %p63
      %p65 = scmp.ne.s32.totalorder %s54, %s57
      %p66 = scmp.eq.s32.totalorder %s23, 1
      %p67 = por %p65, %p66
      %p68 = scmp.ne.s32.totalorder %s57, %s58
      %p69 = scmp.eq.s32.totalorder %s23, 0
      %p70 = por %p68, %p69
      %p71 = scmp.ne.s32.totalorder %s57, %s58
      %p72 = scmp.eq.s32.totalorder %s24, 1
      %p73 = por %p71, %p72
      %p75 = scmp.ne.s32.totalorder %s58, %s74
      %p76 = scmp.eq.s32.totalorder %s24, 0
      %p77 = por %p75, %p76
      %s79 = sadd.s32 %s78, 1
      %p82 = scmp.eq.s32.totalorder %s18, 1
      %p83 = scmp.ne.s32.totalorder %s78, %s80
      %p84 = scmp.eq.s32.totalorder %s18, 0
      %p85 = por %p83, %p84
      %p86 = scmp.ne.s32.totalorder %s78, %s80
      %p87 = scmp.eq.s32.totalorder %s23, 1
      %p88 = por %p86, %p87
      %p89 = scmp.ne.s32.totalorder %s80, %s81
      %p90 = scmp.eq.s32.totalorder %s23, 0
      %p91 = por %p89, %p90
      %p92 = scmp.ne.s32.totalorder %s80, %s81
      %p93 = scmp.eq.s32.totalorder %s24, 1
      %p94 = por %p92, %p93
      %p96 = scmp.ne.s32.totalorder %s81, %s95
      %p97 = scmp.eq.s32.totalorder %s24, 0
      %p98 = por %p96, %p97
      %s100 = sadd.s32 %s99, 1
      %p103 = scmp.eq.s32.totalorder %s18, 1
      %p104 = scmp.ne.s32.totalorder %s99, %s101
      %p105 = scmp.eq.s32.totalorder %s18, 0
      %p106 = por %p104, %p105
      %p107 = scmp.ne.s32.totalorder %s99, %s101
      %p108 = scmp.eq.s32.totalorder %s23, 1
      %p109 = por %p107, %p108
      %p110 = scmp.ne.s32.totalorder %s101, %s102
      %p111 = scmp.eq.s32.totalorder %s23, 0
      %p112 = por %p110, %p111
      %p113 = scmp.ne.s32.totalorder %s101, %s102
      %p114 = scmp.eq.s32.totalorder %s24, 1
      %p115 = por %p113, %p114
      %p117 = scmp.ne.s32.totalorder %s102, %s116
      %p118 = scmp.eq.s32.totalorder %s24, 0
      %p119 = por %p117, %p118
      %s121 = sadd.s32 %s120, 1
      %p124 = scmp.eq.s32.totalorder %s18, 1
      %p125 = scmp.ne.s32.totalorder %s120, %s122
      %p126 = scmp.eq.s32.totalorder %s18, 0
      %p127 = por %p125, %p126
      %p128 = scmp.ne.s32.totalorder %s120, %s122
      %p129 = scmp.eq.s32.totalorder %s23, 1
      %p130 = por %p128, %p129
      %p131 = scmp.ne.s32.totalorder %s122, %s123
      %p132 = scmp.eq.s32.totalorder %s23, 0
      %p133 = por %p131, %p132
      %p134 = scmp.ne.s32.totalorder %s122, %s123
      %p135 = scmp.eq.s32.totalorder %s24, 1
      %p136 = por %p134, %p135
      %p138 = scmp.ne.s32.totalorder %s123, %s137
      %p139 = scmp.eq.s32.totalorder %s24, 0
      %p140 = por %p138, %p139
      %s142 = sadd.s32 %s141, 1
      %p145 = scmp.eq.s32.totalorder %s18, 1
      %p146 = scmp.ne.s32.totalorder %s141, %s143
      %p147 = scmp.eq.s32.totalorder %s18, 0
      %p148 = por %p146, %p147
      %p149 = scmp.ne.s32.totalorder %s141, %s143
      %p150 = scmp.eq.s32.totalorder %s23, 1
      %p151 = por %p149, %p150
      %p152 = scmp.ne.s32.totalorder %s143, %s144
      %p153 = scmp.eq.s32.totalorder %s23, 0
      %p154 = por %p152, %p153
      %p155 = scmp.ne.s32.totalorder %s143, %s144
      %p156 = scmp.eq.s32.totalorder %s24, 1
      %p157 = por %p155, %p156
      %p159 = scmp.ne.s32.totalorder %s144, %s158
      %p160 = scmp.eq.s32.totalorder %s24, 0
      %p161 = por %p159, %p160
      %s162 = ssub.s32 %s18, %s25
      %p163 = scmp.eq.s32.totalorder %s162, 0
      %s165 = sadd.s32 %s164, 1
      %s166 = scalar_select %p163, %s164, %s165
      %p169 = pneg %p163
      %p170 = scmp.eq.s32.totalorder %s18, 1
      %p171 = por %p169, %p170
      %p172 = scmp.ne.s32.totalorder %s164, %s167
      %p173 = scmp.eq.s32.totalorder %s18, 0
      %p174 = por %p172, %p173
      %p175 = scmp.ne.s32.totalorder %s164, %s167
      %p176 = scmp.eq.s32.totalorder %s23, 1
      %p177 = por %p175, %p176
      %p178 = scmp.ne.s32.totalorder %s167, %s168
      %p179 = scmp.eq.s32.totalorder %s23, 0
      %p180 = por %p178, %p179
      %p181 = scmp.ne.s32.totalorder %s167, %s168
      %p182 = scmp.eq.s32.totalorder %s24, 1
      %p183 = por %p181, %p182
      %p185 = scmp.ne.s32.totalorder %s168, %s184
      %p186 = scmp.eq.s32.totalorder %s24, 0
      %p187 = por %p185, %p186
      %p188 = scmp.le.s32.totalorder 1, %s18
      %p189 = scmp.lt.s32.totalorder %s18, 3
      %p190 = pnand %p188, %p189
      %p191 = pneg %p190
      // Predicated region
      $region9: #{tpu_custom_call.1} parent=5 // pred_check
        _
      $region10: #{tpu_custom_call.1} parent=5 // pred_check_branch
        %193 = sbr.rel (%p190) target = $region12
      $region11: #{tpu_custom_call.1} parent=5 // pred_region
        %s194 = ssub.s32 %s18, 1
        // Predicated region
        $region13: #{tpu_custom_call.1} parent=11 // pred_check
          %p195 = pneg %p91
        $region14: #{tpu_custom_call.1} parent=11 // pred_check_branch
          %197 = sbr.rel (%p195) target = $region16
        $region15: #{tpu_custom_call.1} parent=11 // pred_region
          _
        $region16: #{tpu_custom_call.1} parent=11 // pred_fallthru
          _
        // Predicated region
        $region17: #{tpu_custom_call.1} parent=11 // pred_check
          %p198 = pneg %p112
        $region18: #{tpu_custom_call.1} parent=11 // pred_check_branch
          %200 = sbr.rel (%p198) target = $region20
        $region19: #{tpu_custom_call.1} parent=11 // pred_region
          _
        $region20: #{tpu_custom_call.1} parent=11 // pred_fallthru
          _
        // Predicated region
        $region21: #{tpu_custom_call.1} parent=11 // pred_check
          %p201 = pneg %p133
        $region22: #{tpu_custom_call.1} parent=11 // pred_check_branch
          %203 = sbr.rel (%p201) target = $region24
        $region23: #{tpu_custom_call.1} parent=11 // pred_region
          _
        $region24: #{tpu_custom_call.1} parent=11 // pred_fallthru
          _
        // Predicated region
        $region25: #{tpu_custom_call.1} parent=11 // pred_check
          %p204 = pneg %p154
        $region26: #{tpu_custom_call.1} parent=11 // pred_check_branch
          %206 = sbr.rel (%p204) target = $region28
        $region27: #{tpu_custom_call.1} parent=11 // pred_region
          _
        $region28: #{tpu_custom_call.1} parent=11 // pred_fallthru
          _
      $region12: #{tpu_custom_call.1} parent=5 // pred_fallthru
        _
      %p207 = scmp.lt.s32.totalorder %s18, 2
      // Predicated region
      $region29: #{tpu_custom_call.1} parent=5 // pred_check
        %p208 = pneg %p207
      $region30: #{tpu_custom_call.1} parent=5 // pred_check_branch
        %210 = sbr.rel (%p208) target = $region32
      $region31: #{tpu_custom_call.1} parent=5 // pred_region
        // Predicated region
        $region33: #{tpu_custom_call.1} parent=31 // pred_check
          %p211 = pneg %p38
        $region34: #{tpu_custom_call.1} parent=31 // pred_check_branch
          %213 = sbr.rel (%p211) target = $region36
        $region35: #{tpu_custom_call.1} parent=31 // pred_region
          %s214 = sand.u32 %s28, 1
          %s215 = scalar_lea.sflag [#allocation3], %s214
          %s216 = sand.u32 %s28, 1
          %s217 = smul.addr %s216, 128
          %s218 = scalar_lea.vmem [#allocation2], %s217
          %s219 = smul.u32 16, %s18
          %s221 = ssub.s32 2048, 2048
          %222 = vsyncadd %s215, %s221
          %s223 = smul.addr %s219, 128
          %s224 = scalar_lea.hbm %s0, %s223
          %s225 = sshll.u32 %s218, 4
          %s226 = int_to_ptr.vmem [resolvable:$true] %s225
          %231 = dma.hbm_to_vmem [thread:$0]  %s224, 2048, %s226, %s215, 128, 128, 8
        $region36: #{tpu_custom_call.1} parent=31 // pred_fallthru
          _
        // Predicated region
        $region37: #{tpu_custom_call.1} parent=31 // pred_check
          %p232 = pneg %p64
        $region38: #{tpu_custom_call.1} parent=31 // pred_check_branch
          %234 = sbr.rel (%p232) target = $region40
        $region39: #{tpu_custom_call.1} parent=31 // pred_region
          %s235 = sand.u32 %s54, 1
          %s236 = scalar_lea.sflag [#allocation5], %s235
          %s237 = sand.u32 %s54, 1
          %s238 = smul.addr %s237, 128
          %s239 = scalar_lea.vmem [#allocation4], %s238
          %s240 = smul.u32 16, %s18
          %s242 = ssub.s32 2048, 2048
          %243 = vsyncadd %s236, %s242
          %s244 = smul.addr %s240, 128
          %s245 = scalar_lea.hbm %s1, %s244
          %s246 = sshll.u32 %s239, 4
          %s247 = int_to_ptr.vmem [resolvable:$true] %s246
          %252 = dma.hbm_to_vmem [thread:$0]  %s245, 2048, %s247, %s236, 128, 128, 8
        $region40: #{tpu_custom_call.1} parent=31 // pred_fallthru
          _
      $region32: #{tpu_custom_call.1} parent=5 // pred_fallthru
        _
      %p253 = scmp.le.s32.totalorder 1, %s18
      %p254 = scmp.lt.s32.totalorder %s18, 3
      %p255 = pnand %p253, %p254
      %p256 = pneg %p255
      // Predicated region
      $region41: #{tpu_custom_call.1} parent=5 // pred_check
        _
      $region42: #{tpu_custom_call.1} parent=5 // pred_check_branch
        %258 = sbr.rel (%p255) target = $region44
      $region43: #{tpu_custom_call.1} parent=5 // pred_region
        %s259 = ssub.s32 %s18, 1
        %s260 = sand.u32 %s31, 1
        %s261 = scalar_lea.sflag [#allocation3], %s260
        %s262 = sand.u32 %s31, 1
        %s263 = smul.addr %s262, 128
        %s264 = scalar_lea.vmem [#allocation2], %s263
        // Predicated region
        $region45: #{tpu_custom_call.1} parent=43 // pred_check
          %p265 = pneg %p44
        $region46: #{tpu_custom_call.1} parent=43 // pred_check_branch
          %267 = sbr.rel (%p265) target = $region48
        $region47: #{tpu_custom_call.1} parent=43 // pred_region
          %268 = dma.done %s261, 2048
        $region48: #{tpu_custom_call.1} parent=43 // pred_fallthru
          _
        %s269 = sand.u32 %s57, 1
        %s270 = scalar_lea.sflag [#allocation5], %s269
        %s271 = sand.u32 %s57, 1
        %s272 = smul.addr %s271, 128
        %s273 = scalar_lea.vmem [#allocation4], %s272
        // Predicated region
        $region49: #{tpu_custom_call.1} parent=43 // pred_check
          %p274 = pneg %p70
        $region50: #{tpu_custom_call.1} parent=43 // pred_check_branch
          %276 = sbr.rel (%p274) target = $region52
        $region51: #{tpu_custom_call.1} parent=43 // pred_region
          %277 = dma.done %s270, 2048
        $region52: #{tpu_custom_call.1} parent=43 // pred_fallthru
          _
        %s278 = sand.u32 %s31, 1
        %s279 = scalar_lea.sflag [#allocation3], %s278
        %s280 = sand.u32 %s31, 1
        %s281 = smul.addr %s280, 128
        %s282 = scalar_lea.vmem [#allocation2], %s281
        %p283 = pneg %p44
        %p284 = pneg %p41
        %s285 = sand.u32 %s57, 1
        %s286 = scalar_lea.sflag [#allocation5], %s285
        %s287 = sand.u32 %s57, 1
        %s288 = smul.addr %s287, 128
        %s289 = scalar_lea.vmem [#allocation4], %s288
        %p290 = pneg %p70
        %p291 = pneg %p67
        %p292 = pneg %p91
        %p293 = pneg %p88
        %p294 = pneg %p112
        %p295 = pneg %p109
        %p296 = pneg %p133
        %p297 = pneg %p130
        %p298 = pneg %p154
        %p299 = pneg %p151
        %p300 = pneg %p180
        %p301 = pneg %p177
        %s302 = smul.u32 16, %s23
        %p303 = scmp.lt.s32.totalorder %s302, 31
        %s304 = scalar_select %p303, %s302, 31
        %s305 = smul.addr %s304, 8
        %s306 = scalar_lea.vmem %s6, %s305
        %s307 = smul.u32 16, %s23
        %s308 = smul.u32 16, %s23
        %s309 = smul.u32 16, %s23
        %p310 = scmp.lt.s32.totalorder %s309, 31
        %s311 = scalar_select %p310, %s309, 31
        %s312 = smul.addr %s311, 8
        %s313 = scalar_lea.vmem %s6, %s312
        %s314 = smul.u32 16, %s23
        %v316 = vld [vmem:[%s264] sm:$0xff]
        %v317 = vld [vmem:[%s264 + $0x8] sm:$0xff]
        %v318 = vld [vmem:[%s264 + $0x10] sm:$0xff]
        %v319 = vld [vmem:[%s264 + $0x18] sm:$0xff]
        %v320 = vld [vmem:[%s264 + $0x20] sm:$0xff]
        %v321 = vld [vmem:[%s264 + $0x28] sm:$0xff]
        %v322 = vld [vmem:[%s264 + $0x30] sm:$0xff]
        %v323 = vld [vmem:[%s264 + $0x38] sm:$0xff]
        %v324 = vld [vmem:[%s264 + $0x40] sm:$0xff]
        %v325 = vld [vmem:[%s264 + $0x48] sm:$0xff]
        %v326 = vld [vmem:[%s264 + $0x50] sm:$0xff]
        %v327 = vld [vmem:[%s264 + $0x58] sm:$0xff]
        %v328 = vld [vmem:[%s264 + $0x60] sm:$0xff]
        %v329 = vld [vmem:[%s264 + $0x68] sm:$0xff]
        %v330 = vld [vmem:[%s264 + $0x70] sm:$0xff]
        %v331 = vld [vmem:[%s264 + $0x78] sm:$0xff]
        %v332 = vld [vmem:[%s273] sm:$0xff]
        %v333 = vld [vmem:[%s273 + $0x8] sm:$0xff]
        %v334 = vld [vmem:[%s273 + $0x10] sm:$0xff]
        %v335 = vld [vmem:[%s273 + $0x18] sm:$0xff]
        %v336 = vld [vmem:[%s273 + $0x20] sm:$0xff]
        %v337 = vld [vmem:[%s273 + $0x28] sm:$0xff]
        %v338 = vld [vmem:[%s273 + $0x30] sm:$0xff]
        %v339 = vld [vmem:[%s273 + $0x38] sm:$0xff]
        %v340 = vld [vmem:[%s273 + $0x40] sm:$0xff]
        %v341 = vld [vmem:[%s273 + $0x48] sm:$0xff]
        %v342 = vld [vmem:[%s273 + $0x50] sm:$0xff]
        %v343 = vld [vmem:[%s273 + $0x58] sm:$0xff]
        %v344 = vld [vmem:[%s273 + $0x60] sm:$0xff]
        %v345 = vld [vmem:[%s273 + $0x68] sm:$0xff]
        %v346 = vld [vmem:[%s273 + $0x70] sm:$0xff]
        %v347 = vld [vmem:[%s273 + $0x78] sm:$0xff]
        %v348 = vpack.c.bf16 %v317, %v316
        %v349 = vpack.c.bf16 %v319, %v318
        %v350 = vpack.c.bf16 %v321, %v320
        %v351 = vpack.c.bf16 %v323, %v322
        %v352 = vpack.c.bf16 %v325, %v324
        %v353 = vpack.c.bf16 %v327, %v326
        %v354 = vpack.c.bf16 %v329, %v328
        %v355 = vpack.c.bf16 %v331, %v330
        %v356 = vpack.c.bf16 %v333, %v332
        %v357 = vpack.c.bf16 %v335, %v334
        %v358 = vpack.c.bf16 %v337, %v336
        %v359 = vpack.c.bf16 %v339, %v338
        %v360 = vpack.c.bf16 %v341, %v340
        %v361 = vpack.c.bf16 %v343, %v342
        %v362 = vpack.c.bf16 %v345, %v344
        %v363 = vpack.c.bf16 %v347, %v346
        %v364 = vld [vmem:[%s2] sm:$0xff]
        %v365 = vld [vmem:[%s2 + $0x8] sm:$0xff]
        %v366 = vld [vmem:[%s2 + $0x10] sm:$0xff]
        %v367 = vld [vmem:[%s2 + $0x18] sm:$0xff]
        %v372 = vunpack.c.l.b16 %v364
        %v373 = vunpack.c.h.b16 %v364
        %v374 = vunpack.c.l.b16 %v365
        %v375 = vunpack.c.h.b16 %v365
        %v376 = vunpack.c.l.b16 %v366
        %v377 = vunpack.c.h.b16 %v366
        %v378 = vunpack.c.l.b16 %v367
        %v379 = vunpack.c.h.b16 %v367
        %v380 = vpack.c.b16 %v374, %v372
        %v381 = vpack.c.b16 %v375, %v373
        %v382 = vpack.c.b16 %v378, %v376
        %v383 = vpack.c.b16 %v379, %v377
        %vm388 = vcmask 261120
        %v390 = vsel %vm388, %v348, 0
        %v393 = vsel %vm388, %v349, 0
        %v396 = vsel %vm388, %v350, 0
        %v399 = vsel %vm388, %v351, 0
        %v402 = vsel %vm388, %v352, 0
        %v405 = vsel %vm388, %v353, 0
        %v408 = vsel %vm388, %v354, 0
        %v411 = vsel %vm388, %v355, 0
        %413 = vmatprep.subr.bf16.mxu0 %v381
        %414 = vmatpush1.bf16.msra.mxu0 %v380
        %415 = vmatprep.subr.bf16.mxu0 %v383
        %416 = vmatpush1.bf16.msra.mxu0 %v382
        %417 = vmatprep.subr.bf16.mxu0 0
        %418 = vmatpush1.bf16.msra.mxu0 0
        %419 = vmatprep.subr.bf16.mxu0 0
        %420 = vmatpush1.bf16.msra.mxu0 0
        %421 = vmatprep.subr.bf16.mxu0 0
        %422 = vmatpush1.bf16.msra.mxu0 0
        %423 = vmatprep.subr.bf16.mxu0 0
        %424 = vmatpush1.bf16.msra.mxu0 0
        %425 = vmatprep.subr.bf16.mxu0 0
        %426 = vmatpush1.bf16.msra.mxu0 0
        %427 = vmatprep.subr.bf16.mxu0 0
        %428 = vmatpush1.bf16.msra.mxu0 0
        %429 = vmatprep.subr.bf16.mxu0 0
        %430 = vmatpush1.bf16.msra.mxu0 0
        %431 = vmatprep.subr.bf16.mxu0 0
        %432 = vmatpush1.bf16.msra.mxu0 0
        %433 = vmatprep.subr.bf16.mxu0 0
        %434 = vmatpush1.bf16.msra.mxu0 0
        %435 = vmatprep.subr.bf16.mxu0 0
        %436 = vmatpush1.bf16.msra.mxu0 0
        %437 = vmatprep.subr.bf16.mxu0 0
        %438 = vmatpush1.bf16.msra.mxu0 0
        %439 = vmatprep.subr.bf16.mxu0 0
        %440 = vmatpush1.bf16.msra.mxu0 0
        %441 = vmatprep.subr.bf16.mxu0 0
        %442 = vmatpush1.bf16.msra.mxu0 0
        %443 = vmatprep.subr.bf16.mxu0 0
        %444 = vmatpush1.bf16.msra.mxu0 0
        %445 = vmatprep.mubr.bf16.mxu0 0
        %446 = vmatmul.mubr.bf16.gmra.mrb[0].mxu0 %v390
        %v447 = vpop.f32.mrb[0].mxu0
        %v448 = vadd.f32 0.0, %v447
        %v449 = vpop.f32.mrb[0].mxu0
        %v450 = vadd.f32 0.0, %v449
        %v451 = vpop.f32.mrb[0].mxu0
        %v452 = vadd.f32 0.0, %v451
        %v453 = vpop.f32.mrb[0].mxu0
        %v454 = vadd.f32 0.0, %v453
        %455 = vmatprep.mubr.bf16.mxu0 0
        %456 = vmatmul.mubr.bf16.gmra.mrb[0].mxu0 %v393
        %v457 = vpop.f32.mrb[0].mxu0
        %v458 = vadd.f32 0.0, %v457
        %v459 = vpop.f32.mrb[0].mxu0
        %v460 = vadd.f32 0.0, %v459
        %v461 = vpop.f32.mrb[0].mxu0
        %v462 = vadd.f32 0.0, %v461
        %v463 = vpop.f32.mrb[0].mxu0
        %v464 = vadd.f32 0.0, %v463
        %465 = vmatprep.mubr.bf16.mxu0 0
        %466 = vmatmul.mubr.bf16.gmra.mrb[0].mxu0 %v396
        %v467 = vpop.f32.mrb[0].mxu0
        %v468 = vadd.f32 0.0, %v467
        %v469 = vpop.f32.mrb[0].mxu0
        %v470 = vadd.f32 0.0, %v469
        %v471 = vpop.f32.mrb[0].mxu0
        %v472 = vadd.f32 0.0, %v471
        %v473 = vpop.f32.mrb[0].mxu0
        %v474 = vadd.f32 0.0, %v473
        %475 = vmatprep.mubr.bf16.mxu0 0
        %476 = vmatmul.mubr.bf16.gmra.mrb[0].mxu0 %v399
        %v477 = vpop.f32.mrb[0].mxu0
        %v478 = vadd.f32 0.0, %v477
        %v479 = vpop.f32.mrb[0].mxu0
        %v480 = vadd.f32 0.0, %v479
        %v481 = vpop.f32.mrb[0].mxu0
        %v482 = vadd.f32 0.0, %v481
        %v483 = vpop.f32.mrb[0].mxu0
        %v484 = vadd.f32 0.0, %v483
        %485 = vmatprep.mubr.bf16.mxu0 0
        %486 = vmatmul.mubr.bf16.gmra.mrb[0].mxu0 %v402
        %v487 = vpop.f32.mrb[0].mxu0
        %v488 = vadd.f32 0.0, %v487
        %v489 = vpop.f32.mrb[0].mxu0
        %v490 = vadd.f32 0.0, %v489
        %v491 = vpop.f32.mrb[0].mxu0
        %v492 = vadd.f32 0.0, %v491
        %v493 = vpop.f32.mrb[0].mxu0
        %v494 = vadd.f32 0.0, %v493
        %495 = vmatprep.mubr.bf16.mxu0 0
        %496 = vmatmul.mubr.bf16.gmra.mrb[0].mxu0 %v405
        %v497 = vpop.f32.mrb[0].mxu0
        %v498 = vadd.f32 0.0, %v497
        %v499 = vpop.f32.mrb[0].mxu0
        %v500 = vadd.f32 0.0, %v499
        %v501 = vpop.f32.mrb[0].mxu0
        %v502 = vadd.f32 0.0, %v501
        %v503 = vpop.f32.mrb[0].mxu0
        %v504 = vadd.f32 0.0, %v503
        %505 = vmatprep.mubr.bf16.mxu0 0
        %506 = vmatmul.mubr.bf16.gmra.mrb[0].mxu0 %v408
        %v507 = vpop.f32.mrb[0].mxu0
        %v508 = vadd.f32 0.0, %v507
        %v509 = vpop.f32.mrb[0].mxu0
        %v510 = vadd.f32 0.0, %v509
        %v511 = vpop.f32.mrb[0].mxu0
        %v512 = vadd.f32 0.0, %v511
        %v513 = vpop.f32.mrb[0].mxu0
        %v514 = vadd.f32 0.0, %v513
        %515 = vmatprep.mubr.bf16.mxu0 0
        %516 = vmatmul.mubr.bf16.gmra.mrb[0].mxu0 %v411
        %v517 = vpop.f32.mrb[0].mxu0
        %v518 = vadd.f32 0.0, %v517
        %v519 = vpop.f32.mrb[0].mxu0
        %v520 = vadd.f32 0.0, %v519
        %v521 = vpop.f32.mrb[0].mxu0
        %v522 = vadd.f32 0.0, %v521
        %v523 = vpop.f32.mrb[0].mxu0
        %v524 = vadd.f32 0.0, %v523
        %525 = vdwg.mxu0
        %v526 = vld [vmem:[%s3] sm:$0xff]
        %v527 = vld [vmem:[%s3 + $0x8] sm:$0xff]
        %v528 = vld [vmem:[%s3 + $0x10] sm:$0xff]
        %v529 = vld [vmem:[%s3 + $0x18] sm:$0xff]
        %v534 = vunpack.c.l.b16 %v526
        %v535 = vunpack.c.h.b16 %v526
        %v536 = vunpack.c.l.b16 %v527
        %v537 = vunpack.c.h.b16 %v527
        %v538 = vunpack.c.l.b16 %v528
        %v539 = vunpack.c.h.b16 %v528
        %v540 = vunpack.c.l.b16 %v529
        %v541 = vunpack.c.h.b16 %v529
        %v542 = vpack.c.b16 %v536, %v534
        %v543 = vpack.c.b16 %v537, %v535
        %v544 = vpack.c.b16 %v540, %v538
        %v545 = vpack.c.b16 %v541, %v539
        %v551 = vsel %vm388, %v356, 0
        %v554 = vsel %vm388, %v357, 0
        %v557 = vsel %vm388, %v358, 0
        %v560 = vsel %vm388, %v359, 0
        %v563 = vsel %vm388, %v360, 0
        %v566 = vsel %vm388, %v361, 0
        %v569 = vsel %vm388, %v362, 0
        %v572 = vsel %vm388, %v363, 0
        %574 = vmatprep.subr.bf16.mxu0 %v543
        %575 = vmatpush1.bf16.msra.mxu0 %v542
        %576 = vmatprep.subr.bf16.mxu0 %v545
        %577 = vmatpush1.bf16.msra.mxu0 %v544
        %578 = vmatprep.subr.bf16.mxu0 0
        %579 = vmatpush1.bf16.msra.mxu0 0
        %580 = vmatprep.subr.bf16.mxu0 0
        %581 = vmatpush1.bf16.msra.mxu0 0
        %582 = vmatprep.subr.bf16.mxu0 0
        %583 = vmatpush1.bf16.msra.mxu0 0
        %584 = vmatprep.subr.bf16.mxu0 0
        %585 = vmatpush1.bf16.msra.mxu0 0
        %586 = vmatprep.subr.bf16.mxu0 0
        %587 = vmatpush1.bf16.msra.mxu0 0
        %588 = vmatprep.subr.bf16.mxu0 0
        %589 = vmatpush1.bf16.msra.mxu0 0
        %590 = vmatprep.subr.bf16.mxu0 0
        %591 = vmatpush1.bf16.msra.mxu0 0
        %592 = vmatprep.subr.bf16.mxu0 0
        %593 = vmatpush1.bf16.msra.mxu0 0
        %594 = vmatprep.subr.bf16.mxu0 0
        %595 = vmatpush1.bf16.msra.mxu0 0
        %596 = vmatprep.subr.bf16.mxu0 0
        %597 = vmatpush1.bf16.msra.mxu0 0
        %598 = vmatprep.subr.bf16.mxu0 0
        %599 = vmatpush1.bf16.msra.mxu0 0
        %600 = vmatprep.subr.bf16.mxu0 0
        %601 = vmatpush1.bf16.msra.mxu0 0
        %602 = vmatprep.subr.bf16.mxu0 0
        %603 = vmatpush1.bf16.msra.mxu0 0
        %604 = vmatprep.subr.bf16.mxu0 0
        %605 = vmatpush1.bf16.msra.mxu0 0
        %606 = vmatprep.mubr.bf16.mxu0 0
        %607 = vmatmul.mubr.bf16.gmra.mrb[0].mxu0 %v551
        %v608 = vpop.f32.mrb[0].mxu0
        %v609 = vadd.f32 0.0, %v608
        %v610 = vpop.f32.mrb[0].mxu0
        %v611 = vadd.f32 0.0, %v610
        %v612 = vpop.f32.mrb[0].mxu0
        %v613 = vadd.f32 0.0, %v612
        %v614 = vpop.f32.mrb[0].mxu0
        %v615 = vadd.f32 0.0, %v614
        %616 = vmatprep.mubr.bf16.mxu0 0
        %617 = vmatmul.mubr.bf16.gmra.mrb[0].mxu0 %v554
        %v618 = vpop.f32.mrb[0].mxu0
        %v619 = vadd.f32 0.0, %v618
        %v620 = vpop.f32.mrb[0].mxu0
        %v621 = vadd.f32 0.0, %v620
        %v622 = vpop.f32.mrb[0].mxu0
        %v623 = vadd.f32 0.0, %v622
        %v624 = vpop.f32.mrb[0].mxu0
        %v625 = vadd.f32 0.0, %v624
        %626 = vmatprep.mubr.bf16.mxu0 0
        %627 = vmatmul.mubr.bf16.gmra.mrb[0].mxu0 %v557
        %v628 = vpop.f32.mrb[0].mxu0
        %v629 = vadd.f32 0.0, %v628
        %v630 = vpop.f32.mrb[0].mxu0
        %v631 = vadd.f32 0.0, %v630
        %v632 = vpop.f32.mrb[0].mxu0
        %v633 = vadd.f32 0.0, %v632
        %v634 = vpop.f32.mrb[0].mxu0
        %v635 = vadd.f32 0.0, %v634
        %636 = vmatprep.mubr.bf16.mxu0 0
        %637 = vmatmul.mubr.bf16.gmra.mrb[0].mxu0 %v560
        %v638 = vpop.f32.mrb[0].mxu0
        %v639 = vadd.f32 0.0, %v638
        %v640 = vpop.f32.mrb[0].mxu0
        %v641 = vadd.f32 0.0, %v640
        %v642 = vpop.f32.mrb[0].mxu0
        %v643 = vadd.f32 0.0, %v642
        %v644 = vpop.f32.mrb[0].mxu0
        %v645 = vadd.f32 0.0, %v644
        %646 = vmatprep.mubr.bf16.mxu0 0
        %647 = vmatmul.mubr.bf16.gmra.mrb[0].mxu0 %v563
        %v648 = vpop.f32.mrb[0].mxu0
        %v649 = vadd.f32 0.0, %v648
        %v650 = vpop.f32.mrb[0].mxu0
        %v651 = vadd.f32 0.0, %v650
        %v652 = vpop.f32.mrb[0].mxu0
        %v653 = vadd.f32 0.0, %v652
        %v654 = vpop.f32.mrb[0].mxu0
        %v655 = vadd.f32 0.0, %v654
        %656 = vmatprep.mubr.bf16.mxu0 0
        %657 = vmatmul.mubr.bf16.gmra.mrb[0].mxu0 %v566
        %v658 = vpop.f32.mrb[0].mxu0
        %v659 = vadd.f32 0.0, %v658
        %v660 = vpop.f32.mrb[0].mxu0
        %v661 = vadd.f32 0.0, %v660
        %v662 = vpop.f32.mrb[0].mxu0
        %v663 = vadd.f32 0.0, %v662
        %v664 = vpop.f32.mrb[0].mxu0
        %v665 = vadd.f32 0.0, %v664
        %666 = vmatprep.mubr.bf16.mxu0 0
        %667 = vmatmul.mubr.bf16.gmra.mrb[0].mxu0 %v569
        %v668 = vpop.f32.mrb[0].mxu0
        %v669 = vadd.f32 0.0, %v668
        %v670 = vpop.f32.mrb[0].mxu0
        %v671 = vadd.f32 0.0, %v670
        %v672 = vpop.f32.mrb[0].mxu0
        %v673 = vadd.f32 0.0, %v672
        %v674 = vpop.f32.mrb[0].mxu0
        %v675 = vadd.f32 0.0, %v674
        %676 = vmatprep.mubr.bf16.mxu0 0
        %677 = vmatmul.mubr.bf16.gmra.mrb[0].mxu0 %v572
        %v678 = vpop.f32.mrb[0].mxu0
        %v679 = vadd.f32 0.0, %v678
        %v680 = vpop.f32.mrb[0].mxu0
        %v681 = vadd.f32 0.0, %v680
        %v682 = vpop.f32.mrb[0].mxu0
        %v683 = vadd.f32 0.0, %v682
        %v684 = vpop.f32.mrb[0].mxu0
        %v685 = vadd.f32 0.0, %v684
        %686 = vdwg.mxu0
        %v687 = vlaneseq
        %v688 = vshrl.u32 %v687, 7
        %vm689 = vcmp.eq.s32.totalorder %v688, 0
        %v690 = vsel %vm388, %v332, 0.0
        %691 = vadd.xlane.f32.xlu0 %v690
        %v692 = vpop.xlane.xlu0 %691
        %v693 = vsel %vm388, %v333, 0.0
        %694 = vadd.xlane.f32.xlu0 %v693
        %v695 = vpop.xlane.xlu0 %694
        %v696 = vsel %vm388, %v334, 0.0
        %697 = vadd.xlane.f32.xlu0 %v696
        %v698 = vpop.xlane.xlu0 %697
        %v699 = vsel %vm388, %v335, 0.0
        %700 = vadd.xlane.f32.xlu0 %v699
        %v701 = vpop.xlane.xlu0 %700
        %v702 = vsel %vm388, %v336, 0.0
        %703 = vadd.xlane.f32.xlu0 %v702
        %v704 = vpop.xlane.xlu0 %703
        %v705 = vsel %vm388, %v337, 0.0
        %706 = vadd.xlane.f32.xlu0 %v705
        %v707 = vpop.xlane.xlu0 %706
        %v708 = vsel %vm388, %v338, 0.0
        %709 = vadd.xlane.f32.xlu0 %v708
        %v710 = vpop.xlane.xlu0 %709
        %v711 = vsel %vm388, %v339, 0.0
        %712 = vadd.xlane.f32.xlu0 %v711
        %v713 = vpop.xlane.xlu0 %712
        %v714 = vsel %vm388, %v340, 0.0
        %715 = vadd.xlane.f32.xlu0 %v714
        %v716 = vpop.xlane.xlu0 %715
        %v717 = vsel %vm388, %v341, 0.0
        %718 = vadd.xlane.f32.xlu0 %v717
        %v719 = vpop.xlane.xlu0 %718
        %v720 = vsel %vm388, %v342, 0.0
        %721 = vadd.xlane.f32.xlu0 %v720
        %v722 = vpop.xlane.xlu0 %721
        %v723 = vsel %vm388, %v343, 0.0
        %724 = vadd.xlane.f32.xlu0 %v723
        %v725 = vpop.xlane.xlu0 %724
        %v726 = vsel %vm388, %v344, 0.0
        %727 = vadd.xlane.f32.xlu0 %v726
        %v728 = vpop.xlane.xlu0 %727
        %v729 = vsel %vm388, %v345, 0.0
        %730 = vadd.xlane.f32.xlu0 %v729
        %v731 = vpop.xlane.xlu0 %730
        %v732 = vsel %vm388, %v346, 0.0
        %733 = vadd.xlane.f32.xlu0 %v732
        %v734 = vpop.xlane.xlu0 %733
        %v735 = vsel %vm388, %v347, 0.0
        %736 = vadd.xlane.f32.xlu0 %v735
        %v737 = vpop.xlane.xlu0 %736
        %v738 = vrcp.pop 32.0
        %v739 = vmul.f32 %v692, %v738
        %v740 = vmul.f32 %v695, %v738
        %v741 = vmul.f32 %v698, %v738
        %v742 = vmul.f32 %v701, %v738
        %v743 = vmul.f32 %v704, %v738
        %v744 = vmul.f32 %v707, %v738
        %v745 = vmul.f32 %v710, %v738
        %v746 = vmul.f32 %v713, %v738
        %v747 = vmul.f32 %v716, %v738
        %v748 = vmul.f32 %v719, %v738
        %v749 = vmul.f32 %v722, %v738
        %v750 = vmul.f32 %v725, %v738
        %v751 = vmul.f32 %v728, %v738
        %v752 = vmul.f32 %v731, %v738
        %v753 = vmul.f32 %v734, %v738
        %v754 = vmul.f32 %v737, %v738
        %vm755 = vcmp.gt.f32.partialorder %v739, 0.0
        %vm756 = vcmp.gt.f32.partialorder %v740, 0.0
        %vm757 = vcmp.gt.f32.partialorder %v741, 0.0
        %vm758 = vcmp.gt.f32.partialorder %v742, 0.0
        %vm759 = vcmp.gt.f32.partialorder %v743, 0.0
        %vm760 = vcmp.gt.f32.partialorder %v744, 0.0
        %vm761 = vcmp.gt.f32.partialorder %v745, 0.0
        %vm762 = vcmp.gt.f32.partialorder %v746, 0.0
        %vm763 = vcmp.gt.f32.partialorder %v747, 0.0
        %vm764 = vcmp.gt.f32.partialorder %v748, 0.0
        %vm765 = vcmp.gt.f32.partialorder %v749, 0.0
        %vm766 = vcmp.gt.f32.partialorder %v750, 0.0
        %vm767 = vcmp.gt.f32.partialorder %v751, 0.0
        %vm768 = vcmp.gt.f32.partialorder %v752, 0.0
        %vm769 = vcmp.gt.f32.partialorder %v753, 0.0
        %vm770 = vcmp.gt.f32.partialorder %v754, 0.0
        %v771 = vsel %vm755, 1, 0
        %v772 = vsel %vm756, 1, 0
        %v773 = vsel %vm757, 1, 0
        %v774 = vsel %vm758, 1, 0
        %v775 = vsel %vm759, 1, 0
        %v776 = vsel %vm760, 1, 0
        %v777 = vsel %vm761, 1, 0
        %v778 = vsel %vm762, 1, 0
        %v779 = vsel %vm763, 1, 0
        %v780 = vsel %vm764, 1, 0
        %v781 = vsel %vm765, 1, 0
        %v782 = vsel %vm766, 1, 0
        %v783 = vsel %vm767, 1, 0
        %v784 = vsel %vm768, 1, 0
        %v785 = vsel %vm769, 1, 0
        %v786 = vsel %vm770, 1, 0
        %v787 = vcvt.s32.f32 %v771
        %v788 = vcvt.s32.f32 %v772
        %v789 = vcvt.s32.f32 %v773
        %v790 = vcvt.s32.f32 %v774
        %v791 = vcvt.s32.f32 %v775
        %v792 = vcvt.s32.f32 %v776
        %v793 = vcvt.s32.f32 %v777
        %v794 = vcvt.s32.f32 %v778
        %v795 = vcvt.s32.f32 %v779
        %v796 = vcvt.s32.f32 %v780
        %v797 = vcvt.s32.f32 %v781
        %v798 = vcvt.s32.f32 %v782
        %v799 = vcvt.s32.f32 %v783
        %v800 = vcvt.s32.f32 %v784
        %v801 = vcvt.s32.f32 %v785
        %v802 = vcvt.s32.f32 %v786
        %v803 = vsel %vm689, 1.0, %v787
        %v804 = vsel %vm689, 1.0, %v788
        %v805 = vsel %vm689, 1.0, %v789
        %v806 = vsel %vm689, 1.0, %v790
        %v807 = vsel %vm689, 1.0, %v791
        %v808 = vsel %vm689, 1.0, %v792
        %v809 = vsel %vm689, 1.0, %v793
        %v810 = vsel %vm689, 1.0, %v794
        %v811 = vsel %vm689, 1.0, %v795
        %v812 = vsel %vm689, 1.0, %v796
        %v813 = vsel %vm689, 1.0, %v797
        %v814 = vsel %vm689, 1.0, %v798
        %v815 = vsel %vm689, 1.0, %v799
        %v816 = vsel %vm689, 1.0, %v800
        %v817 = vsel %vm689, 1.0, %v801
        %v818 = vsel %vm689, 1.0, %v802
        %v819 = vrot.slane %v609, 4
        %v820 = vmax.f32 %v609, %v819
        %v821 = vrot.slane %v820, 2
        %v822 = vmax.f32 %v820, %v821
        %v823 = vrot.slane %v822, 1
        %v824 = vmax.f32 %v822, %v823
        %vm825 = vcmask 523264
        %v826 = vsel %vm825, %v611, -inf
        %v827 = vrot.slane %v826, 4
        %v828 = vmax.f32 %v826, %v827
        %v829 = vrot.slane %v828, 2
        %v830 = vmax.f32 %v828, %v829
        %v831 = vrot.slane %v830, 1
        %v832 = vmax.f32 %v830, %v831
        %v833 = vrot.slane %v613, 4
        %v834 = vmax.f32 %v613, %v833
        %v835 = vrot.slane %v834, 2
        %v836 = vmax.f32 %v834, %v835
        %v837 = vrot.slane %v836, 1
        %v838 = vmax.f32 %v836, %v837
        %v839 = vsel %vm825, %v615, -inf
        %v840 = vrot.slane %v839, 4
        %v841 = vmax.f32 %v839, %v840
        %v842 = vrot.slane %v841, 2
        %v843 = vmax.f32 %v841, %v842
        %v844 = vrot.slane %v843, 1
        %v845 = vmax.f32 %v843, %v844
        %v846 = vrot.slane %v619, 4
        %v847 = vmax.f32 %v619, %v846
        %v848 = vrot.slane %v847, 2
        %v849 = vmax.f32 %v847, %v848
        %v850 = vrot.slane %v849, 1
        %v851 = vmax.f32 %v849, %v850
        %v852 = vsel %vm825, %v621, -inf
        %v853 = vrot.slane %v852, 4
        %v854 = vmax.f32 %v852, %v853
        %v855 = vrot.slane %v854, 2
        %v856 = vmax.f32 %v854, %v855
        %v857 = vrot.slane %v856, 1
        %v858 = vmax.f32 %v856, %v857
        %v859 = vrot.slane %v623, 4
        %v860 = vmax.f32 %v623, %v859
        %v861 = vrot.slane %v860, 2
        %v862 = vmax.f32 %v860, %v861
        %v863 = vrot.slane %v862, 1
        %v864 = vmax.f32 %v862, %v863
        %v865 = vsel %vm825, %v625, -inf
        %v866 = vrot.slane %v865, 4
        %v867 = vmax.f32 %v865, %v866
        %v868 = vrot.slane %v867, 2
        %v869 = vmax.f32 %v867, %v868
        %v870 = vrot.slane %v869, 1
        %v871 = vmax.f32 %v869, %v870
        %v872 = vrot.slane %v629, 4
        %v873 = vmax.f32 %v629, %v872
        %v874 = vrot.slane %v873, 2
        %v875 = vmax.f32 %v873, %v874
        %v876 = vrot.slane %v875, 1
        %v877 = vmax.f32 %v875, %v876
        %v878 = vsel %vm825, %v631, -inf
        %v879 = vrot.slane %v878, 4
        %v880 = vmax.f32 %v878, %v879
        %v881 = vrot.slane %v880, 2
        %v882 = vmax.f32 %v880, %v881
        %v883 = vrot.slane %v882, 1
        %v884 = vmax.f32 %v882, %v883
        %v885 = vrot.slane %v633, 4
        %v886 = vmax.f32 %v633, %v885
        %v887 = vrot.slane %v886, 2
        %v888 = vmax.f32 %v886, %v887
        %v889 = vrot.slane %v888, 1
        %v890 = vmax.f32 %v888, %v889
        %v891 = vsel %vm825, %v635, -inf
        %v892 = vrot.slane %v891, 4
        %v893 = vmax.f32 %v891, %v892
        %v894 = vrot.slane %v893, 2
        %v895 = vmax.f32 %v893, %v894
        %v896 = vrot.slane %v895, 1
        %v897 = vmax.f32 %v895, %v896
        %v898 = vrot.slane %v639, 4
        %v899 = vmax.f32 %v639, %v898
        %v900 = vrot.slane %v899, 2
        %v901 = vmax.f32 %v899, %v900
        %v902 = vrot.slane %v901, 1
        %v903 = vmax.f32 %v901, %v902
        %v904 = vsel %vm825, %v641, -inf
        %v905 = vrot.slane %v904, 4
        %v906 = vmax.f32 %v904, %v905
        %v907 = vrot.slane %v906, 2
        %v908 = vmax.f32 %v906, %v907
        %v909 = vrot.slane %v908, 1
        %v910 = vmax.f32 %v908, %v909
        %v911 = vrot.slane %v643, 4
        %v912 = vmax.f32 %v643, %v911
        %v913 = vrot.slane %v912, 2
        %v914 = vmax.f32 %v912, %v913
        %v915 = vrot.slane %v914, 1
        %v916 = vmax.f32 %v914, %v915
        %v917 = vsel %vm825, %v645, -inf
        %v918 = vrot.slane %v917, 4
        %v919 = vmax.f32 %v917, %v918
        %v920 = vrot.slane %v919, 2
        %v921 = vmax.f32 %v919, %v920
        %v922 = vrot.slane %v921, 1
        %v923 = vmax.f32 %v921, %v922
        %v924 = vrot.slane %v649, 4
        %v925 = vmax.f32 %v649, %v924
        %v926 = vrot.slane %v925, 2
        %v927 = vmax.f32 %v925, %v926
        %v928 = vrot.slane %v927, 1
        %v929 = vmax.f32 %v927, %v928
        %v930 = vsel %vm825, %v651, -inf
        %v931 = vrot.slane %v930, 4
        %v932 = vmax.f32 %v930, %v931
        %v933 = vrot.slane %v932, 2
        %v934 = vmax.f32 %v932, %v933
        %v935 = vrot.slane %v934, 1
        %v936 = vmax.f32 %v934, %v935
        %v937 = vrot.slane %v653, 4
        %v938 = vmax.f32 %v653, %v937
        %v939 = vrot.slane %v938, 2
        %v940 = vmax.f32 %v938, %v939
        %v941 = vrot.slane %v940, 1
        %v942 = vmax.f32 %v940, %v941
        %v943 = vsel %vm825, %v655, -inf
        %v944 = vrot.slane %v943, 4
        %v945 = vmax.f32 %v943, %v944
        %v946 = vrot.slane %v945, 2
        %v947 = vmax.f32 %v945, %v946
        %v948 = vrot.slane %v947, 1
        %v949 = vmax.f32 %v947, %v948
        %v950 = vrot.slane %v659, 4
        %v951 = vmax.f32 %v659, %v950
        %v952 = vrot.slane %v951, 2
        %v953 = vmax.f32 %v951, %v952
        %v954 = vrot.slane %v953, 1
        %v955 = vmax.f32 %v953, %v954
        %v956 = vsel %vm825, %v661, -inf
        %v957 = vrot.slane %v956, 4
        %v958 = vmax.f32 %v956, %v957
        %v959 = vrot.slane %v958, 2
        %v960 = vmax.f32 %v958, %v959
        %v961 = vrot.slane %v960, 1
        %v962 = vmax.f32 %v960, %v961
        %v963 = vrot.slane %v663, 4
        %v964 = vmax.f32 %v663, %v963
        %v965 = vrot.slane %v964, 2
        %v966 = vmax.f32 %v964, %v965
        %v967 = vrot.slane %v966, 1
        %v968 = vmax.f32 %v966, %v967
        %v969 = vsel %vm825, %v665, -inf
        %v970 = vrot.slane %v969, 4
        %v971 = vmax.f32 %v969, %v970
        %v972 = vrot.slane %v971, 2
        %v973 = vmax.f32 %v971, %v972
        %v974 = vrot.slane %v973, 1
        %v975 = vmax.f32 %v973, %v974
        %v976 = vrot.slane %v669, 4
        %v977 = vmax.f32 %v669, %v976
        %v978 = vrot.slane %v977, 2
        %v979 = vmax.f32 %v977, %v978
        %v980 = vrot.slane %v979, 1
        %v981 = vmax.f32 %v979, %v980
        %v982 = vsel %vm825, %v671, -inf
        %v983 = vrot.slane %v982, 4
        %v984 = vmax.f32 %v982, %v983
        %v985 = vrot.slane %v984, 2
        %v986 = vmax.f32 %v984, %v985
        %v987 = vrot.slane %v986, 1
        %v988 = vmax.f32 %v986, %v987
        %v989 = vrot.slane %v673, 4
        %v990 = vmax.f32 %v673, %v989
        %v991 = vrot.slane %v990, 2
        %v992 = vmax.f32 %v990, %v991
        %v993 = vrot.slane %v992, 1
        %v994 = vmax.f32 %v992, %v993
        %v995 = vsel %vm825, %v675, -inf
        %v996 = vrot.slane %v995, 4
        %v997 = vmax.f32 %v995, %v996
        %v998 = vrot.slane %v997, 2
        %v999 = vmax.f32 %v997, %v998
        %v1000 = vrot.slane %v999, 1
        %v1001 = vmax.f32 %v999, %v1000
        %v1002 = vrot.slane %v679, 4
        %v1003 = vmax.f32 %v679, %v1002
        %v1004 = vrot.slane %v1003, 2
        %v1005 = vmax.f32 %v1003, %v1004
        %v1006 = vrot.slane %v1005, 1
        %v1007 = vmax.f32 %v1005, %v1006
        %v1008 = vsel %vm825, %v681, -inf
        %v1009 = vrot.slane %v1008, 4
        %v1010 = vmax.f32 %v1008, %v1009
        %v1011 = vrot.slane %v1010, 2
        %v1012 = vmax.f32 %v1010, %v1011
        %v1013 = vrot.slane %v1012, 1
        %v1014 = vmax.f32 %v1012, %v1013
        %v1015 = vrot.slane %v683, 4
        %v1016 = vmax.f32 %v683, %v1015
        %v1017 = vrot.slane %v1016, 2
        %v1018 = vmax.f32 %v1016, %v1017
        %v1019 = vrot.slane %v1018, 1
        %v1020 = vmax.f32 %v1018, %v1019
        %v1021 = vsel %vm825, %v685, -inf
        %v1022 = vrot.slane %v1021, 4
        %v1023 = vmax.f32 %v1021, %v1022
        %v1024 = vrot.slane %v1023, 2
        %v1025 = vmax.f32 %v1023, %v1024
        %v1026 = vrot.slane %v1025, 1
        %v1027 = vmax.f32 %v1025, %v1026
        %v1028 = vadd.f32 %v824, 1e-06
        %v1029 = vadd.f32 %v832, 1e-06
        %v1030 = vadd.f32 %v838, 1e-06
        %v1031 = vadd.f32 %v845, 1e-06
        %v1032 = vadd.f32 %v851, 1e-06
        %v1033 = vadd.f32 %v858, 1e-06
        %v1034 = vadd.f32 %v864, 1e-06
        %v1035 = vadd.f32 %v871, 1e-06
        %v1036 = vadd.f32 %v877, 1e-06
        %v1037 = vadd.f32 %v884, 1e-06
        %v1038 = vadd.f32 %v890, 1e-06
        %v1039 = vadd.f32 %v897, 1e-06
        %v1040 = vadd.f32 %v903, 1e-06
        %v1041 = vadd.f32 %v910, 1e-06
        %v1042 = vadd.f32 %v916, 1e-06
        %v1043 = vadd.f32 %v923, 1e-06
        %v1044 = vadd.f32 %v929, 1e-06
        %v1045 = vadd.f32 %v936, 1e-06
        %v1046 = vadd.f32 %v942, 1e-06
        %v1047 = vadd.f32 %v949, 1e-06
        %v1048 = vadd.f32 %v955, 1e-06
        %v1049 = vadd.f32 %v962, 1e-06
        %v1050 = vadd.f32 %v968, 1e-06
        %v1051 = vadd.f32 %v975, 1e-06
        %v1052 = vadd.f32 %v981, 1e-06
        %v1053 = vadd.f32 %v988, 1e-06
        %v1054 = vadd.f32 %v994, 1e-06
        %v1055 = vadd.f32 %v1001, 1e-06
        %v1056 = vadd.f32 %v1007, 1e-06
        %v1057 = vadd.f32 %v1014, 1e-06
        %v1058 = vadd.f32 %v1020, 1e-06
        %v1059 = vadd.f32 %v1027, 1e-06
        %v1060 = vrcp.pop %v1028
        %v1061 = vmul.f32 1.0, %v1060
        %v1062 = vrcp.pop %v1029
        %v1063 = vmul.f32 1.0, %v1062
        %v1064 = vrcp.pop %v1030
        %v1065 = vmul.f32 1.0, %v1064
        %v1066 = vrcp.pop %v1031
        %v1067 = vmul.f32 1.0, %v1066
        %v1068 = vrcp.pop %v1032
        %v1069 = vmul.f32 1.0, %v1068
        %v1070 = vrcp.pop %v1033
        %v1071 = vmul.f32 1.0, %v1070
        %v1072 = vrcp.pop %v1034
        %v1073 = vmul.f32 1.0, %v1072
        %v1074 = vrcp.pop %v1035
        %v1075 = vmul.f32 1.0, %v1074
        %v1076 = vrcp.pop %v1036
        %v1077 = vmul.f32 1.0, %v1076
        %v1078 = vrcp.pop %v1037
        %v1079 = vmul.f32 1.0, %v1078
        %v1080 = vrcp.pop %v1038
        %v1081 = vmul.f32 1.0, %v1080
        %v1082 = vrcp.pop %v1039
        %v1083 = vmul.f32 1.0, %v1082
        %v1084 = vrcp.pop %v1040
        %v1085 = vmul.f32 1.0, %v1084
        %v1086 = vrcp.pop %v1041
        %v1087 = vmul.f32 1.0, %v1086
        %v1088 = vrcp.pop %v1042
        %v1089 = vmul.f32 1.0, %v1088
        %v1090 = vrcp.pop %v1043
        %v1091 = vmul.f32 1.0, %v1090
        %v1092 = vrcp.pop %v1044
        %v1093 = vmul.f32 1.0, %v1092
        %v1094 = vrcp.pop %v1045
        %v1095 = vmul.f32 1.0, %v1094
        %v1096 = vrcp.pop %v1046
        %v1097 = vmul.f32 1.0, %v1096
        %v1098 = vrcp.pop %v1047
        %v1099 = vmul.f32 1.0, %v1098
        %v1100 = vrcp.pop %v1048
        %v1101 = vmul.f32 1.0, %v1100
        %v1102 = vrcp.pop %v1049
        %v1103 = vmul.f32 1.0, %v1102
        %v1104 = vrcp.pop %v1050
        %v1105 = vmul.f32 1.0, %v1104
        %v1106 = vrcp.pop %v1051
        %v1107 = vmul.f32 1.0, %v1106
        %v1108 = vrcp.pop %v1052
        %v1109 = vmul.f32 1.0, %v1108
        %v1110 = vrcp.pop %v1053
        %v1111 = vmul.f32 1.0, %v1110
        %v1112 = vrcp.pop %v1054
        %v1113 = vmul.f32 1.0, %v1112
        %v1114 = vrcp.pop %v1055
        %v1115 = vmul.f32 1.0, %v1114
        %v1116 = vrcp.pop %v1056
        %v1117 = vmul.f32 1.0, %v1116
        %v1118 = vrcp.pop %v1057
        %v1119 = vmul.f32 1.0, %v1118
        %v1120 = vrcp.pop %v1058
        %v1121 = vmul.f32 1.0, %v1120
        %v1122 = vrcp.pop %v1059
        %v1123 = vmul.f32 1.0, %v1122
        %v1124 = vmul.f32 %v609, %v1061
        %v1125 = vmul.f32 %v611, %v1063
        %v1126 = vmul.f32 %v613, %v1065
        %v1127 = vmul.f32 %v615, %v1067
        %v1128 = vmul.f32 %v619, %v1069
        %v1129 = vmul.f32 %v621, %v1071
        %v1130 = vmul.f32 %v623, %v1073
        %v1131 = vmul.f32 %v625, %v1075
        %v1132 = vmul.f32 %v629, %v1077
        %v1133 = vmul.f32 %v631, %v1079
        %v1134 = vmul.f32 %v633, %v1081
        %v1135 = vmul.f32 %v635, %v1083
        %v1136 = vmul.f32 %v639, %v1085
        %v1137 = vmul.f32 %v641, %v1087
        %v1138 = vmul.f32 %v643, %v1089
        %v1139 = vmul.f32 %v645, %v1091
        %v1140 = vmul.f32 %v649, %v1093
        %v1141 = vmul.f32 %v651, %v1095
        %v1142 = vmul.f32 %v653, %v1097
        %v1143 = vmul.f32 %v655, %v1099
        %v1144 = vmul.f32 %v659, %v1101
        %v1145 = vmul.f32 %v661, %v1103
        %v1146 = vmul.f32 %v663, %v1105
        %v1147 = vmul.f32 %v665, %v1107
        %v1148 = vmul.f32 %v669, %v1109
        %v1149 = vmul.f32 %v671, %v1111
        %v1150 = vmul.f32 %v673, %v1113
        %v1151 = vmul.f32 %v675, %v1115
        %v1152 = vmul.f32 %v679, %v1117
        %v1153 = vmul.f32 %v681, %v1119
        %v1154 = vmul.f32 %v683, %v1121
        %v1155 = vmul.f32 %v685, %v1123
        %v1156 = vsel %vm689, 1, 0
        %vm1157 = vcmp.eq.s32.totalorder %v1156, 1
        %v1158 = vsel %vm1157, 1.0, %v1124
        %v1159 = vsel %vm1157, 1.0, %v1125
        %v1160 = vsel %vm1157, 1.0, %v1126
        %v1161 = vsel %vm1157, 1.0, %v1127
        %v1162 = vsel %vm1157, 1.0, %v1128
        %v1163 = vsel %vm1157, 1.0, %v1129
        %v1164 = vsel %vm1157, 1.0, %v1130
        %v1165 = vsel %vm1157, 1.0, %v1131
        %v1166 = vsel %vm1157, 1.0, %v1132
        %v1167 = vsel %vm1157, 1.0, %v1133
        %v1168 = vsel %vm1157, 1.0, %v1134
        %v1169 = vsel %vm1157, 1.0, %v1135
        %v1170 = vsel %vm1157, 1.0, %v1136
        %v1171 = vsel %vm1157, 1.0, %v1137
        %v1172 = vsel %vm1157, 1.0, %v1138
        %v1173 = vsel %vm1157, 1.0, %v1139
        %v1174 = vsel %vm1157, 1.0, %v1140
        %v1175 = vsel %vm1157, 1.0, %v1141
        %v1176 = vsel %vm1157, 1.0, %v1142
        %v1177 = vsel %vm1157, 1.0, %v1143
        %v1178 = vsel %vm1157, 1.0, %v1144
        %v1179 = vsel %vm1157, 1.0, %v1145
        %v1180 = vsel %vm1157, 1.0, %v1146
        %v1181 = vsel %vm1157, 1.0, %v1147
        %v1182 = vsel %vm1157, 1.0, %v1148
        %v1183 = vsel %vm1157, 1.0, %v1149
        %v1184 = vsel %vm1157, 1.0, %v1150
        %v1185 = vsel %vm1157, 1.0, %v1151
        %v1186 = vsel %vm1157, 1.0, %v1152
        %v1187 = vsel %vm1157, 1.0, %v1153
        %v1188 = vsel %vm1157, 1.0, %v1154
        %v1189 = vsel %vm1157, 1.0, %v1155
        %v1190 = vmul.f32 %v448, %v1158
        %v1191 = vmul.f32 %v450, %v1159
        %v1192 = vmul.f32 %v452, %v1160
        %v1193 = vmul.f32 %v454, %v1161
        %v1194 = vmul.f32 %v458, %v1162
        %v1195 = vmul.f32 %v460, %v1163
        %v1196 = vmul.f32 %v462, %v1164
        %v1197 = vmul.f32 %v464, %v1165
        %v1198 = vmul.f32 %v468, %v1166
        %v1199 = vmul.f32 %v470, %v1167
        %v1200 = vmul.f32 %v472, %v1168
        %v1201 = vmul.f32 %v474, %v1169
        %v1202 = vmul.f32 %v478, %v1170
        %v1203 = vmul.f32 %v480, %v1171
        %v1204 = vmul.f32 %v482, %v1172
        %v1205 = vmul.f32 %v484, %v1173
        %v1206 = vmul.f32 %v488, %v1174
        %v1207 = vmul.f32 %v490, %v1175
        %v1208 = vmul.f32 %v492, %v1176
        %v1209 = vmul.f32 %v494, %v1177
        %v1210 = vmul.f32 %v498, %v1178
        %v1211 = vmul.f32 %v500, %v1179
        %v1212 = vmul.f32 %v502, %v1180
        %v1213 = vmul.f32 %v504, %v1181
        %v1214 = vmul.f32 %v508, %v1182
        %v1215 = vmul.f32 %v510, %v1183
        %v1216 = vmul.f32 %v512, %v1184
        %v1217 = vmul.f32 %v514, %v1185
        %v1218 = vmul.f32 %v518, %v1186
        %v1219 = vmul.f32 %v520, %v1187
        %v1220 = vmul.f32 %v522, %v1188
        %v1221 = vmul.f32 %v524, %v1189
        %v1222 = vmul.f32 %v1190, 0.25
        %v1223 = vmul.f32 %v1192, 0.25
        %v1224 = vmul.f32 %v1194, 0.25
        %v1225 = vmul.f32 %v1196, 0.25
        %v1226 = vmul.f32 %v1198, 0.25
        %v1227 = vmul.f32 %v1200, 0.25
        %v1228 = vmul.f32 %v1202, 0.25
        %v1229 = vmul.f32 %v1204, 0.25
        %v1230 = vmul.f32 %v1206, 0.25
        %v1231 = vmul.f32 %v1208, 0.25
        %v1232 = vmul.f32 %v1210, 0.25
        %v1233 = vmul.f32 %v1212, 0.25
        %v1234 = vmul.f32 %v1214, 0.25
        %v1235 = vmul.f32 %v1216, 0.25
        %v1236 = vmul.f32 %v1218, 0.25
        %v1237 = vmul.f32 %v1220, 0.25
        %v1238 = vpack.c.bf16 %v1222, %v1222
        %v1239 = vpack.c.bf16 %v1223, %v1223
        %v1240 = vpack.c.bf16 %v1224, %v1224
        %v1241 = vpack.c.bf16 %v1225, %v1225
        %v1242 = vpack.c.bf16 %v1226, %v1226
        %v1243 = vpack.c.bf16 %v1227, %v1227
        %v1244 = vpack.c.bf16 %v1228, %v1228
        %v1245 = vpack.c.bf16 %v1229, %v1229
        %v1246 = vpack.c.bf16 %v1230, %v1230
        %v1247 = vpack.c.bf16 %v1231, %v1231
        %v1248 = vpack.c.bf16 %v1232, %v1232
        %v1249 = vpack.c.bf16 %v1233, %v1233
        %v1250 = vpack.c.bf16 %v1234, %v1234
        %v1251 = vpack.c.bf16 %v1235, %v1235
        %v1252 = vpack.c.bf16 %v1236, %v1236
        %v1253 = vpack.c.bf16 %v1237, %v1237
        %v1254 = vpack.c.bf16 %v1190, %v1190
        %v1255 = vpack.c.bf16 %v1192, %v1192
        %v1256 = vpack.c.bf16 %v1194, %v1194
        %v1257 = vpack.c.bf16 %v1196, %v1196
        %v1258 = vpack.c.bf16 %v1198, %v1198
        %v1259 = vpack.c.bf16 %v1200, %v1200
        %v1260 = vpack.c.bf16 %v1202, %v1202
        %v1261 = vpack.c.bf16 %v1204, %v1204
        %v1262 = vpack.c.bf16 %v1206, %v1206
        %v1263 = vpack.c.bf16 %v1208, %v1208
        %v1264 = vpack.c.bf16 %v1210, %v1210
        %v1265 = vpack.c.bf16 %v1212, %v1212
        %v1266 = vpack.c.bf16 %v1214, %v1214
        %v1267 = vpack.c.bf16 %v1216, %v1216
        %v1268 = vpack.c.bf16 %v1218, %v1218
        %v1269 = vpack.c.bf16 %v1220, %v1220
        %v1270 = vpack.c.bf16 %v1191, %v1191
        %v1271 = vpack.c.bf16 %v1193, %v1193
        %v1272 = vpack.c.bf16 %v1195, %v1195
        %v1273 = vpack.c.bf16 %v1197, %v1197
        %v1274 = vpack.c.bf16 %v1199, %v1199
        %v1275 = vpack.c.bf16 %v1201, %v1201
        %v1276 = vpack.c.bf16 %v1203, %v1203
        %v1277 = vpack.c.bf16 %v1205, %v1205
        %v1278 = vpack.c.bf16 %v1207, %v1207
        %v1279 = vpack.c.bf16 %v1209, %v1209
        %v1280 = vpack.c.bf16 %v1211, %v1211
        %v1281 = vpack.c.bf16 %v1213, %v1213
        %v1282 = vpack.c.bf16 %v1215, %v1215
        %v1283 = vpack.c.bf16 %v1217, %v1217
        %v1284 = vpack.c.bf16 %v1219, %v1219
        %v1285 = vpack.c.bf16 %v1221, %v1221
        %v1286 = vpack.c.bf16 %v1159, %v1159
        %v1287 = vpack.c.bf16 %v1161, %v1161
        %v1288 = vpack.c.bf16 %v1163, %v1163
        %v1289 = vpack.c.bf16 %v1165, %v1165
        %v1290 = vpack.c.bf16 %v1167, %v1167
        %v1291 = vpack.c.bf16 %v1169, %v1169
        %v1292 = vpack.c.bf16 %v1171, %v1171
        %v1293 = vpack.c.bf16 %v1173, %v1173
        %v1294 = vpack.c.bf16 %v1175, %v1175
        %v1295 = vpack.c.bf16 %v1177, %v1177
        %v1296 = vpack.c.bf16 %v1179, %v1179
        %v1297 = vpack.c.bf16 %v1181, %v1181
        %v1298 = vpack.c.bf16 %v1183, %v1183
        %v1299 = vpack.c.bf16 %v1185, %v1185
        %v1300 = vpack.c.bf16 %v1187, %v1187
        %v1301 = vpack.c.bf16 %v1189, %v1189
        %1303 = vrot.lane.b32.xlu0 %v1254, 64
        %v1304 = vpop.permute.xlu0 %1303
        %vm1305 = vcmask 130048
        %v1307 = vsel %vm1305, %v1238, 0
        %v1310 = vsel %vm1305, %v1304, 0
        %1312 = vmatprep.subr.bf16.mxu0 0
        %1313 = vmatpush1.bf16.xpose.msra.mxu0 %v1310
        %1314 = vmatprep.subr.bf16.mxu0 0
        %1315 = vmatpush1.bf16.xpose.msra.mxu0 0
        %1316 = vmatprep.subr.bf16.mxu0 0
        %1317 = vmatpush1.bf16.xpose.msra.mxu0 0
        %1318 = vmatprep.subr.bf16.mxu0 0
        %1319 = vmatpush1.bf16.xpose.msra.mxu0 0
        %1320 = vmatprep.subr.bf16.mxu0 0
        %1321 = vmatpush1.bf16.xpose.msra.mxu0 0
        %1322 = vmatprep.subr.bf16.mxu0 0
        %1323 = vmatpush1.bf16.xpose.msra.mxu0 0
        %1324 = vmatprep.subr.bf16.mxu0 0
        %1325 = vmatpush1.bf16.xpose.msra.mxu0 0
        %1326 = vmatprep.subr.bf16.mxu0 0
        %1327 = vmatpush1.bf16.xpose.msra.mxu0 0
        %1328 = vmatprep.subr.bf16.mxu0 0
        %1329 = vmatpush1.bf16.xpose.msra.mxu0 0
        %1330 = vmatprep.subr.bf16.mxu0 0
        %1331 = vmatpush1.bf16.xpose.msra.mxu0 0
        %1332 = vmatprep.subr.bf16.mxu0 0
        %1333 = vmatpush1.bf16.xpose.msra.mxu0 0
        %1334 = vmatprep.subr.bf16.mxu0 0
        %1335 = vmatpush1.bf16.xpose.msra.mxu0 0
        %1336 = vmatprep.subr.bf16.mxu0 0
        %1337 = vmatpush1.bf16.xpose.msra.mxu0 0
        %1338 = vmatprep.subr.bf16.mxu0 0
        %1339 = vmatpush1.bf16.xpose.msra.mxu0 0
        %1340 = vmatprep.subr.bf16.mxu0 0
        %1341 = vmatpush1.bf16.xpose.msra.mxu0 0
        %1342 = vmatprep.subr.bf16.mxu0 0
        %1343 = vmatpush1.bf16.xpose.msra.mxu0 0
        %1344 = vmatprep.mubr.bf16.mxu0 0
        %1345 = vmatmul.mubr.bf16.gmra.mrb[0].mxu0 %v1307
        %v1346 = vpop.f32.mrb[0].mxu0
        %v1347 = vadd.f32 0.0, %v1346
        %v1348 = vpop.f32.mrb[0].mxu0
        %v1349 = vpop.f32.mrb[0].mxu0
        %v1350 = vpop.f32.mrb[0].mxu0
        %1351 = vdwg.mxu0
        %1353 = vrot.lane.b32.xlu0 %v1255, 64
        %v1354 = vpop.permute.xlu0 %1353
        %v1356 = vsel %vm1305, %v1239, 0
        %v1359 = vsel %vm1305, %v1354, 0
        %1361 = vmatprep.subr.bf16.mxu0 0
        %1362 = vmatpush1.bf16.xpose.msra.mxu0 %v1359
        %1363 = vmatprep.subr.bf16.mxu0 0
        %1364 = vmatpush1.bf16.xpose.msra.mxu0 0
        %1365 = vmatprep.subr.bf16.mxu0 0
        %1366 = vmatpush1.bf16.xpose.msra.mxu0 0
        %1367 = vmatprep.subr.bf16.mxu0 0
        %1368 = vmatpush1.bf16.xpose.msra.mxu0 0
        %1369 = vmatprep.subr.bf16.mxu0 0
        %1370 = vmatpush1.bf16.xpose.msra.mxu0 0
        %1371 = vmatprep.subr.bf16.mxu0 0
        %1372 = vmatpush1.bf16.xpose.msra.mxu0 0
        %1373 = vmatprep.subr.bf16.mxu0 0
        %1374 = vmatpush1.bf16.xpose.msra.mxu0 0
        %1375 = vmatprep.subr.bf16.mxu0 0
        %1376 = vmatpush1.bf16.xpose.msra.mxu0 0
        %1377 = vmatprep.subr.bf16.mxu0 0
        %1378 = vmatpush1.bf16.xpose.msra.mxu0 0
        %1379 = vmatprep.subr.bf16.mxu0 0
        %1380 = vmatpush1.bf16.xpose.msra.mxu0 0
        %1381 = vmatprep.subr.bf16.mxu0 0
        %1382 = vmatpush1.bf16.xpose.msra.mxu0 0
        %1383 = vmatprep.subr.bf16.mxu0 0
        %1384 = vmatpush1.bf16.xpose.msra.mxu0 0
        %1385 = vmatprep.subr.bf16.mxu0 0
        %1386 = vmatpush1.bf16.xpose.msra.mxu0 0
        %1387 = vmatprep.subr.bf16.mxu0 0
        %1388 = vmatpush1.bf16.xpose.msra.mxu0 0
        %1389 = vmatprep.subr.bf16.mxu0 0
        %1390 = vmatpush1.bf16.xpose.msra.mxu0 0
        %1391 = vmatprep.subr.bf16.mxu0 0
        %1392 = vmatpush1.bf16.xpose.msra.mxu0 0
        %1393 = vmatprep.mubr.bf16.mxu0 0
        %1394 = vmatmul.mubr.bf16.gmra.mrb[0].mxu0 %v1356
        %v1395 = vpop.f32.mrb[0].mxu0
        %v1396 = vadd.f32 0.0, %v1395
        %v1397 = vpop.f32.mrb[0].mxu0
        %v1398 = vpop.f32.mrb[0].mxu0
        %v1399 = vpop.f32.mrb[0].mxu0
        %1400 = vdwg.mxu0
        %1402 = vrot.lane.b32.xlu0 %v1256, 64
        %v1403 = vpop.permute.xlu0 %1402
        %v1405 = vsel %vm1305, %v1240, 0
        %v1408 = vsel %vm1305, %v1403, 0
        %1410 = vmatprep.subr.bf16.mxu0 0
        %1411 = vmatpush1.bf16.xpose.msra.mxu0 %v1408
        %1412 = vmatprep.subr.bf16.mxu0 0
        %1413 = vmatpush1.bf16.xpose.msra.mxu0 0
        %1414 = vmatprep.subr.bf16.mxu0 0
        %1415 = vmatpush1.bf16.xpose.msra.mxu0 0
        %1416 = vmatprep.subr.bf16.mxu0 0
        %1417 = vmatpush1.bf16.xpose.msra.mxu0 0
        %1418 = vmatprep.subr.bf16.mxu0 0
        %1419 = vmatpush1.bf16.xpose.msra.mxu0 0
        %1420 = vmatprep.subr.bf16.mxu0 0
        %1421 = vmatpush1.bf16.xpose.msra.mxu0 0
        %1422 = vmatprep.subr.bf16.mxu0 0
        %1423 = vmatpush1.bf16.xpose.msra.mxu0 0
        %1424 = vmatprep.subr.bf16.mxu0 0
        %1425 = vmatpush1.bf16.xpose.msra.mxu0 0
        %1426 = vmatprep.subr.bf16.mxu0 0
        %1427 = vmatpush1.bf16.xpose.msra.mxu0 0
        %1428 = vmatprep.subr.bf16.mxu0 0
        %1429 = vmatpush1.bf16.xpose.msra.mxu0 0
        %1430 = vmatprep.subr.bf16.mxu0 0
        %1431 = vmatpush1.bf16.xpose.msra.mxu0 0
        %1432 = vmatprep.subr.bf16.mxu0 0
        %1433 = vmatpush1.bf16.xpose.msra.mxu0 0
        %1434 = vmatprep.subr.bf16.mxu0 0
        %1435 = vmatpush1.bf16.xpose.msra.mxu0 0
        %1436 = vmatprep.subr.bf16.mxu0 0
        %1437 = vmatpush1.bf16.xpose.msra.mxu0 0
        %1438 = vmatprep.subr.bf16.mxu0 0
        %1439 = vmatpush1.bf16.xpose.msra.mxu0 0
        %1440 = vmatprep.subr.bf16.mxu0 0
        %1441 = vmatpush1.bf16.xpose.msra.mxu0 0
        %1442 = vmatprep.mubr.bf16.mxu0 0
        %1443 = vmatmul.mubr.bf16.gmra.mrb[0].mxu0 %v1405
        %v1444 = vpop.f32.mrb[0].mxu0
        %v1445 = vadd.f32 0.0, %v1444
        %v1446 = vpop.f32.mrb[0].mxu0
        %v1447 = vpop.f32.mrb[0].mxu0
        %v1448 = vpop.f32.mrb[0].mxu0
        %1449 = vdwg.mxu0
        %1451 = vrot.lane.b32.xlu0 %v1257, 64
        %v1452 = vpop.permute.xlu0 %1451
        %v1454 = vsel %vm1305, %v1241, 0
        %v1457 = vsel %vm1305, %v1452, 0
        %1459 = vmatprep.subr.bf16.mxu0 0
        %1460 = vmatpush1.bf16.xpose.msra.mxu0 %v1457
        %1461 = vmatprep.subr.bf16.mxu0 0
        %1462 = vmatpush1.bf16.xpose.msra.mxu0 0
        %1463 = vmatprep.subr.bf16.mxu0 0
        %1464 = vmatpush1.bf16.xpose.msra.mxu0 0
        %1465 = vmatprep.subr.bf16.mxu0 0
        %1466 = vmatpush1.bf16.xpose.msra.mxu0 0
        %1467 = vmatprep.subr.bf16.mxu0 0
        %1468 = vmatpush1.bf16.xpose.msra.mxu0 0
        %1469 = vmatprep.subr.bf16.mxu0 0
        %1470 = vmatpush1.bf16.xpose.msra.mxu0 0
        %1471 = vmatprep.subr.bf16.mxu0 0
        %1472 = vmatpush1.bf16.xpose.msra.mxu0 0
        %1473 = vmatprep.subr.bf16.mxu0 0
        %1474 = vmatpush1.bf16.xpose.msra.mxu0 0
        %1475 = vmatprep.subr.bf16.mxu0 0
        %1476 = vmatpush1.bf16.xpose.msra.mxu0 0
        %1477 = vmatprep.subr.bf16.mxu0 0
        %1478 = vmatpush1.bf16.xpose.msra.mxu0 0
        %1479 = vmatprep.subr.bf16.mxu0 0
        %1480 = vmatpush1.bf16.xpose.msra.mxu0 0
        %1481 = vmatprep.subr.bf16.mxu0 0
        %1482 = vmatpush1.bf16.xpose.msra.mxu0 0
        %1483 = vmatprep.subr.bf16.mxu0 0
        %1484 = vmatpush1.bf16.xpose.msra.mxu0 0
        %1485 = vmatprep.subr.bf16.mxu0 0
        %1486 = vmatpush1.bf16.xpose.msra.mxu0 0
        %1487 = vmatprep.subr.bf16.mxu0 0
        %1488 = vmatpush1.bf16.xpose.msra.mxu0 0
        %1489 = vmatprep.subr.bf16.mxu0 0
        %1490 = vmatpush1.bf16.xpose.msra.mxu0 0
        %1491 = vmatprep.mubr.bf16.mxu0 0
        %1492 = vmatmul.mubr.bf16.gmra.mrb[0].mxu0 %v1454
        %v1493 = vpop.f32.mrb[0].mxu0
        %v1494 = vadd.f32 0.0, %v1493
        %v1495 = vpop.f32.mrb[0].mxu0
        %v1496 = vpop.f32.mrb[0].mxu0
        %v1497 = vpop.f32.mrb[0].mxu0
        %1498 = vdwg.mxu0
        %1500 = vrot.lane.b32.xlu0 %v1258, 64
        %v1501 = vpop.permute.xlu0 %1500
        %v1503 = vsel %vm1305, %v1242, 0
        %v1506 = vsel %vm1305, %v1501, 0
        %1508 = vmatprep.subr.bf16.mxu0 0
        %1509 = vmatpush1.bf16.xpose.msra.mxu0 %v1506
        %1510 = vmatprep.subr.bf16.mxu0 0
        %1511 = vmatpush1.bf16.xpose.msra.mxu0 0
        %1512 = vmatprep.subr.bf16.mxu0 0
        %1513 = vmatpush1.bf16.xpose.msra.mxu0 0
        %1514 = vmatprep.subr.bf16.mxu0 0
        %1515 = vmatpush1.bf16.xpose.msra.mxu0 0
        %1516 = vmatprep.subr.bf16.mxu0 0
        %1517 = vmatpush1.bf16.xpose.msra.mxu0 0
        %1518 = vmatprep.subr.bf16.mxu0 0
        %1519 = vmatpush1.bf16.xpose.msra.mxu0 0
        %1520 = vmatprep.subr.bf16.mxu0 0
        %1521 = vmatpush1.bf16.xpose.msra.mxu0 0
        %1522 = vmatprep.subr.bf16.mxu0 0
        %1523 = vmatpush1.bf16.xpose.msra.mxu0 0
        %1524 = vmatprep.subr.bf16.mxu0 0
        %1525 = vmatpush1.bf16.xpose.msra.mxu0 0
        %1526 = vmatprep.subr.bf16.mxu0 0
        %1527 = vmatpush1.bf16.xpose.msra.mxu0 0
        %1528 = vmatprep.subr.bf16.mxu0 0
        %1529 = vmatpush1.bf16.xpose.msra.mxu0 0
        %1530 = vmatprep.subr.bf16.mxu0 0
        %1531 = vmatpush1.bf16.xpose.msra.mxu0 0
        %1532 = vmatprep.subr.bf16.mxu0 0
        %1533 = vmatpush1.bf16.xpose.msra.mxu0 0
        %1534 = vmatprep.subr.bf16.mxu0 0
        %1535 = vmatpush1.bf16.xpose.msra.mxu0 0
        %1536 = vmatprep.subr.bf16.mxu0 0
        %1537 = vmatpush1.bf16.xpose.msra.mxu0 0
        %1538 = vmatprep.subr.bf16.mxu0 0
        %1539 = vmatpush1.bf16.xpose.msra.mxu0 0
        %1540 = vmatprep.mubr.bf16.mxu0 0
        %1541 = vmatmul.mubr.bf16.gmra.mrb[0].mxu0 %v1503
        %v1542 = vpop.f32.mrb[0].mxu0
        %v1543 = vadd.f32 0.0, %v1542
        %v1544 = vpop.f32.mrb[0].mxu0
        %v1545 = vpop.f32.mrb[0].mxu0
        %v1546 = vpop.f32.mrb[0].mxu0
        %1547 = vdwg.mxu0
        %1549 = vrot.lane.b32.xlu0 %v1259, 64
        %v1550 = vpop.permute.xlu0 %1549
        %v1552 = vsel %vm1305, %v1243, 0
        %v1555 = vsel %vm1305, %v1550, 0
        %1557 = vmatprep.subr.bf16.mxu0 0
        %1558 = vmatpush1.bf16.xpose.msra.mxu0 %v1555
        %1559 = vmatprep.subr.bf16.mxu0 0
        %1560 = vmatpush1.bf16.xpose.msra.mxu0 0
        %1561 = vmatprep.subr.bf16.mxu0 0
        %1562 = vmatpush1.bf16.xpose.msra.mxu0 0
        %1563 = vmatprep.subr.bf16.mxu0 0
        %1564 = vmatpush1.bf16.xpose.msra.mxu0 0
        %1565 = vmatprep.subr.bf16.mxu0 0
        %1566 = vmatpush1.bf16.xpose.msra.mxu0 0
        %1567 = vmatprep.subr.bf16.mxu0 0
        %1568 = vmatpush1.bf16.xpose.msra.mxu0 0
        %1569 = vmatprep.subr.bf16.mxu0 0
        %1570 = vmatpush1.bf16.xpose.msra.mxu0 0
        %1571 = vmatprep.subr.bf16.mxu0 0
        %1572 = vmatpush1.bf16.xpose.msra.mxu0 0
        %1573 = vmatprep.subr.bf16.mxu0 0
        %1574 = vmatpush1.bf16.xpose.msra.mxu0 0
        %1575 = vmatprep.subr.bf16.mxu0 0
        %1576 = vmatpush1.bf16.xpose.msra.mxu0 0
        %1577 = vmatprep.subr.bf16.mxu0 0
        %1578 = vmatpush1.bf16.xpose.msra.mxu0 0
        %1579 = vmatprep.subr.bf16.mxu0 0
        %1580 = vmatpush1.bf16.xpose.msra.mxu0 0
        %1581 = vmatprep.subr.bf16.mxu0 0
        %1582 = vmatpush1.bf16.xpose.msra.mxu0 0
        %1583 = vmatprep.subr.bf16.mxu0 0
        %1584 = vmatpush1.bf16.xpose.msra.mxu0 0
        %1585 = vmatprep.subr.bf16.mxu0 0
        %1586 = vmatpush1.bf16.xpose.msra.mxu0 0
        %1587 = vmatprep.subr.bf16.mxu0 0
        %1588 = vmatpush1.bf16.xpose.msra.mxu0 0
        %1589 = vmatprep.mubr.bf16.mxu0 0
        %1590 = vmatmul.mubr.bf16.gmra.mrb[0].mxu0 %v1552
        %v1591 = vpop.f32.mrb[0].mxu0
        %v1592 = vadd.f32 0.0, %v1591
        %v1593 = vpop.f32.mrb[0].mxu0
        %v1594 = vpop.f32.mrb[0].mxu0
        %v1595 = vpop.f32.mrb[0].mxu0
        %1596 = vdwg.mxu0
        %1598 = vrot.lane.b32.xlu0 %v1260, 64
        %v1599 = vpop.permute.xlu0 %1598
        %v1601 = vsel %vm1305, %v1244, 0
        %v1604 = vsel %vm1305, %v1599, 0
        %1606 = vmatprep.subr.bf16.mxu0 0
        %1607 = vmatpush1.bf16.xpose.msra.mxu0 %v1604
        %1608 = vmatprep.subr.bf16.mxu0 0
        %1609 = vmatpush1.bf16.xpose.msra.mxu0 0
        %1610 = vmatprep.subr.bf16.mxu0 0
        %1611 = vmatpush1.bf16.xpose.msra.mxu0 0
        %1612 = vmatprep.subr.bf16.mxu0 0
        %1613 = vmatpush1.bf16.xpose.msra.mxu0 0
        %1614 = vmatprep.subr.bf16.mxu0 0
        %1615 = vmatpush1.bf16.xpose.msra.mxu0 0
        %1616 = vmatprep.subr.bf16.mxu0 0
        %1617 = vmatpush1.bf16.xpose.msra.mxu0 0
        %1618 = vmatprep.subr.bf16.mxu0 0
        %1619 = vmatpush1.bf16.xpose.msra.mxu0 0
        %1620 = vmatprep.subr.bf16.mxu0 0
        %1621 = vmatpush1.bf16.xpose.msra.mxu0 0
        %1622 = vmatprep.subr.bf16.mxu0 0
        %1623 = vmatpush1.bf16.xpose.msra.mxu0 0
        %1624 = vmatprep.subr.bf16.mxu0 0
        %1625 = vmatpush1.bf16.xpose.msra.mxu0 0
        %1626 = vmatprep.subr.bf16.mxu0 0
        %1627 = vmatpush1.bf16.xpose.msra.mxu0 0
        %1628 = vmatprep.subr.bf16.mxu0 0
        %1629 = vmatpush1.bf16.xpose.msra.mxu0 0
        %1630 = vmatprep.subr.bf16.mxu0 0
        %1631 = vmatpush1.bf16.xpose.msra.mxu0 0
        %1632 = vmatprep.subr.bf16.mxu0 0
        %1633 = vmatpush1.bf16.xpose.msra.mxu0 0
        %1634 = vmatprep.subr.bf16.mxu0 0
        %1635 = vmatpush1.bf16.xpose.msra.mxu0 0
        %1636 = vmatprep.subr.bf16.mxu0 0
        %1637 = vmatpush1.bf16.xpose.msra.mxu0 0
        %1638 = vmatprep.mubr.bf16.mxu0 0
        %1639 = vmatmul.mubr.bf16.gmra.mrb[0].mxu0 %v1601
        %v1640 = vpop.f32.mrb[0].mxu0
        %v1641 = vadd.f32 0.0, %v1640
        %v1642 = vpop.f32.mrb[0].mxu0
        %v1643 = vpop.f32.mrb[0].mxu0
        %v1644 = vpop.f32.mrb[0].mxu0
        %1645 = vdwg.mxu0
        %1647 = vrot.lane.b32.xlu0 %v1261, 64
        %v1648 = vpop.permute.xlu0 %1647
        %v1650 = vsel %vm1305, %v1245, 0
        %v1653 = vsel %vm1305, %v1648, 0
        %1655 = vmatprep.subr.bf16.mxu0 0
        %1656 = vmatpush1.bf16.xpose.msra.mxu0 %v1653
        %1657 = vmatprep.subr.bf16.mxu0 0
        %1658 = vmatpush1.bf16.xpose.msra.mxu0 0
        %1659 = vmatprep.subr.bf16.mxu0 0
        %1660 = vmatpush1.bf16.xpose.msra.mxu0 0
        %1661 = vmatprep.subr.bf16.mxu0 0
        %1662 = vmatpush1.bf16.xpose.msra.mxu0 0
        %1663 = vmatprep.subr.bf16.mxu0 0
        %1664 = vmatpush1.bf16.xpose.msra.mxu0 0
        %1665 = vmatprep.subr.bf16.mxu0 0
        %1666 = vmatpush1.bf16.xpose.msra.mxu0 0
        %1667 = vmatprep.subr.bf16.mxu0 0
        %1668 = vmatpush1.bf16.xpose.msra.mxu0 0
        %1669 = vmatprep.subr.bf16.mxu0 0
        %1670 = vmatpush1.bf16.xpose.msra.mxu0 0
        %1671 = vmatprep.subr.bf16.mxu0 0
        %1672 = vmatpush1.bf16.xpose.msra.mxu0 0
        %1673 = vmatprep.subr.bf16.mxu0 0
        %1674 = vmatpush1.bf16.xpose.msra.mxu0 0
        %1675 = vmatprep.subr.bf16.mxu0 0
        %1676 = vmatpush1.bf16.xpose.msra.mxu0 0
        %1677 = vmatprep.subr.bf16.mxu0 0
        %1678 = vmatpush1.bf16.xpose.msra.mxu0 0
        %1679 = vmatprep.subr.bf16.mxu0 0
        %1680 = vmatpush1.bf16.xpose.msra.mxu0 0
        %1681 = vmatprep.subr.bf16.mxu0 0
        %1682 = vmatpush1.bf16.xpose.msra.mxu0 0
        %1683 = vmatprep.subr.bf16.mxu0 0
        %1684 = vmatpush1.bf16.xpose.msra.mxu0 0
        %1685 = vmatprep.subr.bf16.mxu0 0
        %1686 = vmatpush1.bf16.xpose.msra.mxu0 0
        %1687 = vmatprep.mubr.bf16.mxu0 0
        %1688 = vmatmul.mubr.bf16.gmra.mrb[0].mxu0 %v1650
        %v1689 = vpop.f32.mrb[0].mxu0
        %v1690 = vadd.f32 0.0, %v1689
        %v1691 = vpop.f32.mrb[0].mxu0
        %v1692 = vpop.f32.mrb[0].mxu0
        %v1693 = vpop.f32.mrb[0].mxu0
        %1694 = vdwg.mxu0
        %1696 = vrot.lane.b32.xlu0 %v1262, 64
        %v1697 = vpop.permute.xlu0 %1696
        %v1699 = vsel %vm1305, %v1246, 0
        %v1702 = vsel %vm1305, %v1697, 0
        %1704 = vmatprep.subr.bf16.mxu0 0
        %1705 = vmatpush1.bf16.xpose.msra.mxu0 %v1702
        %1706 = vmatprep.subr.bf16.mxu0 0
        %1707 = vmatpush1.bf16.xpose.msra.mxu0 0
        %1708 = vmatprep.subr.bf16.mxu0 0
        %1709 = vmatpush1.bf16.xpose.msra.mxu0 0
        %1710 = vmatprep.subr.bf16.mxu0 0
        %1711 = vmatpush1.bf16.xpose.msra.mxu0 0
        %1712 = vmatprep.subr.bf16.mxu0 0
        %1713 = vmatpush1.bf16.xpose.msra.mxu0 0
        %1714 = vmatprep.subr.bf16.mxu0 0
        %1715 = vmatpush1.bf16.xpose.msra.mxu0 0
        %1716 = vmatprep.subr.bf16.mxu0 0
        %1717 = vmatpush1.bf16.xpose.msra.mxu0 0
        %1718 = vmatprep.subr.bf16.mxu0 0
        %1719 = vmatpush1.bf16.xpose.msra.mxu0 0
        %1720 = vmatprep.subr.bf16.mxu0 0
        %1721 = vmatpush1.bf16.xpose.msra.mxu0 0
        %1722 = vmatprep.subr.bf16.mxu0 0
        %1723 = vmatpush1.bf16.xpose.msra.mxu0 0
        %1724 = vmatprep.subr.bf16.mxu0 0
        %1725 = vmatpush1.bf16.xpose.msra.mxu0 0
        %1726 = vmatprep.subr.bf16.mxu0 0
        %1727 = vmatpush1.bf16.xpose.msra.mxu0 0
        %1728 = vmatprep.subr.bf16.mxu0 0
        %1729 = vmatpush1.bf16.xpose.msra.mxu0 0
        %1730 = vmatprep.subr.bf16.mxu0 0
        %1731 = vmatpush1.bf16.xpose.msra.mxu0 0
        %1732 = vmatprep.subr.bf16.mxu0 0
        %1733 = vmatpush1.bf16.xpose.msra.mxu0 0
        %1734 = vmatprep.subr.bf16.mxu0 0
        %1735 = vmatpush1.bf16.xpose.msra.mxu0 0
        %1736 = vmatprep.mubr.bf16.mxu0 0
        %1737 = vmatmul.mubr.bf16.gmra.mrb[0].mxu0 %v1699
        %v1738 = vpop.f32.mrb[0].mxu0
        %v1739 = vadd.f32 0.0, %v1738
        %v1740 = vpop.f32.mrb[0].mxu0
        %v1741 = vpop.f32.mrb[0].mxu0
        %v1742 = vpop.f32.mrb[0].mxu0
        %1743 = vdwg.mxu0
        %1745 = vrot.lane.b32.xlu0 %v1263, 64
        %v1746 = vpop.permute.xlu0 %1745
        %v1748 = vsel %vm1305, %v1247, 0
        %v1751 = vsel %vm1305, %v1746, 0
        %1753 = vmatprep.subr.bf16.mxu0 0
        %1754 = vmatpush1.bf16.xpose.msra.mxu0 %v1751
        %1755 = vmatprep.subr.bf16.mxu0 0
        %1756 = vmatpush1.bf16.xpose.msra.mxu0 0
        %1757 = vmatprep.subr.bf16.mxu0 0
        %1758 = vmatpush1.bf16.xpose.msra.mxu0 0
        %1759 = vmatprep.subr.bf16.mxu0 0
        %1760 = vmatpush1.bf16.xpose.msra.mxu0 0
        %1761 = vmatprep.subr.bf16.mxu0 0
        %1762 = vmatpush1.bf16.xpose.msra.mxu0 0
        %1763 = vmatprep.subr.bf16.mxu0 0
        %1764 = vmatpush1.bf16.xpose.msra.mxu0 0
        %1765 = vmatprep.subr.bf16.mxu0 0
        %1766 = vmatpush1.bf16.xpose.msra.mxu0 0
        %1767 = vmatprep.subr.bf16.mxu0 0
        %1768 = vmatpush1.bf16.xpose.msra.mxu0 0
        %1769 = vmatprep.subr.bf16.mxu0 0
        %1770 = vmatpush1.bf16.xpose.msra.mxu0 0
        %1771 = vmatprep.subr.bf16.mxu0 0
        %1772 = vmatpush1.bf16.xpose.msra.mxu0 0
        %1773 = vmatprep.subr.bf16.mxu0 0
        %1774 = vmatpush1.bf16.xpose.msra.mxu0 0
        %1775 = vmatprep.subr.bf16.mxu0 0
        %1776 = vmatpush1.bf16.xpose.msra.mxu0 0
        %1777 = vmatprep.subr.bf16.mxu0 0
        %1778 = vmatpush1.bf16.xpose.msra.mxu0 0
        %1779 = vmatprep.subr.bf16.mxu0 0
        %1780 = vmatpush1.bf16.xpose.msra.mxu0 0
        %1781 = vmatprep.subr.bf16.mxu0 0
        %1782 = vmatpush1.bf16.xpose.msra.mxu0 0
        %1783 = vmatprep.subr.bf16.mxu0 0
        %1784 = vmatpush1.bf16.xpose.msra.mxu0 0
        %1785 = vmatprep.mubr.bf16.mxu0 0
        %1786 = vmatmul.mubr.bf16.gmra.mrb[0].mxu0 %v1748
        %v1787 = vpop.f32.mrb[0].mxu0
        %v1788 = vadd.f32 0.0, %v1787
        %v1789 = vpop.f32.mrb[0].mxu0
        %v1790 = vpop.f32.mrb[0].mxu0
        %v1791 = vpop.f32.mrb[0].mxu0
        %1792 = vdwg.mxu0
        %1794 = vrot.lane.b32.xlu0 %v1264, 64
        %v1795 = vpop.permute.xlu0 %1794
        %v1797 = vsel %vm1305, %v1248, 0
        %v1800 = vsel %vm1305, %v1795, 0
        %1802 = vmatprep.subr.bf16.mxu0 0
        %1803 = vmatpush1.bf16.xpose.msra.mxu0 %v1800
        %1804 = vmatprep.subr.bf16.mxu0 0
        %1805 = vmatpush1.bf16.xpose.msra.mxu0 0
        %1806 = vmatprep.subr.bf16.mxu0 0
        %1807 = vmatpush1.bf16.xpose.msra.mxu0 0
        %1808 = vmatprep.subr.bf16.mxu0 0
        %1809 = vmatpush1.bf16.xpose.msra.mxu0 0
        %1810 = vmatprep.subr.bf16.mxu0 0
        %1811 = vmatpush1.bf16.xpose.msra.mxu0 0
        %1812 = vmatprep.subr.bf16.mxu0 0
        %1813 = vmatpush1.bf16.xpose.msra.mxu0 0
        %1814 = vmatprep.subr.bf16.mxu0 0
        %1815 = vmatpush1.bf16.xpose.msra.mxu0 0
        %1816 = vmatprep.subr.bf16.mxu0 0
        %1817 = vmatpush1.bf16.xpose.msra.mxu0 0
        %1818 = vmatprep.subr.bf16.mxu0 0
        %1819 = vmatpush1.bf16.xpose.msra.mxu0 0
        %1820 = vmatprep.subr.bf16.mxu0 0
        %1821 = vmatpush1.bf16.xpose.msra.mxu0 0
        %1822 = vmatprep.subr.bf16.mxu0 0
        %1823 = vmatpush1.bf16.xpose.msra.mxu0 0
        %1824 = vmatprep.subr.bf16.mxu0 0
        %1825 = vmatpush1.bf16.xpose.msra.mxu0 0
        %1826 = vmatprep.subr.bf16.mxu0 0
        %1827 = vmatpush1.bf16.xpose.msra.mxu0 0
        %1828 = vmatprep.subr.bf16.mxu0 0
        %1829 = vmatpush1.bf16.xpose.msra.mxu0 0
        %1830 = vmatprep.subr.bf16.mxu0 0
        %1831 = vmatpush1.bf16.xpose.msra.mxu0 0
        %1832 = vmatprep.subr.bf16.mxu0 0
        %1833 = vmatpush1.bf16.xpose.msra.mxu0 0
        %1834 = vmatprep.mubr.bf16.mxu0 0
        %1835 = vmatmul.mubr.bf16.gmra.mrb[0].mxu0 %v1797
        %v1836 = vpop.f32.mrb[0].mxu0
        %v1837 = vadd.f32 0.0, %v1836
        %v1838 = vpop.f32.mrb[0].mxu0
        %v1839 = vpop.f32.mrb[0].mxu0
        %v1840 = vpop.f32.mrb[0].mxu0
        %1841 = vdwg.mxu0
        %1843 = vrot.lane.b32.xlu0 %v1265, 64
        %v1844 = vpop.permute.xlu0 %1843
        %v1846 = vsel %vm1305, %v1249, 0
        %v1849 = vsel %vm1305, %v1844, 0
        %1851 = vmatprep.subr.bf16.mxu0 0
        %1852 = vmatpush1.bf16.xpose.msra.mxu0 %v1849
        %1853 = vmatprep.subr.bf16.mxu0 0
        %1854 = vmatpush1.bf16.xpose.msra.mxu0 0
        %1855 = vmatprep.subr.bf16.mxu0 0
        %1856 = vmatpush1.bf16.xpose.msra.mxu0 0
        %1857 = vmatprep.subr.bf16.mxu0 0
        %1858 = vmatpush1.bf16.xpose.msra.mxu0 0
        %1859 = vmatprep.subr.bf16.mxu0 0
        %1860 = vmatpush1.bf16.xpose.msra.mxu0 0
        %1861 = vmatprep.subr.bf16.mxu0 0
        %1862 = vmatpush1.bf16.xpose.msra.mxu0 0
        %1863 = vmatprep.subr.bf16.mxu0 0
        %1864 = vmatpush1.bf16.xpose.msra.mxu0 0
        %1865 = vmatprep.subr.bf16.mxu0 0
        %1866 = vmatpush1.bf16.xpose.msra.mxu0 0
        %1867 = vmatprep.subr.bf16.mxu0 0
        %1868 = vmatpush1.bf16.xpose.msra.mxu0 0
        %1869 = vmatprep.subr.bf16.mxu0 0
        %1870 = vmatpush1.bf16.xpose.msra.mxu0 0
        %1871 = vmatprep.subr.bf16.mxu0 0
        %1872 = vmatpush1.bf16.xpose.msra.mxu0 0
        %1873 = vmatprep.subr.bf16.mxu0 0
        %1874 = vmatpush1.bf16.xpose.msra.mxu0 0
        %1875 = vmatprep.subr.bf16.mxu0 0
        %1876 = vmatpush1.bf16.xpose.msra.mxu0 0
        %1877 = vmatprep.subr.bf16.mxu0 0
        %1878 = vmatpush1.bf16.xpose.msra.mxu0 0
        %1879 = vmatprep.subr.bf16.mxu0 0
        %1880 = vmatpush1.bf16.xpose.msra.mxu0 0
        %1881 = vmatprep.subr.bf16.mxu0 0
        %1882 = vmatpush1.bf16.xpose.msra.mxu0 0
        %1883 = vmatprep.mubr.bf16.mxu0 0
        %1884 = vmatmul.mubr.bf16.gmra.mrb[0].mxu0 %v1846
        %v1885 = vpop.f32.mrb[0].mxu0
        %v1886 = vadd.f32 0.0, %v1885
        %v1887 = vpop.f32.mrb[0].mxu0
        %v1888 = vpop.f32.mrb[0].mxu0
        %v1889 = vpop.f32.mrb[0].mxu0
        %1890 = vdwg.mxu0
        %1892 = vrot.lane.b32.xlu0 %v1266, 64
        %v1893 = vpop.permute.xlu0 %1892
        %v1895 = vsel %vm1305, %v1250, 0
        %v1898 = vsel %vm1305, %v1893, 0
        %1900 = vmatprep.subr.bf16.mxu0 0
        %1901 = vmatpush1.bf16.xpose.msra.mxu0 %v1898
        %1902 = vmatprep.subr.bf16.mxu0 0
        %1903 = vmatpush1.bf16.xpose.msra.mxu0 0
        %1904 = vmatprep.subr.bf16.mxu0 0
        %1905 = vmatpush1.bf16.xpose.msra.mxu0 0
        %1906 = vmatprep.subr.bf16.mxu0 0
        %1907 = vmatpush1.bf16.xpose.msra.mxu0 0
        %1908 = vmatprep.subr.bf16.mxu0 0
        %1909 = vmatpush1.bf16.xpose.msra.mxu0 0
        %1910 = vmatprep.subr.bf16.mxu0 0
        %1911 = vmatpush1.bf16.xpose.msra.mxu0 0
        %1912 = vmatprep.subr.bf16.mxu0 0
        %1913 = vmatpush1.bf16.xpose.msra.mxu0 0
        %1914 = vmatprep.subr.bf16.mxu0 0
        %1915 = vmatpush1.bf16.xpose.msra.mxu0 0
        %1916 = vmatprep.subr.bf16.mxu0 0
        %1917 = vmatpush1.bf16.xpose.msra.mxu0 0
        %1918 = vmatprep.subr.bf16.mxu0 0
        %1919 = vmatpush1.bf16.xpose.msra.mxu0 0
        %1920 = vmatprep.subr.bf16.mxu0 0
        %1921 = vmatpush1.bf16.xpose.msra.mxu0 0
        %1922 = vmatprep.subr.bf16.mxu0 0
        %1923 = vmatpush1.bf16.xpose.msra.mxu0 0
        %1924 = vmatprep.subr.bf16.mxu0 0
        %1925 = vmatpush1.bf16.xpose.msra.mxu0 0
        %1926 = vmatprep.subr.bf16.mxu0 0
        %1927 = vmatpush1.bf16.xpose.msra.mxu0 0
        %1928 = vmatprep.subr.bf16.mxu0 0
        %1929 = vmatpush1.bf16.xpose.msra.mxu0 0
        %1930 = vmatprep.subr.bf16.mxu0 0
        %1931 = vmatpush1.bf16.xpose.msra.mxu0 0
        %1932 = vmatprep.mubr.bf16.mxu0 0
        %1933 = vmatmul.mubr.bf16.gmra.mrb[0].mxu0 %v1895
        %v1934 = vpop.f32.mrb[0].mxu0
        %v1935 = vadd.f32 0.0, %v1934
        %v1936 = vpop.f32.mrb[0].mxu0
        %v1937 = vpop.f32.mrb[0].mxu0
        %v1938 = vpop.f32.mrb[0].mxu0
        %1939 = vdwg.mxu0
        %1941 = vrot.lane.b32.xlu0 %v1267, 64
        %v1942 = vpop.permute.xlu0 %1941
        %v1944 = vsel %vm1305, %v1251, 0
        %v1947 = vsel %vm1305, %v1942, 0
        %1949 = vmatprep.subr.bf16.mxu0 0
        %1950 = vmatpush1.bf16.xpose.msra.mxu0 %v1947
        %1951 = vmatprep.subr.bf16.mxu0 0
        %1952 = vmatpush1.bf16.xpose.msra.mxu0 0
        %1953 = vmatprep.subr.bf16.mxu0 0
        %1954 = vmatpush1.bf16.xpose.msra.mxu0 0
        %1955 = vmatprep.subr.bf16.mxu0 0
        %1956 = vmatpush1.bf16.xpose.msra.mxu0 0
        %1957 = vmatprep.subr.bf16.mxu0 0
        %1958 = vmatpush1.bf16.xpose.msra.mxu0 0
        %1959 = vmatprep.subr.bf16.mxu0 0
        %1960 = vmatpush1.bf16.xpose.msra.mxu0 0
        %1961 = vmatprep.subr.bf16.mxu0 0
        %1962 = vmatpush1.bf16.xpose.msra.mxu0 0
        %1963 = vmatprep.subr.bf16.mxu0 0
        %1964 = vmatpush1.bf16.xpose.msra.mxu0 0
        %1965 = vmatprep.subr.bf16.mxu0 0
        %1966 = vmatpush1.bf16.xpose.msra.mxu0 0
        %1967 = vmatprep.subr.bf16.mxu0 0
        %1968 = vmatpush1.bf16.xpose.msra.mxu0 0
        %1969 = vmatprep.subr.bf16.mxu0 0
        %1970 = vmatpush1.bf16.xpose.msra.mxu0 0
        %1971 = vmatprep.subr.bf16.mxu0 0
        %1972 = vmatpush1.bf16.xpose.msra.mxu0 0
        %1973 = vmatprep.subr.bf16.mxu0 0
        %1974 = vmatpush1.bf16.xpose.msra.mxu0 0
        %1975 = vmatprep.subr.bf16.mxu0 0
        %1976 = vmatpush1.bf16.xpose.msra.mxu0 0
        %1977 = vmatprep.subr.bf16.mxu0 0
        %1978 = vmatpush1.bf16.xpose.msra.mxu0 0
        %1979 = vmatprep.subr.bf16.mxu0 0
        %1980 = vmatpush1.bf16.xpose.msra.mxu0 0
        %1981 = vmatprep.mubr.bf16.mxu0 0
        %1982 = vmatmul.mubr.bf16.gmra.mrb[0].mxu0 %v1944
        %v1983 = vpop.f32.mrb[0].mxu0
        %v1984 = vadd.f32 0.0, %v1983
        %v1985 = vpop.f32.mrb[0].mxu0
        %v1986 = vpop.f32.mrb[0].mxu0
        %v1987 = vpop.f32.mrb[0].mxu0
        %1988 = vdwg.mxu0
        %1990 = vrot.lane.b32.xlu0 %v1268, 64
        %v1991 = vpop.permute.xlu0 %1990
        %v1993 = vsel %vm1305, %v1252, 0
        %v1996 = vsel %vm1305, %v1991, 0
        %1998 = vmatprep.subr.bf16.mxu0 0
        %1999 = vmatpush1.bf16.xpose.msra.mxu0 %v1996
        %2000 = vmatprep.subr.bf16.mxu0 0
        %2001 = vmatpush1.bf16.xpose.msra.mxu0 0
        %2002 = vmatprep.subr.bf16.mxu0 0
        %2003 = vmatpush1.bf16.xpose.msra.mxu0 0
        %2004 = vmatprep.subr.bf16.mxu0 0
        %2005 = vmatpush1.bf16.xpose.msra.mxu0 0
        %2006 = vmatprep.subr.bf16.mxu0 0
        %2007 = vmatpush1.bf16.xpose.msra.mxu0 0
        %2008 = vmatprep.subr.bf16.mxu0 0
        %2009 = vmatpush1.bf16.xpose.msra.mxu0 0
        %2010 = vmatprep.subr.bf16.mxu0 0
        %2011 = vmatpush1.bf16.xpose.msra.mxu0 0
        %2012 = vmatprep.subr.bf16.mxu0 0
        %2013 = vmatpush1.bf16.xpose.msra.mxu0 0
        %2014 = vmatprep.subr.bf16.mxu0 0
        %2015 = vmatpush1.bf16.xpose.msra.mxu0 0
        %2016 = vmatprep.subr.bf16.mxu0 0
        %2017 = vmatpush1.bf16.xpose.msra.mxu0 0
        %2018 = vmatprep.subr.bf16.mxu0 0
        %2019 = vmatpush1.bf16.xpose.msra.mxu0 0
        %2020 = vmatprep.subr.bf16.mxu0 0
        %2021 = vmatpush1.bf16.xpose.msra.mxu0 0
        %2022 = vmatprep.subr.bf16.mxu0 0
        %2023 = vmatpush1.bf16.xpose.msra.mxu0 0
        %2024 = vmatprep.subr.bf16.mxu0 0
        %2025 = vmatpush1.bf16.xpose.msra.mxu0 0
        %2026 = vmatprep.subr.bf16.mxu0 0
        %2027 = vmatpush1.bf16.xpose.msra.mxu0 0
        %2028 = vmatprep.subr.bf16.mxu0 0
        %2029 = vmatpush1.bf16.xpose.msra.mxu0 0
        %2030 = vmatprep.mubr.bf16.mxu0 0
        %2031 = vmatmul.mubr.bf16.gmra.mrb[0].mxu0 %v1993
        %v2032 = vpop.f32.mrb[0].mxu0
        %v2033 = vadd.f32 0.0, %v2032
        %v2034 = vpop.f32.mrb[0].mxu0
        %v2035 = vpop.f32.mrb[0].mxu0
        %v2036 = vpop.f32.mrb[0].mxu0
        %2037 = vdwg.mxu0
        %2039 = vrot.lane.b32.xlu0 %v1269, 64
        %v2040 = vpop.permute.xlu0 %2039
        %v2042 = vsel %vm1305, %v1253, 0
        %v2045 = vsel %vm1305, %v2040, 0
        %2047 = vmatprep.subr.bf16.mxu0 0
        %2048 = vmatpush1.bf16.xpose.msra.mxu0 %v2045
        %2049 = vmatprep.subr.bf16.mxu0 0
        %2050 = vmatpush1.bf16.xpose.msra.mxu0 0
        %2051 = vmatprep.subr.bf16.mxu0 0
        %2052 = vmatpush1.bf16.xpose.msra.mxu0 0
        %2053 = vmatprep.subr.bf16.mxu0 0
        %2054 = vmatpush1.bf16.xpose.msra.mxu0 0
        %2055 = vmatprep.subr.bf16.mxu0 0
        %2056 = vmatpush1.bf16.xpose.msra.mxu0 0
        %2057 = vmatprep.subr.bf16.mxu0 0
        %2058 = vmatpush1.bf16.xpose.msra.mxu0 0
        %2059 = vmatprep.subr.bf16.mxu0 0
        %2060 = vmatpush1.bf16.xpose.msra.mxu0 0
        %2061 = vmatprep.subr.bf16.mxu0 0
        %2062 = vmatpush1.bf16.xpose.msra.mxu0 0
        %2063 = vmatprep.subr.bf16.mxu0 0
        %2064 = vmatpush1.bf16.xpose.msra.mxu0 0
        %2065 = vmatprep.subr.bf16.mxu0 0
        %2066 = vmatpush1.bf16.xpose.msra.mxu0 0
        %2067 = vmatprep.subr.bf16.mxu0 0
        %2068 = vmatpush1.bf16.xpose.msra.mxu0 0
        %2069 = vmatprep.subr.bf16.mxu0 0
        %2070 = vmatpush1.bf16.xpose.msra.mxu0 0
        %2071 = vmatprep.subr.bf16.mxu0 0
        %2072 = vmatpush1.bf16.xpose.msra.mxu0 0
        %2073 = vmatprep.subr.bf16.mxu0 0
        %2074 = vmatpush1.bf16.xpose.msra.mxu0 0
        %2075 = vmatprep.subr.bf16.mxu0 0
        %2076 = vmatpush1.bf16.xpose.msra.mxu0 0
        %2077 = vmatprep.subr.bf16.mxu0 0
        %2078 = vmatpush1.bf16.xpose.msra.mxu0 0
        %2079 = vmatprep.mubr.bf16.mxu0 0
        %2080 = vmatmul.mubr.bf16.gmra.mrb[0].mxu0 %v2042
        %v2081 = vpop.f32.mrb[0].mxu0
        %v2082 = vadd.f32 0.0, %v2081
        %v2083 = vpop.f32.mrb[0].mxu0
        %v2084 = vpop.f32.mrb[0].mxu0
        %v2085 = vpop.f32.mrb[0].mxu0
        %2086 = vdwg.mxu0
        %vm2087 = vcmask 64512
        %v2088 = vsel %vm2087, %v1347, -inf
        %2089 = vmax.xlane.f32.xlu0 %v2088
        %v2090 = vpop.xlane.xlu0 %2089
        %v2091 = vsel %vm2087, %v1396, -inf
        %2092 = vmax.xlane.f32.xlu0 %v2091
        %v2093 = vpop.xlane.xlu0 %2092
        %v2094 = vsel %vm2087, %v1445, -inf
        %2095 = vmax.xlane.f32.xlu0 %v2094
        %v2096 = vpop.xlane.xlu0 %2095
        %v2097 = vsel %vm2087, %v1494, -inf
        %2098 = vmax.xlane.f32.xlu0 %v2097
        %v2099 = vpop.xlane.xlu0 %2098
        %v2100 = vsel %vm2087, %v1543, -inf
        %2101 = vmax.xlane.f32.xlu0 %v2100
        %v2102 = vpop.xlane.xlu0 %2101
        %v2103 = vsel %vm2087, %v1592, -inf
        %2104 = vmax.xlane.f32.xlu0 %v2103
        %v2105 = vpop.xlane.xlu0 %2104
        %v2106 = vsel %vm2087, %v1641, -inf
        %2107 = vmax.xlane.f32.xlu0 %v2106
        %v2108 = vpop.xlane.xlu0 %2107
        %v2109 = vsel %vm2087, %v1690, -inf
        %2110 = vmax.xlane.f32.xlu0 %v2109
        %v2111 = vpop.xlane.xlu0 %2110
        %v2112 = vsel %vm2087, %v1739, -inf
        %2113 = vmax.xlane.f32.xlu0 %v2112
        %v2114 = vpop.xlane.xlu0 %2113
        %v2115 = vsel %vm2087, %v1788, -inf
        %2116 = vmax.xlane.f32.xlu0 %v2115
        %v2117 = vpop.xlane.xlu0 %2116
        %v2118 = vsel %vm2087, %v1837, -inf
        %2119 = vmax.xlane.f32.xlu0 %v2118
        %v2120 = vpop.xlane.xlu0 %2119
        %v2121 = vsel %vm2087, %v1886, -inf
        %2122 = vmax.xlane.f32.xlu0 %v2121
        %v2123 = vpop.xlane.xlu0 %2122
        %v2124 = vsel %vm2087, %v1935, -inf
        %2125 = vmax.xlane.f32.xlu0 %v2124
        %v2126 = vpop.xlane.xlu0 %2125
        %v2127 = vsel %vm2087, %v1984, -inf
        %2128 = vmax.xlane.f32.xlu0 %v2127
        %v2129 = vpop.xlane.xlu0 %2128
        %v2130 = vsel %vm2087, %v2033, -inf
        %2131 = vmax.xlane.f32.xlu0 %v2130
        %v2132 = vpop.xlane.xlu0 %2131
        %v2133 = vsel %vm2087, %v2082, -inf
        %2134 = vmax.xlane.f32.xlu0 %v2133
        %v2135 = vpop.xlane.xlu0 %2134
        %v2136 = vsub.f32 %v1347, %v2090
        %v2137 = vsub.f32 %v1396, %v2093
        %v2138 = vsub.f32 %v1445, %v2096
        %v2139 = vsub.f32 %v1494, %v2099
        %v2140 = vsub.f32 %v1543, %v2102
        %v2141 = vsub.f32 %v1592, %v2105
        %v2142 = vsub.f32 %v1641, %v2108
        %v2143 = vsub.f32 %v1690, %v2111
        %v2144 = vsub.f32 %v1739, %v2114
        %v2145 = vsub.f32 %v1788, %v2117
        %v2146 = vsub.f32 %v1837, %v2120
        %v2147 = vsub.f32 %v1886, %v2123
        %v2148 = vsub.f32 %v1935, %v2126
        %v2149 = vsub.f32 %v1984, %v2129
        %v2150 = vsub.f32 %v2033, %v2132
        %v2151 = vsub.f32 %v2082, %v2135
        %v2152 = vmul.f32 %v2136, 1.442695
        %v2153 = vpow.pop %v2152
        %v2154 = vmul.f32 %v2137, 1.442695
        %v2155 = vpow.pop %v2154
        %v2156 = vmul.f32 %v2138, 1.442695
        %v2157 = vpow.pop %v2156
        %v2158 = vmul.f32 %v2139, 1.442695
        %v2159 = vpow.pop %v2158
        %v2160 = vmul.f32 %v2140, 1.442695
        %v2161 = vpow.pop %v2160
        %v2162 = vmul.f32 %v2141, 1.442695
        %v2163 = vpow.pop %v2162
        %v2164 = vmul.f32 %v2142, 1.442695
        %v2165 = vpow.pop %v2164
        %v2166 = vmul.f32 %v2143, 1.442695
        %v2167 = vpow.pop %v2166
        %v2168 = vmul.f32 %v2144, 1.442695
        %v2169 = vpow.pop %v2168
        %v2170 = vmul.f32 %v2145, 1.442695
        %v2171 = vpow.pop %v2170
        %v2172 = vmul.f32 %v2146, 1.442695
        %v2173 = vpow.pop %v2172
        %v2174 = vmul.f32 %v2147, 1.442695
        %v2175 = vpow.pop %v2174
        %v2176 = vmul.f32 %v2148, 1.442695
        %v2177 = vpow.pop %v2176
        %v2178 = vmul.f32 %v2149, 1.442695
        %v2179 = vpow.pop %v2178
        %v2180 = vmul.f32 %v2150, 1.442695
        %v2181 = vpow.pop %v2180
        %v2182 = vmul.f32 %v2151, 1.442695
        %v2183 = vpow.pop %v2182
        %v2184 = vsel %vm2087, %v2153, 0.0
        %2185 = vadd.xlane.f32.xlu0 %v2184
        %v2186 = vpop.xlane.xlu0 %2185
        %v2187 = vsel %vm2087, %v2155, 0.0
        %2188 = vadd.xlane.f32.xlu0 %v2187
        %v2189 = vpop.xlane.xlu0 %2188
        %v2190 = vsel %vm2087, %v2157, 0.0
        %2191 = vadd.xlane.f32.xlu0 %v2190
        %v2192 = vpop.xlane.xlu0 %2191
        %v2193 = vsel %vm2087, %v2159, 0.0
        %2194 = vadd.xlane.f32.xlu0 %v2193
        %v2195 = vpop.xlane.xlu0 %2194
        %v2196 = vsel %vm2087, %v2161, 0.0
        %2197 = vadd.xlane.f32.xlu0 %v2196
        %v2198 = vpop.xlane.xlu0 %2197
        %v2199 = vsel %vm2087, %v2163, 0.0
        %2200 = vadd.xlane.f32.xlu0 %v2199
        %v2201 = vpop.xlane.xlu0 %2200
        %v2202 = vsel %vm2087, %v2165, 0.0
        %2203 = vadd.xlane.f32.xlu0 %v2202
        %v2204 = vpop.xlane.xlu0 %2203
        %v2205 = vsel %vm2087, %v2167, 0.0
        %2206 = vadd.xlane.f32.xlu0 %v2205
        %v2207 = vpop.xlane.xlu0 %2206
        %v2208 = vsel %vm2087, %v2169, 0.0
        %2209 = vadd.xlane.f32.xlu0 %v2208
        %v2210 = vpop.xlane.xlu0 %2209
        %v2211 = vsel %vm2087, %v2171, 0.0
        %2212 = vadd.xlane.f32.xlu0 %v2211
        %v2213 = vpop.xlane.xlu0 %2212
        %v2214 = vsel %vm2087, %v2173, 0.0
        %2215 = vadd.xlane.f32.xlu0 %v2214
        %v2216 = vpop.xlane.xlu0 %2215
        %v2217 = vsel %vm2087, %v2175, 0.0
        %2218 = vadd.xlane.f32.xlu0 %v2217
        %v2219 = vpop.xlane.xlu0 %2218
        %v2220 = vsel %vm2087, %v2177, 0.0
        %2221 = vadd.xlane.f32.xlu0 %v2220
        %v2222 = vpop.xlane.xlu0 %2221
        %v2223 = vsel %vm2087, %v2179, 0.0
        %2224 = vadd.xlane.f32.xlu0 %v2223
        %v2225 = vpop.xlane.xlu0 %2224
        %v2226 = vsel %vm2087, %v2181, 0.0
        %2227 = vadd.xlane.f32.xlu0 %v2226
        %v2228 = vpop.xlane.xlu0 %2227
        %v2229 = vsel %vm2087, %v2183, 0.0
        %2230 = vadd.xlane.f32.xlu0 %v2229
        %v2231 = vpop.xlane.xlu0 %2230
        %v2232 = vrcp.pop %v2186
        %v2233 = vrcp.pop %v2189
        %v2234 = vrcp.pop %v2192
        %v2235 = vrcp.pop %v2195
        %v2236 = vrcp.pop %v2198
        %v2237 = vrcp.pop %v2201
        %v2238 = vrcp.pop %v2204
        %v2239 = vrcp.pop %v2207
        %v2240 = vrcp.pop %v2210
        %v2241 = vrcp.pop %v2213
        %v2242 = vrcp.pop %v2216
        %v2243 = vrcp.pop %v2219
        %v2244 = vrcp.pop %v2222
        %v2245 = vrcp.pop %v2225
        %v2246 = vrcp.pop %v2228
        %v2247 = vrcp.pop %v2231
        %v2248 = vmul.f32 %v2153, %v2232
        %v2249 = vmul.f32 %v2155, %v2233
        %v2250 = vmul.f32 %v2157, %v2234
        %v2251 = vmul.f32 %v2159, %v2235
        %v2252 = vmul.f32 %v2161, %v2236
        %v2253 = vmul.f32 %v2163, %v2237
        %v2254 = vmul.f32 %v2165, %v2238
        %v2255 = vmul.f32 %v2167, %v2239
        %v2256 = vmul.f32 %v2169, %v2240
        %v2257 = vmul.f32 %v2171, %v2241
        %v2258 = vmul.f32 %v2173, %v2242
        %v2259 = vmul.f32 %v2175, %v2243
        %v2260 = vmul.f32 %v2177, %v2244
        %v2261 = vmul.f32 %v2179, %v2245
        %v2262 = vmul.f32 %v2181, %v2246
        %v2263 = vmul.f32 %v2183, %v2247
        %v2264 = vpack.c.bf16 %v2248, %v2248
        %v2265 = vpack.c.bf16 %v2249, %v2249
        %v2266 = vpack.c.bf16 %v2250, %v2250
        %v2267 = vpack.c.bf16 %v2251, %v2251
        %v2268 = vpack.c.bf16 %v2252, %v2252
        %v2269 = vpack.c.bf16 %v2253, %v2253
        %v2270 = vpack.c.bf16 %v2254, %v2254
        %v2271 = vpack.c.bf16 %v2255, %v2255
        %v2272 = vpack.c.bf16 %v2256, %v2256
        %v2273 = vpack.c.bf16 %v2257, %v2257
        %v2274 = vpack.c.bf16 %v2258, %v2258
        %v2275 = vpack.c.bf16 %v2259, %v2259
        %v2276 = vpack.c.bf16 %v2260, %v2260
        %v2277 = vpack.c.bf16 %v2261, %v2261
        %v2278 = vpack.c.bf16 %v2262, %v2262
        %v2279 = vpack.c.bf16 %v2263, %v2263
        %2296 = vrot.lane.b32.xlu0 %v1286, 16
        %v2297 = vpop.permute.xlu0 %2296
        %2298 = vrot.lane.b32.xlu0 %v1287, 16
        %v2299 = vpop.permute.xlu0 %2298
        %2300 = vrot.lane.b32.xlu0 %v1288, 16
        %v2301 = vpop.permute.xlu0 %2300
        %2302 = vrot.lane.b32.xlu0 %v1289, 16
        %v2303 = vpop.permute.xlu0 %2302
        %2304 = vrot.lane.b32.xlu0 %v1290, 16
        %v2305 = vpop.permute.xlu0 %2304
        %2306 = vrot.lane.b32.xlu0 %v1291, 16
        %v2307 = vpop.permute.xlu0 %2306
        %2308 = vrot.lane.b32.xlu0 %v1292, 16
        %v2309 = vpop.permute.xlu0 %2308
        %2310 = vrot.lane.b32.xlu0 %v1293, 16
        %v2311 = vpop.permute.xlu0 %2310
        %2312 = vrot.lane.b32.xlu0 %v1294, 16
        %v2313 = vpop.permute.xlu0 %2312
        %2314 = vrot.lane.b32.xlu0 %v1295, 16
        %v2315 = vpop.permute.xlu0 %2314
        %2316 = vrot.lane.b32.xlu0 %v1296, 16
        %v2317 = vpop.permute.xlu0 %2316
        %2318 = vrot.lane.b32.xlu0 %v1297, 16
        %v2319 = vpop.permute.xlu0 %2318
        %2320 = vrot.lane.b32.xlu0 %v1298, 16
        %v2321 = vpop.permute.xlu0 %2320
        %2322 = vrot.lane.b32.xlu0 %v1299, 16
        %v2323 = vpop.permute.xlu0 %2322
        %2324 = vrot.lane.b32.xlu0 %v1300, 16
        %v2325 = vpop.permute.xlu0 %2324
        %2326 = vrot.lane.b32.xlu0 %v1301, 16
        %v2327 = vpop.permute.xlu0 %2326
        %v2330 = vsel %vm1305, %v1270, %v2297
        %v2333 = vsel %vm1305, %v1271, %v2299
        %v2336 = vsel %vm1305, %v1272, %v2301
        %v2339 = vsel %vm1305, %v1273, %v2303
        %v2342 = vsel %vm1305, %v1274, %v2305
        %v2345 = vsel %vm1305, %v1275, %v2307
        %v2348 = vsel %vm1305, %v1276, %v2309
        %v2351 = vsel %vm1305, %v1277, %v2311
        %v2354 = vsel %vm1305, %v1278, %v2313
        %v2357 = vsel %vm1305, %v1279, %v2315
        %v2360 = vsel %vm1305, %v1280, %v2317
        %v2363 = vsel %vm1305, %v1281, %v2319
        %v2366 = vsel %vm1305, %v1282, %v2321
        %v2369 = vsel %vm1305, %v1283, %v2323
        %v2372 = vsel %vm1305, %v1284, %v2325
        %v2375 = vsel %vm1305, %v1285, %v2327
        %v2377 = vsel %vm2087, %v2264, 0
        %vm2379 = vcmask 1043456
        %v2380 = vsel %vm2379, %v2330, 0
        %2382 = vmatprep.subr.bf16.mxu0 0
        %2383 = vmatpush1.bf16.msra.mxu0 %v2380
        %2384 = vmatprep.subr.bf16.mxu0 0
        %2385 = vmatpush1.bf16.msra.mxu0 0
        %2386 = vmatprep.subr.bf16.mxu0 0
        %2387 = vmatpush1.bf16.msra.mxu0 0
        %2388 = vmatprep.subr.bf16.mxu0 0
        %2389 = vmatpush1.bf16.msra.mxu0 0
        %2390 = vmatprep.subr.bf16.mxu0 0
        %2391 = vmatpush1.bf16.msra.mxu0 0
        %2392 = vmatprep.subr.bf16.mxu0 0
        %2393 = vmatpush1.bf16.msra.mxu0 0
        %2394 = vmatprep.subr.bf16.mxu0 0
        %2395 = vmatpush1.bf16.msra.mxu0 0
        %2396 = vmatprep.subr.bf16.mxu0 0
        %2397 = vmatpush1.bf16.msra.mxu0 0
        %2398 = vmatprep.subr.bf16.mxu0 0
        %2399 = vmatpush1.bf16.msra.mxu0 0
        %2400 = vmatprep.subr.bf16.mxu0 0
        %2401 = vmatpush1.bf16.msra.mxu0 0
        %2402 = vmatprep.subr.bf16.mxu0 0
        %2403 = vmatpush1.bf16.msra.mxu0 0
        %2404 = vmatprep.subr.bf16.mxu0 0
        %2405 = vmatpush1.bf16.msra.mxu0 0
        %2406 = vmatprep.subr.bf16.mxu0 0
        %2407 = vmatpush1.bf16.msra.mxu0 0
        %2408 = vmatprep.subr.bf16.mxu0 0
        %2409 = vmatpush1.bf16.msra.mxu0 0
        %2410 = vmatprep.subr.bf16.mxu0 0
        %2411 = vmatpush1.bf16.msra.mxu0 0
        %2412 = vmatprep.subr.bf16.mxu0 0
        %2413 = vmatpush1.bf16.msra.mxu0 0
        %2414 = vmatprep.mubr.bf16.mxu0 0
        %2415 = vmatmul.mubr.bf16.gmra.mrb[0].mxu0 %v2377
        %v2416 = vpop.f32.mrb[0].mxu0
        %v2417 = vadd.f32 0.0, %v2416
        %v2418 = vpop.f32.mrb[0].mxu0
        %v2419 = vpop.f32.mrb[0].mxu0
        %v2420 = vpop.f32.mrb[0].mxu0
        %2421 = vdwg.mxu0
        %v2423 = vsel %vm2087, %v2265, 0
        %v2425 = vsel %vm2379, %v2333, 0
        %2427 = vmatprep.subr.bf16.mxu0 0
        %2428 = vmatpush1.bf16.msra.mxu0 %v2425
        %2429 = vmatprep.subr.bf16.mxu0 0
        %2430 = vmatpush1.bf16.msra.mxu0 0
        %2431 = vmatprep.subr.bf16.mxu0 0
        %2432 = vmatpush1.bf16.msra.mxu0 0
        %2433 = vmatprep.subr.bf16.mxu0 0
        %2434 = vmatpush1.bf16.msra.mxu0 0
        %2435 = vmatprep.subr.bf16.mxu0 0
        %2436 = vmatpush1.bf16.msra.mxu0 0
        %2437 = vmatprep.subr.bf16.mxu0 0
        %2438 = vmatpush1.bf16.msra.mxu0 0
        %2439 = vmatprep.subr.bf16.mxu0 0
        %2440 = vmatpush1.bf16.msra.mxu0 0
        %2441 = vmatprep.subr.bf16.mxu0 0
        %2442 = vmatpush1.bf16.msra.mxu0 0
        %2443 = vmatprep.subr.bf16.mxu0 0
        %2444 = vmatpush1.bf16.msra.mxu0 0
        %2445 = vmatprep.subr.bf16.mxu0 0
        %2446 = vmatpush1.bf16.msra.mxu0 0
        %2447 = vmatprep.subr.bf16.mxu0 0
        %2448 = vmatpush1.bf16.msra.mxu0 0
        %2449 = vmatprep.subr.bf16.mxu0 0
        %2450 = vmatpush1.bf16.msra.mxu0 0
        %2451 = vmatprep.subr.bf16.mxu0 0
        %2452 = vmatpush1.bf16.msra.mxu0 0
        %2453 = vmatprep.subr.bf16.mxu0 0
        %2454 = vmatpush1.bf16.msra.mxu0 0
        %2455 = vmatprep.subr.bf16.mxu0 0
        %2456 = vmatpush1.bf16.msra.mxu0 0
        %2457 = vmatprep.subr.bf16.mxu0 0
        %2458 = vmatpush1.bf16.msra.mxu0 0
        %2459 = vmatprep.mubr.bf16.mxu0 0
        %2460 = vmatmul.mubr.bf16.gmra.mrb[0].mxu0 %v2423
        %v2461 = vpop.f32.mrb[0].mxu0
        %v2462 = vadd.f32 0.0, %v2461
        %v2463 = vpop.f32.mrb[0].mxu0
        %v2464 = vpop.f32.mrb[0].mxu0
        %v2465 = vpop.f32.mrb[0].mxu0
        %2466 = vdwg.mxu0
        %v2468 = vsel %vm2087, %v2266, 0
        %v2470 = vsel %vm2379, %v2336, 0
        %2472 = vmatprep.subr.bf16.mxu0 0
        %2473 = vmatpush1.bf16.msra.mxu0 %v2470
        %2474 = vmatprep.subr.bf16.mxu0 0
        %2475 = vmatpush1.bf16.msra.mxu0 0
        %2476 = vmatprep.subr.bf16.mxu0 0
        %2477 = vmatpush1.bf16.msra.mxu0 0
        %2478 = vmatprep.subr.bf16.mxu0 0
        %2479 = vmatpush1.bf16.msra.mxu0 0
        %2480 = vmatprep.subr.bf16.mxu0 0
        %2481 = vmatpush1.bf16.msra.mxu0 0
        %2482 = vmatprep.subr.bf16.mxu0 0
        %2483 = vmatpush1.bf16.msra.mxu0 0
        %2484 = vmatprep.subr.bf16.mxu0 0
        %2485 = vmatpush1.bf16.msra.mxu0 0
        %2486 = vmatprep.subr.bf16.mxu0 0
        %2487 = vmatpush1.bf16.msra.mxu0 0
        %2488 = vmatprep.subr.bf16.mxu0 0
        %2489 = vmatpush1.bf16.msra.mxu0 0
        %2490 = vmatprep.subr.bf16.mxu0 0
        %2491 = vmatpush1.bf16.msra.mxu0 0
        %2492 = vmatprep.subr.bf16.mxu0 0
        %2493 = vmatpush1.bf16.msra.mxu0 0
        %2494 = vmatprep.subr.bf16.mxu0 0
        %2495 = vmatpush1.bf16.msra.mxu0 0
        %2496 = vmatprep.subr.bf16.mxu0 0
        %2497 = vmatpush1.bf16.msra.mxu0 0
        %2498 = vmatprep.subr.bf16.mxu0 0
        %2499 = vmatpush1.bf16.msra.mxu0 0
        %2500 = vmatprep.subr.bf16.mxu0 0
        %2501 = vmatpush1.bf16.msra.mxu0 0
        %2502 = vmatprep.subr.bf16.mxu0 0
        %2503 = vmatpush1.bf16.msra.mxu0 0
        %2504 = vmatprep.mubr.bf16.mxu0 0
        %2505 = vmatmul.mubr.bf16.gmra.mrb[0].mxu0 %v2468
        %v2506 = vpop.f32.mrb[0].mxu0
        %v2507 = vadd.f32 0.0, %v2506
        %v2508 = vpop.f32.mrb[0].mxu0
        %v2509 = vpop.f32.mrb[0].mxu0
        %v2510 = vpop.f32.mrb[0].mxu0
        %2511 = vdwg.mxu0
        %v2513 = vsel %vm2087, %v2267, 0
        %v2515 = vsel %vm2379, %v2339, 0
        %2517 = vmatprep.subr.bf16.mxu0 0
        %2518 = vmatpush1.bf16.msra.mxu0 %v2515
        %2519 = vmatprep.subr.bf16.mxu0 0
        %2520 = vmatpush1.bf16.msra.mxu0 0
        %2521 = vmatprep.subr.bf16.mxu0 0
        %2522 = vmatpush1.bf16.msra.mxu0 0
        %2523 = vmatprep.subr.bf16.mxu0 0
        %2524 = vmatpush1.bf16.msra.mxu0 0
        %2525 = vmatprep.subr.bf16.mxu0 0
        %2526 = vmatpush1.bf16.msra.mxu0 0
        %2527 = vmatprep.subr.bf16.mxu0 0
        %2528 = vmatpush1.bf16.msra.mxu0 0
        %2529 = vmatprep.subr.bf16.mxu0 0
        %2530 = vmatpush1.bf16.msra.mxu0 0
        %2531 = vmatprep.subr.bf16.mxu0 0
        %2532 = vmatpush1.bf16.msra.mxu0 0
        %2533 = vmatprep.subr.bf16.mxu0 0
        %2534 = vmatpush1.bf16.msra.mxu0 0
        %2535 = vmatprep.subr.bf16.mxu0 0
        %2536 = vmatpush1.bf16.msra.mxu0 0
        %2537 = vmatprep.subr.bf16.mxu0 0
        %2538 = vmatpush1.bf16.msra.mxu0 0
        %2539 = vmatprep.subr.bf16.mxu0 0
        %2540 = vmatpush1.bf16.msra.mxu0 0
        %2541 = vmatprep.subr.bf16.mxu0 0
        %2542 = vmatpush1.bf16.msra.mxu0 0
        %2543 = vmatprep.subr.bf16.mxu0 0
        %2544 = vmatpush1.bf16.msra.mxu0 0
        %2545 = vmatprep.subr.bf16.mxu0 0
        %2546 = vmatpush1.bf16.msra.mxu0 0
        %2547 = vmatprep.subr.bf16.mxu0 0
        %2548 = vmatpush1.bf16.msra.mxu0 0
        %2549 = vmatprep.mubr.bf16.mxu0 0
        %2550 = vmatmul.mubr.bf16.gmra.mrb[0].mxu0 %v2513
        %v2551 = vpop.f32.mrb[0].mxu0
        %v2552 = vadd.f32 0.0, %v2551
        %v2553 = vpop.f32.mrb[0].mxu0
        %v2554 = vpop.f32.mrb[0].mxu0
        %v2555 = vpop.f32.mrb[0].mxu0
        %2556 = vdwg.mxu0
        %v2558 = vsel %vm2087, %v2268, 0
        %v2560 = vsel %vm2379, %v2342, 0
        %2562 = vmatprep.subr.bf16.mxu0 0
        %2563 = vmatpush1.bf16.msra.mxu0 %v2560
        %2564 = vmatprep.subr.bf16.mxu0 0
        %2565 = vmatpush1.bf16.msra.mxu0 0
        %2566 = vmatprep.subr.bf16.mxu0 0
        %2567 = vmatpush1.bf16.msra.mxu0 0
        %2568 = vmatprep.subr.bf16.mxu0 0
        %2569 = vmatpush1.bf16.msra.mxu0 0
        %2570 = vmatprep.subr.bf16.mxu0 0
        %2571 = vmatpush1.bf16.msra.mxu0 0
        %2572 = vmatprep.subr.bf16.mxu0 0
        %2573 = vmatpush1.bf16.msra.mxu0 0
        %2574 = vmatprep.subr.bf16.mxu0 0
        %2575 = vmatpush1.bf16.msra.mxu0 0
        %2576 = vmatprep.subr.bf16.mxu0 0
        %2577 = vmatpush1.bf16.msra.mxu0 0
        %2578 = vmatprep.subr.bf16.mxu0 0
        %2579 = vmatpush1.bf16.msra.mxu0 0
        %2580 = vmatprep.subr.bf16.mxu0 0
        %2581 = vmatpush1.bf16.msra.mxu0 0
        %2582 = vmatprep.subr.bf16.mxu0 0
        %2583 = vmatpush1.bf16.msra.mxu0 0
        %2584 = vmatprep.subr.bf16.mxu0 0
        %2585 = vmatpush1.bf16.msra.mxu0 0
        %2586 = vmatprep.subr.bf16.mxu0 0
        %2587 = vmatpush1.bf16.msra.mxu0 0
        %2588 = vmatprep.subr.bf16.mxu0 0
        %2589 = vmatpush1.bf16.msra.mxu0 0
        %2590 = vmatprep.subr.bf16.mxu0 0
        %2591 = vmatpush1.bf16.msra.mxu0 0
        %2592 = vmatprep.subr.bf16.mxu0 0
        %2593 = vmatpush1.bf16.msra.mxu0 0
        %2594 = vmatprep.mubr.bf16.mxu0 0
        %2595 = vmatmul.mubr.bf16.gmra.mrb[0].mxu0 %v2558
        %v2596 = vpop.f32.mrb[0].mxu0
        %v2597 = vadd.f32 0.0, %v2596
        %v2598 = vpop.f32.mrb[0].mxu0
        %v2599 = vpop.f32.mrb[0].mxu0
        %v2600 = vpop.f32.mrb[0].mxu0
        %2601 = vdwg.mxu0
        %v2603 = vsel %vm2087, %v2269, 0
        %v2605 = vsel %vm2379, %v2345, 0
        %2607 = vmatprep.subr.bf16.mxu0 0
        %2608 = vmatpush1.bf16.msra.mxu0 %v2605
        %2609 = vmatprep.subr.bf16.mxu0 0
        %2610 = vmatpush1.bf16.msra.mxu0 0
        %2611 = vmatprep.subr.bf16.mxu0 0
        %2612 = vmatpush1.bf16.msra.mxu0 0
        %2613 = vmatprep.subr.bf16.mxu0 0
        %2614 = vmatpush1.bf16.msra.mxu0 0
        %2615 = vmatprep.subr.bf16.mxu0 0
        %2616 = vmatpush1.bf16.msra.mxu0 0
        %2617 = vmatprep.subr.bf16.mxu0 0
        %2618 = vmatpush1.bf16.msra.mxu0 0
        %2619 = vmatprep.subr.bf16.mxu0 0
        %2620 = vmatpush1.bf16.msra.mxu0 0
        %2621 = vmatprep.subr.bf16.mxu0 0
        %2622 = vmatpush1.bf16.msra.mxu0 0
        %2623 = vmatprep.subr.bf16.mxu0 0
        %2624 = vmatpush1.bf16.msra.mxu0 0
        %2625 = vmatprep.subr.bf16.mxu0 0
        %2626 = vmatpush1.bf16.msra.mxu0 0
        %2627 = vmatprep.subr.bf16.mxu0 0
        %2628 = vmatpush1.bf16.msra.mxu0 0
        %2629 = vmatprep.subr.bf16.mxu0 0
        %2630 = vmatpush1.bf16.msra.mxu0 0
        %2631 = vmatprep.subr.bf16.mxu0 0
        %2632 = vmatpush1.bf16.msra.mxu0 0
        %2633 = vmatprep.subr.bf16.mxu0 0
        %2634 = vmatpush1.bf16.msra.mxu0 0
        %2635 = vmatprep.subr.bf16.mxu0 0
        %2636 = vmatpush1.bf16.msra.mxu0 0
        %2637 = vmatprep.subr.bf16.mxu0 0
        %2638 = vmatpush1.bf16.msra.mxu0 0
        %2639 = vmatprep.mubr.bf16.mxu0 0
        %2640 = vmatmul.mubr.bf16.gmra.mrb[0].mxu0 %v2603
        %v2641 = vpop.f32.mrb[0].mxu0
        %v2642 = vadd.f32 0.0, %v2641
        %v2643 = vpop.f32.mrb[0].mxu0
        %v2644 = vpop.f32.mrb[0].mxu0
        %v2645 = vpop.f32.mrb[0].mxu0
        %2646 = vdwg.mxu0
        %v2648 = vsel %vm2087, %v2270, 0
        %v2650 = vsel %vm2379, %v2348, 0
        %2652 = vmatprep.subr.bf16.mxu0 0
        %2653 = vmatpush1.bf16.msra.mxu0 %v2650
        %2654 = vmatprep.subr.bf16.mxu0 0
        %2655 = vmatpush1.bf16.msra.mxu0 0
        %2656 = vmatprep.subr.bf16.mxu0 0
        %2657 = vmatpush1.bf16.msra.mxu0 0
        %2658 = vmatprep.subr.bf16.mxu0 0
        %2659 = vmatpush1.bf16.msra.mxu0 0
        %2660 = vmatprep.subr.bf16.mxu0 0
        %2661 = vmatpush1.bf16.msra.mxu0 0
        %2662 = vmatprep.subr.bf16.mxu0 0
        %2663 = vmatpush1.bf16.msra.mxu0 0
        %2664 = vmatprep.subr.bf16.mxu0 0
        %2665 = vmatpush1.bf16.msra.mxu0 0
        %2666 = vmatprep.subr.bf16.mxu0 0
        %2667 = vmatpush1.bf16.msra.mxu0 0
        %2668 = vmatprep.subr.bf16.mxu0 0
        %2669 = vmatpush1.bf16.msra.mxu0 0
        %2670 = vmatprep.subr.bf16.mxu0 0
        %2671 = vmatpush1.bf16.msra.mxu0 0
        %2672 = vmatprep.subr.bf16.mxu0 0
        %2673 = vmatpush1.bf16.msra.mxu0 0
        %2674 = vmatprep.subr.bf16.mxu0 0
        %2675 = vmatpush1.bf16.msra.mxu0 0
        %2676 = vmatprep.subr.bf16.mxu0 0
        %2677 = vmatpush1.bf16.msra.mxu0 0
        %2678 = vmatprep.subr.bf16.mxu0 0
        %2679 = vmatpush1.bf16.msra.mxu0 0
        %2680 = vmatprep.subr.bf16.mxu0 0
        %2681 = vmatpush1.bf16.msra.mxu0 0
        %2682 = vmatprep.subr.bf16.mxu0 0
        %2683 = vmatpush1.bf16.msra.mxu0 0
        %2684 = vmatprep.mubr.bf16.mxu0 0
        %2685 = vmatmul.mubr.bf16.gmra.mrb[0].mxu0 %v2648
        %v2686 = vpop.f32.mrb[0].mxu0
        %v2687 = vadd.f32 0.0, %v2686
        %v2688 = vpop.f32.mrb[0].mxu0
        %v2689 = vpop.f32.mrb[0].mxu0
        %v2690 = vpop.f32.mrb[0].mxu0
        %2691 = vdwg.mxu0
        %v2693 = vsel %vm2087, %v2271, 0
        %v2695 = vsel %vm2379, %v2351, 0
        %2697 = vmatprep.subr.bf16.mxu0 0
        %2698 = vmatpush1.bf16.msra.mxu0 %v2695
        %2699 = vmatprep.subr.bf16.mxu0 0
        %2700 = vmatpush1.bf16.msra.mxu0 0
        %2701 = vmatprep.subr.bf16.mxu0 0
        %2702 = vmatpush1.bf16.msra.mxu0 0
        %2703 = vmatprep.subr.bf16.mxu0 0
        %2704 = vmatpush1.bf16.msra.mxu0 0
        %2705 = vmatprep.subr.bf16.mxu0 0
        %2706 = vmatpush1.bf16.msra.mxu0 0
        %2707 = vmatprep.subr.bf16.mxu0 0
        %2708 = vmatpush1.bf16.msra.mxu0 0
        %2709 = vmatprep.subr.bf16.mxu0 0
        %2710 = vmatpush1.bf16.msra.mxu0 0
        %2711 = vmatprep.subr.bf16.mxu0 0
        %2712 = vmatpush1.bf16.msra.mxu0 0
        %2713 = vmatprep.subr.bf16.mxu0 0
        %2714 = vmatpush1.bf16.msra.mxu0 0
        %2715 = vmatprep.subr.bf16.mxu0 0
        %2716 = vmatpush1.bf16.msra.mxu0 0
        %2717 = vmatprep.subr.bf16.mxu0 0
        %2718 = vmatpush1.bf16.msra.mxu0 0
        %2719 = vmatprep.subr.bf16.mxu0 0
        %2720 = vmatpush1.bf16.msra.mxu0 0
        %2721 = vmatprep.subr.bf16.mxu0 0
        %2722 = vmatpush1.bf16.msra.mxu0 0
        %2723 = vmatprep.subr.bf16.mxu0 0
        %2724 = vmatpush1.bf16.msra.mxu0 0
        %2725 = vmatprep.subr.bf16.mxu0 0
        %2726 = vmatpush1.bf16.msra.mxu0 0
        %2727 = vmatprep.subr.bf16.mxu0 0
        %2728 = vmatpush1.bf16.msra.mxu0 0
        %2729 = vmatprep.mubr.bf16.mxu0 0
        %2730 = vmatmul.mubr.bf16.gmra.mrb[0].mxu0 %v2693
        %v2731 = vpop.f32.mrb[0].mxu0
        %v2732 = vadd.f32 0.0, %v2731
        %v2733 = vpop.f32.mrb[0].mxu0
        %v2734 = vpop.f32.mrb[0].mxu0
        %v2735 = vpop.f32.mrb[0].mxu0
        %2736 = vdwg.mxu0
        %v2738 = vsel %vm2087, %v2272, 0
        %v2740 = vsel %vm2379, %v2354, 0
        %2742 = vmatprep.subr.bf16.mxu0 0
        %2743 = vmatpush1.bf16.msra.mxu0 %v2740
        %2744 = vmatprep.subr.bf16.mxu0 0
        %2745 = vmatpush1.bf16.msra.mxu0 0
        %2746 = vmatprep.subr.bf16.mxu0 0
        %2747 = vmatpush1.bf16.msra.mxu0 0
        %2748 = vmatprep.subr.bf16.mxu0 0
        %2749 = vmatpush1.bf16.msra.mxu0 0
        %2750 = vmatprep.subr.bf16.mxu0 0
        %2751 = vmatpush1.bf16.msra.mxu0 0
        %2752 = vmatprep.subr.bf16.mxu0 0
        %2753 = vmatpush1.bf16.msra.mxu0 0
        %2754 = vmatprep.subr.bf16.mxu0 0
        %2755 = vmatpush1.bf16.msra.mxu0 0
        %2756 = vmatprep.subr.bf16.mxu0 0
        %2757 = vmatpush1.bf16.msra.mxu0 0
        %2758 = vmatprep.subr.bf16.mxu0 0
        %2759 = vmatpush1.bf16.msra.mxu0 0
        %2760 = vmatprep.subr.bf16.mxu0 0
        %2761 = vmatpush1.bf16.msra.mxu0 0
        %2762 = vmatprep.subr.bf16.mxu0 0
        %2763 = vmatpush1.bf16.msra.mxu0 0
        %2764 = vmatprep.subr.bf16.mxu0 0
        %2765 = vmatpush1.bf16.msra.mxu0 0
        %2766 = vmatprep.subr.bf16.mxu0 0
        %2767 = vmatpush1.bf16.msra.mxu0 0
        %2768 = vmatprep.subr.bf16.mxu0 0
        %2769 = vmatpush1.bf16.msra.mxu0 0
        %2770 = vmatprep.subr.bf16.mxu0 0
        %2771 = vmatpush1.bf16.msra.mxu0 0
        %2772 = vmatprep.subr.bf16.mxu0 0
        %2773 = vmatpush1.bf16.msra.mxu0 0
        %2774 = vmatprep.mubr.bf16.mxu0 0
        %2775 = vmatmul.mubr.bf16.gmra.mrb[0].mxu0 %v2738
        %v2776 = vpop.f32.mrb[0].mxu0
        %v2777 = vadd.f32 0.0, %v2776
        %v2778 = vpop.f32.mrb[0].mxu0
        %v2779 = vpop.f32.mrb[0].mxu0
        %v2780 = vpop.f32.mrb[0].mxu0
        %2781 = vdwg.mxu0
        %v2783 = vsel %vm2087, %v2273, 0
        %v2785 = vsel %vm2379, %v2357, 0
        %2787 = vmatprep.subr.bf16.mxu0 0
        %2788 = vmatpush1.bf16.msra.mxu0 %v2785
        %2789 = vmatprep.subr.bf16.mxu0 0
        %2790 = vmatpush1.bf16.msra.mxu0 0
        %2791 = vmatprep.subr.bf16.mxu0 0
        %2792 = vmatpush1.bf16.msra.mxu0 0
        %2793 = vmatprep.subr.bf16.mxu0 0
        %2794 = vmatpush1.bf16.msra.mxu0 0
        %2795 = vmatprep.subr.bf16.mxu0 0
        %2796 = vmatpush1.bf16.msra.mxu0 0
        %2797 = vmatprep.subr.bf16.mxu0 0
        %2798 = vmatpush1.bf16.msra.mxu0 0
        %2799 = vmatprep.subr.bf16.mxu0 0
        %2800 = vmatpush1.bf16.msra.mxu0 0
        %2801 = vmatprep.subr.bf16.mxu0 0
        %2802 = vmatpush1.bf16.msra.mxu0 0
        %2803 = vmatprep.subr.bf16.mxu0 0
        %2804 = vmatpush1.bf16.msra.mxu0 0
        %2805 = vmatprep.subr.bf16.mxu0 0
        %2806 = vmatpush1.bf16.msra.mxu0 0
        %2807 = vmatprep.subr.bf16.mxu0 0
        %2808 = vmatpush1.bf16.msra.mxu0 0
        %2809 = vmatprep.subr.bf16.mxu0 0
        %2810 = vmatpush1.bf16.msra.mxu0 0
        %2811 = vmatprep.subr.bf16.mxu0 0
        %2812 = vmatpush1.bf16.msra.mxu0 0
        %2813 = vmatprep.subr.bf16.mxu0 0
        %2814 = vmatpush1.bf16.msra.mxu0 0
        %2815 = vmatprep.subr.bf16.mxu0 0
        %2816 = vmatpush1.bf16.msra.mxu0 0
        %2817 = vmatprep.subr.bf16.mxu0 0
        %2818 = vmatpush1.bf16.msra.mxu0 0
        %2819 = vmatprep.mubr.bf16.mxu0 0
        %2820 = vmatmul.mubr.bf16.gmra.mrb[0].mxu0 %v2783
        %v2821 = vpop.f32.mrb[0].mxu0
        %v2822 = vadd.f32 0.0, %v2821
        %v2823 = vpop.f32.mrb[0].mxu0
        %v2824 = vpop.f32.mrb[0].mxu0
        %v2825 = vpop.f32.mrb[0].mxu0
        %2826 = vdwg.mxu0
        %v2828 = vsel %vm2087, %v2274, 0
        %v2830 = vsel %vm2379, %v2360, 0
        %2832 = vmatprep.subr.bf16.mxu0 0
        %2833 = vmatpush1.bf16.msra.mxu0 %v2830
        %2834 = vmatprep.subr.bf16.mxu0 0
        %2835 = vmatpush1.bf16.msra.mxu0 0
        %2836 = vmatprep.subr.bf16.mxu0 0
        %2837 = vmatpush1.bf16.msra.mxu0 0
        %2838 = vmatprep.subr.bf16.mxu0 0
        %2839 = vmatpush1.bf16.msra.mxu0 0
        %2840 = vmatprep.subr.bf16.mxu0 0
        %2841 = vmatpush1.bf16.msra.mxu0 0
        %2842 = vmatprep.subr.bf16.mxu0 0
        %2843 = vmatpush1.bf16.msra.mxu0 0
        %2844 = vmatprep.subr.bf16.mxu0 0
        %2845 = vmatpush1.bf16.msra.mxu0 0
        %2846 = vmatprep.subr.bf16.mxu0 0
        %2847 = vmatpush1.bf16.msra.mxu0 0
        %2848 = vmatprep.subr.bf16.mxu0 0
        %2849 = vmatpush1.bf16.msra.mxu0 0
        %2850 = vmatprep.subr.bf16.mxu0 0
        %2851 = vmatpush1.bf16.msra.mxu0 0
        %2852 = vmatprep.subr.bf16.mxu0 0
        %2853 = vmatpush1.bf16.msra.mxu0 0
        %2854 = vmatprep.subr.bf16.mxu0 0
        %2855 = vmatpush1.bf16.msra.mxu0 0
        %2856 = vmatprep.subr.bf16.mxu0 0
        %2857 = vmatpush1.bf16.msra.mxu0 0
        %2858 = vmatprep.subr.bf16.mxu0 0
        %2859 = vmatpush1.bf16.msra.mxu0 0
        %2860 = vmatprep.subr.bf16.mxu0 0
        %2861 = vmatpush1.bf16.msra.mxu0 0
        %2862 = vmatprep.subr.bf16.mxu0 0
        %2863 = vmatpush1.bf16.msra.mxu0 0
        %2864 = vmatprep.mubr.bf16.mxu0 0
        %2865 = vmatmul.mubr.bf16.gmra.mrb[0].mxu0 %v2828
        %v2866 = vpop.f32.mrb[0].mxu0
        %v2867 = vadd.f32 0.0, %v2866
        %v2868 = vpop.f32.mrb[0].mxu0
        %v2869 = vpop.f32.mrb[0].mxu0
        %v2870 = vpop.f32.mrb[0].mxu0
        %2871 = vdwg.mxu0
        %v2873 = vsel %vm2087, %v2275, 0
        %v2875 = vsel %vm2379, %v2363, 0
        %2877 = vmatprep.subr.bf16.mxu0 0
        %2878 = vmatpush1.bf16.msra.mxu0 %v2875
        %2879 = vmatprep.subr.bf16.mxu0 0
        %2880 = vmatpush1.bf16.msra.mxu0 0
        %2881 = vmatprep.subr.bf16.mxu0 0
        %2882 = vmatpush1.bf16.msra.mxu0 0
        %2883 = vmatprep.subr.bf16.mxu0 0
        %2884 = vmatpush1.bf16.msra.mxu0 0
        %2885 = vmatprep.subr.bf16.mxu0 0
        %2886 = vmatpush1.bf16.msra.mxu0 0
        %2887 = vmatprep.subr.bf16.mxu0 0
        %2888 = vmatpush1.bf16.msra.mxu0 0
        %2889 = vmatprep.subr.bf16.mxu0 0
        %2890 = vmatpush1.bf16.msra.mxu0 0
        %2891 = vmatprep.subr.bf16.mxu0 0
        %2892 = vmatpush1.bf16.msra.mxu0 0
        %2893 = vmatprep.subr.bf16.mxu0 0
        %2894 = vmatpush1.bf16.msra.mxu0 0
        %2895 = vmatprep.subr.bf16.mxu0 0
        %2896 = vmatpush1.bf16.msra.mxu0 0
        %2897 = vmatprep.subr.bf16.mxu0 0
        %2898 = vmatpush1.bf16.msra.mxu0 0
        %2899 = vmatprep.subr.bf16.mxu0 0
        %2900 = vmatpush1.bf16.msra.mxu0 0
        %2901 = vmatprep.subr.bf16.mxu0 0
        %2902 = vmatpush1.bf16.msra.mxu0 0
        %2903 = vmatprep.subr.bf16.mxu0 0
        %2904 = vmatpush1.bf16.msra.mxu0 0
        %2905 = vmatprep.subr.bf16.mxu0 0
        %2906 = vmatpush1.bf16.msra.mxu0 0
        %2907 = vmatprep.subr.bf16.mxu0 0
        %2908 = vmatpush1.bf16.msra.mxu0 0
        %2909 = vmatprep.mubr.bf16.mxu0 0
        %2910 = vmatmul.mubr.bf16.gmra.mrb[0].mxu0 %v2873
        %v2911 = vpop.f32.mrb[0].mxu0
        %v2912 = vadd.f32 0.0, %v2911
        %v2913 = vpop.f32.mrb[0].mxu0
        %v2914 = vpop.f32.mrb[0].mxu0
        %v2915 = vpop.f32.mrb[0].mxu0
        %2916 = vdwg.mxu0
        %v2918 = vsel %vm2087, %v2276, 0
        %v2920 = vsel %vm2379, %v2366, 0
        %2922 = vmatprep.subr.bf16.mxu0 0
        %2923 = vmatpush1.bf16.msra.mxu0 %v2920
        %2924 = vmatprep.subr.bf16.mxu0 0
        %2925 = vmatpush1.bf16.msra.mxu0 0
        %2926 = vmatprep.subr.bf16.mxu0 0
        %2927 = vmatpush1.bf16.msra.mxu0 0
        %2928 = vmatprep.subr.bf16.mxu0 0
        %2929 = vmatpush1.bf16.msra.mxu0 0
        %2930 = vmatprep.subr.bf16.mxu0 0
        %2931 = vmatpush1.bf16.msra.mxu0 0
        %2932 = vmatprep.subr.bf16.mxu0 0
        %2933 = vmatpush1.bf16.msra.mxu0 0
        %2934 = vmatprep.subr.bf16.mxu0 0
        %2935 = vmatpush1.bf16.msra.mxu0 0
        %2936 = vmatprep.subr.bf16.mxu0 0
        %2937 = vmatpush1.bf16.msra.mxu0 0
        %2938 = vmatprep.subr.bf16.mxu0 0
        %2939 = vmatpush1.bf16.msra.mxu0 0
        %2940 = vmatprep.subr.bf16.mxu0 0
        %2941 = vmatpush1.bf16.msra.mxu0 0
        %2942 = vmatprep.subr.bf16.mxu0 0
        %2943 = vmatpush1.bf16.msra.mxu0 0
        %2944 = vmatprep.subr.bf16.mxu0 0
        %2945 = vmatpush1.bf16.msra.mxu0 0
        %2946 = vmatprep.subr.bf16.mxu0 0
        %2947 = vmatpush1.bf16.msra.mxu0 0
        %2948 = vmatprep.subr.bf16.mxu0 0
        %2949 = vmatpush1.bf16.msra.mxu0 0
        %2950 = vmatprep.subr.bf16.mxu0 0
        %2951 = vmatpush1.bf16.msra.mxu0 0
        %2952 = vmatprep.subr.bf16.mxu0 0
        %2953 = vmatpush1.bf16.msra.mxu0 0
        %2954 = vmatprep.mubr.bf16.mxu0 0
        %2955 = vmatmul.mubr.bf16.gmra.mrb[0].mxu0 %v2918
        %v2956 = vpop.f32.mrb[0].mxu0
        %v2957 = vadd.f32 0.0, %v2956
        %v2958 = vpop.f32.mrb[0].mxu0
        %v2959 = vpop.f32.mrb[0].mxu0
        %v2960 = vpop.f32.mrb[0].mxu0
        %2961 = vdwg.mxu0
        %v2963 = vsel %vm2087, %v2277, 0
        %v2965 = vsel %vm2379, %v2369, 0
        %2967 = vmatprep.subr.bf16.mxu0 0
        %2968 = vmatpush1.bf16.msra.mxu0 %v2965
        %2969 = vmatprep.subr.bf16.mxu0 0
        %2970 = vmatpush1.bf16.msra.mxu0 0
        %2971 = vmatprep.subr.bf16.mxu0 0
        %2972 = vmatpush1.bf16.msra.mxu0 0
        %2973 = vmatprep.subr.bf16.mxu0 0
        %2974 = vmatpush1.bf16.msra.mxu0 0
        %2975 = vmatprep.subr.bf16.mxu0 0
        %2976 = vmatpush1.bf16.msra.mxu0 0
        %2977 = vmatprep.subr.bf16.mxu0 0
        %2978 = vmatpush1.bf16.msra.mxu0 0
        %2979 = vmatprep.subr.bf16.mxu0 0
        %2980 = vmatpush1.bf16.msra.mxu0 0
        %2981 = vmatprep.subr.bf16.mxu0 0
        %2982 = vmatpush1.bf16.msra.mxu0 0
        %2983 = vmatprep.subr.bf16.mxu0 0
        %2984 = vmatpush1.bf16.msra.mxu0 0
        %2985 = vmatprep.subr.bf16.mxu0 0
        %2986 = vmatpush1.bf16.msra.mxu0 0
        %2987 = vmatprep.subr.bf16.mxu0 0
        %2988 = vmatpush1.bf16.msra.mxu0 0
        %2989 = vmatprep.subr.bf16.mxu0 0
        %2990 = vmatpush1.bf16.msra.mxu0 0
        %2991 = vmatprep.subr.bf16.mxu0 0
        %2992 = vmatpush1.bf16.msra.mxu0 0
        %2993 = vmatprep.subr.bf16.mxu0 0
        %2994 = vmatpush1.bf16.msra.mxu0 0
        %2995 = vmatprep.subr.bf16.mxu0 0
        %2996 = vmatpush1.bf16.msra.mxu0 0
        %2997 = vmatprep.subr.bf16.mxu0 0
        %2998 = vmatpush1.bf16.msra.mxu0 0
        %2999 = vmatprep.mubr.bf16.mxu0 0
        %3000 = vmatmul.mubr.bf16.gmra.mrb[0].mxu0 %v2963
        %v3001 = vpop.f32.mrb[0].mxu0
        %v3002 = vadd.f32 0.0, %v3001
        %v3003 = vpop.f32.mrb[0].mxu0
        %v3004 = vpop.f32.mrb[0].mxu0
        %v3005 = vpop.f32.mrb[0].mxu0
        %3006 = vdwg.mxu0
        %v3008 = vsel %vm2087, %v2278, 0
        %v3010 = vsel %vm2379, %v2372, 0
        %3012 = vmatprep.subr.bf16.mxu0 0
        %3013 = vmatpush1.bf16.msra.mxu0 %v3010
        %3014 = vmatprep.subr.bf16.mxu0 0
        %3015 = vmatpush1.bf16.msra.mxu0 0
        %3016 = vmatprep.subr.bf16.mxu0 0
        %3017 = vmatpush1.bf16.msra.mxu0 0
        %3018 = vmatprep.subr.bf16.mxu0 0
        %3019 = vmatpush1.bf16.msra.mxu0 0
        %3020 = vmatprep.subr.bf16.mxu0 0
        %3021 = vmatpush1.bf16.msra.mxu0 0
        %3022 = vmatprep.subr.bf16.mxu0 0
        %3023 = vmatpush1.bf16.msra.mxu0 0
        %3024 = vmatprep.subr.bf16.mxu0 0
        %3025 = vmatpush1.bf16.msra.mxu0 0
        %3026 = vmatprep.subr.bf16.mxu0 0
        %3027 = vmatpush1.bf16.msra.mxu0 0
        %3028 = vmatprep.subr.bf16.mxu0 0
        %3029 = vmatpush1.bf16.msra.mxu0 0
        %3030 = vmatprep.subr.bf16.mxu0 0
        %3031 = vmatpush1.bf16.msra.mxu0 0
        %3032 = vmatprep.subr.bf16.mxu0 0
        %3033 = vmatpush1.bf16.msra.mxu0 0
        %3034 = vmatprep.subr.bf16.mxu0 0
        %3035 = vmatpush1.bf16.msra.mxu0 0
        %3036 = vmatprep.subr.bf16.mxu0 0
        %3037 = vmatpush1.bf16.msra.mxu0 0
        %3038 = vmatprep.subr.bf16.mxu0 0
        %3039 = vmatpush1.bf16.msra.mxu0 0
        %3040 = vmatprep.subr.bf16.mxu0 0
        %3041 = vmatpush1.bf16.msra.mxu0 0
        %3042 = vmatprep.subr.bf16.mxu0 0
        %3043 = vmatpush1.bf16.msra.mxu0 0
        %3044 = vmatprep.mubr.bf16.mxu0 0
        %3045 = vmatmul.mubr.bf16.gmra.mrb[0].mxu0 %v3008
        %v3046 = vpop.f32.mrb[0].mxu0
        %v3047 = vadd.f32 0.0, %v3046
        %v3048 = vpop.f32.mrb[0].mxu0
        %v3049 = vpop.f32.mrb[0].mxu0
        %v3050 = vpop.f32.mrb[0].mxu0
        %3051 = vdwg.mxu0
        %v3053 = vsel %vm2087, %v2279, 0
        %v3055 = vsel %vm2379, %v2375, 0
        %3057 = vmatprep.subr.bf16.mxu0 0
        %3058 = vmatpush1.bf16.msra.mxu0 %v3055
        %3059 = vmatprep.subr.bf16.mxu0 0
        %3060 = vmatpush1.bf16.msra.mxu0 0
        %3061 = vmatprep.subr.bf16.mxu0 0
        %3062 = vmatpush1.bf16.msra.mxu0 0
        %3063 = vmatprep.subr.bf16.mxu0 0
        %3064 = vmatpush1.bf16.msra.mxu0 0
        %3065 = vmatprep.subr.bf16.mxu0 0
        %3066 = vmatpush1.bf16.msra.mxu0 0
        %3067 = vmatprep.subr.bf16.mxu0 0
        %3068 = vmatpush1.bf16.msra.mxu0 0
        %3069 = vmatprep.subr.bf16.mxu0 0
        %3070 = vmatpush1.bf16.msra.mxu0 0
        %3071 = vmatprep.subr.bf16.mxu0 0
        %3072 = vmatpush1.bf16.msra.mxu0 0
        %3073 = vmatprep.subr.bf16.mxu0 0
        %3074 = vmatpush1.bf16.msra.mxu0 0
        %3075 = vmatprep.subr.bf16.mxu0 0
        %3076 = vmatpush1.bf16.msra.mxu0 0
        %3077 = vmatprep.subr.bf16.mxu0 0
        %3078 = vmatpush1.bf16.msra.mxu0 0
        %3079 = vmatprep.subr.bf16.mxu0 0
        %3080 = vmatpush1.bf16.msra.mxu0 0
        %3081 = vmatprep.subr.bf16.mxu0 0
        %3082 = vmatpush1.bf16.msra.mxu0 0
        %3083 = vmatprep.subr.bf16.mxu0 0
        %3084 = vmatpush1.bf16.msra.mxu0 0
        %3085 = vmatprep.subr.bf16.mxu0 0
        %3086 = vmatpush1.bf16.msra.mxu0 0
        %3087 = vmatprep.subr.bf16.mxu0 0
        %3088 = vmatpush1.bf16.msra.mxu0 0
        %3089 = vmatprep.mubr.bf16.mxu0 0
        %3090 = vmatmul.mubr.bf16.gmra.mrb[0].mxu0 %v3053
        %v3091 = vpop.f32.mrb[0].mxu0
        %v3092 = vadd.f32 0.0, %v3091
        %v3093 = vpop.f32.mrb[0].mxu0
        %v3094 = vpop.f32.mrb[0].mxu0
        %v3095 = vpop.f32.mrb[0].mxu0
        %3096 = vdwg.mxu0
        %v3097 = vld [vmem:[%s4] sm:$0xf]
        %v3098 = vld [vmem:[%s4 + $0x4] sm:$0xf]
        %v3099 = vld [vmem:[%s4 + $0x8] sm:$0xf]
        %v3100 = vld [vmem:[%s4 + $0xc] sm:$0xf]
        %v3101 = vpack.c.bf16 %v2462, %v2417
        %v3102 = vpack.c.bf16 %v2552, %v2507
        %v3103 = vpack.c.bf16 %v2642, %v2597
        %v3104 = vpack.c.bf16 %v2732, %v2687
        %v3105 = vpack.c.bf16 %v2822, %v2777
        %v3106 = vpack.c.bf16 %v2912, %v2867
        %v3107 = vpack.c.bf16 %v3002, %v2957
        %v3108 = vpack.c.bf16 %v3092, %v3047
        %3110 = vrot.lane.b32.xlu0 %v1238, 112
        %v3111 = vpop.permute.xlu0 %3110
        %3112 = vrot.lane.b32.xlu0 %v1254, 48
        %v3113 = vpop.permute.xlu0 %3112
        %v3115 = vsel %vm1305, %v3111, 0
        %v3118 = vsel %vm1305, %v3113, 0
        %3120 = vmatprep.subr.bf16.mxu0 0
        %3121 = vmatpush1.bf16.xpose.msra.mxu0 %v3118
        %3122 = vmatprep.subr.bf16.mxu0 0
        %3123 = vmatpush1.bf16.xpose.msra.mxu0 0
        %3124 = vmatprep.subr.bf16.mxu0 0
        %3125 = vmatpush1.bf16.xpose.msra.mxu0 0
        %3126 = vmatprep.subr.bf16.mxu0 0
        %3127 = vmatpush1.bf16.xpose.msra.mxu0 0
        %3128 = vmatprep.subr.bf16.mxu0 0
        %3129 = vmatpush1.bf16.xpose.msra.mxu0 0
        %3130 = vmatprep.subr.bf16.mxu0 0
        %3131 = vmatpush1.bf16.xpose.msra.mxu0 0
        %3132 = vmatprep.subr.bf16.mxu0 0
        %3133 = vmatpush1.bf16.xpose.msra.mxu0 0
        %3134 = vmatprep.subr.bf16.mxu0 0
        %3135 = vmatpush1.bf16.xpose.msra.mxu0 0
        %3136 = vmatprep.subr.bf16.mxu0 0
        %3137 = vmatpush1.bf16.xpose.msra.mxu0 0
        %3138 = vmatprep.subr.bf16.mxu0 0
        %3139 = vmatpush1.bf16.xpose.msra.mxu0 0
        %3140 = vmatprep.subr.bf16.mxu0 0
        %3141 = vmatpush1.bf16.xpose.msra.mxu0 0
        %3142 = vmatprep.subr.bf16.mxu0 0
        %3143 = vmatpush1.bf16.xpose.msra.mxu0 0
        %3144 = vmatprep.subr.bf16.mxu0 0
        %3145 = vmatpush1.bf16.xpose.msra.mxu0 0
        %3146 = vmatprep.subr.bf16.mxu0 0
        %3147 = vmatpush1.bf16.xpose.msra.mxu0 0
        %3148 = vmatprep.subr.bf16.mxu0 0
        %3149 = vmatpush1.bf16.xpose.msra.mxu0 0
        %3150 = vmatprep.subr.bf16.mxu0 0
        %3151 = vmatpush1.bf16.xpose.msra.mxu0 0
        %3152 = vmatprep.mubr.bf16.mxu0 0
        %3153 = vmatmul.mubr.bf16.gmra.mrb[0].mxu0 %v3115
        %v3154 = vpop.f32.mrb[0].mxu0
        %v3155 = vadd.f32 0.0, %v3154
        %v3156 = vpop.f32.mrb[0].mxu0
        %v3157 = vpop.f32.mrb[0].mxu0
        %v3158 = vpop.f32.mrb[0].mxu0
        %3159 = vdwg.mxu0
        %3161 = vrot.lane.b32.xlu0 %v1239, 112
        %v3162 = vpop.permute.xlu0 %3161
        %3163 = vrot.lane.b32.xlu0 %v1255, 48
        %v3164 = vpop.permute.xlu0 %3163
        %v3166 = vsel %vm1305, %v3162, 0
        %v3169 = vsel %vm1305, %v3164, 0
        %3171 = vmatprep.subr.bf16.mxu0 0
        %3172 = vmatpush1.bf16.xpose.msra.mxu0 %v3169
        %3173 = vmatprep.subr.bf16.mxu0 0
        %3174 = vmatpush1.bf16.xpose.msra.mxu0 0
        %3175 = vmatprep.subr.bf16.mxu0 0
        %3176 = vmatpush1.bf16.xpose.msra.mxu0 0
        %3177 = vmatprep.subr.bf16.mxu0 0
        %3178 = vmatpush1.bf16.xpose.msra.mxu0 0
        %3179 = vmatprep.subr.bf16.mxu0 0
        %3180 = vmatpush1.bf16.xpose.msra.mxu0 0
        %3181 = vmatprep.subr.bf16.mxu0 0
        %3182 = vmatpush1.bf16.xpose.msra.mxu0 0
        %3183 = vmatprep.subr.bf16.mxu0 0
        %3184 = vmatpush1.bf16.xpose.msra.mxu0 0
        %3185 = vmatprep.subr.bf16.mxu0 0
        %3186 = vmatpush1.bf16.xpose.msra.mxu0 0
        %3187 = vmatprep.subr.bf16.mxu0 0
        %3188 = vmatpush1.bf16.xpose.msra.mxu0 0
        %3189 = vmatprep.subr.bf16.mxu0 0
        %3190 = vmatpush1.bf16.xpose.msra.mxu0 0
        %3191 = vmatprep.subr.bf16.mxu0 0
        %3192 = vmatpush1.bf16.xpose.msra.mxu0 0
        %3193 = vmatprep.subr.bf16.mxu0 0
        %3194 = vmatpush1.bf16.xpose.msra.mxu0 0
        %3195 = vmatprep.subr.bf16.mxu0 0
        %3196 = vmatpush1.bf16.xpose.msra.mxu0 0
        %3197 = vmatprep.subr.bf16.mxu0 0
        %3198 = vmatpush1.bf16.xpose.msra.mxu0 0
        %3199 = vmatprep.subr.bf16.mxu0 0
        %3200 = vmatpush1.bf16.xpose.msra.mxu0 0
        %3201 = vmatprep.subr.bf16.mxu0 0
        %3202 = vmatpush1.bf16.xpose.msra.mxu0 0
        %3203 = vmatprep.mubr.bf16.mxu0 0
        %3204 = vmatmul.mubr.bf16.gmra.mrb[0].mxu0 %v3166
        %v3205 = vpop.f32.mrb[0].mxu0
        %v3206 = vadd.f32 0.0, %v3205
        %v3207 = vpop.f32.mrb[0].mxu0
        %v3208 = vpop.f32.mrb[0].mxu0
        %v3209 = vpop.f32.mrb[0].mxu0
        %3210 = vdwg.mxu0
        %3212 = vrot.lane.b32.xlu0 %v1240, 112
        %v3213 = vpop.permute.xlu0 %3212
        %3214 = vrot.lane.b32.xlu0 %v1256, 48
        %v3215 = vpop.permute.xlu0 %3214
        %v3217 = vsel %vm1305, %v3213, 0
        %v3220 = vsel %vm1305, %v3215, 0
        %3222 = vmatprep.subr.bf16.mxu0 0
        %3223 = vmatpush1.bf16.xpose.msra.mxu0 %v3220
        %3224 = vmatprep.subr.bf16.mxu0 0
        %3225 = vmatpush1.bf16.xpose.msra.mxu0 0
        %3226 = vmatprep.subr.bf16.mxu0 0
        %3227 = vmatpush1.bf16.xpose.msra.mxu0 0
        %3228 = vmatprep.subr.bf16.mxu0 0
        %3229 = vmatpush1.bf16.xpose.msra.mxu0 0
        %3230 = vmatprep.subr.bf16.mxu0 0
        %3231 = vmatpush1.bf16.xpose.msra.mxu0 0
        %3232 = vmatprep.subr.bf16.mxu0 0
        %3233 = vmatpush1.bf16.xpose.msra.mxu0 0
        %3234 = vmatprep.subr.bf16.mxu0 0
        %3235 = vmatpush1.bf16.xpose.msra.mxu0 0
        %3236 = vmatprep.subr.bf16.mxu0 0
        %3237 = vmatpush1.bf16.xpose.msra.mxu0 0
        %3238 = vmatprep.subr.bf16.mxu0 0
        %3239 = vmatpush1.bf16.xpose.msra.mxu0 0
        %3240 = vmatprep.subr.bf16.mxu0 0
        %3241 = vmatpush1.bf16.xpose.msra.mxu0 0
        %3242 = vmatprep.subr.bf16.mxu0 0
        %3243 = vmatpush1.bf16.xpose.msra.mxu0 0
        %3244 = vmatprep.subr.bf16.mxu0 0
        %3245 = vmatpush1.bf16.xpose.msra.mxu0 0
        %3246 = vmatprep.subr.bf16.mxu0 0
        %3247 = vmatpush1.bf16.xpose.msra.mxu0 0
        %3248 = vmatprep.subr.bf16.mxu0 0
        %3249 = vmatpush1.bf16.xpose.msra.mxu0 0
        %3250 = vmatprep.subr.bf16.mxu0 0
        %3251 = vmatpush1.bf16.xpose.msra.mxu0 0
        %3252 = vmatprep.subr.bf16.mxu0 0
        %3253 = vmatpush1.bf16.xpose.msra.mxu0 0
        %3254 = vmatprep.mubr.bf16.mxu0 0
        %3255 = vmatmul.mubr.bf16.gmra.mrb[0].mxu0 %v3217
        %v3256 = vpop.f32.mrb[0].mxu0
        %v3257 = vadd.f32 0.0, %v3256
        %v3258 = vpop.f32.mrb[0].mxu0
        %v3259 = vpop.f32.mrb[0].mxu0
        %v3260 = vpop.f32.mrb[0].mxu0
        %3261 = vdwg.mxu0
        %3263 = vrot.lane.b32.xlu0 %v1241, 112
        %v3264 = vpop.permute.xlu0 %3263
        %3265 = vrot.lane.b32.xlu0 %v1257, 48
        %v3266 = vpop.permute.xlu0 %3265
        %v3268 = vsel %vm1305, %v3264, 0
        %v3271 = vsel %vm1305, %v3266, 0
        %3273 = vmatprep.subr.bf16.mxu0 0
        %3274 = vmatpush1.bf16.xpose.msra.mxu0 %v3271
        %3275 = vmatprep.subr.bf16.mxu0 0
        %3276 = vmatpush1.bf16.xpose.msra.mxu0 0
        %3277 = vmatprep.subr.bf16.mxu0 0
        %3278 = vmatpush1.bf16.xpose.msra.mxu0 0
        %3279 = vmatprep.subr.bf16.mxu0 0
        %3280 = vmatpush1.bf16.xpose.msra.mxu0 0
        %3281 = vmatprep.subr.bf16.mxu0 0
        %3282 = vmatpush1.bf16.xpose.msra.mxu0 0
        %3283 = vmatprep.subr.bf16.mxu0 0
        %3284 = vmatpush1.bf16.xpose.msra.mxu0 0
        %3285 = vmatprep.subr.bf16.mxu0 0
        %3286 = vmatpush1.bf16.xpose.msra.mxu0 0
        %3287 = vmatprep.subr.bf16.mxu0 0
        %3288 = vmatpush1.bf16.xpose.msra.mxu0 0
        %3289 = vmatprep.subr.bf16.mxu0 0
        %3290 = vmatpush1.bf16.xpose.msra.mxu0 0
        %3291 = vmatprep.subr.bf16.mxu0 0
        %3292 = vmatpush1.bf16.xpose.msra.mxu0 0
        %3293 = vmatprep.subr.bf16.mxu0 0
        %3294 = vmatpush1.bf16.xpose.msra.mxu0 0
        %3295 = vmatprep.subr.bf16.mxu0 0
        %3296 = vmatpush1.bf16.xpose.msra.mxu0 0
        %3297 = vmatprep.subr.bf16.mxu0 0
        %3298 = vmatpush1.bf16.xpose.msra.mxu0 0
        %3299 = vmatprep.subr.bf16.mxu0 0
        %3300 = vmatpush1.bf16.xpose.msra.mxu0 0
        %3301 = vmatprep.subr.bf16.mxu0 0
        %3302 = vmatpush1.bf16.xpose.msra.mxu0 0
        %3303 = vmatprep.subr.bf16.mxu0 0
        %3304 = vmatpush1.bf16.xpose.msra.mxu0 0
        %3305 = vmatprep.mubr.bf16.mxu0 0
        %3306 = vmatmul.mubr.bf16.gmra.mrb[0].mxu0 %v3268
        %v3307 = vpop.f32.mrb[0].mxu0
        %v3308 = vadd.f32 0.0, %v3307
        %v3309 = vpop.f32.mrb[0].mxu0
        %v3310 = vpop.f32.mrb[0].mxu0
        %v3311 = vpop.f32.mrb[0].mxu0
        %3312 = vdwg.mxu0
        %3314 = vrot.lane.b32.xlu0 %v1242, 112
        %v3315 = vpop.permute.xlu0 %3314
        %3316 = vrot.lane.b32.xlu0 %v1258, 48
        %v3317 = vpop.permute.xlu0 %3316
        %v3319 = vsel %vm1305, %v3315, 0
        %v3322 = vsel %vm1305, %v3317, 0
        %3324 = vmatprep.subr.bf16.mxu0 0
        %3325 = vmatpush1.bf16.xpose.msra.mxu0 %v3322
        %3326 = vmatprep.subr.bf16.mxu0 0
        %3327 = vmatpush1.bf16.xpose.msra.mxu0 0
        %3328 = vmatprep.subr.bf16.mxu0 0
        %3329 = vmatpush1.bf16.xpose.msra.mxu0 0
        %3330 = vmatprep.subr.bf16.mxu0 0
        %3331 = vmatpush1.bf16.xpose.msra.mxu0 0
        %3332 = vmatprep.subr.bf16.mxu0 0
        %3333 = vmatpush1.bf16.xpose.msra.mxu0 0
        %3334 = vmatprep.subr.bf16.mxu0 0
        %3335 = vmatpush1.bf16.xpose.msra.mxu0 0
        %3336 = vmatprep.subr.bf16.mxu0 0
        %3337 = vmatpush1.bf16.xpose.msra.mxu0 0
        %3338 = vmatprep.subr.bf16.mxu0 0
        %3339 = vmatpush1.bf16.xpose.msra.mxu0 0
        %3340 = vmatprep.subr.bf16.mxu0 0
        %3341 = vmatpush1.bf16.xpose.msra.mxu0 0
        %3342 = vmatprep.subr.bf16.mxu0 0
        %3343 = vmatpush1.bf16.xpose.msra.mxu0 0
        %3344 = vmatprep.subr.bf16.mxu0 0
        %3345 = vmatpush1.bf16.xpose.msra.mxu0 0
        %3346 = vmatprep.subr.bf16.mxu0 0
        %3347 = vmatpush1.bf16.xpose.msra.mxu0 0
        %3348 = vmatprep.subr.bf16.mxu0 0
        %3349 = vmatpush1.bf16.xpose.msra.mxu0 0
        %3350 = vmatprep.subr.bf16.mxu0 0
        %3351 = vmatpush1.bf16.xpose.msra.mxu0 0
        %3352 = vmatprep.subr.bf16.mxu0 0
        %3353 = vmatpush1.bf16.xpose.msra.mxu0 0
        %3354 = vmatprep.subr.bf16.mxu0 0
        %3355 = vmatpush1.bf16.xpose.msra.mxu0 0
        %3356 = vmatprep.mubr.bf16.mxu0 0
        %3357 = vmatmul.mubr.bf16.gmra.mrb[0].mxu0 %v3319
        %v3358 = vpop.f32.mrb[0].mxu0
        %v3359 = vadd.f32 0.0, %v3358
        %v3360 = vpop.f32.mrb[0].mxu0
        %v3361 = vpop.f32.mrb[0].mxu0
        %v3362 = vpop.f32.mrb[0].mxu0
        %3363 = vdwg.mxu0
        %3365 = vrot.lane.b32.xlu0 %v1243, 112
        %v3366 = vpop.permute.xlu0 %3365
        %3367 = vrot.lane.b32.xlu0 %v1259, 48
        %v3368 = vpop.permute.xlu0 %3367
        %v3370 = vsel %vm1305, %v3366, 0
        %v3373 = vsel %vm1305, %v3368, 0
        %3375 = vmatprep.subr.bf16.mxu0 0
        %3376 = vmatpush1.bf16.xpose.msra.mxu0 %v3373
        %3377 = vmatprep.subr.bf16.mxu0 0
        %3378 = vmatpush1.bf16.xpose.msra.mxu0 0
        %3379 = vmatprep.subr.bf16.mxu0 0
        %3380 = vmatpush1.bf16.xpose.msra.mxu0 0
        %3381 = vmatprep.subr.bf16.mxu0 0
        %3382 = vmatpush1.bf16.xpose.msra.mxu0 0
        %3383 = vmatprep.subr.bf16.mxu0 0
        %3384 = vmatpush1.bf16.xpose.msra.mxu0 0
        %3385 = vmatprep.subr.bf16.mxu0 0
        %3386 = vmatpush1.bf16.xpose.msra.mxu0 0
        %3387 = vmatprep.subr.bf16.mxu0 0
        %3388 = vmatpush1.bf16.xpose.msra.mxu0 0
        %3389 = vmatprep.subr.bf16.mxu0 0
        %3390 = vmatpush1.bf16.xpose.msra.mxu0 0
        %3391 = vmatprep.subr.bf16.mxu0 0
        %3392 = vmatpush1.bf16.xpose.msra.mxu0 0
        %3393 = vmatprep.subr.bf16.mxu0 0
        %3394 = vmatpush1.bf16.xpose.msra.mxu0 0
        %3395 = vmatprep.subr.bf16.mxu0 0
        %3396 = vmatpush1.bf16.xpose.msra.mxu0 0
        %3397 = vmatprep.subr.bf16.mxu0 0
        %3398 = vmatpush1.bf16.xpose.msra.mxu0 0
        %3399 = vmatprep.subr.bf16.mxu0 0
        %3400 = vmatpush1.bf16.xpose.msra.mxu0 0
        %3401 = vmatprep.subr.bf16.mxu0 0
        %3402 = vmatpush1.bf16.xpose.msra.mxu0 0
        %3403 = vmatprep.subr.bf16.mxu0 0
        %3404 = vmatpush1.bf16.xpose.msra.mxu0 0
        %3405 = vmatprep.subr.bf16.mxu0 0
        %3406 = vmatpush1.bf16.xpose.msra.mxu0 0
        %3407 = vmatprep.mubr.bf16.mxu0 0
        %3408 = vmatmul.mubr.bf16.gmra.mrb[0].mxu0 %v3370
        %v3409 = vpop.f32.mrb[0].mxu0
        %v3410 = vadd.f32 0.0, %v3409
        %v3411 = vpop.f32.mrb[0].mxu0
        %v3412 = vpop.f32.mrb[0].mxu0
        %v3413 = vpop.f32.mrb[0].mxu0
        %3414 = vdwg.mxu0
        %3416 = vrot.lane.b32.xlu0 %v1244, 112
        %v3417 = vpop.permute.xlu0 %3416
        %3418 = vrot.lane.b32.xlu0 %v1260, 48
        %v3419 = vpop.permute.xlu0 %3418
        %v3421 = vsel %vm1305, %v3417, 0
        %v3424 = vsel %vm1305, %v3419, 0
        %3426 = vmatprep.subr.bf16.mxu0 0
        %3427 = vmatpush1.bf16.xpose.msra.mxu0 %v3424
        %3428 = vmatprep.subr.bf16.mxu0 0
        %3429 = vmatpush1.bf16.xpose.msra.mxu0 0
        %3430 = vmatprep.subr.bf16.mxu0 0
        %3431 = vmatpush1.bf16.xpose.msra.mxu0 0
        %3432 = vmatprep.subr.bf16.mxu0 0
        %3433 = vmatpush1.bf16.xpose.msra.mxu0 0
        %3434 = vmatprep.subr.bf16.mxu0 0
        %3435 = vmatpush1.bf16.xpose.msra.mxu0 0
        %3436 = vmatprep.subr.bf16.mxu0 0
        %3437 = vmatpush1.bf16.xpose.msra.mxu0 0
        %3438 = vmatprep.subr.bf16.mxu0 0
        %3439 = vmatpush1.bf16.xpose.msra.mxu0 0
        %3440 = vmatprep.subr.bf16.mxu0 0
        %3441 = vmatpush1.bf16.xpose.msra.mxu0 0
        %3442 = vmatprep.subr.bf16.mxu0 0
        %3443 = vmatpush1.bf16.xpose.msra.mxu0 0
        %3444 = vmatprep.subr.bf16.mxu0 0
        %3445 = vmatpush1.bf16.xpose.msra.mxu0 0
        %3446 = vmatprep.subr.bf16.mxu0 0
        %3447 = vmatpush1.bf16.xpose.msra.mxu0 0
        %3448 = vmatprep.subr.bf16.mxu0 0
        %3449 = vmatpush1.bf16.xpose.msra.mxu0 0
        %3450 = vmatprep.subr.bf16.mxu0 0
        %3451 = vmatpush1.bf16.xpose.msra.mxu0 0
        %3452 = vmatprep.subr.bf16.mxu0 0
        %3453 = vmatpush1.bf16.xpose.msra.mxu0 0
        %3454 = vmatprep.subr.bf16.mxu0 0
        %3455 = vmatpush1.bf16.xpose.msra.mxu0 0
        %3456 = vmatprep.subr.bf16.mxu0 0
        %3457 = vmatpush1.bf16.xpose.msra.mxu0 0
        %3458 = vmatprep.mubr.bf16.mxu0 0
        %3459 = vmatmul.mubr.bf16.gmra.mrb[0].mxu0 %v3421
        %v3460 = vpop.f32.mrb[0].mxu0
        %v3461 = vadd.f32 0.0, %v3460
        %v3462 = vpop.f32.mrb[0].mxu0
        %v3463 = vpop.f32.mrb[0].mxu0
        %v3464 = vpop.f32.mrb[0].mxu0
        %3465 = vdwg.mxu0
        %3467 = vrot.lane.b32.xlu0 %v1245, 112
        %v3468 = vpop.permute.xlu0 %3467
        %3469 = vrot.lane.b32.xlu0 %v1261, 48
        %v3470 = vpop.permute.xlu0 %3469
        %v3472 = vsel %vm1305, %v3468, 0
        %v3475 = vsel %vm1305, %v3470, 0
        %3477 = vmatprep.subr.bf16.mxu0 0
        %3478 = vmatpush1.bf16.xpose.msra.mxu0 %v3475
        %3479 = vmatprep.subr.bf16.mxu0 0
        %3480 = vmatpush1.bf16.xpose.msra.mxu0 0
        %3481 = vmatprep.subr.bf16.mxu0 0
        %3482 = vmatpush1.bf16.xpose.msra.mxu0 0
        %3483 = vmatprep.subr.bf16.mxu0 0
        %3484 = vmatpush1.bf16.xpose.msra.mxu0 0
        %3485 = vmatprep.subr.bf16.mxu0 0
        %3486 = vmatpush1.bf16.xpose.msra.mxu0 0
        %3487 = vmatprep.subr.bf16.mxu0 0
        %3488 = vmatpush1.bf16.xpose.msra.mxu0 0
        %3489 = vmatprep.subr.bf16.mxu0 0
        %3490 = vmatpush1.bf16.xpose.msra.mxu0 0
        %3491 = vmatprep.subr.bf16.mxu0 0
        %3492 = vmatpush1.bf16.xpose.msra.mxu0 0
        %3493 = vmatprep.subr.bf16.mxu0 0
        %3494 = vmatpush1.bf16.xpose.msra.mxu0 0
        %3495 = vmatprep.subr.bf16.mxu0 0
        %3496 = vmatpush1.bf16.xpose.msra.mxu0 0
        %3497 = vmatprep.subr.bf16.mxu0 0
        %3498 = vmatpush1.bf16.xpose.msra.mxu0 0
        %3499 = vmatprep.subr.bf16.mxu0 0
        %3500 = vmatpush1.bf16.xpose.msra.mxu0 0
        %3501 = vmatprep.subr.bf16.mxu0 0
        %3502 = vmatpush1.bf16.xpose.msra.mxu0 0
        %3503 = vmatprep.subr.bf16.mxu0 0
        %3504 = vmatpush1.bf16.xpose.msra.mxu0 0
        %3505 = vmatprep.subr.bf16.mxu0 0
        %3506 = vmatpush1.bf16.xpose.msra.mxu0 0
        %3507 = vmatprep.subr.bf16.mxu0 0
        %3508 = vmatpush1.bf16.xpose.msra.mxu0 0
        %3509 = vmatprep.mubr.bf16.mxu0 0
        %3510 = vmatmul.mubr.bf16.gmra.mrb[0].mxu0 %v3472
        %v3511 = vpop.f32.mrb[0].mxu0
        %v3512 = vadd.f32 0.0, %v3511
        %v3513 = vpop.f32.mrb[0].mxu0
        %v3514 = vpop.f32.mrb[0].mxu0
        %v3515 = vpop.f32.mrb[0].mxu0
        %3516 = vdwg.mxu0
        %3518 = vrot.lane.b32.xlu0 %v1246, 112
        %v3519 = vpop.permute.xlu0 %3518
        %3520 = vrot.lane.b32.xlu0 %v1262, 48
        %v3521 = vpop.permute.xlu0 %3520
        %v3523 = vsel %vm1305, %v3519, 0
        %v3526 = vsel %vm1305, %v3521, 0
        %3528 = vmatprep.subr.bf16.mxu0 0
        %3529 = vmatpush1.bf16.xpose.msra.mxu0 %v3526
        %3530 = vmatprep.subr.bf16.mxu0 0
        %3531 = vmatpush1.bf16.xpose.msra.mxu0 0
        %3532 = vmatprep.subr.bf16.mxu0 0
        %3533 = vmatpush1.bf16.xpose.msra.mxu0 0
        %3534 = vmatprep.subr.bf16.mxu0 0
        %3535 = vmatpush1.bf16.xpose.msra.mxu0 0
        %3536 = vmatprep.subr.bf16.mxu0 0
        %3537 = vmatpush1.bf16.xpose.msra.mxu0 0
        %3538 = vmatprep.subr.bf16.mxu0 0
        %3539 = vmatpush1.bf16.xpose.msra.mxu0 0
        %3540 = vmatprep.subr.bf16.mxu0 0
        %3541 = vmatpush1.bf16.xpose.msra.mxu0 0
        %3542 = vmatprep.subr.bf16.mxu0 0
        %3543 = vmatpush1.bf16.xpose.msra.mxu0 0
        %3544 = vmatprep.subr.bf16.mxu0 0
        %3545 = vmatpush1.bf16.xpose.msra.mxu0 0
        %3546 = vmatprep.subr.bf16.mxu0 0
        %3547 = vmatpush1.bf16.xpose.msra.mxu0 0
        %3548 = vmatprep.subr.bf16.mxu0 0
        %3549 = vmatpush1.bf16.xpose.msra.mxu0 0
        %3550 = vmatprep.subr.bf16.mxu0 0
        %3551 = vmatpush1.bf16.xpose.msra.mxu0 0
        %3552 = vmatprep.subr.bf16.mxu0 0
        %3553 = vmatpush1.bf16.xpose.msra.mxu0 0
        %3554 = vmatprep.subr.bf16.mxu0 0
        %3555 = vmatpush1.bf16.xpose.msra.mxu0 0
        %3556 = vmatprep.subr.bf16.mxu0 0
        %3557 = vmatpush1.bf16.xpose.msra.mxu0 0
        %3558 = vmatprep.subr.bf16.mxu0 0
        %3559 = vmatpush1.bf16.xpose.msra.mxu0 0
        %3560 = vmatprep.mubr.bf16.mxu0 0
        %3561 = vmatmul.mubr.bf16.gmra.mrb[0].mxu0 %v3523
        %v3562 = vpop.f32.mrb[0].mxu0
        %v3563 = vadd.f32 0.0, %v3562
        %v3564 = vpop.f32.mrb[0].mxu0
        %v3565 = vpop.f32.mrb[0].mxu0
        %v3566 = vpop.f32.mrb[0].mxu0
        %3567 = vdwg.mxu0
        %3569 = vrot.lane.b32.xlu0 %v1247, 112
        %v3570 = vpop.permute.xlu0 %3569
        %3571 = vrot.lane.b32.xlu0 %v1263, 48
        %v3572 = vpop.permute.xlu0 %3571
        %v3574 = vsel %vm1305, %v3570, 0
        %v3577 = vsel %vm1305, %v3572, 0
        %3579 = vmatprep.subr.bf16.mxu0 0
        %3580 = vmatpush1.bf16.xpose.msra.mxu0 %v3577
        %3581 = vmatprep.subr.bf16.mxu0 0
        %3582 = vmatpush1.bf16.xpose.msra.mxu0 0
        %3583 = vmatprep.subr.bf16.mxu0 0
        %3584 = vmatpush1.bf16.xpose.msra.mxu0 0
        %3585 = vmatprep.subr.bf16.mxu0 0
        %3586 = vmatpush1.bf16.xpose.msra.mxu0 0
        %3587 = vmatprep.subr.bf16.mxu0 0
        %3588 = vmatpush1.bf16.xpose.msra.mxu0 0
        %3589 = vmatprep.subr.bf16.mxu0 0
        %3590 = vmatpush1.bf16.xpose.msra.mxu0 0
        %3591 = vmatprep.subr.bf16.mxu0 0
        %3592 = vmatpush1.bf16.xpose.msra.mxu0 0
        %3593 = vmatprep.subr.bf16.mxu0 0
        %3594 = vmatpush1.bf16.xpose.msra.mxu0 0
        %3595 = vmatprep.subr.bf16.mxu0 0
        %3596 = vmatpush1.bf16.xpose.msra.mxu0 0
        %3597 = vmatprep.subr.bf16.mxu0 0
        %3598 = vmatpush1.bf16.xpose.msra.mxu0 0
        %3599 = vmatprep.subr.bf16.mxu0 0
        %3600 = vmatpush1.bf16.xpose.msra.mxu0 0
        %3601 = vmatprep.subr.bf16.mxu0 0
        %3602 = vmatpush1.bf16.xpose.msra.mxu0 0
        %3603 = vmatprep.subr.bf16.mxu0 0
        %3604 = vmatpush1.bf16.xpose.msra.mxu0 0
        %3605 = vmatprep.subr.bf16.mxu0 0
        %3606 = vmatpush1.bf16.xpose.msra.mxu0 0
        %3607 = vmatprep.subr.bf16.mxu0 0
        %3608 = vmatpush1.bf16.xpose.msra.mxu0 0
        %3609 = vmatprep.subr.bf16.mxu0 0
        %3610 = vmatpush1.bf16.xpose.msra.mxu0 0
        %3611 = vmatprep.mubr.bf16.mxu0 0
        %3612 = vmatmul.mubr.bf16.gmra.mrb[0].mxu0 %v3574
        %v3613 = vpop.f32.mrb[0].mxu0
        %v3614 = vadd.f32 0.0, %v3613
        %v3615 = vpop.f32.mrb[0].mxu0
        %v3616 = vpop.f32.mrb[0].mxu0
        %v3617 = vpop.f32.mrb[0].mxu0
        %3618 = vdwg.mxu0
        %3620 = vrot.lane.b32.xlu0 %v1248, 112
        %v3621 = vpop.permute.xlu0 %3620
        %3622 = vrot.lane.b32.xlu0 %v1264, 48
        %v3623 = vpop.permute.xlu0 %3622
        %v3625 = vsel %vm1305, %v3621, 0
        %v3628 = vsel %vm1305, %v3623, 0
        %3630 = vmatprep.subr.bf16.mxu0 0
        %3631 = vmatpush1.bf16.xpose.msra.mxu0 %v3628
        %3632 = vmatprep.subr.bf16.mxu0 0
        %3633 = vmatpush1.bf16.xpose.msra.mxu0 0
        %3634 = vmatprep.subr.bf16.mxu0 0
        %3635 = vmatpush1.bf16.xpose.msra.mxu0 0
        %3636 = vmatprep.subr.bf16.mxu0 0
        %3637 = vmatpush1.bf16.xpose.msra.mxu0 0
        %3638 = vmatprep.subr.bf16.mxu0 0
        %3639 = vmatpush1.bf16.xpose.msra.mxu0 0
        %3640 = vmatprep.subr.bf16.mxu0 0
        %3641 = vmatpush1.bf16.xpose.msra.mxu0 0
        %3642 = vmatprep.subr.bf16.mxu0 0
        %3643 = vmatpush1.bf16.xpose.msra.mxu0 0
        %3644 = vmatprep.subr.bf16.mxu0 0
        %3645 = vmatpush1.bf16.xpose.msra.mxu0 0
        %3646 = vmatprep.subr.bf16.mxu0 0
        %3647 = vmatpush1.bf16.xpose.msra.mxu0 0
        %3648 = vmatprep.subr.bf16.mxu0 0
        %3649 = vmatpush1.bf16.xpose.msra.mxu0 0
        %3650 = vmatprep.subr.bf16.mxu0 0
        %3651 = vmatpush1.bf16.xpose.msra.mxu0 0
        %3652 = vmatprep.subr.bf16.mxu0 0
        %3653 = vmatpush1.bf16.xpose.msra.mxu0 0
        %3654 = vmatprep.subr.bf16.mxu0 0
        %3655 = vmatpush1.bf16.xpose.msra.mxu0 0
        %3656 = vmatprep.subr.bf16.mxu0 0
        %3657 = vmatpush1.bf16.xpose.msra.mxu0 0
        %3658 = vmatprep.subr.bf16.mxu0 0
        %3659 = vmatpush1.bf16.xpose.msra.mxu0 0
        %3660 = vmatprep.subr.bf16.mxu0 0
        %3661 = vmatpush1.bf16.xpose.msra.mxu0 0
        %3662 = vmatprep.mubr.bf16.mxu0 0
        %3663 = vmatmul.mubr.bf16.gmra.mrb[0].mxu0 %v3625
        %v3664 = vpop.f32.mrb[0].mxu0
        %v3665 = vadd.f32 0.0, %v3664
        %v3666 = vpop.f32.mrb[0].mxu0
        %v3667 = vpop.f32.mrb[0].mxu0
        %v3668 = vpop.f32.mrb[0].mxu0
        %3669 = vdwg.mxu0
        %3671 = vrot.lane.b32.xlu0 %v1249, 112
        %v3672 = vpop.permute.xlu0 %3671
        %3673 = vrot.lane.b32.xlu0 %v1265, 48
        %v3674 = vpop.permute.xlu0 %3673
        %v3676 = vsel %vm1305, %v3672, 0
        %v3679 = vsel %vm1305, %v3674, 0
        %3681 = vmatprep.subr.bf16.mxu0 0
        %3682 = vmatpush1.bf16.xpose.msra.mxu0 %v3679
        %3683 = vmatprep.subr.bf16.mxu0 0
        %3684 = vmatpush1.bf16.xpose.msra.mxu0 0
        %3685 = vmatprep.subr.bf16.mxu0 0
        %3686 = vmatpush1.bf16.xpose.msra.mxu0 0
        %3687 = vmatprep.subr.bf16.mxu0 0
        %3688 = vmatpush1.bf16.xpose.msra.mxu0 0
        %3689 = vmatprep.subr.bf16.mxu0 0
        %3690 = vmatpush1.bf16.xpose.msra.mxu0 0
        %3691 = vmatprep.subr.bf16.mxu0 0
        %3692 = vmatpush1.bf16.xpose.msra.mxu0 0
        %3693 = vmatprep.subr.bf16.mxu0 0
        %3694 = vmatpush1.bf16.xpose.msra.mxu0 0
        %3695 = vmatprep.subr.bf16.mxu0 0
        %3696 = vmatpush1.bf16.xpose.msra.mxu0 0
        %3697 = vmatprep.subr.bf16.mxu0 0
        %3698 = vmatpush1.bf16.xpose.msra.mxu0 0
        %3699 = vmatprep.subr.bf16.mxu0 0
        %3700 = vmatpush1.bf16.xpose.msra.mxu0 0
        %3701 = vmatprep.subr.bf16.mxu0 0
        %3702 = vmatpush1.bf16.xpose.msra.mxu0 0
        %3703 = vmatprep.subr.bf16.mxu0 0
        %3704 = vmatpush1.bf16.xpose.msra.mxu0 0
        %3705 = vmatprep.subr.bf16.mxu0 0
        %3706 = vmatpush1.bf16.xpose.msra.mxu0 0
        %3707 = vmatprep.subr.bf16.mxu0 0
        %3708 = vmatpush1.bf16.xpose.msra.mxu0 0
        %3709 = vmatprep.subr.bf16.mxu0 0
        %3710 = vmatpush1.bf16.xpose.msra.mxu0 0
        %3711 = vmatprep.subr.bf16.mxu0 0
        %3712 = vmatpush1.bf16.xpose.msra.mxu0 0
        %3713 = vmatprep.mubr.bf16.mxu0 0
        %3714 = vmatmul.mubr.bf16.gmra.mrb[0].mxu0 %v3676
        %v3715 = vpop.f32.mrb[0].mxu0
        %v3716 = vadd.f32 0.0, %v3715
        %v3717 = vpop.f32.mrb[0].mxu0
        %v3718 = vpop.f32.mrb[0].mxu0
        %v3719 = vpop.f32.mrb[0].mxu0
        %3720 = vdwg.mxu0
        %3722 = vrot.lane.b32.xlu0 %v1250, 112
        %v3723 = vpop.permute.xlu0 %3722
        %3724 = vrot.lane.b32.xlu0 %v1266, 48
        %v3725 = vpop.permute.xlu0 %3724
        %v3727 = vsel %vm1305, %v3723, 0
        %v3730 = vsel %vm1305, %v3725, 0
        %3732 = vmatprep.subr.bf16.mxu0 0
        %3733 = vmatpush1.bf16.xpose.msra.mxu0 %v3730
        %3734 = vmatprep.subr.bf16.mxu0 0
        %3735 = vmatpush1.bf16.xpose.msra.mxu0 0
        %3736 = vmatprep.subr.bf16.mxu0 0
        %3737 = vmatpush1.bf16.xpose.msra.mxu0 0
        %3738 = vmatprep.subr.bf16.mxu0 0
        %3739 = vmatpush1.bf16.xpose.msra.mxu0 0
        %3740 = vmatprep.subr.bf16.mxu0 0
        %3741 = vmatpush1.bf16.xpose.msra.mxu0 0
        %3742 = vmatprep.subr.bf16.mxu0 0
        %3743 = vmatpush1.bf16.xpose.msra.mxu0 0
        %3744 = vmatprep.subr.bf16.mxu0 0
        %3745 = vmatpush1.bf16.xpose.msra.mxu0 0
        %3746 = vmatprep.subr.bf16.mxu0 0
        %3747 = vmatpush1.bf16.xpose.msra.mxu0 0
        %3748 = vmatprep.subr.bf16.mxu0 0
        %3749 = vmatpush1.bf16.xpose.msra.mxu0 0
        %3750 = vmatprep.subr.bf16.mxu0 0
        %3751 = vmatpush1.bf16.xpose.msra.mxu0 0
        %3752 = vmatprep.subr.bf16.mxu0 0
        %3753 = vmatpush1.bf16.xpose.msra.mxu0 0
        %3754 = vmatprep.subr.bf16.mxu0 0
        %3755 = vmatpush1.bf16.xpose.msra.mxu0 0
        %3756 = vmatprep.subr.bf16.mxu0 0
        %3757 = vmatpush1.bf16.xpose.msra.mxu0 0
        %3758 = vmatprep.subr.bf16.mxu0 0
        %3759 = vmatpush1.bf16.xpose.msra.mxu0 0
        %3760 = vmatprep.subr.bf16.mxu0 0
        %3761 = vmatpush1.bf16.xpose.msra.mxu0 0
        %3762 = vmatprep.subr.bf16.mxu0 0
        %3763 = vmatpush1.bf16.xpose.msra.mxu0 0
        %3764 = vmatprep.mubr.bf16.mxu0 0
        %3765 = vmatmul.mubr.bf16.gmra.mrb[0].mxu0 %v3727
        %v3766 = vpop.f32.mrb[0].mxu0
        %v3767 = vadd.f32 0.0, %v3766
        %v3768 = vpop.f32.mrb[0].mxu0
        %v3769 = vpop.f32.mrb[0].mxu0
        %v3770 = vpop.f32.mrb[0].mxu0
        %3771 = vdwg.mxu0
        %3773 = vrot.lane.b32.xlu0 %v1251, 112
        %v3774 = vpop.permute.xlu0 %3773
        %3775 = vrot.lane.b32.xlu0 %v1267, 48
        %v3776 = vpop.permute.xlu0 %3775
        %v3778 = vsel %vm1305, %v3774, 0
        %v3781 = vsel %vm1305, %v3776, 0
        %3783 = vmatprep.subr.bf16.mxu0 0
        %3784 = vmatpush1.bf16.xpose.msra.mxu0 %v3781
        %3785 = vmatprep.subr.bf16.mxu0 0
        %3786 = vmatpush1.bf16.xpose.msra.mxu0 0
        %3787 = vmatprep.subr.bf16.mxu0 0
        %3788 = vmatpush1.bf16.xpose.msra.mxu0 0
        %3789 = vmatprep.subr.bf16.mxu0 0
        %3790 = vmatpush1.bf16.xpose.msra.mxu0 0
        %3791 = vmatprep.subr.bf16.mxu0 0
        %3792 = vmatpush1.bf16.xpose.msra.mxu0 0
        %3793 = vmatprep.subr.bf16.mxu0 0
        %3794 = vmatpush1.bf16.xpose.msra.mxu0 0
        %3795 = vmatprep.subr.bf16.mxu0 0
        %3796 = vmatpush1.bf16.xpose.msra.mxu0 0
        %3797 = vmatprep.subr.bf16.mxu0 0
        %3798 = vmatpush1.bf16.xpose.msra.mxu0 0
        %3799 = vmatprep.subr.bf16.mxu0 0
        %3800 = vmatpush1.bf16.xpose.msra.mxu0 0
        %3801 = vmatprep.subr.bf16.mxu0 0
        %3802 = vmatpush1.bf16.xpose.msra.mxu0 0
        %3803 = vmatprep.subr.bf16.mxu0 0
        %3804 = vmatpush1.bf16.xpose.msra.mxu0 0
        %3805 = vmatprep.subr.bf16.mxu0 0
        %3806 = vmatpush1.bf16.xpose.msra.mxu0 0
        %3807 = vmatprep.subr.bf16.mxu0 0
        %3808 = vmatpush1.bf16.xpose.msra.mxu0 0
        %3809 = vmatprep.subr.bf16.mxu0 0
        %3810 = vmatpush1.bf16.xpose.msra.mxu0 0
        %3811 = vmatprep.subr.bf16.mxu0 0
        %3812 = vmatpush1.bf16.xpose.msra.mxu0 0
        %3813 = vmatprep.subr.bf16.mxu0 0
        %3814 = vmatpush1.bf16.xpose.msra.mxu0 0
        %3815 = vmatprep.mubr.bf16.mxu0 0
        %3816 = vmatmul.mubr.bf16.gmra.mrb[0].mxu0 %v3778
        %v3817 = vpop.f32.mrb[0].mxu0
        %v3818 = vadd.f32 0.0, %v3817
        %v3819 = vpop.f32.mrb[0].mxu0
        %v3820 = vpop.f32.mrb[0].mxu0
        %v3821 = vpop.f32.mrb[0].mxu0
        %3822 = vdwg.mxu0
        %3824 = vrot.lane.b32.xlu0 %v1252, 112
        %v3825 = vpop.permute.xlu0 %3824
        %3826 = vrot.lane.b32.xlu0 %v1268, 48
        %v3827 = vpop.permute.xlu0 %3826
        %v3829 = vsel %vm1305, %v3825, 0
        %v3832 = vsel %vm1305, %v3827, 0
        %3834 = vmatprep.subr.bf16.mxu0 0
        %3835 = vmatpush1.bf16.xpose.msra.mxu0 %v3832
        %3836 = vmatprep.subr.bf16.mxu0 0
        %3837 = vmatpush1.bf16.xpose.msra.mxu0 0
        %3838 = vmatprep.subr.bf16.mxu0 0
        %3839 = vmatpush1.bf16.xpose.msra.mxu0 0
        %3840 = vmatprep.subr.bf16.mxu0 0
        %3841 = vmatpush1.bf16.xpose.msra.mxu0 0
        %3842 = vmatprep.subr.bf16.mxu0 0
        %3843 = vmatpush1.bf16.xpose.msra.mxu0 0
        %3844 = vmatprep.subr.bf16.mxu0 0
        %3845 = vmatpush1.bf16.xpose.msra.mxu0 0
        %3846 = vmatprep.subr.bf16.mxu0 0
        %3847 = vmatpush1.bf16.xpose.msra.mxu0 0
        %3848 = vmatprep.subr.bf16.mxu0 0
        %3849 = vmatpush1.bf16.xpose.msra.mxu0 0
        %3850 = vmatprep.subr.bf16.mxu0 0
        %3851 = vmatpush1.bf16.xpose.msra.mxu0 0
        %3852 = vmatprep.subr.bf16.mxu0 0
        %3853 = vmatpush1.bf16.xpose.msra.mxu0 0
        %3854 = vmatprep.subr.bf16.mxu0 0
        %3855 = vmatpush1.bf16.xpose.msra.mxu0 0
        %3856 = vmatprep.subr.bf16.mxu0 0
        %3857 = vmatpush1.bf16.xpose.msra.mxu0 0
        %3858 = vmatprep.subr.bf16.mxu0 0
        %3859 = vmatpush1.bf16.xpose.msra.mxu0 0
        %3860 = vmatprep.subr.bf16.mxu0 0
        %3861 = vmatpush1.bf16.xpose.msra.mxu0 0
        %3862 = vmatprep.subr.bf16.mxu0 0
        %3863 = vmatpush1.bf16.xpose.msra.mxu0 0
        %3864 = vmatprep.subr.bf16.mxu0 0
        %3865 = vmatpush1.bf16.xpose.msra.mxu0 0
        %3866 = vmatprep.mubr.bf16.mxu0 0
        %3867 = vmatmul.mubr.bf16.gmra.mrb[0].mxu0 %v3829
        %v3868 = vpop.f32.mrb[0].mxu0
        %v3869 = vadd.f32 0.0, %v3868
        %v3870 = vpop.f32.mrb[0].mxu0
        %v3871 = vpop.f32.mrb[0].mxu0
        %v3872 = vpop.f32.mrb[0].mxu0
        %3873 = vdwg.mxu0
        %3875 = vrot.lane.b32.xlu0 %v1253, 112
        %v3876 = vpop.permute.xlu0 %3875
        %3877 = vrot.lane.b32.xlu0 %v1269, 48
        %v3878 = vpop.permute.xlu0 %3877
        %v3880 = vsel %vm1305, %v3876, 0
        %v3883 = vsel %vm1305, %v3878, 0
        %3885 = vmatprep.subr.bf16.mxu0 0
        %3886 = vmatpush1.bf16.xpose.msra.mxu0 %v3883
        %3887 = vmatprep.subr.bf16.mxu0 0
        %3888 = vmatpush1.bf16.xpose.msra.mxu0 0
        %3889 = vmatprep.subr.bf16.mxu0 0
        %3890 = vmatpush1.bf16.xpose.msra.mxu0 0
        %3891 = vmatprep.subr.bf16.mxu0 0
        %3892 = vmatpush1.bf16.xpose.msra.mxu0 0
        %3893 = vmatprep.subr.bf16.mxu0 0
        %3894 = vmatpush1.bf16.xpose.msra.mxu0 0
        %3895 = vmatprep.subr.bf16.mxu0 0
        %3896 = vmatpush1.bf16.xpose.msra.mxu0 0
        %3897 = vmatprep.subr.bf16.mxu0 0
        %3898 = vmatpush1.bf16.xpose.msra.mxu0 0
        %3899 = vmatprep.subr.bf16.mxu0 0
        %3900 = vmatpush1.bf16.xpose.msra.mxu0 0
        %3901 = vmatprep.subr.bf16.mxu0 0
        %3902 = vmatpush1.bf16.xpose.msra.mxu0 0
        %3903 = vmatprep.subr.bf16.mxu0 0
        %3904 = vmatpush1.bf16.xpose.msra.mxu0 0
        %3905 = vmatprep.subr.bf16.mxu0 0
        %3906 = vmatpush1.bf16.xpose.msra.mxu0 0
        %3907 = vmatprep.subr.bf16.mxu0 0
        %3908 = vmatpush1.bf16.xpose.msra.mxu0 0
        %3909 = vmatprep.subr.bf16.mxu0 0
        %3910 = vmatpush1.bf16.xpose.msra.mxu0 0
        %3911 = vmatprep.subr.bf16.mxu0 0
        %3912 = vmatpush1.bf16.xpose.msra.mxu0 0
        %3913 = vmatprep.subr.bf16.mxu0 0
        %3914 = vmatpush1.bf16.xpose.msra.mxu0 0
        %3915 = vmatprep.subr.bf16.mxu0 0
        %3916 = vmatpush1.bf16.xpose.msra.mxu0 0
        %3917 = vmatprep.mubr.bf16.mxu0 0
        %3918 = vmatmul.mubr.bf16.gmra.mrb[0].mxu0 %v3880
        %v3919 = vpop.f32.mrb[0].mxu0
        %v3920 = vadd.f32 0.0, %v3919
        %v3921 = vpop.f32.mrb[0].mxu0
        %v3922 = vpop.f32.mrb[0].mxu0
        %v3923 = vpop.f32.mrb[0].mxu0
        %3924 = vdwg.mxu0
        %v3925 = vsel %vm2087, %v3155, -inf
        %3926 = vmax.xlane.f32.xlu0 %v3925
        %v3927 = vpop.xlane.xlu0 %3926
        %v3928 = vsel %vm2087, %v3206, -inf
        %3929 = vmax.xlane.f32.xlu0 %v3928
        %v3930 = vpop.xlane.xlu0 %3929
        %v3931 = vsel %vm2087, %v3257, -inf
        %3932 = vmax.xlane.f32.xlu0 %v3931
        %v3933 = vpop.xlane.xlu0 %3932
        %v3934 = vsel %vm2087, %v3308, -inf
        %3935 = vmax.xlane.f32.xlu0 %v3934
        %v3936 = vpop.xlane.xlu0 %3935
        %v3937 = vsel %vm2087, %v3359, -inf
        %3938 = vmax.xlane.f32.xlu0 %v3937
        %v3939 = vpop.xlane.xlu0 %3938
        %v3940 = vsel %vm2087, %v3410, -inf
        %3941 = vmax.xlane.f32.xlu0 %v3940
        %v3942 = vpop.xlane.xlu0 %3941
        %v3943 = vsel %vm2087, %v3461, -inf
        %3944 = vmax.xlane.f32.xlu0 %v3943
        %v3945 = vpop.xlane.xlu0 %3944
        %v3946 = vsel %vm2087, %v3512, -inf
        %3947 = vmax.xlane.f32.xlu0 %v3946
        %v3948 = vpop.xlane.xlu0 %3947
        %v3949 = vsel %vm2087, %v3563, -inf
        %3950 = vmax.xlane.f32.xlu0 %v3949
        %v3951 = vpop.xlane.xlu0 %3950
        %v3952 = vsel %vm2087, %v3614, -inf
        %3953 = vmax.xlane.f32.xlu0 %v3952
        %v3954 = vpop.xlane.xlu0 %3953
        %v3955 = vsel %vm2087, %v3665, -inf
        %3956 = vmax.xlane.f32.xlu0 %v3955
        %v3957 = vpop.xlane.xlu0 %3956
        %v3958 = vsel %vm2087, %v3716, -inf
        %3959 = vmax.xlane.f32.xlu0 %v3958
        %v3960 = vpop.xlane.xlu0 %3959
        %v3961 = vsel %vm2087, %v3767, -inf
        %3962 = vmax.xlane.f32.xlu0 %v3961
        %v3963 = vpop.xlane.xlu0 %3962
        %v3964 = vsel %vm2087, %v3818, -inf
        %3965 = vmax.xlane.f32.xlu0 %v3964
        %v3966 = vpop.xlane.xlu0 %3965
        %v3967 = vsel %vm2087, %v3869, -inf
        %3968 = vmax.xlane.f32.xlu0 %v3967
        %v3969 = vpop.xlane.xlu0 %3968
        %v3970 = vsel %vm2087, %v3920, -inf
        %3971 = vmax.xlane.f32.xlu0 %v3970
        %v3972 = vpop.xlane.xlu0 %3971
        %v3973 = vsub.f32 %v3155, %v3927
        %v3974 = vsub.f32 %v3206, %v3930
        %v3975 = vsub.f32 %v3257, %v3933
        %v3976 = vsub.f32 %v3308, %v3936
        %v3977 = vsub.f32 %v3359, %v3939
        %v3978 = vsub.f32 %v3410, %v3942
        %v3979 = vsub.f32 %v3461, %v3945
        %v3980 = vsub.f32 %v3512, %v3948
        %v3981 = vsub.f32 %v3563, %v3951
        %v3982 = vsub.f32 %v3614, %v3954
        %v3983 = vsub.f32 %v3665, %v3957
        %v3984 = vsub.f32 %v3716, %v3960
        %v3985 = vsub.f32 %v3767, %v3963
        %v3986 = vsub.f32 %v3818, %v3966
        %v3987 = vsub.f32 %v3869, %v3969
        %v3988 = vsub.f32 %v3920, %v3972
        %v3989 = vmul.f32 %v3973, 1.442695
        %v3990 = vpow.pop %v3989
        %v3991 = vmul.f32 %v3974, 1.442695
        %v3992 = vpow.pop %v3991
        %v3993 = vmul.f32 %v3975, 1.442695
        %v3994 = vpow.pop %v3993
        %v3995 = vmul.f32 %v3976, 1.442695
        %v3996 = vpow.pop %v3995
        %v3997 = vmul.f32 %v3977, 1.442695
        %v3998 = vpow.pop %v3997
        %v3999 = vmul.f32 %v3978, 1.442695
        %v4000 = vpow.pop %v3999
        %v4001 = vmul.f32 %v3979, 1.442695
        %v4002 = vpow.pop %v4001
        %v4003 = vmul.f32 %v3980, 1.442695
        %v4004 = vpow.pop %v4003
        %v4005 = vmul.f32 %v3981, 1.442695
        %v4006 = vpow.pop %v4005
        %v4007 = vmul.f32 %v3982, 1.442695
        %v4008 = vpow.pop %v4007
        %v4009 = vmul.f32 %v3983, 1.442695
        %v4010 = vpow.pop %v4009
        %v4011 = vmul.f32 %v3984, 1.442695
        %v4012 = vpow.pop %v4011
        %v4013 = vmul.f32 %v3985, 1.442695
        %v4014 = vpow.pop %v4013
        %v4015 = vmul.f32 %v3986, 1.442695
        %v4016 = vpow.pop %v4015
        %v4017 = vmul.f32 %v3987, 1.442695
        %v4018 = vpow.pop %v4017
        %v4019 = vmul.f32 %v3988, 1.442695
        %v4020 = vpow.pop %v4019
        %v4021 = vsel %vm2087, %v3990, 0.0
        %4022 = vadd.xlane.f32.xlu0 %v4021
        %v4023 = vpop.xlane.xlu0 %4022
        %v4024 = vsel %vm2087, %v3992, 0.0
        %4025 = vadd.xlane.f32.xlu0 %v4024
        %v4026 = vpop.xlane.xlu0 %4025
        %v4027 = vsel %vm2087, %v3994, 0.0
        %4028 = vadd.xlane.f32.xlu0 %v4027
        %v4029 = vpop.xlane.xlu0 %4028
        %v4030 = vsel %vm2087, %v3996, 0.0
        %4031 = vadd.xlane.f32.xlu0 %v4030
        %v4032 = vpop.xlane.xlu0 %4031
        %v4033 = vsel %vm2087, %v3998, 0.0
        %4034 = vadd.xlane.f32.xlu0 %v4033
        %v4035 = vpop.xlane.xlu0 %4034
        %v4036 = vsel %vm2087, %v4000, 0.0
        %4037 = vadd.xlane.f32.xlu0 %v4036
        %v4038 = vpop.xlane.xlu0 %4037
        %v4039 = vsel %vm2087, %v4002, 0.0
        %4040 = vadd.xlane.f32.xlu0 %v4039
        %v4041 = vpop.xlane.xlu0 %4040
        %v4042 = vsel %vm2087, %v4004, 0.0
        %4043 = vadd.xlane.f32.xlu0 %v4042
        %v4044 = vpop.xlane.xlu0 %4043
        %v4045 = vsel %vm2087, %v4006, 0.0
        %4046 = vadd.xlane.f32.xlu0 %v4045
        %v4047 = vpop.xlane.xlu0 %4046
        %v4048 = vsel %vm2087, %v4008, 0.0
        %4049 = vadd.xlane.f32.xlu0 %v4048
        %v4050 = vpop.xlane.xlu0 %4049
        %v4051 = vsel %vm2087, %v4010, 0.0
        %4052 = vadd.xlane.f32.xlu0 %v4051
        %v4053 = vpop.xlane.xlu0 %4052
        %v4054 = vsel %vm2087, %v4012, 0.0
        %4055 = vadd.xlane.f32.xlu0 %v4054
        %v4056 = vpop.xlane.xlu0 %4055
        %v4057 = vsel %vm2087, %v4014, 0.0
        %4058 = vadd.xlane.f32.xlu0 %v4057
        %v4059 = vpop.xlane.xlu0 %4058
        %v4060 = vsel %vm2087, %v4016, 0.0
        %4061 = vadd.xlane.f32.xlu0 %v4060
        %v4062 = vpop.xlane.xlu0 %4061
        %v4063 = vsel %vm2087, %v4018, 0.0
        %4064 = vadd.xlane.f32.xlu0 %v4063
        %v4065 = vpop.xlane.xlu0 %4064
        %v4066 = vsel %vm2087, %v4020, 0.0
        %4067 = vadd.xlane.f32.xlu0 %v4066
        %v4068 = vpop.xlane.xlu0 %4067
        %v4069 = vrcp.pop %v4023
        %v4070 = vrcp.pop %v4026
        %v4071 = vrcp.pop %v4029
        %v4072 = vrcp.pop %v4032
        %v4073 = vrcp.pop %v4035
        %v4074 = vrcp.pop %v4038
        %v4075 = vrcp.pop %v4041
        %v4076 = vrcp.pop %v4044
        %v4077 = vrcp.pop %v4047
        %v4078 = vrcp.pop %v4050
        %v4079 = vrcp.pop %v4053
        %v4080 = vrcp.pop %v4056
        %v4081 = vrcp.pop %v4059
        %v4082 = vrcp.pop %v4062
        %v4083 = vrcp.pop %v4065
        %v4084 = vrcp.pop %v4068
        %v4085 = vmul.f32 %v3990, %v4069
        %v4086 = vmul.f32 %v3992, %v4070
        %v4087 = vmul.f32 %v3994, %v4071
        %v4088 = vmul.f32 %v3996, %v4072
        %v4089 = vmul.f32 %v3998, %v4073
        %v4090 = vmul.f32 %v4000, %v4074
        %v4091 = vmul.f32 %v4002, %v4075
        %v4092 = vmul.f32 %v4004, %v4076
        %v4093 = vmul.f32 %v4006, %v4077
        %v4094 = vmul.f32 %v4008, %v4078
        %v4095 = vmul.f32 %v4010, %v4079
        %v4096 = vmul.f32 %v4012, %v4080
        %v4097 = vmul.f32 %v4014, %v4081
        %v4098 = vmul.f32 %v4016, %v4082
        %v4099 = vmul.f32 %v4018, %v4083
        %v4100 = vmul.f32 %v4020, %v4084
        %v4101 = vpack.c.bf16 %v4085, %v4085
        %v4102 = vpack.c.bf16 %v4086, %v4086
        %v4103 = vpack.c.bf16 %v4087, %v4087
        %v4104 = vpack.c.bf16 %v4088, %v4088
        %v4105 = vpack.c.bf16 %v4089, %v4089
        %v4106 = vpack.c.bf16 %v4090, %v4090
        %v4107 = vpack.c.bf16 %v4091, %v4091
        %v4108 = vpack.c.bf16 %v4092, %v4092
        %v4109 = vpack.c.bf16 %v4093, %v4093
        %v4110 = vpack.c.bf16 %v4094, %v4094
        %v4111 = vpack.c.bf16 %v4095, %v4095
        %v4112 = vpack.c.bf16 %v4096, %v4096
        %v4113 = vpack.c.bf16 %v4097, %v4097
        %v4114 = vpack.c.bf16 %v4098, %v4098
        %v4115 = vpack.c.bf16 %v4099, %v4099
        %v4116 = vpack.c.bf16 %v4100, %v4100
        %4133 = vrot.lane.b32.xlu0 %v1270, 112
        %v4134 = vpop.permute.xlu0 %4133
        %4135 = vrot.lane.b32.xlu0 %v1271, 112
        %v4136 = vpop.permute.xlu0 %4135
        %4137 = vrot.lane.b32.xlu0 %v1272, 112
        %v4138 = vpop.permute.xlu0 %4137
        %4139 = vrot.lane.b32.xlu0 %v1273, 112
        %v4140 = vpop.permute.xlu0 %4139
        %4141 = vrot.lane.b32.xlu0 %v1274, 112
        %v4142 = vpop.permute.xlu0 %4141
        %4143 = vrot.lane.b32.xlu0 %v1275, 112
        %v4144 = vpop.permute.xlu0 %4143
        %4145 = vrot.lane.b32.xlu0 %v1276, 112
        %v4146 = vpop.permute.xlu0 %4145
        %4147 = vrot.lane.b32.xlu0 %v1277, 112
        %v4148 = vpop.permute.xlu0 %4147
        %4149 = vrot.lane.b32.xlu0 %v1278, 112
        %v4150 = vpop.permute.xlu0 %4149
        %4151 = vrot.lane.b32.xlu0 %v1279, 112
        %v4152 = vpop.permute.xlu0 %4151
        %4153 = vrot.lane.b32.xlu0 %v1280, 112
        %v4154 = vpop.permute.xlu0 %4153
        %4155 = vrot.lane.b32.xlu0 %v1281, 112
        %v4156 = vpop.permute.xlu0 %4155
        %4157 = vrot.lane.b32.xlu0 %v1282, 112
        %v4158 = vpop.permute.xlu0 %4157
        %4159 = vrot.lane.b32.xlu0 %v1283, 112
        %v4160 = vpop.permute.xlu0 %4159
        %4161 = vrot.lane.b32.xlu0 %v1284, 112
        %v4162 = vpop.permute.xlu0 %4161
        %4163 = vrot.lane.b32.xlu0 %v1285, 112
        %v4164 = vpop.permute.xlu0 %4163
        %v4167 = vsel %vm1305, %v4134, %v1286
        %v4170 = vsel %vm1305, %v4136, %v1287
        %v4173 = vsel %vm1305, %v4138, %v1288
        %v4176 = vsel %vm1305, %v4140, %v1289
        %v4179 = vsel %vm1305, %v4142, %v1290
        %v4182 = vsel %vm1305, %v4144, %v1291
        %v4185 = vsel %vm1305, %v4146, %v1292
        %v4188 = vsel %vm1305, %v4148, %v1293
        %v4191 = vsel %vm1305, %v4150, %v1294
        %v4194 = vsel %vm1305, %v4152, %v1295
        %v4197 = vsel %vm1305, %v4154, %v1296
        %v4200 = vsel %vm1305, %v4156, %v1297
        %v4203 = vsel %vm1305, %v4158, %v1298
        %v4206 = vsel %vm1305, %v4160, %v1299
        %v4209 = vsel %vm1305, %v4162, %v1300
        %v4212 = vsel %vm1305, %v4164, %v1301
        %v4214 = vsel %vm2087, %v4101, 0
        %v4216 = vsel %vm2379, %v4167, 0
        %4218 = vmatprep.subr.bf16.mxu0 0
        %4219 = vmatpush1.bf16.msra.mxu0 %v4216
        %4220 = vmatprep.subr.bf16.mxu0 0
        %4221 = vmatpush1.bf16.msra.mxu0 0
        %4222 = vmatprep.subr.bf16.mxu0 0
        %4223 = vmatpush1.bf16.msra.mxu0 0
        %4224 = vmatprep.subr.bf16.mxu0 0
        %4225 = vmatpush1.bf16.msra.mxu0 0
        %4226 = vmatprep.subr.bf16.mxu0 0
        %4227 = vmatpush1.bf16.msra.mxu0 0
        %4228 = vmatprep.subr.bf16.mxu0 0
        %4229 = vmatpush1.bf16.msra.mxu0 0
        %4230 = vmatprep.subr.bf16.mxu0 0
        %4231 = vmatpush1.bf16.msra.mxu0 0
        %4232 = vmatprep.subr.bf16.mxu0 0
        %4233 = vmatpush1.bf16.msra.mxu0 0
        %4234 = vmatprep.subr.bf16.mxu0 0
        %4235 = vmatpush1.bf16.msra.mxu0 0
        %4236 = vmatprep.subr.bf16.mxu0 0
        %4237 = vmatpush1.bf16.msra.mxu0 0
        %4238 = vmatprep.subr.bf16.mxu0 0
        %4239 = vmatpush1.bf16.msra.mxu0 0
        %4240 = vmatprep.subr.bf16.mxu0 0
        %4241 = vmatpush1.bf16.msra.mxu0 0
        %4242 = vmatprep.subr.bf16.mxu0 0
        %4243 = vmatpush1.bf16.msra.mxu0 0
        %4244 = vmatprep.subr.bf16.mxu0 0
        %4245 = vmatpush1.bf16.msra.mxu0 0
        %4246 = vmatprep.subr.bf16.mxu0 0
        %4247 = vmatpush1.bf16.msra.mxu0 0
        %4248 = vmatprep.subr.bf16.mxu0 0
        %4249 = vmatpush1.bf16.msra.mxu0 0
        %4250 = vmatprep.mubr.bf16.mxu0 0
        %4251 = vmatmul.mubr.bf16.gmra.mrb[0].mxu0 %v4214
        %v4252 = vpop.f32.mrb[0].mxu0
        %v4253 = vadd.f32 0.0, %v4252
        %v4254 = vpop.f32.mrb[0].mxu0
        %v4255 = vpop.f32.mrb[0].mxu0
        %v4256 = vpop.f32.mrb[0].mxu0
        %4257 = vdwg.mxu0
        %v4259 = vsel %vm2087, %v4102, 0
        %v4261 = vsel %vm2379, %v4170, 0
        %4263 = vmatprep.subr.bf16.mxu0 0
        %4264 = vmatpush1.bf16.msra.mxu0 %v4261
        %4265 = vmatprep.subr.bf16.mxu0 0
        %4266 = vmatpush1.bf16.msra.mxu0 0
        %4267 = vmatprep.subr.bf16.mxu0 0
        %4268 = vmatpush1.bf16.msra.mxu0 0
        %4269 = vmatprep.subr.bf16.mxu0 0
        %4270 = vmatpush1.bf16.msra.mxu0 0
        %4271 = vmatprep.subr.bf16.mxu0 0
        %4272 = vmatpush1.bf16.msra.mxu0 0
        %4273 = vmatprep.subr.bf16.mxu0 0
        %4274 = vmatpush1.bf16.msra.mxu0 0
        %4275 = vmatprep.subr.bf16.mxu0 0
        %4276 = vmatpush1.bf16.msra.mxu0 0
        %4277 = vmatprep.subr.bf16.mxu0 0
        %4278 = vmatpush1.bf16.msra.mxu0 0
        %4279 = vmatprep.subr.bf16.mxu0 0
        %4280 = vmatpush1.bf16.msra.mxu0 0
        %4281 = vmatprep.subr.bf16.mxu0 0
        %4282 = vmatpush1.bf16.msra.mxu0 0
        %4283 = vmatprep.subr.bf16.mxu0 0
        %4284 = vmatpush1.bf16.msra.mxu0 0
        %4285 = vmatprep.subr.bf16.mxu0 0
        %4286 = vmatpush1.bf16.msra.mxu0 0
        %4287 = vmatprep.subr.bf16.mxu0 0
        %4288 = vmatpush1.bf16.msra.mxu0 0
        %4289 = vmatprep.subr.bf16.mxu0 0
        %4290 = vmatpush1.bf16.msra.mxu0 0
        %4291 = vmatprep.subr.bf16.mxu0 0
        %4292 = vmatpush1.bf16.msra.mxu0 0
        %4293 = vmatprep.subr.bf16.mxu0 0
        %4294 = vmatpush1.bf16.msra.mxu0 0
        %4295 = vmatprep.mubr.bf16.mxu0 0
        %4296 = vmatmul.mubr.bf16.gmra.mrb[0].mxu0 %v4259
        %v4297 = vpop.f32.mrb[0].mxu0
        %v4298 = vadd.f32 0.0, %v4297
        %v4299 = vpop.f32.mrb[0].mxu0
        %v4300 = vpop.f32.mrb[0].mxu0
        %v4301 = vpop.f32.mrb[0].mxu0
        %4302 = vdwg.mxu0
        %v4304 = vsel %vm2087, %v4103, 0
        %v4306 = vsel %vm2379, %v4173, 0
        %4308 = vmatprep.subr.bf16.mxu0 0
        %4309 = vmatpush1.bf16.msra.mxu0 %v4306
        %4310 = vmatprep.subr.bf16.mxu0 0
        %4311 = vmatpush1.bf16.msra.mxu0 0
        %4312 = vmatprep.subr.bf16.mxu0 0
        %4313 = vmatpush1.bf16.msra.mxu0 0
        %4314 = vmatprep.subr.bf16.mxu0 0
        %4315 = vmatpush1.bf16.msra.mxu0 0
        %4316 = vmatprep.subr.bf16.mxu0 0
        %4317 = vmatpush1.bf16.msra.mxu0 0
        %4318 = vmatprep.subr.bf16.mxu0 0
        %4319 = vmatpush1.bf16.msra.mxu0 0
        %4320 = vmatprep.subr.bf16.mxu0 0
        %4321 = vmatpush1.bf16.msra.mxu0 0
        %4322 = vmatprep.subr.bf16.mxu0 0
        %4323 = vmatpush1.bf16.msra.mxu0 0
        %4324 = vmatprep.subr.bf16.mxu0 0
        %4325 = vmatpush1.bf16.msra.mxu0 0
        %4326 = vmatprep.subr.bf16.mxu0 0
        %4327 = vmatpush1.bf16.msra.mxu0 0
        %4328 = vmatprep.subr.bf16.mxu0 0
        %4329 = vmatpush1.bf16.msra.mxu0 0
        %4330 = vmatprep.subr.bf16.mxu0 0
        %4331 = vmatpush1.bf16.msra.mxu0 0
        %4332 = vmatprep.subr.bf16.mxu0 0
        %4333 = vmatpush1.bf16.msra.mxu0 0
        %4334 = vmatprep.subr.bf16.mxu0 0
        %4335 = vmatpush1.bf16.msra.mxu0 0
        %4336 = vmatprep.subr.bf16.mxu0 0
        %4337 = vmatpush1.bf16.msra.mxu0 0
        %4338 = vmatprep.subr.bf16.mxu0 0
        %4339 = vmatpush1.bf16.msra.mxu0 0
        %4340 = vmatprep.mubr.bf16.mxu0 0
        %4341 = vmatmul.mubr.bf16.gmra.mrb[0].mxu0 %v4304
        %v4342 = vpop.f32.mrb[0].mxu0
        %v4343 = vadd.f32 0.0, %v4342
        %v4344 = vpop.f32.mrb[0].mxu0
        %v4345 = vpop.f32.mrb[0].mxu0
        %v4346 = vpop.f32.mrb[0].mxu0
        %4347 = vdwg.mxu0
        %v4349 = vsel %vm2087, %v4104, 0
        %v4351 = vsel %vm2379, %v4176, 0
        %4353 = vmatprep.subr.bf16.mxu0 0
        %4354 = vmatpush1.bf16.msra.mxu0 %v4351
        %4355 = vmatprep.subr.bf16.mxu0 0
        %4356 = vmatpush1.bf16.msra.mxu0 0
        %4357 = vmatprep.subr.bf16.mxu0 0
        %4358 = vmatpush1.bf16.msra.mxu0 0
        %4359 = vmatprep.subr.bf16.mxu0 0
        %4360 = vmatpush1.bf16.msra.mxu0 0
        %4361 = vmatprep.subr.bf16.mxu0 0
        %4362 = vmatpush1.bf16.msra.mxu0 0
        %4363 = vmatprep.subr.bf16.mxu0 0
        %4364 = vmatpush1.bf16.msra.mxu0 0
        %4365 = vmatprep.subr.bf16.mxu0 0
        %4366 = vmatpush1.bf16.msra.mxu0 0
        %4367 = vmatprep.subr.bf16.mxu0 0
        %4368 = vmatpush1.bf16.msra.mxu0 0
        %4369 = vmatprep.subr.bf16.mxu0 0
        %4370 = vmatpush1.bf16.msra.mxu0 0
        %4371 = vmatprep.subr.bf16.mxu0 0
        %4372 = vmatpush1.bf16.msra.mxu0 0
        %4373 = vmatprep.subr.bf16.mxu0 0
        %4374 = vmatpush1.bf16.msra.mxu0 0
        %4375 = vmatprep.subr.bf16.mxu0 0
        %4376 = vmatpush1.bf16.msra.mxu0 0
        %4377 = vmatprep.subr.bf16.mxu0 0
        %4378 = vmatpush1.bf16.msra.mxu0 0
        %4379 = vmatprep.subr.bf16.mxu0 0
        %4380 = vmatpush1.bf16.msra.mxu0 0
        %4381 = vmatprep.subr.bf16.mxu0 0
        %4382 = vmatpush1.bf16.msra.mxu0 0
        %4383 = vmatprep.subr.bf16.mxu0 0
        %4384 = vmatpush1.bf16.msra.mxu0 0
        %4385 = vmatprep.mubr.bf16.mxu0 0
        %4386 = vmatmul.mubr.bf16.gmra.mrb[0].mxu0 %v4349
        %v4387 = vpop.f32.mrb[0].mxu0
        %v4388 = vadd.f32 0.0, %v4387
        %v4389 = vpop.f32.mrb[0].mxu0
        %v4390 = vpop.f32.mrb[0].mxu0
        %v4391 = vpop.f32.mrb[0].mxu0
        %4392 = vdwg.mxu0
        %v4394 = vsel %vm2087, %v4105, 0
        %v4396 = vsel %vm2379, %v4179, 0
        %4398 = vmatprep.subr.bf16.mxu0 0
        %4399 = vmatpush1.bf16.msra.mxu0 %v4396
        %4400 = vmatprep.subr.bf16.mxu0 0
        %4401 = vmatpush1.bf16.msra.mxu0 0
        %4402 = vmatprep.subr.bf16.mxu0 0
        %4403 = vmatpush1.bf16.msra.mxu0 0
        %4404 = vmatprep.subr.bf16.mxu0 0
        %4405 = vmatpush1.bf16.msra.mxu0 0
        %4406 = vmatprep.subr.bf16.mxu0 0
        %4407 = vmatpush1.bf16.msra.mxu0 0
        %4408 = vmatprep.subr.bf16.mxu0 0
        %4409 = vmatpush1.bf16.msra.mxu0 0
        %4410 = vmatprep.subr.bf16.mxu0 0
        %4411 = vmatpush1.bf16.msra.mxu0 0
        %4412 = vmatprep.subr.bf16.mxu0 0
        %4413 = vmatpush1.bf16.msra.mxu0 0
        %4414 = vmatprep.subr.bf16.mxu0 0
        %4415 = vmatpush1.bf16.msra.mxu0 0
        %4416 = vmatprep.subr.bf16.mxu0 0
        %4417 = vmatpush1.bf16.msra.mxu0 0
        %4418 = vmatprep.subr.bf16.mxu0 0
        %4419 = vmatpush1.bf16.msra.mxu0 0
        %4420 = vmatprep.subr.bf16.mxu0 0
        %4421 = vmatpush1.bf16.msra.mxu0 0
        %4422 = vmatprep.subr.bf16.mxu0 0
        %4423 = vmatpush1.bf16.msra.mxu0 0
        %4424 = vmatprep.subr.bf16.mxu0 0
        %4425 = vmatpush1.bf16.msra.mxu0 0
        %4426 = vmatprep.subr.bf16.mxu0 0
        %4427 = vmatpush1.bf16.msra.mxu0 0
        %4428 = vmatprep.subr.bf16.mxu0 0
        %4429 = vmatpush1.bf16.msra.mxu0 0
        %4430 = vmatprep.mubr.bf16.mxu0 0
        %4431 = vmatmul.mubr.bf16.gmra.mrb[0].mxu0 %v4394
        %v4432 = vpop.f32.mrb[0].mxu0
        %v4433 = vadd.f32 0.0, %v4432
        %v4434 = vpop.f32.mrb[0].mxu0
        %v4435 = vpop.f32.mrb[0].mxu0
        %v4436 = vpop.f32.mrb[0].mxu0
        %4437 = vdwg.mxu0
        %v4439 = vsel %vm2087, %v4106, 0
        %v4441 = vsel %vm2379, %v4182, 0
        %4443 = vmatprep.subr.bf16.mxu0 0
        %4444 = vmatpush1.bf16.msra.mxu0 %v4441
        %4445 = vmatprep.subr.bf16.mxu0 0
        %4446 = vmatpush1.bf16.msra.mxu0 0
        %4447 = vmatprep.subr.bf16.mxu0 0
        %4448 = vmatpush1.bf16.msra.mxu0 0
        %4449 = vmatprep.subr.bf16.mxu0 0
        %4450 = vmatpush1.bf16.msra.mxu0 0
        %4451 = vmatprep.subr.bf16.mxu0 0
        %4452 = vmatpush1.bf16.msra.mxu0 0
        %4453 = vmatprep.subr.bf16.mxu0 0
        %4454 = vmatpush1.bf16.msra.mxu0 0
        %4455 = vmatprep.subr.bf16.mxu0 0
        %4456 = vmatpush1.bf16.msra.mxu0 0
        %4457 = vmatprep.subr.bf16.mxu0 0
        %4458 = vmatpush1.bf16.msra.mxu0 0
        %4459 = vmatprep.subr.bf16.mxu0 0
        %4460 = vmatpush1.bf16.msra.mxu0 0
        %4461 = vmatprep.subr.bf16.mxu0 0
        %4462 = vmatpush1.bf16.msra.mxu0 0
        %4463 = vmatprep.subr.bf16.mxu0 0
        %4464 = vmatpush1.bf16.msra.mxu0 0
        %4465 = vmatprep.subr.bf16.mxu0 0
        %4466 = vmatpush1.bf16.msra.mxu0 0
        %4467 = vmatprep.subr.bf16.mxu0 0
        %4468 = vmatpush1.bf16.msra.mxu0 0
        %4469 = vmatprep.subr.bf16.mxu0 0
        %4470 = vmatpush1.bf16.msra.mxu0 0
        %4471 = vmatprep.subr.bf16.mxu0 0
        %4472 = vmatpush1.bf16.msra.mxu0 0
        %4473 = vmatprep.subr.bf16.mxu0 0
        %4474 = vmatpush1.bf16.msra.mxu0 0
        %4475 = vmatprep.mubr.bf16.mxu0 0
        %4476 = vmatmul.mubr.bf16.gmra.mrb[0].mxu0 %v4439
        %v4477 = vpop.f32.mrb[0].mxu0
        %v4478 = vadd.f32 0.0, %v4477
        %v4479 = vpop.f32.mrb[0].mxu0
        %v4480 = vpop.f32.mrb[0].mxu0
        %v4481 = vpop.f32.mrb[0].mxu0
        %4482 = vdwg.mxu0
        %v4484 = vsel %vm2087, %v4107, 0
        %v4486 = vsel %vm2379, %v4185, 0
        %4488 = vmatprep.subr.bf16.mxu0 0
        %4489 = vmatpush1.bf16.msra.mxu0 %v4486
        %4490 = vmatprep.subr.bf16.mxu0 0
        %4491 = vmatpush1.bf16.msra.mxu0 0
        %4492 = vmatprep.subr.bf16.mxu0 0
        %4493 = vmatpush1.bf16.msra.mxu0 0
        %4494 = vmatprep.subr.bf16.mxu0 0
        %4495 = vmatpush1.bf16.msra.mxu0 0
        %4496 = vmatprep.subr.bf16.mxu0 0
        %4497 = vmatpush1.bf16.msra.mxu0 0
        %4498 = vmatprep.subr.bf16.mxu0 0
        %4499 = vmatpush1.bf16.msra.mxu0 0
        %4500 = vmatprep.subr.bf16.mxu0 0
        %4501 = vmatpush1.bf16.msra.mxu0 0
        %4502 = vmatprep.subr.bf16.mxu0 0
        %4503 = vmatpush1.bf16.msra.mxu0 0
        %4504 = vmatprep.subr.bf16.mxu0 0
        %4505 = vmatpush1.bf16.msra.mxu0 0
        %4506 = vmatprep.subr.bf16.mxu0 0
        %4507 = vmatpush1.bf16.msra.mxu0 0
        %4508 = vmatprep.subr.bf16.mxu0 0
        %4509 = vmatpush1.bf16.msra.mxu0 0
        %4510 = vmatprep.subr.bf16.mxu0 0
        %4511 = vmatpush1.bf16.msra.mxu0 0
        %4512 = vmatprep.subr.bf16.mxu0 0
        %4513 = vmatpush1.bf16.msra.mxu0 0
        %4514 = vmatprep.subr.bf16.mxu0 0
        %4515 = vmatpush1.bf16.msra.mxu0 0
        %4516 = vmatprep.subr.bf16.mxu0 0
        %4517 = vmatpush1.bf16.msra.mxu0 0
        %4518 = vmatprep.subr.bf16.mxu0 0
        %4519 = vmatpush1.bf16.msra.mxu0 0
        %4520 = vmatprep.mubr.bf16.mxu0 0
        %4521 = vmatmul.mubr.bf16.gmra.mrb[0].mxu0 %v4484
        %v4522 = vpop.f32.mrb[0].mxu0
        %v4523 = vadd.f32 0.0, %v4522
        %v4524 = vpop.f32.mrb[0].mxu0
        %v4525 = vpop.f32.mrb[0].mxu0
        %v4526 = vpop.f32.mrb[0].mxu0
        %4527 = vdwg.mxu0
        %v4529 = vsel %vm2087, %v4108, 0
        %v4531 = vsel %vm2379, %v4188, 0
        %4533 = vmatprep.subr.bf16.mxu0 0
        %4534 = vmatpush1.bf16.msra.mxu0 %v4531
        %4535 = vmatprep.subr.bf16.mxu0 0
        %4536 = vmatpush1.bf16.msra.mxu0 0
        %4537 = vmatprep.subr.bf16.mxu0 0
        %4538 = vmatpush1.bf16.msra.mxu0 0
        %4539 = vmatprep.subr.bf16.mxu0 0
        %4540 = vmatpush1.bf16.msra.mxu0 0
        %4541 = vmatprep.subr.bf16.mxu0 0
        %4542 = vmatpush1.bf16.msra.mxu0 0
        %4543 = vmatprep.subr.bf16.mxu0 0
        %4544 = vmatpush1.bf16.msra.mxu0 0
        %4545 = vmatprep.subr.bf16.mxu0 0
        %4546 = vmatpush1.bf16.msra.mxu0 0
        %4547 = vmatprep.subr.bf16.mxu0 0
        %4548 = vmatpush1.bf16.msra.mxu0 0
        %4549 = vmatprep.subr.bf16.mxu0 0
        %4550 = vmatpush1.bf16.msra.mxu0 0
        %4551 = vmatprep.subr.bf16.mxu0 0
        %4552 = vmatpush1.bf16.msra.mxu0 0
        %4553 = vmatprep.subr.bf16.mxu0 0
        %4554 = vmatpush1.bf16.msra.mxu0 0
        %4555 = vmatprep.subr.bf16.mxu0 0
        %4556 = vmatpush1.bf16.msra.mxu0 0
        %4557 = vmatprep.subr.bf16.mxu0 0
        %4558 = vmatpush1.bf16.msra.mxu0 0
        %4559 = vmatprep.subr.bf16.mxu0 0
        %4560 = vmatpush1.bf16.msra.mxu0 0
        %4561 = vmatprep.subr.bf16.mxu0 0
        %4562 = vmatpush1.bf16.msra.mxu0 0
        %4563 = vmatprep.subr.bf16.mxu0 0
        %4564 = vmatpush1.bf16.msra.mxu0 0
        %4565 = vmatprep.mubr.bf16.mxu0 0
        %4566 = vmatmul.mubr.bf16.gmra.mrb[0].mxu0 %v4529
        %v4567 = vpop.f32.mrb[0].mxu0
        %v4568 = vadd.f32 0.0, %v4567
        %v4569 = vpop.f32.mrb[0].mxu0
        %v4570 = vpop.f32.mrb[0].mxu0
        %v4571 = vpop.f32.mrb[0].mxu0
        %4572 = vdwg.mxu0
        %v4574 = vsel %vm2087, %v4109, 0
        %v4576 = vsel %vm2379, %v4191, 0
        %4578 = vmatprep.subr.bf16.mxu0 0
        %4579 = vmatpush1.bf16.msra.mxu0 %v4576
        %4580 = vmatprep.subr.bf16.mxu0 0
        %4581 = vmatpush1.bf16.msra.mxu0 0
        %4582 = vmatprep.subr.bf16.mxu0 0
        %4583 = vmatpush1.bf16.msra.mxu0 0
        %4584 = vmatprep.subr.bf16.mxu0 0
        %4585 = vmatpush1.bf16.msra.mxu0 0
        %4586 = vmatprep.subr.bf16.mxu0 0
        %4587 = vmatpush1.bf16.msra.mxu0 0
        %4588 = vmatprep.subr.bf16.mxu0 0
        %4589 = vmatpush1.bf16.msra.mxu0 0
        %4590 = vmatprep.subr.bf16.mxu0 0
        %4591 = vmatpush1.bf16.msra.mxu0 0
        %4592 = vmatprep.subr.bf16.mxu0 0
        %4593 = vmatpush1.bf16.msra.mxu0 0
        %4594 = vmatprep.subr.bf16.mxu0 0
        %4595 = vmatpush1.bf16.msra.mxu0 0
        %4596 = vmatprep.subr.bf16.mxu0 0
        %4597 = vmatpush1.bf16.msra.mxu0 0
        %4598 = vmatprep.subr.bf16.mxu0 0
        %4599 = vmatpush1.bf16.msra.mxu0 0
        %4600 = vmatprep.subr.bf16.mxu0 0
        %4601 = vmatpush1.bf16.msra.mxu0 0
        %4602 = vmatprep.subr.bf16.mxu0 0
        %4603 = vmatpush1.bf16.msra.mxu0 0
        %4604 = vmatprep.subr.bf16.mxu0 0
        %4605 = vmatpush1.bf16.msra.mxu0 0
        %4606 = vmatprep.subr.bf16.mxu0 0
        %4607 = vmatpush1.bf16.msra.mxu0 0
        %4608 = vmatprep.subr.bf16.mxu0 0
        %4609 = vmatpush1.bf16.msra.mxu0 0
        %4610 = vmatprep.mubr.bf16.mxu0 0
        %4611 = vmatmul.mubr.bf16.gmra.mrb[0].mxu0 %v4574
        %v4612 = vpop.f32.mrb[0].mxu0
        %v4613 = vadd.f32 0.0, %v4612
        %v4614 = vpop.f32.mrb[0].mxu0
        %v4615 = vpop.f32.mrb[0].mxu0
        %v4616 = vpop.f32.mrb[0].mxu0
        %4617 = vdwg.mxu0
        %v4619 = vsel %vm2087, %v4110, 0
        %v4621 = vsel %vm2379, %v4194, 0
        %4623 = vmatprep.subr.bf16.mxu0 0
        %4624 = vmatpush1.bf16.msra.mxu0 %v4621
        %4625 = vmatprep.subr.bf16.mxu0 0
        %4626 = vmatpush1.bf16.msra.mxu0 0
        %4627 = vmatprep.subr.bf16.mxu0 0
        %4628 = vmatpush1.bf16.msra.mxu0 0
        %4629 = vmatprep.subr.bf16.mxu0 0
        %4630 = vmatpush1.bf16.msra.mxu0 0
        %4631 = vmatprep.subr.bf16.mxu0 0
        %4632 = vmatpush1.bf16.msra.mxu0 0
        %4633 = vmatprep.subr.bf16.mxu0 0
        %4634 = vmatpush1.bf16.msra.mxu0 0
        %4635 = vmatprep.subr.bf16.mxu0 0
        %4636 = vmatpush1.bf16.msra.mxu0 0
        %4637 = vmatprep.subr.bf16.mxu0 0
        %4638 = vmatpush1.bf16.msra.mxu0 0
        %4639 = vmatprep.subr.bf16.mxu0 0
        %4640 = vmatpush1.bf16.msra.mxu0 0
        %4641 = vmatprep.subr.bf16.mxu0 0
        %4642 = vmatpush1.bf16.msra.mxu0 0
        %4643 = vmatprep.subr.bf16.mxu0 0
        %4644 = vmatpush1.bf16.msra.mxu0 0
        %4645 = vmatprep.subr.bf16.mxu0 0
        %4646 = vmatpush1.bf16.msra.mxu0 0
        %4647 = vmatprep.subr.bf16.mxu0 0
        %4648 = vmatpush1.bf16.msra.mxu0 0
        %4649 = vmatprep.subr.bf16.mxu0 0
        %4650 = vmatpush1.bf16.msra.mxu0 0
        %4651 = vmatprep.subr.bf16.mxu0 0
        %4652 = vmatpush1.bf16.msra.mxu0 0
        %4653 = vmatprep.subr.bf16.mxu0 0
        %4654 = vmatpush1.bf16.msra.mxu0 0
        %4655 = vmatprep.mubr.bf16.mxu0 0
        %4656 = vmatmul.mubr.bf16.gmra.mrb[0].mxu0 %v4619
        %v4657 = vpop.f32.mrb[0].mxu0
        %v4658 = vadd.f32 0.0, %v4657
        %v4659 = vpop.f32.mrb[0].mxu0
        %v4660 = vpop.f32.mrb[0].mxu0
        %v4661 = vpop.f32.mrb[0].mxu0
        %4662 = vdwg.mxu0
        %v4664 = vsel %vm2087, %v4111, 0
        %v4666 = vsel %vm2379, %v4197, 0
        %4668 = vmatprep.subr.bf16.mxu0 0
        %4669 = vmatpush1.bf16.msra.mxu0 %v4666
        %4670 = vmatprep.subr.bf16.mxu0 0
        %4671 = vmatpush1.bf16.msra.mxu0 0
        %4672 = vmatprep.subr.bf16.mxu0 0
        %4673 = vmatpush1.bf16.msra.mxu0 0
        %4674 = vmatprep.subr.bf16.mxu0 0
        %4675 = vmatpush1.bf16.msra.mxu0 0
        %4676 = vmatprep.subr.bf16.mxu0 0
        %4677 = vmatpush1.bf16.msra.mxu0 0
        %4678 = vmatprep.subr.bf16.mxu0 0
        %4679 = vmatpush1.bf16.msra.mxu0 0
        %4680 = vmatprep.subr.bf16.mxu0 0
        %4681 = vmatpush1.bf16.msra.mxu0 0
        %4682 = vmatprep.subr.bf16.mxu0 0
        %4683 = vmatpush1.bf16.msra.mxu0 0
        %4684 = vmatprep.subr.bf16.mxu0 0
        %4685 = vmatpush1.bf16.msra.mxu0 0
        %4686 = vmatprep.subr.bf16.mxu0 0
        %4687 = vmatpush1.bf16.msra.mxu0 0
        %4688 = vmatprep.subr.bf16.mxu0 0
        %4689 = vmatpush1.bf16.msra.mxu0 0
        %4690 = vmatprep.subr.bf16.mxu0 0
        %4691 = vmatpush1.bf16.msra.mxu0 0
        %4692 = vmatprep.subr.bf16.mxu0 0
        %4693 = vmatpush1.bf16.msra.mxu0 0
        %4694 = vmatprep.subr.bf16.mxu0 0
        %4695 = vmatpush1.bf16.msra.mxu0 0
        %4696 = vmatprep.subr.bf16.mxu0 0
        %4697 = vmatpush1.bf16.msra.mxu0 0
        %4698 = vmatprep.subr.bf16.mxu0 0
        %4699 = vmatpush1.bf16.msra.mxu0 0
        %4700 = vmatprep.mubr.bf16.mxu0 0
        %4701 = vmatmul.mubr.bf16.gmra.mrb[0].mxu0 %v4664
        %v4702 = vpop.f32.mrb[0].mxu0
        %v4703 = vadd.f32 0.0, %v4702
        %v4704 = vpop.f32.mrb[0].mxu0
        %v4705 = vpop.f32.mrb[0].mxu0
        %v4706 = vpop.f32.mrb[0].mxu0
        %4707 = vdwg.mxu0
        %v4709 = vsel %vm2087, %v4112, 0
        %v4711 = vsel %vm2379, %v4200, 0
        %4713 = vmatprep.subr.bf16.mxu0 0
        %4714 = vmatpush1.bf16.msra.mxu0 %v4711
        %4715 = vmatprep.subr.bf16.mxu0 0
        %4716 = vmatpush1.bf16.msra.mxu0 0
        %4717 = vmatprep.subr.bf16.mxu0 0
        %4718 = vmatpush1.bf16.msra.mxu0 0
        %4719 = vmatprep.subr.bf16.mxu0 0
        %4720 = vmatpush1.bf16.msra.mxu0 0
        %4721 = vmatprep.subr.bf16.mxu0 0
        %4722 = vmatpush1.bf16.msra.mxu0 0
        %4723 = vmatprep.subr.bf16.mxu0 0
        %4724 = vmatpush1.bf16.msra.mxu0 0
        %4725 = vmatprep.subr.bf16.mxu0 0
        %4726 = vmatpush1.bf16.msra.mxu0 0
        %4727 = vmatprep.subr.bf16.mxu0 0
        %4728 = vmatpush1.bf16.msra.mxu0 0
        %4729 = vmatprep.subr.bf16.mxu0 0
        %4730 = vmatpush1.bf16.msra.mxu0 0
        %4731 = vmatprep.subr.bf16.mxu0 0
        %4732 = vmatpush1.bf16.msra.mxu0 0
        %4733 = vmatprep.subr.bf16.mxu0 0
        %4734 = vmatpush1.bf16.msra.mxu0 0
        %4735 = vmatprep.subr.bf16.mxu0 0
        %4736 = vmatpush1.bf16.msra.mxu0 0
        %4737 = vmatprep.subr.bf16.mxu0 0
        %4738 = vmatpush1.bf16.msra.mxu0 0
        %4739 = vmatprep.subr.bf16.mxu0 0
        %4740 = vmatpush1.bf16.msra.mxu0 0
        %4741 = vmatprep.subr.bf16.mxu0 0
        %4742 = vmatpush1.bf16.msra.mxu0 0
        %4743 = vmatprep.subr.bf16.mxu0 0
        %4744 = vmatpush1.bf16.msra.mxu0 0
        %4745 = vmatprep.mubr.bf16.mxu0 0
        %4746 = vmatmul.mubr.bf16.gmra.mrb[0].mxu0 %v4709
        %v4747 = vpop.f32.mrb[0].mxu0
        %v4748 = vadd.f32 0.0, %v4747
        %v4749 = vpop.f32.mrb[0].mxu0
        %v4750 = vpop.f32.mrb[0].mxu0
        %v4751 = vpop.f32.mrb[0].mxu0
        %4752 = vdwg.mxu0
        %v4754 = vsel %vm2087, %v4113, 0
        %v4756 = vsel %vm2379, %v4203, 0
        %4758 = vmatprep.subr.bf16.mxu0 0
        %4759 = vmatpush1.bf16.msra.mxu0 %v4756
        %4760 = vmatprep.subr.bf16.mxu0 0
        %4761 = vmatpush1.bf16.msra.mxu0 0
        %4762 = vmatprep.subr.bf16.mxu0 0
        %4763 = vmatpush1.bf16.msra.mxu0 0
        %4764 = vmatprep.subr.bf16.mxu0 0
        %4765 = vmatpush1.bf16.msra.mxu0 0
        %4766 = vmatprep.subr.bf16.mxu0 0
        %4767 = vmatpush1.bf16.msra.mxu0 0
        %4768 = vmatprep.subr.bf16.mxu0 0
        %4769 = vmatpush1.bf16.msra.mxu0 0
        %4770 = vmatprep.subr.bf16.mxu0 0
        %4771 = vmatpush1.bf16.msra.mxu0 0
        %4772 = vmatprep.subr.bf16.mxu0 0
        %4773 = vmatpush1.bf16.msra.mxu0 0
        %4774 = vmatprep.subr.bf16.mxu0 0
        %4775 = vmatpush1.bf16.msra.mxu0 0
        %4776 = vmatprep.subr.bf16.mxu0 0
        %4777 = vmatpush1.bf16.msra.mxu0 0
        %4778 = vmatprep.subr.bf16.mxu0 0
        %4779 = vmatpush1.bf16.msra.mxu0 0
        %4780 = vmatprep.subr.bf16.mxu0 0
        %4781 = vmatpush1.bf16.msra.mxu0 0
        %4782 = vmatprep.subr.bf16.mxu0 0
        %4783 = vmatpush1.bf16.msra.mxu0 0
        %4784 = vmatprep.subr.bf16.mxu0 0
        %4785 = vmatpush1.bf16.msra.mxu0 0
        %4786 = vmatprep.subr.bf16.mxu0 0
        %4787 = vmatpush1.bf16.msra.mxu0 0
        %4788 = vmatprep.subr.bf16.mxu0 0
        %4789 = vmatpush1.bf16.msra.mxu0 0
        %4790 = vmatprep.mubr.bf16.mxu0 0
        %4791 = vmatmul.mubr.bf16.gmra.mrb[0].mxu0 %v4754
        %v4792 = vpop.f32.mrb[0].mxu0
        %v4793 = vadd.f32 0.0, %v4792
        %v4794 = vpop.f32.mrb[0].mxu0
        %v4795 = vpop.f32.mrb[0].mxu0
        %v4796 = vpop.f32.mrb[0].mxu0
        %4797 = vdwg.mxu0
        %v4799 = vsel %vm2087, %v4114, 0
        %v4801 = vsel %vm2379, %v4206, 0
        %4803 = vmatprep.subr.bf16.mxu0 0
        %4804 = vmatpush1.bf16.msra.mxu0 %v4801
        %4805 = vmatprep.subr.bf16.mxu0 0
        %4806 = vmatpush1.bf16.msra.mxu0 0
        %4807 = vmatprep.subr.bf16.mxu0 0
        %4808 = vmatpush1.bf16.msra.mxu0 0
        %4809 = vmatprep.subr.bf16.mxu0 0
        %4810 = vmatpush1.bf16.msra.mxu0 0
        %4811 = vmatprep.subr.bf16.mxu0 0
        %4812 = vmatpush1.bf16.msra.mxu0 0
        %4813 = vmatprep.subr.bf16.mxu0 0
        %4814 = vmatpush1.bf16.msra.mxu0 0
        %4815 = vmatprep.subr.bf16.mxu0 0
        %4816 = vmatpush1.bf16.msra.mxu0 0
        %4817 = vmatprep.subr.bf16.mxu0 0
        %4818 = vmatpush1.bf16.msra.mxu0 0
        %4819 = vmatprep.subr.bf16.mxu0 0
        %4820 = vmatpush1.bf16.msra.mxu0 0
        %4821 = vmatprep.subr.bf16.mxu0 0
        %4822 = vmatpush1.bf16.msra.mxu0 0
        %4823 = vmatprep.subr.bf16.mxu0 0
        %4824 = vmatpush1.bf16.msra.mxu0 0
        %4825 = vmatprep.subr.bf16.mxu0 0
        %4826 = vmatpush1.bf16.msra.mxu0 0
        %4827 = vmatprep.subr.bf16.mxu0 0
        %4828 = vmatpush1.bf16.msra.mxu0 0
        %4829 = vmatprep.subr.bf16.mxu0 0
        %4830 = vmatpush1.bf16.msra.mxu0 0
        %4831 = vmatprep.subr.bf16.mxu0 0
        %4832 = vmatpush1.bf16.msra.mxu0 0
        %4833 = vmatprep.subr.bf16.mxu0 0
        %4834 = vmatpush1.bf16.msra.mxu0 0
        %4835 = vmatprep.mubr.bf16.mxu0 0
        %4836 = vmatmul.mubr.bf16.gmra.mrb[0].mxu0 %v4799
        %v4837 = vpop.f32.mrb[0].mxu0
        %v4838 = vadd.f32 0.0, %v4837
        %v4839 = vpop.f32.mrb[0].mxu0
        %v4840 = vpop.f32.mrb[0].mxu0
        %v4841 = vpop.f32.mrb[0].mxu0
        %4842 = vdwg.mxu0
        %v4844 = vsel %vm2087, %v4115, 0
        %v4846 = vsel %vm2379, %v4209, 0
        %4848 = vmatprep.subr.bf16.mxu0 0
        %4849 = vmatpush1.bf16.msra.mxu0 %v4846
        %4850 = vmatprep.subr.bf16.mxu0 0
        %4851 = vmatpush1.bf16.msra.mxu0 0
        %4852 = vmatprep.subr.bf16.mxu0 0
        %4853 = vmatpush1.bf16.msra.mxu0 0
        %4854 = vmatprep.subr.bf16.mxu0 0
        %4855 = vmatpush1.bf16.msra.mxu0 0
        %4856 = vmatprep.subr.bf16.mxu0 0
        %4857 = vmatpush1.bf16.msra.mxu0 0
        %4858 = vmatprep.subr.bf16.mxu0 0
        %4859 = vmatpush1.bf16.msra.mxu0 0
        %4860 = vmatprep.subr.bf16.mxu0 0
        %4861 = vmatpush1.bf16.msra.mxu0 0
        %4862 = vmatprep.subr.bf16.mxu0 0
        %4863 = vmatpush1.bf16.msra.mxu0 0
        %4864 = vmatprep.subr.bf16.mxu0 0
        %4865 = vmatpush1.bf16.msra.mxu0 0
        %4866 = vmatprep.subr.bf16.mxu0 0
        %4867 = vmatpush1.bf16.msra.mxu0 0
        %4868 = vmatprep.subr.bf16.mxu0 0
        %4869 = vmatpush1.bf16.msra.mxu0 0
        %4870 = vmatprep.subr.bf16.mxu0 0
        %4871 = vmatpush1.bf16.msra.mxu0 0
        %4872 = vmatprep.subr.bf16.mxu0 0
        %4873 = vmatpush1.bf16.msra.mxu0 0
        %4874 = vmatprep.subr.bf16.mxu0 0
        %4875 = vmatpush1.bf16.msra.mxu0 0
        %4876 = vmatprep.subr.bf16.mxu0 0
        %4877 = vmatpush1.bf16.msra.mxu0 0
        %4878 = vmatprep.subr.bf16.mxu0 0
        %4879 = vmatpush1.bf16.msra.mxu0 0
        %4880 = vmatprep.mubr.bf16.mxu0 0
        %4881 = vmatmul.mubr.bf16.gmra.mrb[0].mxu0 %v4844
        %v4882 = vpop.f32.mrb[0].mxu0
        %v4883 = vadd.f32 0.0, %v4882
        %v4884 = vpop.f32.mrb[0].mxu0
        %v4885 = vpop.f32.mrb[0].mxu0
        %v4886 = vpop.f32.mrb[0].mxu0
        %4887 = vdwg.mxu0
        %v4889 = vsel %vm2087, %v4116, 0
        %v4891 = vsel %vm2379, %v4212, 0
        %4893 = vmatprep.subr.bf16.mxu0 0
        %4894 = vmatpush1.bf16.msra.mxu0 %v4891
        %4895 = vmatprep.subr.bf16.mxu0 0
        %4896 = vmatpush1.bf16.msra.mxu0 0
        %4897 = vmatprep.subr.bf16.mxu0 0
        %4898 = vmatpush1.bf16.msra.mxu0 0
        %4899 = vmatprep.subr.bf16.mxu0 0
        %4900 = vmatpush1.bf16.msra.mxu0 0
        %4901 = vmatprep.subr.bf16.mxu0 0
        %4902 = vmatpush1.bf16.msra.mxu0 0
        %4903 = vmatprep.subr.bf16.mxu0 0
        %4904 = vmatpush1.bf16.msra.mxu0 0
        %4905 = vmatprep.subr.bf16.mxu0 0
        %4906 = vmatpush1.bf16.msra.mxu0 0
        %4907 = vmatprep.subr.bf16.mxu0 0
        %4908 = vmatpush1.bf16.msra.mxu0 0
        %4909 = vmatprep.subr.bf16.mxu0 0
        %4910 = vmatpush1.bf16.msra.mxu0 0
        %4911 = vmatprep.subr.bf16.mxu0 0
        %4912 = vmatpush1.bf16.msra.mxu0 0
        %4913 = vmatprep.subr.bf16.mxu0 0
        %4914 = vmatpush1.bf16.msra.mxu0 0
        %4915 = vmatprep.subr.bf16.mxu0 0
        %4916 = vmatpush1.bf16.msra.mxu0 0
        %4917 = vmatprep.subr.bf16.mxu0 0
        %4918 = vmatpush1.bf16.msra.mxu0 0
        %4919 = vmatprep.subr.bf16.mxu0 0
        %4920 = vmatpush1.bf16.msra.mxu0 0
        %4921 = vmatprep.subr.bf16.mxu0 0
        %4922 = vmatpush1.bf16.msra.mxu0 0
        %4923 = vmatprep.subr.bf16.mxu0 0
        %4924 = vmatpush1.bf16.msra.mxu0 0
        %4925 = vmatprep.mubr.bf16.mxu0 0
        %4926 = vmatmul.mubr.bf16.gmra.mrb[0].mxu0 %v4889
        %v4927 = vpop.f32.mrb[0].mxu0
        %v4928 = vadd.f32 0.0, %v4927
        %v4929 = vpop.f32.mrb[0].mxu0
        %v4930 = vpop.f32.mrb[0].mxu0
        %v4931 = vpop.f32.mrb[0].mxu0
        %4932 = vdwg.mxu0
        %v4933 = vld [vmem:[%s4 + $0x10] sm:$0xf]
        %v4934 = vld [vmem:[%s4 + $0x14] sm:$0xf]
        %v4935 = vld [vmem:[%s4 + $0x18] sm:$0xf]
        %v4936 = vld [vmem:[%s4 + $0x1c] sm:$0xf]
        %v4937 = vpack.c.bf16 %v4298, %v4253
        %v4938 = vpack.c.bf16 %v4388, %v4343
        %v4939 = vpack.c.bf16 %v4478, %v4433
        %v4940 = vpack.c.bf16 %v4568, %v4523
        %v4941 = vpack.c.bf16 %v4658, %v4613
        %v4942 = vpack.c.bf16 %v4748, %v4703
        %v4943 = vpack.c.bf16 %v4838, %v4793
        %v4944 = vpack.c.bf16 %v4928, %v4883
        %v4949 = vunpack.c.l.b16 %v4933
        %v4950 = vunpack.c.l.b16 %v4934
        %v4951 = vunpack.c.l.b16 %v4935
        %v4952 = vunpack.c.l.b16 %v4936
        %v4953 = vpack.c.b16 %v4950, %v4949
        %v4954 = vpack.c.b16 %v4952, %v4951
        %v4958 = vsel %vm388, %v4937, 0
        %v4961 = vsel %vm388, %v4938, 0
        %v4964 = vsel %vm388, %v4939, 0
        %v4967 = vsel %vm388, %v4940, 0
        %v4970 = vsel %vm388, %v4941, 0
        %v4973 = vsel %vm388, %v4942, 0
        %v4976 = vsel %vm388, %v4943, 0
        %v4979 = vsel %vm388, %v4944, 0
        %4981 = vmatprep.subr.bf16.mxu0 0
        %4982 = vmatpush1.bf16.msra.mxu0 %v4953
        %4983 = vmatprep.subr.bf16.mxu0 0
        %4984 = vmatpush1.bf16.msra.mxu0 %v4954
        %4985 = vmatprep.subr.bf16.mxu0 0
        %4986 = vmatpush1.bf16.msra.mxu0 0
        %4987 = vmatprep.subr.bf16.mxu0 0
        %4988 = vmatpush1.bf16.msra.mxu0 0
        %4989 = vmatprep.subr.bf16.mxu0 0
        %4990 = vmatpush1.bf16.msra.mxu0 0
        %4991 = vmatprep.subr.bf16.mxu0 0
        %4992 = vmatpush1.bf16.msra.mxu0 0
        %4993 = vmatprep.subr.bf16.mxu0 0
        %4994 = vmatpush1.bf16.msra.mxu0 0
        %4995 = vmatprep.subr.bf16.mxu0 0
        %4996 = vmatpush1.bf16.msra.mxu0 0
        %4997 = vmatprep.subr.bf16.mxu0 0
        %4998 = vmatpush1.bf16.msra.mxu0 0
        %4999 = vmatprep.subr.bf16.mxu0 0
        %5000 = vmatpush1.bf16.msra.mxu0 0
        %5001 = vmatprep.subr.bf16.mxu0 0
        %5002 = vmatpush1.bf16.msra.mxu0 0
        %5003 = vmatprep.subr.bf16.mxu0 0
        %5004 = vmatpush1.bf16.msra.mxu0 0
        %5005 = vmatprep.subr.bf16.mxu0 0
        %5006 = vmatpush1.bf16.msra.mxu0 0
        %5007 = vmatprep.subr.bf16.mxu0 0
        %5008 = vmatpush1.bf16.msra.mxu0 0
        %5009 = vmatprep.subr.bf16.mxu0 0
        %5010 = vmatpush1.bf16.msra.mxu0 0
        %5011 = vmatprep.subr.bf16.mxu0 0
        %5012 = vmatpush1.bf16.msra.mxu0 0
        %5013 = vmatprep.mubr.bf16.mxu0 0
        %5014 = vmatmul.mubr.bf16.gmra.mrb[0].mxu0 %v4958
        %v5015 = vpop.f32.mrb[0].mxu0
        %v5016 = vadd.f32 0.0, %v5015
        %v5017 = vpop.f32.mrb[0].mxu0
        %v5018 = vpop.f32.mrb[0].mxu0
        %v5019 = vadd.f32 0.0, %v5018
        %v5020 = vpop.f32.mrb[0].mxu0
        %5021 = vmatprep.mubr.bf16.mxu0 0
        %5022 = vmatmul.mubr.bf16.gmra.mrb[0].mxu0 %v4961
        %v5023 = vpop.f32.mrb[0].mxu0
        %v5024 = vadd.f32 0.0, %v5023
        %v5025 = vpop.f32.mrb[0].mxu0
        %v5026 = vpop.f32.mrb[0].mxu0
        %v5027 = vadd.f32 0.0, %v5026
        %v5028 = vpop.f32.mrb[0].mxu0
        %5029 = vmatprep.mubr.bf16.mxu0 0
        %5030 = vmatmul.mubr.bf16.gmra.mrb[0].mxu0 %v4964
        %v5031 = vpop.f32.mrb[0].mxu0
        %v5032 = vadd.f32 0.0, %v5031
        %v5033 = vpop.f32.mrb[0].mxu0
        %v5034 = vpop.f32.mrb[0].mxu0
        %v5035 = vadd.f32 0.0, %v5034
        %v5036 = vpop.f32.mrb[0].mxu0
        %5037 = vmatprep.mubr.bf16.mxu0 0
        %5038 = vmatmul.mubr.bf16.gmra.mrb[0].mxu0 %v4967
        %v5039 = vpop.f32.mrb[0].mxu0
        %v5040 = vadd.f32 0.0, %v5039
        %v5041 = vpop.f32.mrb[0].mxu0
        %v5042 = vpop.f32.mrb[0].mxu0
        %v5043 = vadd.f32 0.0, %v5042
        %v5044 = vpop.f32.mrb[0].mxu0
        %5045 = vmatprep.mubr.bf16.mxu0 0
        %5046 = vmatmul.mubr.bf16.gmra.mrb[0].mxu0 %v4970
        %v5047 = vpop.f32.mrb[0].mxu0
        %v5048 = vadd.f32 0.0, %v5047
        %v5049 = vpop.f32.mrb[0].mxu0
        %v5050 = vpop.f32.mrb[0].mxu0
        %v5051 = vadd.f32 0.0, %v5050
        %v5052 = vpop.f32.mrb[0].mxu0
        %5053 = vmatprep.mubr.bf16.mxu0 0
        %5054 = vmatmul.mubr.bf16.gmra.mrb[0].mxu0 %v4973
        %v5055 = vpop.f32.mrb[0].mxu0
        %v5056 = vadd.f32 0.0, %v5055
        %v5057 = vpop.f32.mrb[0].mxu0
        %v5058 = vpop.f32.mrb[0].mxu0
        %v5059 = vadd.f32 0.0, %v5058
        %v5060 = vpop.f32.mrb[0].mxu0
        %5061 = vmatprep.mubr.bf16.mxu0 0
        %5062 = vmatmul.mubr.bf16.gmra.mrb[0].mxu0 %v4976
        %v5063 = vpop.f32.mrb[0].mxu0
        %v5064 = vadd.f32 0.0, %v5063
        %v5065 = vpop.f32.mrb[0].mxu0
        %v5066 = vpop.f32.mrb[0].mxu0
        %v5067 = vadd.f32 0.0, %v5066
        %v5068 = vpop.f32.mrb[0].mxu0
        %5069 = vmatprep.mubr.bf16.mxu0 0
        %5070 = vmatmul.mubr.bf16.gmra.mrb[0].mxu0 %v4979
        %v5071 = vpop.f32.mrb[0].mxu0
        %v5072 = vadd.f32 0.0, %v5071
        %v5073 = vpop.f32.mrb[0].mxu0
        %v5074 = vpop.f32.mrb[0].mxu0
        %v5075 = vadd.f32 0.0, %v5074
        %v5076 = vpop.f32.mrb[0].mxu0
        %5077 = vdwg.mxu0
        %v5082 = vunpack.c.l.b16 %v3097
        %v5083 = vunpack.c.l.b16 %v3098
        %v5084 = vunpack.c.l.b16 %v3099
        %v5085 = vunpack.c.l.b16 %v3100
        %v5086 = vpack.c.b16 %v5083, %v5082
        %v5087 = vpack.c.b16 %v5085, %v5084
        %v5091 = vsel %vm388, %v3101, 0
        %v5094 = vsel %vm388, %v3102, 0
        %v5097 = vsel %vm388, %v3103, 0
        %v5100 = vsel %vm388, %v3104, 0
        %v5103 = vsel %vm388, %v3105, 0
        %v5106 = vsel %vm388, %v3106, 0
        %v5109 = vsel %vm388, %v3107, 0
        %v5112 = vsel %vm388, %v3108, 0
        %5114 = vmatprep.subr.bf16.mxu0 0
        %5115 = vmatpush1.bf16.msra.mxu0 %v5086
        %5116 = vmatprep.subr.bf16.mxu0 0
        %5117 = vmatpush1.bf16.msra.mxu0 %v5087
        %5118 = vmatprep.subr.bf16.mxu0 0
        %5119 = vmatpush1.bf16.msra.mxu0 0
        %5120 = vmatprep.subr.bf16.mxu0 0
        %5121 = vmatpush1.bf16.msra.mxu0 0
        %5122 = vmatprep.subr.bf16.mxu0 0
        %5123 = vmatpush1.bf16.msra.mxu0 0
        %5124 = vmatprep.subr.bf16.mxu0 0
        %5125 = vmatpush1.bf16.msra.mxu0 0
        %5126 = vmatprep.subr.bf16.mxu0 0
        %5127 = vmatpush1.bf16.msra.mxu0 0
        %5128 = vmatprep.subr.bf16.mxu0 0
        %5129 = vmatpush1.bf16.msra.mxu0 0
        %5130 = vmatprep.subr.bf16.mxu0 0
        %5131 = vmatpush1.bf16.msra.mxu0 0
        %5132 = vmatprep.subr.bf16.mxu0 0
        %5133 = vmatpush1.bf16.msra.mxu0 0
        %5134 = vmatprep.subr.bf16.mxu0 0
        %5135 = vmatpush1.bf16.msra.mxu0 0
        %5136 = vmatprep.subr.bf16.mxu0 0
        %5137 = vmatpush1.bf16.msra.mxu0 0
        %5138 = vmatprep.subr.bf16.mxu0 0
        %5139 = vmatpush1.bf16.msra.mxu0 0
        %5140 = vmatprep.subr.bf16.mxu0 0
        %5141 = vmatpush1.bf16.msra.mxu0 0
        %5142 = vmatprep.subr.bf16.mxu0 0
        %5143 = vmatpush1.bf16.msra.mxu0 0
        %5144 = vmatprep.subr.bf16.mxu0 0
        %5145 = vmatpush1.bf16.msra.mxu0 0
        %5146 = vmatprep.mubr.bf16.mxu0 0
        %5147 = vmatmul.mubr.bf16.gmra.mrb[0].mxu0 %v5091
        %v5148 = vpop.f32.mrb[0].mxu0
        %v5149 = vadd.f32 %v5016, %v5148
        %v5150 = vpop.f32.mrb[0].mxu0
        %v5151 = vpop.f32.mrb[0].mxu0
        %v5152 = vadd.f32 %v5019, %v5151
        %v5153 = vpop.f32.mrb[0].mxu0
        %5154 = vmatprep.mubr.bf16.mxu0 0
        %5155 = vmatmul.mubr.bf16.gmra.mrb[0].mxu0 %v5094
        %v5156 = vpop.f32.mrb[0].mxu0
        %v5157 = vadd.f32 %v5024, %v5156
        %v5158 = vpop.f32.mrb[0].mxu0
        %v5159 = vpop.f32.mrb[0].mxu0
        %v5160 = vadd.f32 %v5027, %v5159
        %v5161 = vpop.f32.mrb[0].mxu0
        %5162 = vmatprep.mubr.bf16.mxu0 0
        %5163 = vmatmul.mubr.bf16.gmra.mrb[0].mxu0 %v5097
        %v5164 = vpop.f32.mrb[0].mxu0
        %v5165 = vadd.f32 %v5032, %v5164
        %v5166 = vpop.f32.mrb[0].mxu0
        %v5167 = vpop.f32.mrb[0].mxu0
        %v5168 = vadd.f32 %v5035, %v5167
        %v5169 = vpop.f32.mrb[0].mxu0
        %5170 = vmatprep.mubr.bf16.mxu0 0
        %5171 = vmatmul.mubr.bf16.gmra.mrb[0].mxu0 %v5100
        %v5172 = vpop.f32.mrb[0].mxu0
        %v5173 = vadd.f32 %v5040, %v5172
        %v5174 = vpop.f32.mrb[0].mxu0
        %v5175 = vpop.f32.mrb[0].mxu0
        %v5176 = vadd.f32 %v5043, %v5175
        %v5177 = vpop.f32.mrb[0].mxu0
        %5178 = vmatprep.mubr.bf16.mxu0 0
        %5179 = vmatmul.mubr.bf16.gmra.mrb[0].mxu0 %v5103
        %v5180 = vpop.f32.mrb[0].mxu0
        %v5181 = vadd.f32 %v5048, %v5180
        %v5182 = vpop.f32.mrb[0].mxu0
        %v5183 = vpop.f32.mrb[0].mxu0
        %v5184 = vadd.f32 %v5051, %v5183
        %v5185 = vpop.f32.mrb[0].mxu0
        %5186 = vmatprep.mubr.bf16.mxu0 0
        %5187 = vmatmul.mubr.bf16.gmra.mrb[0].mxu0 %v5106
        %v5188 = vpop.f32.mrb[0].mxu0
        %v5189 = vadd.f32 %v5056, %v5188
        %v5190 = vpop.f32.mrb[0].mxu0
        %v5191 = vpop.f32.mrb[0].mxu0
        %v5192 = vadd.f32 %v5059, %v5191
        %v5193 = vpop.f32.mrb[0].mxu0
        %5194 = vmatprep.mubr.bf16.mxu0 0
        %5195 = vmatmul.mubr.bf16.gmra.mrb[0].mxu0 %v5109
        %v5196 = vpop.f32.mrb[0].mxu0
        %v5197 = vadd.f32 %v5064, %v5196
        %v5198 = vpop.f32.mrb[0].mxu0
        %v5199 = vpop.f32.mrb[0].mxu0
        %v5200 = vadd.f32 %v5067, %v5199
        %v5201 = vpop.f32.mrb[0].mxu0
        %5202 = vmatprep.mubr.bf16.mxu0 0
        %5203 = vmatmul.mubr.bf16.gmra.mrb[0].mxu0 %v5112
        %v5204 = vpop.f32.mrb[0].mxu0
        %v5205 = vadd.f32 %v5072, %v5204
        %v5206 = vpop.f32.mrb[0].mxu0
        %v5207 = vpop.f32.mrb[0].mxu0
        %v5208 = vadd.f32 %v5075, %v5207
        %v5209 = vpop.f32.mrb[0].mxu0
        %5210 = vdwg.mxu0
        %5211 = vrot.lane.b32.xlu0 %v1238, 96
        %v5212 = vpop.permute.xlu0 %5211
        %5213 = vrot.lane.b32.xlu0 %v1254, 32
        %v5214 = vpop.permute.xlu0 %5213
        %v5216 = vsel %vm1305, %v5212, 0
        %v5219 = vsel %vm1305, %v5214, 0
        %5221 = vmatprep.subr.bf16.mxu0 0
        %5222 = vmatpush1.bf16.xpose.msra.mxu0 %v5219
        %5223 = vmatprep.subr.bf16.mxu0 0
        %5224 = vmatpush1.bf16.xpose.msra.mxu0 0
        %5225 = vmatprep.subr.bf16.mxu0 0
        %5226 = vmatpush1.bf16.xpose.msra.mxu0 0
        %5227 = vmatprep.subr.bf16.mxu0 0
        %5228 = vmatpush1.bf16.xpose.msra.mxu0 0
        %5229 = vmatprep.subr.bf16.mxu0 0
        %5230 = vmatpush1.bf16.xpose.msra.mxu0 0
        %5231 = vmatprep.subr.bf16.mxu0 0
        %5232 = vmatpush1.bf16.xpose.msra.mxu0 0
        %5233 = vmatprep.subr.bf16.mxu0 0
        %5234 = vmatpush1.bf16.xpose.msra.mxu0 0
        %5235 = vmatprep.subr.bf16.mxu0 0
        %5236 = vmatpush1.bf16.xpose.msra.mxu0 0
        %5237 = vmatprep.subr.bf16.mxu0 0
        %5238 = vmatpush1.bf16.xpose.msra.mxu0 0
        %5239 = vmatprep.subr.bf16.mxu0 0
        %5240 = vmatpush1.bf16.xpose.msra.mxu0 0
        %5241 = vmatprep.subr.bf16.mxu0 0
        %5242 = vmatpush1.bf16.xpose.msra.mxu0 0
        %5243 = vmatprep.subr.bf16.mxu0 0
        %5244 = vmatpush1.bf16.xpose.msra.mxu0 0
        %5245 = vmatprep.subr.bf16.mxu0 0
        %5246 = vmatpush1.bf16.xpose.msra.mxu0 0
        %5247 = vmatprep.subr.bf16.mxu0 0
        %5248 = vmatpush1.bf16.xpose.msra.mxu0 0
        %5249 = vmatprep.subr.bf16.mxu0 0
        %5250 = vmatpush1.bf16.xpose.msra.mxu0 0
        %5251 = vmatprep.subr.bf16.mxu0 0
        %5252 = vmatpush1.bf16.xpose.msra.mxu0 0
        %5253 = vmatprep.mubr.bf16.mxu0 0
        %5254 = vmatmul.mubr.bf16.gmra.mrb[0].mxu0 %v5216
        %v5255 = vpop.f32.mrb[0].mxu0
        %v5256 = vadd.f32 0.0, %v5255
        %v5257 = vpop.f32.mrb[0].mxu0
        %v5258 = vpop.f32.mrb[0].mxu0
        %v5259 = vpop.f32.mrb[0].mxu0
        %5260 = vdwg.mxu0
        %5261 = vrot.lane.b32.xlu0 %v1239, 96
        %v5262 = vpop.permute.xlu0 %5261
        %5263 = vrot.lane.b32.xlu0 %v1255, 32
        %v5264 = vpop.permute.xlu0 %5263
        %v5266 = vsel %vm1305, %v5262, 0
        %v5269 = vsel %vm1305, %v5264, 0
        %5271 = vmatprep.subr.bf16.mxu0 0
        %5272 = vmatpush1.bf16.xpose.msra.mxu0 %v5269
        %5273 = vmatprep.subr.bf16.mxu0 0
        %5274 = vmatpush1.bf16.xpose.msra.mxu0 0
        %5275 = vmatprep.subr.bf16.mxu0 0
        %5276 = vmatpush1.bf16.xpose.msra.mxu0 0
        %5277 = vmatprep.subr.bf16.mxu0 0
        %5278 = vmatpush1.bf16.xpose.msra.mxu0 0
        %5279 = vmatprep.subr.bf16.mxu0 0
        %5280 = vmatpush1.bf16.xpose.msra.mxu0 0
        %5281 = vmatprep.subr.bf16.mxu0 0
        %5282 = vmatpush1.bf16.xpose.msra.mxu0 0
        %5283 = vmatprep.subr.bf16.mxu0 0
        %5284 = vmatpush1.bf16.xpose.msra.mxu0 0
        %5285 = vmatprep.subr.bf16.mxu0 0
        %5286 = vmatpush1.bf16.xpose.msra.mxu0 0
        %5287 = vmatprep.subr.bf16.mxu0 0
        %5288 = vmatpush1.bf16.xpose.msra.mxu0 0
        %5289 = vmatprep.subr.bf16.mxu0 0
        %5290 = vmatpush1.bf16.xpose.msra.mxu0 0
        %5291 = vmatprep.subr.bf16.mxu0 0
        %5292 = vmatpush1.bf16.xpose.msra.mxu0 0
        %5293 = vmatprep.subr.bf16.mxu0 0
        %5294 = vmatpush1.bf16.xpose.msra.mxu0 0
        %5295 = vmatprep.subr.bf16.mxu0 0
        %5296 = vmatpush1.bf16.xpose.msra.mxu0 0
        %5297 = vmatprep.subr.bf16.mxu0 0
        %5298 = vmatpush1.bf16.xpose.msra.mxu0 0
        %5299 = vmatprep.subr.bf16.mxu0 0
        %5300 = vmatpush1.bf16.xpose.msra.mxu0 0
        %5301 = vmatprep.subr.bf16.mxu0 0
        %5302 = vmatpush1.bf16.xpose.msra.mxu0 0
        %5303 = vmatprep.mubr.bf16.mxu0 0
        %5304 = vmatmul.mubr.bf16.gmra.mrb[0].mxu0 %v5266
        %v5305 = vpop.f32.mrb[0].mxu0
        %v5306 = vadd.f32 0.0, %v5305
        %v5307 = vpop.f32.mrb[0].mxu0
        %v5308 = vpop.f32.mrb[0].mxu0
        %v5309 = vpop.f32.mrb[0].mxu0
        %5310 = vdwg.mxu0
        %5311 = vrot.lane.b32.xlu0 %v1240, 96
        %v5312 = vpop.permute.xlu0 %5311
        %5313 = vrot.lane.b32.xlu0 %v1256, 32
        %v5314 = vpop.permute.xlu0 %5313
        %v5316 = vsel %vm1305, %v5312, 0
        %v5319 = vsel %vm1305, %v5314, 0
        %5321 = vmatprep.subr.bf16.mxu0 0
        %5322 = vmatpush1.bf16.xpose.msra.mxu0 %v5319
        %5323 = vmatprep.subr.bf16.mxu0 0
        %5324 = vmatpush1.bf16.xpose.msra.mxu0 0
        %5325 = vmatprep.subr.bf16.mxu0 0
        %5326 = vmatpush1.bf16.xpose.msra.mxu0 0
        %5327 = vmatprep.subr.bf16.mxu0 0
        %5328 = vmatpush1.bf16.xpose.msra.mxu0 0
        %5329 = vmatprep.subr.bf16.mxu0 0
        %5330 = vmatpush1.bf16.xpose.msra.mxu0 0
        %5331 = vmatprep.subr.bf16.mxu0 0
        %5332 = vmatpush1.bf16.xpose.msra.mxu0 0
        %5333 = vmatprep.subr.bf16.mxu0 0
        %5334 = vmatpush1.bf16.xpose.msra.mxu0 0
        %5335 = vmatprep.subr.bf16.mxu0 0
        %5336 = vmatpush1.bf16.xpose.msra.mxu0 0
        %5337 = vmatprep.subr.bf16.mxu0 0
        %5338 = vmatpush1.bf16.xpose.msra.mxu0 0
        %5339 = vmatprep.subr.bf16.mxu0 0
        %5340 = vmatpush1.bf16.xpose.msra.mxu0 0
        %5341 = vmatprep.subr.bf16.mxu0 0
        %5342 = vmatpush1.bf16.xpose.msra.mxu0 0
        %5343 = vmatprep.subr.bf16.mxu0 0
        %5344 = vmatpush1.bf16.xpose.msra.mxu0 0
        %5345 = vmatprep.subr.bf16.mxu0 0
        %5346 = vmatpush1.bf16.xpose.msra.mxu0 0
        %5347 = vmatprep.subr.bf16.mxu0 0
        %5348 = vmatpush1.bf16.xpose.msra.mxu0 0
        %5349 = vmatprep.subr.bf16.mxu0 0
        %5350 = vmatpush1.bf16.xpose.msra.mxu0 0
        %5351 = vmatprep.subr.bf16.mxu0 0
        %5352 = vmatpush1.bf16.xpose.msra.mxu0 0
        %5353 = vmatprep.mubr.bf16.mxu0 0
        %5354 = vmatmul.mubr.bf16.gmra.mrb[0].mxu0 %v5316
        %v5355 = vpop.f32.mrb[0].mxu0
        %v5356 = vadd.f32 0.0, %v5355
        %v5357 = vpop.f32.mrb[0].mxu0
        %v5358 = vpop.f32.mrb[0].mxu0
        %v5359 = vpop.f32.mrb[0].mxu0
        %5360 = vdwg.mxu0
        %5361 = vrot.lane.b32.xlu0 %v1241, 96
        %v5362 = vpop.permute.xlu0 %5361
        %5363 = vrot.lane.b32.xlu0 %v1257, 32
        %v5364 = vpop.permute.xlu0 %5363
        %v5366 = vsel %vm1305, %v5362, 0
        %v5369 = vsel %vm1305, %v5364, 0
        %5371 = vmatprep.subr.bf16.mxu0 0
        %5372 = vmatpush1.bf16.xpose.msra.mxu0 %v5369
        %5373 = vmatprep.subr.bf16.mxu0 0
        %5374 = vmatpush1.bf16.xpose.msra.mxu0 0
        %5375 = vmatprep.subr.bf16.mxu0 0
        %5376 = vmatpush1.bf16.xpose.msra.mxu0 0
        %5377 = vmatprep.subr.bf16.mxu0 0
        %5378 = vmatpush1.bf16.xpose.msra.mxu0 0
        %5379 = vmatprep.subr.bf16.mxu0 0
        %5380 = vmatpush1.bf16.xpose.msra.mxu0 0
        %5381 = vmatprep.subr.bf16.mxu0 0
        %5382 = vmatpush1.bf16.xpose.msra.mxu0 0
        %5383 = vmatprep.subr.bf16.mxu0 0
        %5384 = vmatpush1.bf16.xpose.msra.mxu0 0
        %5385 = vmatprep.subr.bf16.mxu0 0
        %5386 = vmatpush1.bf16.xpose.msra.mxu0 0
        %5387 = vmatprep.subr.bf16.mxu0 0
        %5388 = vmatpush1.bf16.xpose.msra.mxu0 0
        %5389 = vmatprep.subr.bf16.mxu0 0
        %5390 = vmatpush1.bf16.xpose.msra.mxu0 0
        %5391 = vmatprep.subr.bf16.mxu0 0
        %5392 = vmatpush1.bf16.xpose.msra.mxu0 0
        %5393 = vmatprep.subr.bf16.mxu0 0
        %5394 = vmatpush1.bf16.xpose.msra.mxu0 0
        %5395 = vmatprep.subr.bf16.mxu0 0
        %5396 = vmatpush1.bf16.xpose.msra.mxu0 0
        %5397 = vmatprep.subr.bf16.mxu0 0
        %5398 = vmatpush1.bf16.xpose.msra.mxu0 0
        %5399 = vmatprep.subr.bf16.mxu0 0
        %5400 = vmatpush1.bf16.xpose.msra.mxu0 0
        %5401 = vmatprep.subr.bf16.mxu0 0
        %5402 = vmatpush1.bf16.xpose.msra.mxu0 0
        %5403 = vmatprep.mubr.bf16.mxu0 0
        %5404 = vmatmul.mubr.bf16.gmra.mrb[0].mxu0 %v5366
        %v5405 = vpop.f32.mrb[0].mxu0
        %v5406 = vadd.f32 0.0, %v5405
        %v5407 = vpop.f32.mrb[0].mxu0
        %v5408 = vpop.f32.mrb[0].mxu0
        %v5409 = vpop.f32.mrb[0].mxu0
        %5410 = vdwg.mxu0
        %5411 = vrot.lane.b32.xlu0 %v1242, 96
        %v5412 = vpop.permute.xlu0 %5411
        %5413 = vrot.lane.b32.xlu0 %v1258, 32
        %v5414 = vpop.permute.xlu0 %5413
        %v5416 = vsel %vm1305, %v5412, 0
        %v5419 = vsel %vm1305, %v5414, 0
        %5421 = vmatprep.subr.bf16.mxu0 0
        %5422 = vmatpush1.bf16.xpose.msra.mxu0 %v5419
        %5423 = vmatprep.subr.bf16.mxu0 0
        %5424 = vmatpush1.bf16.xpose.msra.mxu0 0
        %5425 = vmatprep.subr.bf16.mxu0 0
        %5426 = vmatpush1.bf16.xpose.msra.mxu0 0
        %5427 = vmatprep.subr.bf16.mxu0 0
        %5428 = vmatpush1.bf16.xpose.msra.mxu0 0
        %5429 = vmatprep.subr.bf16.mxu0 0
        %5430 = vmatpush1.bf16.xpose.msra.mxu0 0
        %5431 = vmatprep.subr.bf16.mxu0 0
        %5432 = vmatpush1.bf16.xpose.msra.mxu0 0
        %5433 = vmatprep.subr.bf16.mxu0 0
        %5434 = vmatpush1.bf16.xpose.msra.mxu0 0
        %5435 = vmatprep.subr.bf16.mxu0 0
        %5436 = vmatpush1.bf16.xpose.msra.mxu0 0
        %5437 = vmatprep.subr.bf16.mxu0 0
        %5438 = vmatpush1.bf16.xpose.msra.mxu0 0
        %5439 = vmatprep.subr.bf16.mxu0 0
        %5440 = vmatpush1.bf16.xpose.msra.mxu0 0
        %5441 = vmatprep.subr.bf16.mxu0 0
        %5442 = vmatpush1.bf16.xpose.msra.mxu0 0
        %5443 = vmatprep.subr.bf16.mxu0 0
        %5444 = vmatpush1.bf16.xpose.msra.mxu0 0
        %5445 = vmatprep.subr.bf16.mxu0 0
        %5446 = vmatpush1.bf16.xpose.msra.mxu0 0
        %5447 = vmatprep.subr.bf16.mxu0 0
        %5448 = vmatpush1.bf16.xpose.msra.mxu0 0
        %5449 = vmatprep.subr.bf16.mxu0 0
        %5450 = vmatpush1.bf16.xpose.msra.mxu0 0
        %5451 = vmatprep.subr.bf16.mxu0 0
        %5452 = vmatpush1.bf16.xpose.msra.mxu0 0
        %5453 = vmatprep.mubr.bf16.mxu0 0
        %5454 = vmatmul.mubr.bf16.gmra.mrb[0].mxu0 %v5416
        %v5455 = vpop.f32.mrb[0].mxu0
        %v5456 = vadd.f32 0.0, %v5455
        %v5457 = vpop.f32.mrb[0].mxu0
        %v5458 = vpop.f32.mrb[0].mxu0
        %v5459 = vpop.f32.mrb[0].mxu0
        %5460 = vdwg.mxu0
        %5461 = vrot.lane.b32.xlu0 %v1243, 96
        %v5462 = vpop.permute.xlu0 %5461
        %5463 = vrot.lane.b32.xlu0 %v1259, 32
        %v5464 = vpop.permute.xlu0 %5463
        %v5466 = vsel %vm1305, %v5462, 0
        %v5469 = vsel %vm1305, %v5464, 0
        %5471 = vmatprep.subr.bf16.mxu0 0
        %5472 = vmatpush1.bf16.xpose.msra.mxu0 %v5469
        %5473 = vmatprep.subr.bf16.mxu0 0
        %5474 = vmatpush1.bf16.xpose.msra.mxu0 0
        %5475 = vmatprep.subr.bf16.mxu0 0
        %5476 = vmatpush1.bf16.xpose.msra.mxu0 0
        %5477 = vmatprep.subr.bf16.mxu0 0
        %5478 = vmatpush1.bf16.xpose.msra.mxu0 0
        %5479 = vmatprep.subr.bf16.mxu0 0
        %5480 = vmatpush1.bf16.xpose.msra.mxu0 0
        %5481 = vmatprep.subr.bf16.mxu0 0
        %5482 = vmatpush1.bf16.xpose.msra.mxu0 0
        %5483 = vmatprep.subr.bf16.mxu0 0
        %5484 = vmatpush1.bf16.xpose.msra.mxu0 0
        %5485 = vmatprep.subr.bf16.mxu0 0
        %5486 = vmatpush1.bf16.xpose.msra.mxu0 0
        %5487 = vmatprep.subr.bf16.mxu0 0
        %5488 = vmatpush1.bf16.xpose.msra.mxu0 0
        %5489 = vmatprep.subr.bf16.mxu0 0
        %5490 = vmatpush1.bf16.xpose.msra.mxu0 0
        %5491 = vmatprep.subr.bf16.mxu0 0
        %5492 = vmatpush1.bf16.xpose.msra.mxu0 0
        %5493 = vmatprep.subr.bf16.mxu0 0
        %5494 = vmatpush1.bf16.xpose.msra.mxu0 0
        %5495 = vmatprep.subr.bf16.mxu0 0
        %5496 = vmatpush1.bf16.xpose.msra.mxu0 0
        %5497 = vmatprep.subr.bf16.mxu0 0
        %5498 = vmatpush1.bf16.xpose.msra.mxu0 0
        %5499 = vmatprep.subr.bf16.mxu0 0
        %5500 = vmatpush1.bf16.xpose.msra.mxu0 0
        %5501 = vmatprep.subr.bf16.mxu0 0
        %5502 = vmatpush1.bf16.xpose.msra.mxu0 0
        %5503 = vmatprep.mubr.bf16.mxu0 0
        %5504 = vmatmul.mubr.bf16.gmra.mrb[0].mxu0 %v5466
        %v5505 = vpop.f32.mrb[0].mxu0
        %v5506 = vadd.f32 0.0, %v5505
        %v5507 = vpop.f32.mrb[0].mxu0
        %v5508 = vpop.f32.mrb[0].mxu0
        %v5509 = vpop.f32.mrb[0].mxu0
        %5510 = vdwg.mxu0
        %5511 = vrot.lane.b32.xlu0 %v1244, 96
        %v5512 = vpop.permute.xlu0 %5511
        %5513 = vrot.lane.b32.xlu0 %v1260, 32
        %v5514 = vpop.permute.xlu0 %5513
        %v5516 = vsel %vm1305, %v5512, 0
        %v5519 = vsel %vm1305, %v5514, 0
        %5521 = vmatprep.subr.bf16.mxu0 0
        %5522 = vmatpush1.bf16.xpose.msra.mxu0 %v5519
        %5523 = vmatprep.subr.bf16.mxu0 0
        %5524 = vmatpush1.bf16.xpose.msra.mxu0 0
        %5525 = vmatprep.subr.bf16.mxu0 0
        %5526 = vmatpush1.bf16.xpose.msra.mxu0 0
        %5527 = vmatprep.subr.bf16.mxu0 0
        %5528 = vmatpush1.bf16.xpose.msra.mxu0 0
        %5529 = vmatprep.subr.bf16.mxu0 0
        %5530 = vmatpush1.bf16.xpose.msra.mxu0 0
        %5531 = vmatprep.subr.bf16.mxu0 0
        %5532 = vmatpush1.bf16.xpose.msra.mxu0 0
        %5533 = vmatprep.subr.bf16.mxu0 0
        %5534 = vmatpush1.bf16.xpose.msra.mxu0 0
        %5535 = vmatprep.subr.bf16.mxu0 0
        %5536 = vmatpush1.bf16.xpose.msra.mxu0 0
        %5537 = vmatprep.subr.bf16.mxu0 0
        %5538 = vmatpush1.bf16.xpose.msra.mxu0 0
        %5539 = vmatprep.subr.bf16.mxu0 0
        %5540 = vmatpush1.bf16.xpose.msra.mxu0 0
        %5541 = vmatprep.subr.bf16.mxu0 0
        %5542 = vmatpush1.bf16.xpose.msra.mxu0 0
        %5543 = vmatprep.subr.bf16.mxu0 0
        %5544 = vmatpush1.bf16.xpose.msra.mxu0 0
        %5545 = vmatprep.subr.bf16.mxu0 0
        %5546 = vmatpush1.bf16.xpose.msra.mxu0 0
        %5547 = vmatprep.subr.bf16.mxu0 0
        %5548 = vmatpush1.bf16.xpose.msra.mxu0 0
        %5549 = vmatprep.subr.bf16.mxu0 0
        %5550 = vmatpush1.bf16.xpose.msra.mxu0 0
        %5551 = vmatprep.subr.bf16.mxu0 0
        %5552 = vmatpush1.bf16.xpose.msra.mxu0 0
        %5553 = vmatprep.mubr.bf16.mxu0 0
        %5554 = vmatmul.mubr.bf16.gmra.mrb[0].mxu0 %v5516
        %v5555 = vpop.f32.mrb[0].mxu0
        %v5556 = vadd.f32 0.0, %v5555
        %v5557 = vpop.f32.mrb[0].mxu0
        %v5558 = vpop.f32.mrb[0].mxu0
        %v5559 = vpop.f32.mrb[0].mxu0
        %5560 = vdwg.mxu0
        %5561 = vrot.lane.b32.xlu0 %v1245, 96
        %v5562 = vpop.permute.xlu0 %5561
        %5563 = vrot.lane.b32.xlu0 %v1261, 32
        %v5564 = vpop.permute.xlu0 %5563
        %v5566 = vsel %vm1305, %v5562, 0
        %v5569 = vsel %vm1305, %v5564, 0
        %5571 = vmatprep.subr.bf16.mxu0 0
        %5572 = vmatpush1.bf16.xpose.msra.mxu0 %v5569
        %5573 = vmatprep.subr.bf16.mxu0 0
        %5574 = vmatpush1.bf16.xpose.msra.mxu0 0
        %5575 = vmatprep.subr.bf16.mxu0 0
        %5576 = vmatpush1.bf16.xpose.msra.mxu0 0
        %5577 = vmatprep.subr.bf16.mxu0 0
        %5578 = vmatpush1.bf16.xpose.msra.mxu0 0
        %5579 = vmatprep.subr.bf16.mxu0 0
        %5580 = vmatpush1.bf16.xpose.msra.mxu0 0
        %5581 = vmatprep.subr.bf16.mxu0 0
        %5582 = vmatpush1.bf16.xpose.msra.mxu0 0
        %5583 = vmatprep.subr.bf16.mxu0 0
        %5584 = vmatpush1.bf16.xpose.msra.mxu0 0
        %5585 = vmatprep.subr.bf16.mxu0 0
        %5586 = vmatpush1.bf16.xpose.msra.mxu0 0
        %5587 = vmatprep.subr.bf16.mxu0 0
        %5588 = vmatpush1.bf16.xpose.msra.mxu0 0
        %5589 = vmatprep.subr.bf16.mxu0 0
        %5590 = vmatpush1.bf16.xpose.msra.mxu0 0
        %5591 = vmatprep.subr.bf16.mxu0 0
        %5592 = vmatpush1.bf16.xpose.msra.mxu0 0
        %5593 = vmatprep.subr.bf16.mxu0 0
        %5594 = vmatpush1.bf16.xpose.msra.mxu0 0
        %5595 = vmatprep.subr.bf16.mxu0 0
        %5596 = vmatpush1.bf16.xpose.msra.mxu0 0
        %5597 = vmatprep.subr.bf16.mxu0 0
        %5598 = vmatpush1.bf16.xpose.msra.mxu0 0
        %5599 = vmatprep.subr.bf16.mxu0 0
        %5600 = vmatpush1.bf16.xpose.msra.mxu0 0
        %5601 = vmatprep.subr.bf16.mxu0 0
        %5602 = vmatpush1.bf16.xpose.msra.mxu0 0
        %5603 = vmatprep.mubr.bf16.mxu0 0
        %5604 = vmatmul.mubr.bf16.gmra.mrb[0].mxu0 %v5566
        %v5605 = vpop.f32.mrb[0].mxu0
        %v5606 = vadd.f32 0.0, %v5605
        %v5607 = vpop.f32.mrb[0].mxu0
        %v5608 = vpop.f32.mrb[0].mxu0
        %v5609 = vpop.f32.mrb[0].mxu0
        %5610 = vdwg.mxu0
        %5611 = vrot.lane.b32.xlu0 %v1246, 96
        %v5612 = vpop.permute.xlu0 %5611
        %5613 = vrot.lane.b32.xlu0 %v1262, 32
        %v5614 = vpop.permute.xlu0 %5613
        %v5616 = vsel %vm1305, %v5612, 0
        %v5619 = vsel %vm1305, %v5614, 0
        %5621 = vmatprep.subr.bf16.mxu0 0
        %5622 = vmatpush1.bf16.xpose.msra.mxu0 %v5619
        %5623 = vmatprep.subr.bf16.mxu0 0
        %5624 = vmatpush1.bf16.xpose.msra.mxu0 0
        %5625 = vmatprep.subr.bf16.mxu0 0
        %5626 = vmatpush1.bf16.xpose.msra.mxu0 0
        %5627 = vmatprep.subr.bf16.mxu0 0
        %5628 = vmatpush1.bf16.xpose.msra.mxu0 0
        %5629 = vmatprep.subr.bf16.mxu0 0
        %5630 = vmatpush1.bf16.xpose.msra.mxu0 0
        %5631 = vmatprep.subr.bf16.mxu0 0
        %5632 = vmatpush1.bf16.xpose.msra.mxu0 0
        %5633 = vmatprep.subr.bf16.mxu0 0
        %5634 = vmatpush1.bf16.xpose.msra.mxu0 0
        %5635 = vmatprep.subr.bf16.mxu0 0
        %5636 = vmatpush1.bf16.xpose.msra.mxu0 0
        %5637 = vmatprep.subr.bf16.mxu0 0
        %5638 = vmatpush1.bf16.xpose.msra.mxu0 0
        %5639 = vmatprep.subr.bf16.mxu0 0
        %5640 = vmatpush1.bf16.xpose.msra.mxu0 0
        %5641 = vmatprep.subr.bf16.mxu0 0
        %5642 = vmatpush1.bf16.xpose.msra.mxu0 0
        %5643 = vmatprep.subr.bf16.mxu0 0
        %5644 = vmatpush1.bf16.xpose.msra.mxu0 0
        %5645 = vmatprep.subr.bf16.mxu0 0
        %5646 = vmatpush1.bf16.xpose.msra.mxu0 0
        %5647 = vmatprep.subr.bf16.mxu0 0
        %5648 = vmatpush1.bf16.xpose.msra.mxu0 0
        %5649 = vmatprep.subr.bf16.mxu0 0
        %5650 = vmatpush1.bf16.xpose.msra.mxu0 0
        %5651 = vmatprep.subr.bf16.mxu0 0
        %5652 = vmatpush1.bf16.xpose.msra.mxu0 0
        %5653 = vmatprep.mubr.bf16.mxu0 0
        %5654 = vmatmul.mubr.bf16.gmra.mrb[0].mxu0 %v5616
        %v5655 = vpop.f32.mrb[0].mxu0
        %v5656 = vadd.f32 0.0, %v5655
        %v5657 = vpop.f32.mrb[0].mxu0
        %v5658 = vpop.f32.mrb[0].mxu0
        %v5659 = vpop.f32.mrb[0].mxu0
        %5660 = vdwg.mxu0
        %5661 = vrot.lane.b32.xlu0 %v1247, 96
        %v5662 = vpop.permute.xlu0 %5661
        %5663 = vrot.lane.b32.xlu0 %v1263, 32
        %v5664 = vpop.permute.xlu0 %5663
        %v5666 = vsel %vm1305, %v5662, 0
        %v5669 = vsel %vm1305, %v5664, 0
        %5671 = vmatprep.subr.bf16.mxu0 0
        %5672 = vmatpush1.bf16.xpose.msra.mxu0 %v5669
        %5673 = vmatprep.subr.bf16.mxu0 0
        %5674 = vmatpush1.bf16.xpose.msra.mxu0 0
        %5675 = vmatprep.subr.bf16.mxu0 0
        %5676 = vmatpush1.bf16.xpose.msra.mxu0 0
        %5677 = vmatprep.subr.bf16.mxu0 0
        %5678 = vmatpush1.bf16.xpose.msra.mxu0 0
        %5679 = vmatprep.subr.bf16.mxu0 0
        %5680 = vmatpush1.bf16.xpose.msra.mxu0 0
        %5681 = vmatprep.subr.bf16.mxu0 0
        %5682 = vmatpush1.bf16.xpose.msra.mxu0 0
        %5683 = vmatprep.subr.bf16.mxu0 0
        %5684 = vmatpush1.bf16.xpose.msra.mxu0 0
        %5685 = vmatprep.subr.bf16.mxu0 0
        %5686 = vmatpush1.bf16.xpose.msra.mxu0 0
        %5687 = vmatprep.subr.bf16.mxu0 0
        %5688 = vmatpush1.bf16.xpose.msra.mxu0 0
        %5689 = vmatprep.subr.bf16.mxu0 0
        %5690 = vmatpush1.bf16.xpose.msra.mxu0 0
        %5691 = vmatprep.subr.bf16.mxu0 0
        %5692 = vmatpush1.bf16.xpose.msra.mxu0 0
        %5693 = vmatprep.subr.bf16.mxu0 0
        %5694 = vmatpush1.bf16.xpose.msra.mxu0 0
        %5695 = vmatprep.subr.bf16.mxu0 0
        %5696 = vmatpush1.bf16.xpose.msra.mxu0 0
        %5697 = vmatprep.subr.bf16.mxu0 0
        %5698 = vmatpush1.bf16.xpose.msra.mxu0 0
        %5699 = vmatprep.subr.bf16.mxu0 0
        %5700 = vmatpush1.bf16.xpose.msra.mxu0 0
        %5701 = vmatprep.subr.bf16.mxu0 0
        %5702 = vmatpush1.bf16.xpose.msra.mxu0 0
        %5703 = vmatprep.mubr.bf16.mxu0 0
        %5704 = vmatmul.mubr.bf16.gmra.mrb[0].mxu0 %v5666
        %v5705 = vpop.f32.mrb[0].mxu0
        %v5706 = vadd.f32 0.0, %v5705
        %v5707 = vpop.f32.mrb[0].mxu0
        %v5708 = vpop.f32.mrb[0].mxu0
        %v5709 = vpop.f32.mrb[0].mxu0
        %5710 = vdwg.mxu0
        %5711 = vrot.lane.b32.xlu0 %v1248, 96
        %v5712 = vpop.permute.xlu0 %5711
        %5713 = vrot.lane.b32.xlu0 %v1264, 32
        %v5714 = vpop.permute.xlu0 %5713
        %v5716 = vsel %vm1305, %v5712, 0
        %v5719 = vsel %vm1305, %v5714, 0
        %5721 = vmatprep.subr.bf16.mxu0 0
        %5722 = vmatpush1.bf16.xpose.msra.mxu0 %v5719
        %5723 = vmatprep.subr.bf16.mxu0 0
        %5724 = vmatpush1.bf16.xpose.msra.mxu0 0
        %5725 = vmatprep.subr.bf16.mxu0 0
        %5726 = vmatpush1.bf16.xpose.msra.mxu0 0
        %5727 = vmatprep.subr.bf16.mxu0 0
        %5728 = vmatpush1.bf16.xpose.msra.mxu0 0
        %5729 = vmatprep.subr.bf16.mxu0 0
        %5730 = vmatpush1.bf16.xpose.msra.mxu0 0
        %5731 = vmatprep.subr.bf16.mxu0 0
        %5732 = vmatpush1.bf16.xpose.msra.mxu0 0
        %5733 = vmatprep.subr.bf16.mxu0 0
        %5734 = vmatpush1.bf16.xpose.msra.mxu0 0
        %5735 = vmatprep.subr.bf16.mxu0 0
        %5736 = vmatpush1.bf16.xpose.msra.mxu0 0
        %5737 = vmatprep.subr.bf16.mxu0 0
        %5738 = vmatpush1.bf16.xpose.msra.mxu0 0
        %5739 = vmatprep.subr.bf16.mxu0 0
        %5740 = vmatpush1.bf16.xpose.msra.mxu0 0
        %5741 = vmatprep.subr.bf16.mxu0 0
        %5742 = vmatpush1.bf16.xpose.msra.mxu0 0
        %5743 = vmatprep.subr.bf16.mxu0 0
        %5744 = vmatpush1.bf16.xpose.msra.mxu0 0
        %5745 = vmatprep.subr.bf16.mxu0 0
        %5746 = vmatpush1.bf16.xpose.msra.mxu0 0
        %5747 = vmatprep.subr.bf16.mxu0 0
        %5748 = vmatpush1.bf16.xpose.msra.mxu0 0
        %5749 = vmatprep.subr.bf16.mxu0 0
        %5750 = vmatpush1.bf16.xpose.msra.mxu0 0
        %5751 = vmatprep.subr.bf16.mxu0 0
        %5752 = vmatpush1.bf16.xpose.msra.mxu0 0
        %5753 = vmatprep.mubr.bf16.mxu0 0
        %5754 = vmatmul.mubr.bf16.gmra.mrb[0].mxu0 %v5716
        %v5755 = vpop.f32.mrb[0].mxu0
        %v5756 = vadd.f32 0.0, %v5755
        %v5757 = vpop.f32.mrb[0].mxu0
        %v5758 = vpop.f32.mrb[0].mxu0
        %v5759 = vpop.f32.mrb[0].mxu0
        %5760 = vdwg.mxu0
        %5761 = vrot.lane.b32.xlu0 %v1249, 96
        %v5762 = vpop.permute.xlu0 %5761
        %5763 = vrot.lane.b32.xlu0 %v1265, 32
        %v5764 = vpop.permute.xlu0 %5763
        %v5766 = vsel %vm1305, %v5762, 0
        %v5769 = vsel %vm1305, %v5764, 0
        %5771 = vmatprep.subr.bf16.mxu0 0
        %5772 = vmatpush1.bf16.xpose.msra.mxu0 %v5769
        %5773 = vmatprep.subr.bf16.mxu0 0
        %5774 = vmatpush1.bf16.xpose.msra.mxu0 0
        %5775 = vmatprep.subr.bf16.mxu0 0
        %5776 = vmatpush1.bf16.xpose.msra.mxu0 0
        %5777 = vmatprep.subr.bf16.mxu0 0
        %5778 = vmatpush1.bf16.xpose.msra.mxu0 0
        %5779 = vmatprep.subr.bf16.mxu0 0
        %5780 = vmatpush1.bf16.xpose.msra.mxu0 0
        %5781 = vmatprep.subr.bf16.mxu0 0
        %5782 = vmatpush1.bf16.xpose.msra.mxu0 0
        %5783 = vmatprep.subr.bf16.mxu0 0
        %5784 = vmatpush1.bf16.xpose.msra.mxu0 0
        %5785 = vmatprep.subr.bf16.mxu0 0
        %5786 = vmatpush1.bf16.xpose.msra.mxu0 0
        %5787 = vmatprep.subr.bf16.mxu0 0
        %5788 = vmatpush1.bf16.xpose.msra.mxu0 0
        %5789 = vmatprep.subr.bf16.mxu0 0
        %5790 = vmatpush1.bf16.xpose.msra.mxu0 0
        %5791 = vmatprep.subr.bf16.mxu0 0
        %5792 = vmatpush1.bf16.xpose.msra.mxu0 0
        %5793 = vmatprep.subr.bf16.mxu0 0
        %5794 = vmatpush1.bf16.xpose.msra.mxu0 0
        %5795 = vmatprep.subr.bf16.mxu0 0
        %5796 = vmatpush1.bf16.xpose.msra.mxu0 0
        %5797 = vmatprep.subr.bf16.mxu0 0
        %5798 = vmatpush1.bf16.xpose.msra.mxu0 0
        %5799 = vmatprep.subr.bf16.mxu0 0
        %5800 = vmatpush1.bf16.xpose.msra.mxu0 0
        %5801 = vmatprep.subr.bf16.mxu0 0
        %5802 = vmatpush1.bf16.xpose.msra.mxu0 0
        %5803 = vmatprep.mubr.bf16.mxu0 0
        %5804 = vmatmul.mubr.bf16.gmra.mrb[0].mxu0 %v5766
        %v5805 = vpop.f32.mrb[0].mxu0
        %v5806 = vadd.f32 0.0, %v5805
        %v5807 = vpop.f32.mrb[0].mxu0
        %v5808 = vpop.f32.mrb[0].mxu0
        %v5809 = vpop.f32.mrb[0].mxu0
        %5810 = vdwg.mxu0
        %5811 = vrot.lane.b32.xlu0 %v1250, 96
        %v5812 = vpop.permute.xlu0 %5811
        %5813 = vrot.lane.b32.xlu0 %v1266, 32
        %v5814 = vpop.permute.xlu0 %5813
        %v5816 = vsel %vm1305, %v5812, 0
        %v5819 = vsel %vm1305, %v5814, 0
        %5821 = vmatprep.subr.bf16.mxu0 0
        %5822 = vmatpush1.bf16.xpose.msra.mxu0 %v5819
        %5823 = vmatprep.subr.bf16.mxu0 0
        %5824 = vmatpush1.bf16.xpose.msra.mxu0 0
        %5825 = vmatprep.subr.bf16.mxu0 0
        %5826 = vmatpush1.bf16.xpose.msra.mxu0 0
        %5827 = vmatprep.subr.bf16.mxu0 0
        %5828 = vmatpush1.bf16.xpose.msra.mxu0 0
        %5829 = vmatprep.subr.bf16.mxu0 0
        %5830 = vmatpush1.bf16.xpose.msra.mxu0 0
        %5831 = vmatprep.subr.bf16.mxu0 0
        %5832 = vmatpush1.bf16.xpose.msra.mxu0 0
        %5833 = vmatprep.subr.bf16.mxu0 0
        %5834 = vmatpush1.bf16.xpose.msra.mxu0 0
        %5835 = vmatprep.subr.bf16.mxu0 0
        %5836 = vmatpush1.bf16.xpose.msra.mxu0 0
        %5837 = vmatprep.subr.bf16.mxu0 0
        %5838 = vmatpush1.bf16.xpose.msra.mxu0 0
        %5839 = vmatprep.subr.bf16.mxu0 0
        %5840 = vmatpush1.bf16.xpose.msra.mxu0 0
        %5841 = vmatprep.subr.bf16.mxu0 0
        %5842 = vmatpush1.bf16.xpose.msra.mxu0 0
        %5843 = vmatprep.subr.bf16.mxu0 0
        %5844 = vmatpush1.bf16.xpose.msra.mxu0 0
        %5845 = vmatprep.subr.bf16.mxu0 0
        %5846 = vmatpush1.bf16.xpose.msra.mxu0 0
        %5847 = vmatprep.subr.bf16.mxu0 0
        %5848 = vmatpush1.bf16.xpose.msra.mxu0 0
        %5849 = vmatprep.subr.bf16.mxu0 0
        %5850 = vmatpush1.bf16.xpose.msra.mxu0 0
        %5851 = vmatprep.subr.bf16.mxu0 0
        %5852 = vmatpush1.bf16.xpose.msra.mxu0 0
        %5853 = vmatprep.mubr.bf16.mxu0 0
        %5854 = vmatmul.mubr.bf16.gmra.mrb[0].mxu0 %v5816
        %v5855 = vpop.f32.mrb[0].mxu0
        %v5856 = vadd.f32 0.0, %v5855
        %v5857 = vpop.f32.mrb[0].mxu0
        %v5858 = vpop.f32.mrb[0].mxu0
        %v5859 = vpop.f32.mrb[0].mxu0
        %5860 = vdwg.mxu0
        %5861 = vrot.lane.b32.xlu0 %v1251, 96
        %v5862 = vpop.permute.xlu0 %5861
        %5863 = vrot.lane.b32.xlu0 %v1267, 32
        %v5864 = vpop.permute.xlu0 %5863
        %v5866 = vsel %vm1305, %v5862, 0
        %v5869 = vsel %vm1305, %v5864, 0
        %5871 = vmatprep.subr.bf16.mxu0 0
        %5872 = vmatpush1.bf16.xpose.msra.mxu0 %v5869
        %5873 = vmatprep.subr.bf16.mxu0 0
        %5874 = vmatpush1.bf16.xpose.msra.mxu0 0
        %5875 = vmatprep.subr.bf16.mxu0 0
        %5876 = vmatpush1.bf16.xpose.msra.mxu0 0
        %5877 = vmatprep.subr.bf16.mxu0 0
        %5878 = vmatpush1.bf16.xpose.msra.mxu0 0
        %5879 = vmatprep.subr.bf16.mxu0 0
        %5880 = vmatpush1.bf16.xpose.msra.mxu0 0
        %5881 = vmatprep.subr.bf16.mxu0 0
        %5882 = vmatpush1.bf16.xpose.msra.mxu0 0
        %5883 = vmatprep.subr.bf16.mxu0 0
        %5884 = vmatpush1.bf16.xpose.msra.mxu0 0
        %5885 = vmatprep.subr.bf16.mxu0 0
        %5886 = vmatpush1.bf16.xpose.msra.mxu0 0
        %5887 = vmatprep.subr.bf16.mxu0 0
        %5888 = vmatpush1.bf16.xpose.msra.mxu0 0
        %5889 = vmatprep.subr.bf16.mxu0 0
        %5890 = vmatpush1.bf16.xpose.msra.mxu0 0
        %5891 = vmatprep.subr.bf16.mxu0 0
        %5892 = vmatpush1.bf16.xpose.msra.mxu0 0
        %5893 = vmatprep.subr.bf16.mxu0 0
        %5894 = vmatpush1.bf16.xpose.msra.mxu0 0
        %5895 = vmatprep.subr.bf16.mxu0 0
        %5896 = vmatpush1.bf16.xpose.msra.mxu0 0
        %5897 = vmatprep.subr.bf16.mxu0 0
        %5898 = vmatpush1.bf16.xpose.msra.mxu0 0
        %5899 = vmatprep.subr.bf16.mxu0 0
        %5900 = vmatpush1.bf16.xpose.msra.mxu0 0
        %5901 = vmatprep.subr.bf16.mxu0 0
        %5902 = vmatpush1.bf16.xpose.msra.mxu0 0
        %5903 = vmatprep.mubr.bf16.mxu0 0
        %5904 = vmatmul.mubr.bf16.gmra.mrb[0].mxu0 %v5866
        %v5905 = vpop.f32.mrb[0].mxu0
        %v5906 = vadd.f32 0.0, %v5905
        %v5907 = vpop.f32.mrb[0].mxu0
        %v5908 = vpop.f32.mrb[0].mxu0
        %v5909 = vpop.f32.mrb[0].mxu0
        %5910 = vdwg.mxu0
        %5911 = vrot.lane.b32.xlu0 %v1252, 96
        %v5912 = vpop.permute.xlu0 %5911
        %5913 = vrot.lane.b32.xlu0 %v1268, 32
        %v5914 = vpop.permute.xlu0 %5913
        %v5916 = vsel %vm1305, %v5912, 0
        %v5919 = vsel %vm1305, %v5914, 0
        %5921 = vmatprep.subr.bf16.mxu0 0
        %5922 = vmatpush1.bf16.xpose.msra.mxu0 %v5919
        %5923 = vmatprep.subr.bf16.mxu0 0
        %5924 = vmatpush1.bf16.xpose.msra.mxu0 0
        %5925 = vmatprep.subr.bf16.mxu0 0
        %5926 = vmatpush1.bf16.xpose.msra.mxu0 0
        %5927 = vmatprep.subr.bf16.mxu0 0
        %5928 = vmatpush1.bf16.xpose.msra.mxu0 0
        %5929 = vmatprep.subr.bf16.mxu0 0
        %5930 = vmatpush1.bf16.xpose.msra.mxu0 0
        %5931 = vmatprep.subr.bf16.mxu0 0
        %5932 = vmatpush1.bf16.xpose.msra.mxu0 0
        %5933 = vmatprep.subr.bf16.mxu0 0
        %5934 = vmatpush1.bf16.xpose.msra.mxu0 0
        %5935 = vmatprep.subr.bf16.mxu0 0
        %5936 = vmatpush1.bf16.xpose.msra.mxu0 0
        %5937 = vmatprep.subr.bf16.mxu0 0
        %5938 = vmatpush1.bf16.xpose.msra.mxu0 0
        %5939 = vmatprep.subr.bf16.mxu0 0
        %5940 = vmatpush1.bf16.xpose.msra.mxu0 0
        %5941 = vmatprep.subr.bf16.mxu0 0
        %5942 = vmatpush1.bf16.xpose.msra.mxu0 0
        %5943 = vmatprep.subr.bf16.mxu0 0
        %5944 = vmatpush1.bf16.xpose.msra.mxu0 0
        %5945 = vmatprep.subr.bf16.mxu0 0
        %5946 = vmatpush1.bf16.xpose.msra.mxu0 0
        %5947 = vmatprep.subr.bf16.mxu0 0
        %5948 = vmatpush1.bf16.xpose.msra.mxu0 0
        %5949 = vmatprep.subr.bf16.mxu0 0
        %5950 = vmatpush1.bf16.xpose.msra.mxu0 0
        %5951 = vmatprep.subr.bf16.mxu0 0
        %5952 = vmatpush1.bf16.xpose.msra.mxu0 0
        %5953 = vmatprep.mubr.bf16.mxu0 0
        %5954 = vmatmul.mubr.bf16.gmra.mrb[0].mxu0 %v5916
        %v5955 = vpop.f32.mrb[0].mxu0
        %v5956 = vadd.f32 0.0, %v5955
        %v5957 = vpop.f32.mrb[0].mxu0
        %v5958 = vpop.f32.mrb[0].mxu0
        %v5959 = vpop.f32.mrb[0].mxu0
        %5960 = vdwg.mxu0
        %5961 = vrot.lane.b32.xlu0 %v1253, 96
        %v5962 = vpop.permute.xlu0 %5961
        %5963 = vrot.lane.b32.xlu0 %v1269, 32
        %v5964 = vpop.permute.xlu0 %5963
        %v5966 = vsel %vm1305, %v5962, 0
        %v5969 = vsel %vm1305, %v5964, 0
        %5971 = vmatprep.subr.bf16.mxu0 0
        %5972 = vmatpush1.bf16.xpose.msra.mxu0 %v5969
        %5973 = vmatprep.subr.bf16.mxu0 0
        %5974 = vmatpush1.bf16.xpose.msra.mxu0 0
        %5975 = vmatprep.subr.bf16.mxu0 0
        %5976 = vmatpush1.bf16.xpose.msra.mxu0 0
        %5977 = vmatprep.subr.bf16.mxu0 0
        %5978 = vmatpush1.bf16.xpose.msra.mxu0 0
        %5979 = vmatprep.subr.bf16.mxu0 0
        %5980 = vmatpush1.bf16.xpose.msra.mxu0 0
        %5981 = vmatprep.subr.bf16.mxu0 0
        %5982 = vmatpush1.bf16.xpose.msra.mxu0 0
        %5983 = vmatprep.subr.bf16.mxu0 0
        %5984 = vmatpush1.bf16.xpose.msra.mxu0 0
        %5985 = vmatprep.subr.bf16.mxu0 0
        %5986 = vmatpush1.bf16.xpose.msra.mxu0 0
        %5987 = vmatprep.subr.bf16.mxu0 0
        %5988 = vmatpush1.bf16.xpose.msra.mxu0 0
        %5989 = vmatprep.subr.bf16.mxu0 0
        %5990 = vmatpush1.bf16.xpose.msra.mxu0 0
        %5991 = vmatprep.subr.bf16.mxu0 0
        %5992 = vmatpush1.bf16.xpose.msra.mxu0 0
        %5993 = vmatprep.subr.bf16.mxu0 0
        %5994 = vmatpush1.bf16.xpose.msra.mxu0 0
        %5995 = vmatprep.subr.bf16.mxu0 0
        %5996 = vmatpush1.bf16.xpose.msra.mxu0 0
        %5997 = vmatprep.subr.bf16.mxu0 0
        %5998 = vmatpush1.bf16.xpose.msra.mxu0 0
        %5999 = vmatprep.subr.bf16.mxu0 0
        %6000 = vmatpush1.bf16.xpose.msra.mxu0 0
        %6001 = vmatprep.subr.bf16.mxu0 0
        %6002 = vmatpush1.bf16.xpose.msra.mxu0 0
        %6003 = vmatprep.mubr.bf16.mxu0 0
        %6004 = vmatmul.mubr.bf16.gmra.mrb[0].mxu0 %v5966
        %v6005 = vpop.f32.mrb[0].mxu0
        %v6006 = vadd.f32 0.0, %v6005
        %v6007 = vpop.f32.mrb[0].mxu0
        %v6008 = vpop.f32.mrb[0].mxu0
        %v6009 = vpop.f32.mrb[0].mxu0
        %6010 = vdwg.mxu0
        %v6011 = vsel %vm2087, %v5256, -inf
        %6012 = vmax.xlane.f32.xlu0 %v6011
        %v6013 = vpop.xlane.xlu0 %6012
        %v6014 = vsel %vm2087, %v5306, -inf
        %6015 = vmax.xlane.f32.xlu0 %v6014
        %v6016 = vpop.xlane.xlu0 %6015
        %v6017 = vsel %vm2087, %v5356, -inf
        %6018 = vmax.xlane.f32.xlu0 %v6017
        %v6019 = vpop.xlane.xlu0 %6018
        %v6020 = vsel %vm2087, %v5406, -inf
        %6021 = vmax.xlane.f32.xlu0 %v6020
        %v6022 = vpop.xlane.xlu0 %6021
        %v6023 = vsel %vm2087, %v5456, -inf
        %6024 = vmax.xlane.f32.xlu0 %v6023
        %v6025 = vpop.xlane.xlu0 %6024
        %v6026 = vsel %vm2087, %v5506, -inf
        %6027 = vmax.xlane.f32.xlu0 %v6026
        %v6028 = vpop.xlane.xlu0 %6027
        %v6029 = vsel %vm2087, %v5556, -inf
        %6030 = vmax.xlane.f32.xlu0 %v6029
        %v6031 = vpop.xlane.xlu0 %6030
        %v6032 = vsel %vm2087, %v5606, -inf
        %6033 = vmax.xlane.f32.xlu0 %v6032
        %v6034 = vpop.xlane.xlu0 %6033
        %v6035 = vsel %vm2087, %v5656, -inf
        %6036 = vmax.xlane.f32.xlu0 %v6035
        %v6037 = vpop.xlane.xlu0 %6036
        %v6038 = vsel %vm2087, %v5706, -inf
        %6039 = vmax.xlane.f32.xlu0 %v6038
        %v6040 = vpop.xlane.xlu0 %6039
        %v6041 = vsel %vm2087, %v5756, -inf
        %6042 = vmax.xlane.f32.xlu0 %v6041
        %v6043 = vpop.xlane.xlu0 %6042
        %v6044 = vsel %vm2087, %v5806, -inf
        %6045 = vmax.xlane.f32.xlu0 %v6044
        %v6046 = vpop.xlane.xlu0 %6045
        %v6047 = vsel %vm2087, %v5856, -inf
        %6048 = vmax.xlane.f32.xlu0 %v6047
        %v6049 = vpop.xlane.xlu0 %6048
        %v6050 = vsel %vm2087, %v5906, -inf
        %6051 = vmax.xlane.f32.xlu0 %v6050
        %v6052 = vpop.xlane.xlu0 %6051
        %v6053 = vsel %vm2087, %v5956, -inf
        %6054 = vmax.xlane.f32.xlu0 %v6053
        %v6055 = vpop.xlane.xlu0 %6054
        %v6056 = vsel %vm2087, %v6006, -inf
        %6057 = vmax.xlane.f32.xlu0 %v6056
        %v6058 = vpop.xlane.xlu0 %6057
        %v6059 = vsub.f32 %v5256, %v6013
        %v6060 = vsub.f32 %v5306, %v6016
        %v6061 = vsub.f32 %v5356, %v6019
        %v6062 = vsub.f32 %v5406, %v6022
        %v6063 = vsub.f32 %v5456, %v6025
        %v6064 = vsub.f32 %v5506, %v6028
        %v6065 = vsub.f32 %v5556, %v6031
        %v6066 = vsub.f32 %v5606, %v6034
        %v6067 = vsub.f32 %v5656, %v6037
        %v6068 = vsub.f32 %v5706, %v6040
        %v6069 = vsub.f32 %v5756, %v6043
        %v6070 = vsub.f32 %v5806, %v6046
        %v6071 = vsub.f32 %v5856, %v6049
        %v6072 = vsub.f32 %v5906, %v6052
        %v6073 = vsub.f32 %v5956, %v6055
        %v6074 = vsub.f32 %v6006, %v6058
        %v6075 = vmul.f32 %v6059, 1.442695
        %v6076 = vpow.pop %v6075
        %v6077 = vmul.f32 %v6060, 1.442695
        %v6078 = vpow.pop %v6077
        %v6079 = vmul.f32 %v6061, 1.442695
        %v6080 = vpow.pop %v6079
        %v6081 = vmul.f32 %v6062, 1.442695
        %v6082 = vpow.pop %v6081
        %v6083 = vmul.f32 %v6063, 1.442695
        %v6084 = vpow.pop %v6083
        %v6085 = vmul.f32 %v6064, 1.442695
        %v6086 = vpow.pop %v6085
        %v6087 = vmul.f32 %v6065, 1.442695
        %v6088 = vpow.pop %v6087
        %v6089 = vmul.f32 %v6066, 1.442695
        %v6090 = vpow.pop %v6089
        %v6091 = vmul.f32 %v6067, 1.442695
        %v6092 = vpow.pop %v6091
        %v6093 = vmul.f32 %v6068, 1.442695
        %v6094 = vpow.pop %v6093
        %v6095 = vmul.f32 %v6069, 1.442695
        %v6096 = vpow.pop %v6095
        %v6097 = vmul.f32 %v6070, 1.442695
        %v6098 = vpow.pop %v6097
        %v6099 = vmul.f32 %v6071, 1.442695
        %v6100 = vpow.pop %v6099
        %v6101 = vmul.f32 %v6072, 1.442695
        %v6102 = vpow.pop %v6101
        %v6103 = vmul.f32 %v6073, 1.442695
        %v6104 = vpow.pop %v6103
        %v6105 = vmul.f32 %v6074, 1.442695
        %v6106 = vpow.pop %v6105
        %v6107 = vsel %vm2087, %v6076, 0.0
        %6108 = vadd.xlane.f32.xlu0 %v6107
        %v6109 = vpop.xlane.xlu0 %6108
        %v6110 = vsel %vm2087, %v6078, 0.0
        %6111 = vadd.xlane.f32.xlu0 %v6110
        %v6112 = vpop.xlane.xlu0 %6111
        %v6113 = vsel %vm2087, %v6080, 0.0
        %6114 = vadd.xlane.f32.xlu0 %v6113
        %v6115 = vpop.xlane.xlu0 %6114
        %v6116 = vsel %vm2087, %v6082, 0.0
        %6117 = vadd.xlane.f32.xlu0 %v6116
        %v6118 = vpop.xlane.xlu0 %6117
        %v6119 = vsel %vm2087, %v6084, 0.0
        %6120 = vadd.xlane.f32.xlu0 %v6119
        %v6121 = vpop.xlane.xlu0 %6120
        %v6122 = vsel %vm2087, %v6086, 0.0
        %6123 = vadd.xlane.f32.xlu0 %v6122
        %v6124 = vpop.xlane.xlu0 %6123
        %v6125 = vsel %vm2087, %v6088, 0.0
        %6126 = vadd.xlane.f32.xlu0 %v6125
        %v6127 = vpop.xlane.xlu0 %6126
        %v6128 = vsel %vm2087, %v6090, 0.0
        %6129 = vadd.xlane.f32.xlu0 %v6128
        %v6130 = vpop.xlane.xlu0 %6129
        %v6131 = vsel %vm2087, %v6092, 0.0
        %6132 = vadd.xlane.f32.xlu0 %v6131
        %v6133 = vpop.xlane.xlu0 %6132
        %v6134 = vsel %vm2087, %v6094, 0.0
        %6135 = vadd.xlane.f32.xlu0 %v6134
        %v6136 = vpop.xlane.xlu0 %6135
        %v6137 = vsel %vm2087, %v6096, 0.0
        %6138 = vadd.xlane.f32.xlu0 %v6137
        %v6139 = vpop.xlane.xlu0 %6138
        %v6140 = vsel %vm2087, %v6098, 0.0
        %6141 = vadd.xlane.f32.xlu0 %v6140
        %v6142 = vpop.xlane.xlu0 %6141
        %v6143 = vsel %vm2087, %v6100, 0.0
        %6144 = vadd.xlane.f32.xlu0 %v6143
        %v6145 = vpop.xlane.xlu0 %6144
        %v6146 = vsel %vm2087, %v6102, 0.0
        %6147 = vadd.xlane.f32.xlu0 %v6146
        %v6148 = vpop.xlane.xlu0 %6147
        %v6149 = vsel %vm2087, %v6104, 0.0
        %6150 = vadd.xlane.f32.xlu0 %v6149
        %v6151 = vpop.xlane.xlu0 %6150
        %v6152 = vsel %vm2087, %v6106, 0.0
        %6153 = vadd.xlane.f32.xlu0 %v6152
        %v6154 = vpop.xlane.xlu0 %6153
        %v6155 = vrcp.pop %v6109
        %v6156 = vrcp.pop %v6112
        %v6157 = vrcp.pop %v6115
        %v6158 = vrcp.pop %v6118
        %v6159 = vrcp.pop %v6121
        %v6160 = vrcp.pop %v6124
        %v6161 = vrcp.pop %v6127
        %v6162 = vrcp.pop %v6130
        %v6163 = vrcp.pop %v6133
        %v6164 = vrcp.pop %v6136
        %v6165 = vrcp.pop %v6139
        %v6166 = vrcp.pop %v6142
        %v6167 = vrcp.pop %v6145
        %v6168 = vrcp.pop %v6148
        %v6169 = vrcp.pop %v6151
        %v6170 = vrcp.pop %v6154
        %v6171 = vmul.f32 %v6076, %v6155
        %v6172 = vmul.f32 %v6078, %v6156
        %v6173 = vmul.f32 %v6080, %v6157
        %v6174 = vmul.f32 %v6082, %v6158
        %v6175 = vmul.f32 %v6084, %v6159
        %v6176 = vmul.f32 %v6086, %v6160
        %v6177 = vmul.f32 %v6088, %v6161
        %v6178 = vmul.f32 %v6090, %v6162
        %v6179 = vmul.f32 %v6092, %v6163
        %v6180 = vmul.f32 %v6094, %v6164
        %v6181 = vmul.f32 %v6096, %v6165
        %v6182 = vmul.f32 %v6098, %v6166
        %v6183 = vmul.f32 %v6100, %v6167
        %v6184 = vmul.f32 %v6102, %v6168
        %v6185 = vmul.f32 %v6104, %v6169
        %v6186 = vmul.f32 %v6106, %v6170
        %v6187 = vpack.c.bf16 %v6171, %v6171
        %v6188 = vpack.c.bf16 %v6172, %v6172
        %v6189 = vpack.c.bf16 %v6173, %v6173
        %v6190 = vpack.c.bf16 %v6174, %v6174
        %v6191 = vpack.c.bf16 %v6175, %v6175
        %v6192 = vpack.c.bf16 %v6176, %v6176
        %v6193 = vpack.c.bf16 %v6177, %v6177
        %v6194 = vpack.c.bf16 %v6178, %v6178
        %v6195 = vpack.c.bf16 %v6179, %v6179
        %v6196 = vpack.c.bf16 %v6180, %v6180
        %v6197 = vpack.c.bf16 %v6181, %v6181
        %v6198 = vpack.c.bf16 %v6182, %v6182
        %v6199 = vpack.c.bf16 %v6183, %v6183
        %v6200 = vpack.c.bf16 %v6184, %v6184
        %v6201 = vpack.c.bf16 %v6185, %v6185
        %v6202 = vpack.c.bf16 %v6186, %v6186
        %6203 = vrot.lane.b32.xlu0 %v1270, 96
        %v6204 = vpop.permute.xlu0 %6203
        %6205 = vrot.lane.b32.xlu0 %v1271, 96
        %v6206 = vpop.permute.xlu0 %6205
        %6207 = vrot.lane.b32.xlu0 %v1272, 96
        %v6208 = vpop.permute.xlu0 %6207
        %6209 = vrot.lane.b32.xlu0 %v1273, 96
        %v6210 = vpop.permute.xlu0 %6209
        %6211 = vrot.lane.b32.xlu0 %v1274, 96
        %v6212 = vpop.permute.xlu0 %6211
        %6213 = vrot.lane.b32.xlu0 %v1275, 96
        %v6214 = vpop.permute.xlu0 %6213
        %6215 = vrot.lane.b32.xlu0 %v1276, 96
        %v6216 = vpop.permute.xlu0 %6215
        %6217 = vrot.lane.b32.xlu0 %v1277, 96
        %v6218 = vpop.permute.xlu0 %6217
        %6219 = vrot.lane.b32.xlu0 %v1278, 96
        %v6220 = vpop.permute.xlu0 %6219
        %6221 = vrot.lane.b32.xlu0 %v1279, 96
        %v6222 = vpop.permute.xlu0 %6221
        %6223 = vrot.lane.b32.xlu0 %v1280, 96
        %v6224 = vpop.permute.xlu0 %6223
        %6225 = vrot.lane.b32.xlu0 %v1281, 96
        %v6226 = vpop.permute.xlu0 %6225
        %6227 = vrot.lane.b32.xlu0 %v1282, 96
        %v6228 = vpop.permute.xlu0 %6227
        %6229 = vrot.lane.b32.xlu0 %v1283, 96
        %v6230 = vpop.permute.xlu0 %6229
        %6231 = vrot.lane.b32.xlu0 %v1284, 96
        %v6232 = vpop.permute.xlu0 %6231
        %6233 = vrot.lane.b32.xlu0 %v1285, 96
        %v6234 = vpop.permute.xlu0 %6233
        %6235 = vrot.lane.b32.xlu0 %v1286, 112
        %v6236 = vpop.permute.xlu0 %6235
        %6237 = vrot.lane.b32.xlu0 %v1287, 112
        %v6238 = vpop.permute.xlu0 %6237
        %6239 = vrot.lane.b32.xlu0 %v1288, 112
        %v6240 = vpop.permute.xlu0 %6239
        %6241 = vrot.lane.b32.xlu0 %v1289, 112
        %v6242 = vpop.permute.xlu0 %6241
        %6243 = vrot.lane.b32.xlu0 %v1290, 112
        %v6244 = vpop.permute.xlu0 %6243
        %6245 = vrot.lane.b32.xlu0 %v1291, 112
        %v6246 = vpop.permute.xlu0 %6245
        %6247 = vrot.lane.b32.xlu0 %v1292, 112
        %v6248 = vpop.permute.xlu0 %6247
        %6249 = vrot.lane.b32.xlu0 %v1293, 112
        %v6250 = vpop.permute.xlu0 %6249
        %6251 = vrot.lane.b32.xlu0 %v1294, 112
        %v6252 = vpop.permute.xlu0 %6251
        %6253 = vrot.lane.b32.xlu0 %v1295, 112
        %v6254 = vpop.permute.xlu0 %6253
        %6255 = vrot.lane.b32.xlu0 %v1296, 112
        %v6256 = vpop.permute.xlu0 %6255
        %6257 = vrot.lane.b32.xlu0 %v1297, 112
        %v6258 = vpop.permute.xlu0 %6257
        %6259 = vrot.lane.b32.xlu0 %v1298, 112
        %v6260 = vpop.permute.xlu0 %6259
        %6261 = vrot.lane.b32.xlu0 %v1299, 112
        %v6262 = vpop.permute.xlu0 %6261
        %6263 = vrot.lane.b32.xlu0 %v1300, 112
        %v6264 = vpop.permute.xlu0 %6263
        %6265 = vrot.lane.b32.xlu0 %v1301, 112
        %v6266 = vpop.permute.xlu0 %6265
        %v6269 = vsel %vm1305, %v6204, %v6236
        %v6272 = vsel %vm1305, %v6206, %v6238
        %v6275 = vsel %vm1305, %v6208, %v6240
        %v6278 = vsel %vm1305, %v6210, %v6242
        %v6281 = vsel %vm1305, %v6212, %v6244
        %v6284 = vsel %vm1305, %v6214, %v6246
        %v6287 = vsel %vm1305, %v6216, %v6248
        %v6290 = vsel %vm1305, %v6218, %v6250
        %v6293 = vsel %vm1305, %v6220, %v6252
        %v6296 = vsel %vm1305, %v6222, %v6254
        %v6299 = vsel %vm1305, %v6224, %v6256
        %v6302 = vsel %vm1305, %v6226, %v6258
        %v6305 = vsel %vm1305, %v6228, %v6260
        %v6308 = vsel %vm1305, %v6230, %v6262
        %v6311 = vsel %vm1305, %v6232, %v6264
        %v6314 = vsel %vm1305, %v6234, %v6266
        %v6316 = vsel %vm2087, %v6187, 0
        %v6318 = vsel %vm2379, %v6269, 0
        %6320 = vmatprep.subr.bf16.mxu0 0
        %6321 = vmatpush1.bf16.msra.mxu0 %v6318
        %6322 = vmatprep.subr.bf16.mxu0 0
        %6323 = vmatpush1.bf16.msra.mxu0 0
        %6324 = vmatprep.subr.bf16.mxu0 0
        %6325 = vmatpush1.bf16.msra.mxu0 0
        %6326 = vmatprep.subr.bf16.mxu0 0
        %6327 = vmatpush1.bf16.msra.mxu0 0
        %6328 = vmatprep.subr.bf16.mxu0 0
        %6329 = vmatpush1.bf16.msra.mxu0 0
        %6330 = vmatprep.subr.bf16.mxu0 0
        %6331 = vmatpush1.bf16.msra.mxu0 0
        %6332 = vmatprep.subr.bf16.mxu0 0
        %6333 = vmatpush1.bf16.msra.mxu0 0
        %6334 = vmatprep.subr.bf16.mxu0 0
        %6335 = vmatpush1.bf16.msra.mxu0 0
        %6336 = vmatprep.subr.bf16.mxu0 0
        %6337 = vmatpush1.bf16.msra.mxu0 0
        %6338 = vmatprep.subr.bf16.mxu0 0
        %6339 = vmatpush1.bf16.msra.mxu0 0
        %6340 = vmatprep.subr.bf16.mxu0 0
        %6341 = vmatpush1.bf16.msra.mxu0 0
        %6342 = vmatprep.subr.bf16.mxu0 0
        %6343 = vmatpush1.bf16.msra.mxu0 0
        %6344 = vmatprep.subr.bf16.mxu0 0
        %6345 = vmatpush1.bf16.msra.mxu0 0
        %6346 = vmatprep.subr.bf16.mxu0 0
        %6347 = vmatpush1.bf16.msra.mxu0 0
        %6348 = vmatprep.subr.bf16.mxu0 0
        %6349 = vmatpush1.bf16.msra.mxu0 0
        %6350 = vmatprep.subr.bf16.mxu0 0
        %6351 = vmatpush1.bf16.msra.mxu0 0
        %6352 = vmatprep.mubr.bf16.mxu0 0
        %6353 = vmatmul.mubr.bf16.gmra.mrb[0].mxu0 %v6316
        %v6354 = vpop.f32.mrb[0].mxu0
        %v6355 = vadd.f32 0.0, %v6354
        %v6356 = vpop.f32.mrb[0].mxu0
        %v6357 = vpop.f32.mrb[0].mxu0
        %v6358 = vpop.f32.mrb[0].mxu0
        %6359 = vdwg.mxu0
        %v6361 = vsel %vm2087, %v6188, 0
        %v6363 = vsel %vm2379, %v6272, 0
        %6365 = vmatprep.subr.bf16.mxu0 0
        %6366 = vmatpush1.bf16.msra.mxu0 %v6363
        %6367 = vmatprep.subr.bf16.mxu0 0
        %6368 = vmatpush1.bf16.msra.mxu0 0
        %6369 = vmatprep.subr.bf16.mxu0 0
        %6370 = vmatpush1.bf16.msra.mxu0 0
        %6371 = vmatprep.subr.bf16.mxu0 0
        %6372 = vmatpush1.bf16.msra.mxu0 0
        %6373 = vmatprep.subr.bf16.mxu0 0
        %6374 = vmatpush1.bf16.msra.mxu0 0
        %6375 = vmatprep.subr.bf16.mxu0 0
        %6376 = vmatpush1.bf16.msra.mxu0 0
        %6377 = vmatprep.subr.bf16.mxu0 0
        %6378 = vmatpush1.bf16.msra.mxu0 0
        %6379 = vmatprep.subr.bf16.mxu0 0
        %6380 = vmatpush1.bf16.msra.mxu0 0
        %6381 = vmatprep.subr.bf16.mxu0 0
        %6382 = vmatpush1.bf16.msra.mxu0 0
        %6383 = vmatprep.subr.bf16.mxu0 0
        %6384 = vmatpush1.bf16.msra.mxu0 0
        %6385 = vmatprep.subr.bf16.mxu0 0
        %6386 = vmatpush1.bf16.msra.mxu0 0
        %6387 = vmatprep.subr.bf16.mxu0 0
        %6388 = vmatpush1.bf16.msra.mxu0 0
        %6389 = vmatprep.subr.bf16.mxu0 0
        %6390 = vmatpush1.bf16.msra.mxu0 0
        %6391 = vmatprep.subr.bf16.mxu0 0
        %6392 = vmatpush1.bf16.msra.mxu0 0
        %6393 = vmatprep.subr.bf16.mxu0 0
        %6394 = vmatpush1.bf16.msra.mxu0 0
        %6395 = vmatprep.subr.bf16.mxu0 0
        %6396 = vmatpush1.bf16.msra.mxu0 0
        %6397 = vmatprep.mubr.bf16.mxu0 0
        %6398 = vmatmul.mubr.bf16.gmra.mrb[0].mxu0 %v6361
        %v6399 = vpop.f32.mrb[0].mxu0
        %v6400 = vadd.f32 0.0, %v6399
        %v6401 = vpop.f32.mrb[0].mxu0
        %v6402 = vpop.f32.mrb[0].mxu0
        %v6403 = vpop.f32.mrb[0].mxu0
        %6404 = vdwg.mxu0
        %v6406 = vsel %vm2087, %v6189, 0
        %v6408 = vsel %vm2379, %v6275, 0
        %6410 = vmatprep.subr.bf16.mxu0 0
        %6411 = vmatpush1.bf16.msra.mxu0 %v6408
        %6412 = vmatprep.subr.bf16.mxu0 0
        %6413 = vmatpush1.bf16.msra.mxu0 0
        %6414 = vmatprep.subr.bf16.mxu0 0
        %6415 = vmatpush1.bf16.msra.mxu0 0
        %6416 = vmatprep.subr.bf16.mxu0 0
        %6417 = vmatpush1.bf16.msra.mxu0 0
        %6418 = vmatprep.subr.bf16.mxu0 0
        %6419 = vmatpush1.bf16.msra.mxu0 0
        %6420 = vmatprep.subr.bf16.mxu0 0
        %6421 = vmatpush1.bf16.msra.mxu0 0
        %6422 = vmatprep.subr.bf16.mxu0 0
        %6423 = vmatpush1.bf16.msra.mxu0 0
        %6424 = vmatprep.subr.bf16.mxu0 0
        %6425 = vmatpush1.bf16.msra.mxu0 0
        %6426 = vmatprep.subr.bf16.mxu0 0
        %6427 = vmatpush1.bf16.msra.mxu0 0
        %6428 = vmatprep.subr.bf16.mxu0 0
        %6429 = vmatpush1.bf16.msra.mxu0 0
        %6430 = vmatprep.subr.bf16.mxu0 0
        %6431 = vmatpush1.bf16.msra.mxu0 0
        %6432 = vmatprep.subr.bf16.mxu0 0
        %6433 = vmatpush1.bf16.msra.mxu0 0
        %6434 = vmatprep.subr.bf16.mxu0 0
        %6435 = vmatpush1.bf16.msra.mxu0 0
        %6436 = vmatprep.subr.bf16.mxu0 0
        %6437 = vmatpush1.bf16.msra.mxu0 0
        %6438 = vmatprep.subr.bf16.mxu0 0
        %6439 = vmatpush1.bf16.msra.mxu0 0
        %6440 = vmatprep.subr.bf16.mxu0 0
        %6441 = vmatpush1.bf16.msra.mxu0 0
        %6442 = vmatprep.mubr.bf16.mxu0 0
        %6443 = vmatmul.mubr.bf16.gmra.mrb[0].mxu0 %v6406
        %v6444 = vpop.f32.mrb[0].mxu0
        %v6445 = vadd.f32 0.0, %v6444
        %v6446 = vpop.f32.mrb[0].mxu0
        %v6447 = vpop.f32.mrb[0].mxu0
        %v6448 = vpop.f32.mrb[0].mxu0
        %6449 = vdwg.mxu0
        %v6451 = vsel %vm2087, %v6190, 0
        %v6453 = vsel %vm2379, %v6278, 0
        %6455 = vmatprep.subr.bf16.mxu0 0
        %6456 = vmatpush1.bf16.msra.mxu0 %v6453
        %6457 = vmatprep.subr.bf16.mxu0 0
        %6458 = vmatpush1.bf16.msra.mxu0 0
        %6459 = vmatprep.subr.bf16.mxu0 0
        %6460 = vmatpush1.bf16.msra.mxu0 0
        %6461 = vmatprep.subr.bf16.mxu0 0
        %6462 = vmatpush1.bf16.msra.mxu0 0
        %6463 = vmatprep.subr.bf16.mxu0 0
        %6464 = vmatpush1.bf16.msra.mxu0 0
        %6465 = vmatprep.subr.bf16.mxu0 0
        %6466 = vmatpush1.bf16.msra.mxu0 0
        %6467 = vmatprep.subr.bf16.mxu0 0
        %6468 = vmatpush1.bf16.msra.mxu0 0
        %6469 = vmatprep.subr.bf16.mxu0 0
        %6470 = vmatpush1.bf16.msra.mxu0 0
        %6471 = vmatprep.subr.bf16.mxu0 0
        %6472 = vmatpush1.bf16.msra.mxu0 0
        %6473 = vmatprep.subr.bf16.mxu0 0
        %6474 = vmatpush1.bf16.msra.mxu0 0
        %6475 = vmatprep.subr.bf16.mxu0 0
        %6476 = vmatpush1.bf16.msra.mxu0 0
        %6477 = vmatprep.subr.bf16.mxu0 0
        %6478 = vmatpush1.bf16.msra.mxu0 0
        %6479 = vmatprep.subr.bf16.mxu0 0
        %6480 = vmatpush1.bf16.msra.mxu0 0
        %6481 = vmatprep.subr.bf16.mxu0 0
        %6482 = vmatpush1.bf16.msra.mxu0 0
        %6483 = vmatprep.subr.bf16.mxu0 0
        %6484 = vmatpush1.bf16.msra.mxu0 0
        %6485 = vmatprep.subr.bf16.mxu0 0
        %6486 = vmatpush1.bf16.msra.mxu0 0
        %6487 = vmatprep.mubr.bf16.mxu0 0
        %6488 = vmatmul.mubr.bf16.gmra.mrb[0].mxu0 %v6451
        %v6489 = vpop.f32.mrb[0].mxu0
        %v6490 = vadd.f32 0.0, %v6489
        %v6491 = vpop.f32.mrb[0].mxu0
        %v6492 = vpop.f32.mrb[0].mxu0
        %v6493 = vpop.f32.mrb[0].mxu0
        %6494 = vdwg.mxu0
        %v6496 = vsel %vm2087, %v6191, 0
        %v6498 = vsel %vm2379, %v6281, 0
        %6500 = vmatprep.subr.bf16.mxu0 0
        %6501 = vmatpush1.bf16.msra.mxu0 %v6498
        %6502 = vmatprep.subr.bf16.mxu0 0
        %6503 = vmatpush1.bf16.msra.mxu0 0
        %6504 = vmatprep.subr.bf16.mxu0 0
        %6505 = vmatpush1.bf16.msra.mxu0 0
        %6506 = vmatprep.subr.bf16.mxu0 0
        %6507 = vmatpush1.bf16.msra.mxu0 0
        %6508 = vmatprep.subr.bf16.mxu0 0
        %6509 = vmatpush1.bf16.msra.mxu0 0
        %6510 = vmatprep.subr.bf16.mxu0 0
        %6511 = vmatpush1.bf16.msra.mxu0 0
        %6512 = vmatprep.subr.bf16.mxu0 0
        %6513 = vmatpush1.bf16.msra.mxu0 0
        %6514 = vmatprep.subr.bf16.mxu0 0
        %6515 = vmatpush1.bf16.msra.mxu0 0
        %6516 = vmatprep.subr.bf16.mxu0 0
        %6517 = vmatpush1.bf16.msra.mxu0 0
        %6518 = vmatprep.subr.bf16.mxu0 0
        %6519 = vmatpush1.bf16.msra.mxu0 0
        %6520 = vmatprep.subr.bf16.mxu0 0
        %6521 = vmatpush1.bf16.msra.mxu0 0
        %6522 = vmatprep.subr.bf16.mxu0 0
        %6523 = vmatpush1.bf16.msra.mxu0 0
        %6524 = vmatprep.subr.bf16.mxu0 0
        %6525 = vmatpush1.bf16.msra.mxu0 0
        %6526 = vmatprep.subr.bf16.mxu0 0
        %6527 = vmatpush1.bf16.msra.mxu0 0
        %6528 = vmatprep.subr.bf16.mxu0 0
        %6529 = vmatpush1.bf16.msra.mxu0 0
        %6530 = vmatprep.subr.bf16.mxu0 0
        %6531 = vmatpush1.bf16.msra.mxu0 0
        %6532 = vmatprep.mubr.bf16.mxu0 0
        %6533 = vmatmul.mubr.bf16.gmra.mrb[0].mxu0 %v6496
        %v6534 = vpop.f32.mrb[0].mxu0
        %v6535 = vadd.f32 0.0, %v6534
        %v6536 = vpop.f32.mrb[0].mxu0
        %v6537 = vpop.f32.mrb[0].mxu0
        %v6538 = vpop.f32.mrb[0].mxu0
        %6539 = vdwg.mxu0
        %v6541 = vsel %vm2087, %v6192, 0
        %v6543 = vsel %vm2379, %v6284, 0
        %6545 = vmatprep.subr.bf16.mxu0 0
        %6546 = vmatpush1.bf16.msra.mxu0 %v6543
        %6547 = vmatprep.subr.bf16.mxu0 0
        %6548 = vmatpush1.bf16.msra.mxu0 0
        %6549 = vmatprep.subr.bf16.mxu0 0
        %6550 = vmatpush1.bf16.msra.mxu0 0
        %6551 = vmatprep.subr.bf16.mxu0 0
        %6552 = vmatpush1.bf16.msra.mxu0 0
        %6553 = vmatprep.subr.bf16.mxu0 0
        %6554 = vmatpush1.bf16.msra.mxu0 0
        %6555 = vmatprep.subr.bf16.mxu0 0
        %6556 = vmatpush1.bf16.msra.mxu0 0
        %6557 = vmatprep.subr.bf16.mxu0 0
        %6558 = vmatpush1.bf16.msra.mxu0 0
        %6559 = vmatprep.subr.bf16.mxu0 0
        %6560 = vmatpush1.bf16.msra.mxu0 0
        %6561 = vmatprep.subr.bf16.mxu0 0
        %6562 = vmatpush1.bf16.msra.mxu0 0
        %6563 = vmatprep.subr.bf16.mxu0 0
        %6564 = vmatpush1.bf16.msra.mxu0 0
        %6565 = vmatprep.subr.bf16.mxu0 0
        %6566 = vmatpush1.bf16.msra.mxu0 0
        %6567 = vmatprep.subr.bf16.mxu0 0
        %6568 = vmatpush1.bf16.msra.mxu0 0
        %6569 = vmatprep.subr.bf16.mxu0 0
        %6570 = vmatpush1.bf16.msra.mxu0 0
        %6571 = vmatprep.subr.bf16.mxu0 0
        %6572 = vmatpush1.bf16.msra.mxu0 0
        %6573 = vmatprep.subr.bf16.mxu0 0
        %6574 = vmatpush1.bf16.msra.mxu0 0
        %6575 = vmatprep.subr.bf16.mxu0 0
        %6576 = vmatpush1.bf16.msra.mxu0 0
        %6577 = vmatprep.mubr.bf16.mxu0 0
        %6578 = vmatmul.mubr.bf16.gmra.mrb[0].mxu0 %v6541
        %v6579 = vpop.f32.mrb[0].mxu0
        %v6580 = vadd.f32 0.0, %v6579
        %v6581 = vpop.f32.mrb[0].mxu0
        %v6582 = vpop.f32.mrb[0].mxu0
        %v6583 = vpop.f32.mrb[0].mxu0
        %6584 = vdwg.mxu0
        %v6586 = vsel %vm2087, %v6193, 0
        %v6588 = vsel %vm2379, %v6287, 0
        %6590 = vmatprep.subr.bf16.mxu0 0
        %6591 = vmatpush1.bf16.msra.mxu0 %v6588
        %6592 = vmatprep.subr.bf16.mxu0 0
        %6593 = vmatpush1.bf16.msra.mxu0 0
        %6594 = vmatprep.subr.bf16.mxu0 0
        %6595 = vmatpush1.bf16.msra.mxu0 0
        %6596 = vmatprep.subr.bf16.mxu0 0
        %6597 = vmatpush1.bf16.msra.mxu0 0
        %6598 = vmatprep.subr.bf16.mxu0 0
        %6599 = vmatpush1.bf16.msra.mxu0 0
        %6600 = vmatprep.subr.bf16.mxu0 0
        %6601 = vmatpush1.bf16.msra.mxu0 0
        %6602 = vmatprep.subr.bf16.mxu0 0
        %6603 = vmatpush1.bf16.msra.mxu0 0
        %6604 = vmatprep.subr.bf16.mxu0 0
        %6605 = vmatpush1.bf16.msra.mxu0 0
        %6606 = vmatprep.subr.bf16.mxu0 0
        %6607 = vmatpush1.bf16.msra.mxu0 0
        %6608 = vmatprep.subr.bf16.mxu0 0
        %6609 = vmatpush1.bf16.msra.mxu0 0
        %6610 = vmatprep.subr.bf16.mxu0 0
        %6611 = vmatpush1.bf16.msra.mxu0 0
        %6612 = vmatprep.subr.bf16.mxu0 0
        %6613 = vmatpush1.bf16.msra.mxu0 0
        %6614 = vmatprep.subr.bf16.mxu0 0
        %6615 = vmatpush1.bf16.msra.mxu0 0
        %6616 = vmatprep.subr.bf16.mxu0 0
        %6617 = vmatpush1.bf16.msra.mxu0 0
        %6618 = vmatprep.subr.bf16.mxu0 0
        %6619 = vmatpush1.bf16.msra.mxu0 0
        %6620 = vmatprep.subr.bf16.mxu0 0
        %6621 = vmatpush1.bf16.msra.mxu0 0
        %6622 = vmatprep.mubr.bf16.mxu0 0
        %6623 = vmatmul.mubr.bf16.gmra.mrb[0].mxu0 %v6586
        %v6624 = vpop.f32.mrb[0].mxu0
        %v6625 = vadd.f32 0.0, %v6624
        %v6626 = vpop.f32.mrb[0].mxu0
        %v6627 = vpop.f32.mrb[0].mxu0
        %v6628 = vpop.f32.mrb[0].mxu0
        %6629 = vdwg.mxu0
        %v6631 = vsel %vm2087, %v6194, 0
        %v6633 = vsel %vm2379, %v6290, 0
        %6635 = vmatprep.subr.bf16.mxu0 0
        %6636 = vmatpush1.bf16.msra.mxu0 %v6633
        %6637 = vmatprep.subr.bf16.mxu0 0
        %6638 = vmatpush1.bf16.msra.mxu0 0
        %6639 = vmatprep.subr.bf16.mxu0 0
        %6640 = vmatpush1.bf16.msra.mxu0 0
        %6641 = vmatprep.subr.bf16.mxu0 0
        %6642 = vmatpush1.bf16.msra.mxu0 0
        %6643 = vmatprep.subr.bf16.mxu0 0
        %6644 = vmatpush1.bf16.msra.mxu0 0
        %6645 = vmatprep.subr.bf16.mxu0 0
        %6646 = vmatpush1.bf16.msra.mxu0 0
        %6647 = vmatprep.subr.bf16.mxu0 0
        %6648 = vmatpush1.bf16.msra.mxu0 0
        %6649 = vmatprep.subr.bf16.mxu0 0
        %6650 = vmatpush1.bf16.msra.mxu0 0
        %6651 = vmatprep.subr.bf16.mxu0 0
        %6652 = vmatpush1.bf16.msra.mxu0 0
        %6653 = vmatprep.subr.bf16.mxu0 0
        %6654 = vmatpush1.bf16.msra.mxu0 0
        %6655 = vmatprep.subr.bf16.mxu0 0
        %6656 = vmatpush1.bf16.msra.mxu0 0
        %6657 = vmatprep.subr.bf16.mxu0 0
        %6658 = vmatpush1.bf16.msra.mxu0 0
        %6659 = vmatprep.subr.bf16.mxu0 0
        %6660 = vmatpush1.bf16.msra.mxu0 0
        %6661 = vmatprep.subr.bf16.mxu0 0
        %6662 = vmatpush1.bf16.msra.mxu0 0
        %6663 = vmatprep.subr.bf16.mxu0 0
        %6664 = vmatpush1.bf16.msra.mxu0 0
        %6665 = vmatprep.subr.bf16.mxu0 0
        %6666 = vmatpush1.bf16.msra.mxu0 0
        %6667 = vmatprep.mubr.bf16.mxu0 0
        %6668 = vmatmul.mubr.bf16.gmra.mrb[0].mxu0 %v6631
        %v6669 = vpop.f32.mrb[0].mxu0
        %v6670 = vadd.f32 0.0, %v6669
        %v6671 = vpop.f32.mrb[0].mxu0
        %v6672 = vpop.f32.mrb[0].mxu0
        %v6673 = vpop.f32.mrb[0].mxu0
        %6674 = vdwg.mxu0
        %v6676 = vsel %vm2087, %v6195, 0
        %v6678 = vsel %vm2379, %v6293, 0
        %6680 = vmatprep.subr.bf16.mxu0 0
        %6681 = vmatpush1.bf16.msra.mxu0 %v6678
        %6682 = vmatprep.subr.bf16.mxu0 0
        %6683 = vmatpush1.bf16.msra.mxu0 0
        %6684 = vmatprep.subr.bf16.mxu0 0
        %6685 = vmatpush1.bf16.msra.mxu0 0
        %6686 = vmatprep.subr.bf16.mxu0 0
        %6687 = vmatpush1.bf16.msra.mxu0 0
        %6688 = vmatprep.subr.bf16.mxu0 0
        %6689 = vmatpush1.bf16.msra.mxu0 0
        %6690 = vmatprep.subr.bf16.mxu0 0
        %6691 = vmatpush1.bf16.msra.mxu0 0
        %6692 = vmatprep.subr.bf16.mxu0 0
        %6693 = vmatpush1.bf16.msra.mxu0 0
        %6694 = vmatprep.subr.bf16.mxu0 0
        %6695 = vmatpush1.bf16.msra.mxu0 0
        %6696 = vmatprep.subr.bf16.mxu0 0
        %6697 = vmatpush1.bf16.msra.mxu0 0
        %6698 = vmatprep.subr.bf16.mxu0 0
        %6699 = vmatpush1.bf16.msra.mxu0 0
        %6700 = vmatprep.subr.bf16.mxu0 0
        %6701 = vmatpush1.bf16.msra.mxu0 0
        %6702 = vmatprep.subr.bf16.mxu0 0
        %6703 = vmatpush1.bf16.msra.mxu0 0
        %6704 = vmatprep.subr.bf16.mxu0 0
        %6705 = vmatpush1.bf16.msra.mxu0 0
        %6706 = vmatprep.subr.bf16.mxu0 0
        %6707 = vmatpush1.bf16.msra.mxu0 0
        %6708 = vmatprep.subr.bf16.mxu0 0
        %6709 = vmatpush1.bf16.msra.mxu0 0
        %6710 = vmatprep.subr.bf16.mxu0 0
        %6711 = vmatpush1.bf16.msra.mxu0 0
        %6712 = vmatprep.mubr.bf16.mxu0 0
        %6713 = vmatmul.mubr.bf16.gmra.mrb[0].mxu0 %v6676
        %v6714 = vpop.f32.mrb[0].mxu0
        %v6715 = vadd.f32 0.0, %v6714
        %v6716 = vpop.f32.mrb[0].mxu0
        %v6717 = vpop.f32.mrb[0].mxu0
        %v6718 = vpop.f32.mrb[0].mxu0
        %6719 = vdwg.mxu0
        %v6721 = vsel %vm2087, %v6196, 0
        %v6723 = vsel %vm2379, %v6296, 0
        %6725 = vmatprep.subr.bf16.mxu0 0
        %6726 = vmatpush1.bf16.msra.mxu0 %v6723
        %6727 = vmatprep.subr.bf16.mxu0 0
        %6728 = vmatpush1.bf16.msra.mxu0 0
        %6729 = vmatprep.subr.bf16.mxu0 0
        %6730 = vmatpush1.bf16.msra.mxu0 0
        %6731 = vmatprep.subr.bf16.mxu0 0
        %6732 = vmatpush1.bf16.msra.mxu0 0
        %6733 = vmatprep.subr.bf16.mxu0 0
        %6734 = vmatpush1.bf16.msra.mxu0 0
        %6735 = vmatprep.subr.bf16.mxu0 0
        %6736 = vmatpush1.bf16.msra.mxu0 0
        %6737 = vmatprep.subr.bf16.mxu0 0
        %6738 = vmatpush1.bf16.msra.mxu0 0
        %6739 = vmatprep.subr.bf16.mxu0 0
        %6740 = vmatpush1.bf16.msra.mxu0 0
        %6741 = vmatprep.subr.bf16.mxu0 0
        %6742 = vmatpush1.bf16.msra.mxu0 0
        %6743 = vmatprep.subr.bf16.mxu0 0
        %6744 = vmatpush1.bf16.msra.mxu0 0
        %6745 = vmatprep.subr.bf16.mxu0 0
        %6746 = vmatpush1.bf16.msra.mxu0 0
        %6747 = vmatprep.subr.bf16.mxu0 0
        %6748 = vmatpush1.bf16.msra.mxu0 0
        %6749 = vmatprep.subr.bf16.mxu0 0
        %6750 = vmatpush1.bf16.msra.mxu0 0
        %6751 = vmatprep.subr.bf16.mxu0 0
        %6752 = vmatpush1.bf16.msra.mxu0 0
        %6753 = vmatprep.subr.bf16.mxu0 0
        %6754 = vmatpush1.bf16.msra.mxu0 0
        %6755 = vmatprep.subr.bf16.mxu0 0
        %6756 = vmatpush1.bf16.msra.mxu0 0
        %6757 = vmatprep.mubr.bf16.mxu0 0
        %6758 = vmatmul.mubr.bf16.gmra.mrb[0].mxu0 %v6721
        %v6759 = vpop.f32.mrb[0].mxu0
        %v6760 = vadd.f32 0.0, %v6759
        %v6761 = vpop.f32.mrb[0].mxu0
        %v6762 = vpop.f32.mrb[0].mxu0
        %v6763 = vpop.f32.mrb[0].mxu0
        %6764 = vdwg.mxu0
        %v6766 = vsel %vm2087, %v6197, 0
        %v6768 = vsel %vm2379, %v6299, 0
        %6770 = vmatprep.subr.bf16.mxu0 0
        %6771 = vmatpush1.bf16.msra.mxu0 %v6768
        %6772 = vmatprep.subr.bf16.mxu0 0
        %6773 = vmatpush1.bf16.msra.mxu0 0
        %6774 = vmatprep.subr.bf16.mxu0 0
        %6775 = vmatpush1.bf16.msra.mxu0 0
        %6776 = vmatprep.subr.bf16.mxu0 0
        %6777 = vmatpush1.bf16.msra.mxu0 0
        %6778 = vmatprep.subr.bf16.mxu0 0
        %6779 = vmatpush1.bf16.msra.mxu0 0
        %6780 = vmatprep.subr.bf16.mxu0 0
        %6781 = vmatpush1.bf16.msra.mxu0 0
        %6782 = vmatprep.subr.bf16.mxu0 0
        %6783 = vmatpush1.bf16.msra.mxu0 0
        %6784 = vmatprep.subr.bf16.mxu0 0
        %6785 = vmatpush1.bf16.msra.mxu0 0
        %6786 = vmatprep.subr.bf16.mxu0 0
        %6787 = vmatpush1.bf16.msra.mxu0 0
        %6788 = vmatprep.subr.bf16.mxu0 0
        %6789 = vmatpush1.bf16.msra.mxu0 0
        %6790 = vmatprep.subr.bf16.mxu0 0
        %6791 = vmatpush1.bf16.msra.mxu0 0
        %6792 = vmatprep.subr.bf16.mxu0 0
        %6793 = vmatpush1.bf16.msra.mxu0 0
        %6794 = vmatprep.subr.bf16.mxu0 0
        %6795 = vmatpush1.bf16.msra.mxu0 0
        %6796 = vmatprep.subr.bf16.mxu0 0
        %6797 = vmatpush1.bf16.msra.mxu0 0
        %6798 = vmatprep.subr.bf16.mxu0 0
        %6799 = vmatpush1.bf16.msra.mxu0 0
        %6800 = vmatprep.subr.bf16.mxu0 0
        %6801 = vmatpush1.bf16.msra.mxu0 0
        %6802 = vmatprep.mubr.bf16.mxu0 0
        %6803 = vmatmul.mubr.bf16.gmra.mrb[0].mxu0 %v6766
        %v6804 = vpop.f32.mrb[0].mxu0
        %v6805 = vadd.f32 0.0, %v6804
        %v6806 = vpop.f32.mrb[0].mxu0
        %v6807 = vpop.f32.mrb[0].mxu0
        %v6808 = vpop.f32.mrb[0].mxu0
        %6809 = vdwg.mxu0
        %v6811 = vsel %vm2087, %v6198, 0
        %v6813 = vsel %vm2379, %v6302, 0
        %6815 = vmatprep.subr.bf16.mxu0 0
        %6816 = vmatpush1.bf16.msra.mxu0 %v6813
        %6817 = vmatprep.subr.bf16.mxu0 0
        %6818 = vmatpush1.bf16.msra.mxu0 0
        %6819 = vmatprep.subr.bf16.mxu0 0
        %6820 = vmatpush1.bf16.msra.mxu0 0
        %6821 = vmatprep.subr.bf16.mxu0 0
        %6822 = vmatpush1.bf16.msra.mxu0 0
        %6823 = vmatprep.subr.bf16.mxu0 0
        %6824 = vmatpush1.bf16.msra.mxu0 0
        %6825 = vmatprep.subr.bf16.mxu0 0
        %6826 = vmatpush1.bf16.msra.mxu0 0
        %6827 = vmatprep.subr.bf16.mxu0 0
        %6828 = vmatpush1.bf16.msra.mxu0 0
        %6829 = vmatprep.subr.bf16.mxu0 0
        %6830 = vmatpush1.bf16.msra.mxu0 0
        %6831 = vmatprep.subr.bf16.mxu0 0
        %6832 = vmatpush1.bf16.msra.mxu0 0
        %6833 = vmatprep.subr.bf16.mxu0 0
        %6834 = vmatpush1.bf16.msra.mxu0 0
        %6835 = vmatprep.subr.bf16.mxu0 0
        %6836 = vmatpush1.bf16.msra.mxu0 0
        %6837 = vmatprep.subr.bf16.mxu0 0
        %6838 = vmatpush1.bf16.msra.mxu0 0
        %6839 = vmatprep.subr.bf16.mxu0 0
        %6840 = vmatpush1.bf16.msra.mxu0 0
        %6841 = vmatprep.subr.bf16.mxu0 0
        %6842 = vmatpush1.bf16.msra.mxu0 0
        %6843 = vmatprep.subr.bf16.mxu0 0
        %6844 = vmatpush1.bf16.msra.mxu0 0
        %6845 = vmatprep.subr.bf16.mxu0 0
        %6846 = vmatpush1.bf16.msra.mxu0 0
        %6847 = vmatprep.mubr.bf16.mxu0 0
        %6848 = vmatmul.mubr.bf16.gmra.mrb[0].mxu0 %v6811
        %v6849 = vpop.f32.mrb[0].mxu0
        %v6850 = vadd.f32 0.0, %v6849
        %v6851 = vpop.f32.mrb[0].mxu0
        %v6852 = vpop.f32.mrb[0].mxu0
        %v6853 = vpop.f32.mrb[0].mxu0
        %6854 = vdwg.mxu0
        %v6856 = vsel %vm2087, %v6199, 0
        %v6858 = vsel %vm2379, %v6305, 0
        %6860 = vmatprep.subr.bf16.mxu0 0
        %6861 = vmatpush1.bf16.msra.mxu0 %v6858
        %6862 = vmatprep.subr.bf16.mxu0 0
        %6863 = vmatpush1.bf16.msra.mxu0 0
        %6864 = vmatprep.subr.bf16.mxu0 0
        %6865 = vmatpush1.bf16.msra.mxu0 0
        %6866 = vmatprep.subr.bf16.mxu0 0
        %6867 = vmatpush1.bf16.msra.mxu0 0
        %6868 = vmatprep.subr.bf16.mxu0 0
        %6869 = vmatpush1.bf16.msra.mxu0 0
        %6870 = vmatprep.subr.bf16.mxu0 0
        %6871 = vmatpush1.bf16.msra.mxu0 0
        %6872 = vmatprep.subr.bf16.mxu0 0
        %6873 = vmatpush1.bf16.msra.mxu0 0
        %6874 = vmatprep.subr.bf16.mxu0 0
        %6875 = vmatpush1.bf16.msra.mxu0 0
        %6876 = vmatprep.subr.bf16.mxu0 0
        %6877 = vmatpush1.bf16.msra.mxu0 0
        %6878 = vmatprep.subr.bf16.mxu0 0
        %6879 = vmatpush1.bf16.msra.mxu0 0
        %6880 = vmatprep.subr.bf16.mxu0 0
        %6881 = vmatpush1.bf16.msra.mxu0 0
        %6882 = vmatprep.subr.bf16.mxu0 0
        %6883 = vmatpush1.bf16.msra.mxu0 0
        %6884 = vmatprep.subr.bf16.mxu0 0
        %6885 = vmatpush1.bf16.msra.mxu0 0
        %6886 = vmatprep.subr.bf16.mxu0 0
        %6887 = vmatpush1.bf16.msra.mxu0 0
        %6888 = vmatprep.subr.bf16.mxu0 0
        %6889 = vmatpush1.bf16.msra.mxu0 0
        %6890 = vmatprep.subr.bf16.mxu0 0
        %6891 = vmatpush1.bf16.msra.mxu0 0
        %6892 = vmatprep.mubr.bf16.mxu0 0
        %6893 = vmatmul.mubr.bf16.gmra.mrb[0].mxu0 %v6856
        %v6894 = vpop.f32.mrb[0].mxu0
        %v6895 = vadd.f32 0.0, %v6894
        %v6896 = vpop.f32.mrb[0].mxu0
        %v6897 = vpop.f32.mrb[0].mxu0
        %v6898 = vpop.f32.mrb[0].mxu0
        %6899 = vdwg.mxu0
        %v6901 = vsel %vm2087, %v6200, 0
        %v6903 = vsel %vm2379, %v6308, 0
        %6905 = vmatprep.subr.bf16.mxu0 0
        %6906 = vmatpush1.bf16.msra.mxu0 %v6903
        %6907 = vmatprep.subr.bf16.mxu0 0
        %6908 = vmatpush1.bf16.msra.mxu0 0
        %6909 = vmatprep.subr.bf16.mxu0 0
        %6910 = vmatpush1.bf16.msra.mxu0 0
        %6911 = vmatprep.subr.bf16.mxu0 0
        %6912 = vmatpush1.bf16.msra.mxu0 0
        %6913 = vmatprep.subr.bf16.mxu0 0
        %6914 = vmatpush1.bf16.msra.mxu0 0
        %6915 = vmatprep.subr.bf16.mxu0 0
        %6916 = vmatpush1.bf16.msra.mxu0 0
        %6917 = vmatprep.subr.bf16.mxu0 0
        %6918 = vmatpush1.bf16.msra.mxu0 0
        %6919 = vmatprep.subr.bf16.mxu0 0
        %6920 = vmatpush1.bf16.msra.mxu0 0
        %6921 = vmatprep.subr.bf16.mxu0 0
        %6922 = vmatpush1.bf16.msra.mxu0 0
        %6923 = vmatprep.subr.bf16.mxu0 0
        %6924 = vmatpush1.bf16.msra.mxu0 0
        %6925 = vmatprep.subr.bf16.mxu0 0
        %6926 = vmatpush1.bf16.msra.mxu0 0
        %6927 = vmatprep.subr.bf16.mxu0 0
        %6928 = vmatpush1.bf16.msra.mxu0 0
        %6929 = vmatprep.subr.bf16.mxu0 0
        %6930 = vmatpush1.bf16.msra.mxu0 0
        %6931 = vmatprep.subr.bf16.mxu0 0
        %6932 = vmatpush1.bf16.msra.mxu0 0
        %6933 = vmatprep.subr.bf16.mxu0 0
        %6934 = vmatpush1.bf16.msra.mxu0 0
        %6935 = vmatprep.subr.bf16.mxu0 0
        %6936 = vmatpush1.bf16.msra.mxu0 0
        %6937 = vmatprep.mubr.bf16.mxu0 0
        %6938 = vmatmul.mubr.bf16.gmra.mrb[0].mxu0 %v6901
        %v6939 = vpop.f32.mrb[0].mxu0
        %v6940 = vadd.f32 0.0, %v6939
        %v6941 = vpop.f32.mrb[0].mxu0
        %v6942 = vpop.f32.mrb[0].mxu0
        %v6943 = vpop.f32.mrb[0].mxu0
        %6944 = vdwg.mxu0
        %v6946 = vsel %vm2087, %v6201, 0
        %v6948 = vsel %vm2379, %v6311, 0
        %6950 = vmatprep.subr.bf16.mxu0 0
        %6951 = vmatpush1.bf16.msra.mxu0 %v6948
        %6952 = vmatprep.subr.bf16.mxu0 0
        %6953 = vmatpush1.bf16.msra.mxu0 0
        %6954 = vmatprep.subr.bf16.mxu0 0
        %6955 = vmatpush1.bf16.msra.mxu0 0
        %6956 = vmatprep.subr.bf16.mxu0 0
        %6957 = vmatpush1.bf16.msra.mxu0 0
        %6958 = vmatprep.subr.bf16.mxu0 0
        %6959 = vmatpush1.bf16.msra.mxu0 0
        %6960 = vmatprep.subr.bf16.mxu0 0
        %6961 = vmatpush1.bf16.msra.mxu0 0
        %6962 = vmatprep.subr.bf16.mxu0 0
        %6963 = vmatpush1.bf16.msra.mxu0 0
        %6964 = vmatprep.subr.bf16.mxu0 0
        %6965 = vmatpush1.bf16.msra.mxu0 0
        %6966 = vmatprep.subr.bf16.mxu0 0
        %6967 = vmatpush1.bf16.msra.mxu0 0
        %6968 = vmatprep.subr.bf16.mxu0 0
        %6969 = vmatpush1.bf16.msra.mxu0 0
        %6970 = vmatprep.subr.bf16.mxu0 0
        %6971 = vmatpush1.bf16.msra.mxu0 0
        %6972 = vmatprep.subr.bf16.mxu0 0
        %6973 = vmatpush1.bf16.msra.mxu0 0
        %6974 = vmatprep.subr.bf16.mxu0 0
        %6975 = vmatpush1.bf16.msra.mxu0 0
        %6976 = vmatprep.subr.bf16.mxu0 0
        %6977 = vmatpush1.bf16.msra.mxu0 0
        %6978 = vmatprep.subr.bf16.mxu0 0
        %6979 = vmatpush1.bf16.msra.mxu0 0
        %6980 = vmatprep.subr.bf16.mxu0 0
        %6981 = vmatpush1.bf16.msra.mxu0 0
        %6982 = vmatprep.mubr.bf16.mxu0 0
        %6983 = vmatmul.mubr.bf16.gmra.mrb[0].mxu0 %v6946
        %v6984 = vpop.f32.mrb[0].mxu0
        %v6985 = vadd.f32 0.0, %v6984
        %v6986 = vpop.f32.mrb[0].mxu0
        %v6987 = vpop.f32.mrb[0].mxu0
        %v6988 = vpop.f32.mrb[0].mxu0
        %6989 = vdwg.mxu0
        %v6991 = vsel %vm2087, %v6202, 0
        %v6993 = vsel %vm2379, %v6314, 0
        %6995 = vmatprep.subr.bf16.mxu0 0
        %6996 = vmatpush1.bf16.msra.mxu0 %v6993
        %6997 = vmatprep.subr.bf16.mxu0 0
        %6998 = vmatpush1.bf16.msra.mxu0 0
        %6999 = vmatprep.subr.bf16.mxu0 0
        %7000 = vmatpush1.bf16.msra.mxu0 0
        %7001 = vmatprep.subr.bf16.mxu0 0
        %7002 = vmatpush1.bf16.msra.mxu0 0
        %7003 = vmatprep.subr.bf16.mxu0 0
        %7004 = vmatpush1.bf16.msra.mxu0 0
        %7005 = vmatprep.subr.bf16.mxu0 0
        %7006 = vmatpush1.bf16.msra.mxu0 0
        %7007 = vmatprep.subr.bf16.mxu0 0
        %7008 = vmatpush1.bf16.msra.mxu0 0
        %7009 = vmatprep.subr.bf16.mxu0 0
        %7010 = vmatpush1.bf16.msra.mxu0 0
        %7011 = vmatprep.subr.bf16.mxu0 0
        %7012 = vmatpush1.bf16.msra.mxu0 0
        %7013 = vmatprep.subr.bf16.mxu0 0
        %7014 = vmatpush1.bf16.msra.mxu0 0
        %7015 = vmatprep.subr.bf16.mxu0 0
        %7016 = vmatpush1.bf16.msra.mxu0 0
        %7017 = vmatprep.subr.bf16.mxu0 0
        %7018 = vmatpush1.bf16.msra.mxu0 0
        %7019 = vmatprep.subr.bf16.mxu0 0
        %7020 = vmatpush1.bf16.msra.mxu0 0
        %7021 = vmatprep.subr.bf16.mxu0 0
        %7022 = vmatpush1.bf16.msra.mxu0 0
        %7023 = vmatprep.subr.bf16.mxu0 0
        %7024 = vmatpush1.bf16.msra.mxu0 0
        %7025 = vmatprep.subr.bf16.mxu0 0
        %7026 = vmatpush1.bf16.msra.mxu0 0
        %7027 = vmatprep.mubr.bf16.mxu0 0
        %7028 = vmatmul.mubr.bf16.gmra.mrb[0].mxu0 %v6991
        %v7029 = vpop.f32.mrb[0].mxu0
        %v7030 = vadd.f32 0.0, %v7029
        %v7031 = vpop.f32.mrb[0].mxu0
        %v7032 = vpop.f32.mrb[0].mxu0
        %v7033 = vpop.f32.mrb[0].mxu0
        %7034 = vdwg.mxu0
        %v7035 = vld [vmem:[%s4 + $0x20] sm:$0xf]
        %v7036 = vld [vmem:[%s4 + $0x24] sm:$0xf]
        %v7037 = vld [vmem:[%s4 + $0x28] sm:$0xf]
        %v7038 = vld [vmem:[%s4 + $0x2c] sm:$0xf]
        %v7039 = vpack.c.bf16 %v6400, %v6355
        %v7040 = vpack.c.bf16 %v6490, %v6445
        %v7041 = vpack.c.bf16 %v6580, %v6535
        %v7042 = vpack.c.bf16 %v6670, %v6625
        %v7043 = vpack.c.bf16 %v6760, %v6715
        %v7044 = vpack.c.bf16 %v6850, %v6805
        %v7045 = vpack.c.bf16 %v6940, %v6895
        %v7046 = vpack.c.bf16 %v7030, %v6985
        %v7051 = vunpack.c.l.b16 %v7035
        %v7052 = vunpack.c.l.b16 %v7036
        %v7053 = vunpack.c.l.b16 %v7037
        %v7054 = vunpack.c.l.b16 %v7038
        %v7055 = vpack.c.b16 %v7052, %v7051
        %v7056 = vpack.c.b16 %v7054, %v7053
        %v7060 = vsel %vm388, %v7039, 0
        %v7063 = vsel %vm388, %v7040, 0
        %v7066 = vsel %vm388, %v7041, 0
        %v7069 = vsel %vm388, %v7042, 0
        %v7072 = vsel %vm388, %v7043, 0
        %v7075 = vsel %vm388, %v7044, 0
        %v7078 = vsel %vm388, %v7045, 0
        %v7081 = vsel %vm388, %v7046, 0
        %7083 = vmatprep.subr.bf16.mxu0 0
        %7084 = vmatpush1.bf16.msra.mxu0 %v7055
        %7085 = vmatprep.subr.bf16.mxu0 0
        %7086 = vmatpush1.bf16.msra.mxu0 %v7056
        %7087 = vmatprep.subr.bf16.mxu0 0
        %7088 = vmatpush1.bf16.msra.mxu0 0
        %7089 = vmatprep.subr.bf16.mxu0 0
        %7090 = vmatpush1.bf16.msra.mxu0 0
        %7091 = vmatprep.subr.bf16.mxu0 0
        %7092 = vmatpush1.bf16.msra.mxu0 0
        %7093 = vmatprep.subr.bf16.mxu0 0
        %7094 = vmatpush1.bf16.msra.mxu0 0
        %7095 = vmatprep.subr.bf16.mxu0 0
        %7096 = vmatpush1.bf16.msra.mxu0 0
        %7097 = vmatprep.subr.bf16.mxu0 0
        %7098 = vmatpush1.bf16.msra.mxu0 0
        %7099 = vmatprep.subr.bf16.mxu0 0
        %7100 = vmatpush1.bf16.msra.mxu0 0
        %7101 = vmatprep.subr.bf16.mxu0 0
        %7102 = vmatpush1.bf16.msra.mxu0 0
        %7103 = vmatprep.subr.bf16.mxu0 0
        %7104 = vmatpush1.bf16.msra.mxu0 0
        %7105 = vmatprep.subr.bf16.mxu0 0
        %7106 = vmatpush1.bf16.msra.mxu0 0
        %7107 = vmatprep.subr.bf16.mxu0 0
        %7108 = vmatpush1.bf16.msra.mxu0 0
        %7109 = vmatprep.subr.bf16.mxu0 0
        %7110 = vmatpush1.bf16.msra.mxu0 0
        %7111 = vmatprep.subr.bf16.mxu0 0
        %7112 = vmatpush1.bf16.msra.mxu0 0
        %7113 = vmatprep.subr.bf16.mxu0 0
        %7114 = vmatpush1.bf16.msra.mxu0 0
        %7115 = vmatprep.mubr.bf16.mxu0 0
        %7116 = vmatmul.mubr.bf16.gmra.mrb[0].mxu0 %v7060
        %v7117 = vpop.f32.mrb[0].mxu0
        %v7118 = vadd.f32 0.0, %v7117
        %v7119 = vpop.f32.mrb[0].mxu0
        %v7120 = vpop.f32.mrb[0].mxu0
        %v7121 = vadd.f32 0.0, %v7120
        %v7122 = vpop.f32.mrb[0].mxu0
        %7123 = vmatprep.mubr.bf16.mxu0 0
        %7124 = vmatmul.mubr.bf16.gmra.mrb[0].mxu0 %v7063
        %v7125 = vpop.f32.mrb[0].mxu0
        %v7126 = vadd.f32 0.0, %v7125
        %v7127 = vpop.f32.mrb[0].mxu0
        %v7128 = vpop.f32.mrb[0].mxu0
        %v7129 = vadd.f32 0.0, %v7128
        %v7130 = vpop.f32.mrb[0].mxu0
        %7131 = vmatprep.mubr.bf16.mxu0 0
        %7132 = vmatmul.mubr.bf16.gmra.mrb[0].mxu0 %v7066
        %v7133 = vpop.f32.mrb[0].mxu0
        %v7134 = vadd.f32 0.0, %v7133
        %v7135 = vpop.f32.mrb[0].mxu0
        %v7136 = vpop.f32.mrb[0].mxu0
        %v7137 = vadd.f32 0.0, %v7136
        %v7138 = vpop.f32.mrb[0].mxu0
        %7139 = vmatprep.mubr.bf16.mxu0 0
        %7140 = vmatmul.mubr.bf16.gmra.mrb[0].mxu0 %v7069
        %v7141 = vpop.f32.mrb[0].mxu0
        %v7142 = vadd.f32 0.0, %v7141
        %v7143 = vpop.f32.mrb[0].mxu0
        %v7144 = vpop.f32.mrb[0].mxu0
        %v7145 = vadd.f32 0.0, %v7144
        %v7146 = vpop.f32.mrb[0].mxu0
        %7147 = vmatprep.mubr.bf16.mxu0 0
        %7148 = vmatmul.mubr.bf16.gmra.mrb[0].mxu0 %v7072
        %v7149 = vpop.f32.mrb[0].mxu0
        %v7150 = vadd.f32 0.0, %v7149
        %v7151 = vpop.f32.mrb[0].mxu0
        %v7152 = vpop.f32.mrb[0].mxu0
        %v7153 = vadd.f32 0.0, %v7152
        %v7154 = vpop.f32.mrb[0].mxu0
        %7155 = vmatprep.mubr.bf16.mxu0 0
        %7156 = vmatmul.mubr.bf16.gmra.mrb[0].mxu0 %v7075
        %v7157 = vpop.f32.mrb[0].mxu0
        %v7158 = vadd.f32 0.0, %v7157
        %v7159 = vpop.f32.mrb[0].mxu0
        %v7160 = vpop.f32.mrb[0].mxu0
        %v7161 = vadd.f32 0.0, %v7160
        %v7162 = vpop.f32.mrb[0].mxu0
        %7163 = vmatprep.mubr.bf16.mxu0 0
        %7164 = vmatmul.mubr.bf16.gmra.mrb[0].mxu0 %v7078
        %v7165 = vpop.f32.mrb[0].mxu0
        %v7166 = vadd.f32 0.0, %v7165
        %v7167 = vpop.f32.mrb[0].mxu0
        %v7168 = vpop.f32.mrb[0].mxu0
        %v7169 = vadd.f32 0.0, %v7168
        %v7170 = vpop.f32.mrb[0].mxu0
        %7171 = vmatprep.mubr.bf16.mxu0 0
        %7172 = vmatmul.mubr.bf16.gmra.mrb[0].mxu0 %v7081
        %v7173 = vpop.f32.mrb[0].mxu0
        %v7174 = vadd.f32 0.0, %v7173
        %v7175 = vpop.f32.mrb[0].mxu0
        %v7176 = vpop.f32.mrb[0].mxu0
        %v7177 = vadd.f32 0.0, %v7176
        %v7178 = vpop.f32.mrb[0].mxu0
        %7179 = vdwg.mxu0
        %v7180 = vadd.f32 %v5149, %v7118
        %v7181 = vadd.f32 %v5152, %v7121
        %v7182 = vadd.f32 %v5157, %v7126
        %v7183 = vadd.f32 %v5160, %v7129
        %v7184 = vadd.f32 %v5165, %v7134
        %v7185 = vadd.f32 %v5168, %v7137
        %v7186 = vadd.f32 %v5173, %v7142
        %v7187 = vadd.f32 %v5176, %v7145
        %v7188 = vadd.f32 %v5181, %v7150
        %v7189 = vadd.f32 %v5184, %v7153
        %v7190 = vadd.f32 %v5189, %v7158
        %v7191 = vadd.f32 %v5192, %v7161
        %v7192 = vadd.f32 %v5197, %v7166
        %v7193 = vadd.f32 %v5200, %v7169
        %v7194 = vadd.f32 %v5205, %v7174
        %v7195 = vadd.f32 %v5208, %v7177
        %7196 = vrot.lane.b32.xlu0 %v1238, 80
        %v7197 = vpop.permute.xlu0 %7196
        %7198 = vrot.lane.b32.xlu0 %v1254, 16
        %v7199 = vpop.permute.xlu0 %7198
        %v7201 = vsel %vm1305, %v7197, 0
        %v7204 = vsel %vm1305, %v7199, 0
        %7206 = vmatprep.subr.bf16.mxu0 0
        %7207 = vmatpush1.bf16.xpose.msra.mxu0 %v7204
        %7208 = vmatprep.subr.bf16.mxu0 0
        %7209 = vmatpush1.bf16.xpose.msra.mxu0 0
        %7210 = vmatprep.subr.bf16.mxu0 0
        %7211 = vmatpush1.bf16.xpose.msra.mxu0 0
        %7212 = vmatprep.subr.bf16.mxu0 0
        %7213 = vmatpush1.bf16.xpose.msra.mxu0 0
        %7214 = vmatprep.subr.bf16.mxu0 0
        %7215 = vmatpush1.bf16.xpose.msra.mxu0 0
        %7216 = vmatprep.subr.bf16.mxu0 0
        %7217 = vmatpush1.bf16.xpose.msra.mxu0 0
        %7218 = vmatprep.subr.bf16.mxu0 0
        %7219 = vmatpush1.bf16.xpose.msra.mxu0 0
        %7220 = vmatprep.subr.bf16.mxu0 0
        %7221 = vmatpush1.bf16.xpose.msra.mxu0 0
        %7222 = vmatprep.subr.bf16.mxu0 0
        %7223 = vmatpush1.bf16.xpose.msra.mxu0 0
        %7224 = vmatprep.subr.bf16.mxu0 0
        %7225 = vmatpush1.bf16.xpose.msra.mxu0 0
        %7226 = vmatprep.subr.bf16.mxu0 0
        %7227 = vmatpush1.bf16.xpose.msra.mxu0 0
        %7228 = vmatprep.subr.bf16.mxu0 0
        %7229 = vmatpush1.bf16.xpose.msra.mxu0 0
        %7230 = vmatprep.subr.bf16.mxu0 0
        %7231 = vmatpush1.bf16.xpose.msra.mxu0 0
        %7232 = vmatprep.subr.bf16.mxu0 0
        %7233 = vmatpush1.bf16.xpose.msra.mxu0 0
        %7234 = vmatprep.subr.bf16.mxu0 0
        %7235 = vmatpush1.bf16.xpose.msra.mxu0 0
        %7236 = vmatprep.subr.bf16.mxu0 0
        %7237 = vmatpush1.bf16.xpose.msra.mxu0 0
        %7238 = vmatprep.mubr.bf16.mxu0 0
        %7239 = vmatmul.mubr.bf16.gmra.mrb[0].mxu0 %v7201
        %v7240 = vpop.f32.mrb[0].mxu0
        %v7241 = vadd.f32 0.0, %v7240
        %v7242 = vpop.f32.mrb[0].mxu0
        %v7243 = vpop.f32.mrb[0].mxu0
        %v7244 = vpop.f32.mrb[0].mxu0
        %7245 = vdwg.mxu0
        %7246 = vrot.lane.b32.xlu0 %v1239, 80
        %v7247 = vpop.permute.xlu0 %7246
        %7248 = vrot.lane.b32.xlu0 %v1255, 16
        %v7249 = vpop.permute.xlu0 %7248
        %v7251 = vsel %vm1305, %v7247, 0
        %v7254 = vsel %vm1305, %v7249, 0
        %7256 = vmatprep.subr.bf16.mxu0 0
        %7257 = vmatpush1.bf16.xpose.msra.mxu0 %v7254
        %7258 = vmatprep.subr.bf16.mxu0 0
        %7259 = vmatpush1.bf16.xpose.msra.mxu0 0
        %7260 = vmatprep.subr.bf16.mxu0 0
        %7261 = vmatpush1.bf16.xpose.msra.mxu0 0
        %7262 = vmatprep.subr.bf16.mxu0 0
        %7263 = vmatpush1.bf16.xpose.msra.mxu0 0
        %7264 = vmatprep.subr.bf16.mxu0 0
        %7265 = vmatpush1.bf16.xpose.msra.mxu0 0
        %7266 = vmatprep.subr.bf16.mxu0 0
        %7267 = vmatpush1.bf16.xpose.msra.mxu0 0
        %7268 = vmatprep.subr.bf16.mxu0 0
        %7269 = vmatpush1.bf16.xpose.msra.mxu0 0
        %7270 = vmatprep.subr.bf16.mxu0 0
        %7271 = vmatpush1.bf16.xpose.msra.mxu0 0
        %7272 = vmatprep.subr.bf16.mxu0 0
        %7273 = vmatpush1.bf16.xpose.msra.mxu0 0
        %7274 = vmatprep.subr.bf16.mxu0 0
        %7275 = vmatpush1.bf16.xpose.msra.mxu0 0
        %7276 = vmatprep.subr.bf16.mxu0 0
        %7277 = vmatpush1.bf16.xpose.msra.mxu0 0
        %7278 = vmatprep.subr.bf16.mxu0 0
        %7279 = vmatpush1.bf16.xpose.msra.mxu0 0
        %7280 = vmatprep.subr.bf16.mxu0 0
        %7281 = vmatpush1.bf16.xpose.msra.mxu0 0
        %7282 = vmatprep.subr.bf16.mxu0 0
        %7283 = vmatpush1.bf16.xpose.msra.mxu0 0
        %7284 = vmatprep.subr.bf16.mxu0 0
        %7285 = vmatpush1.bf16.xpose.msra.mxu0 0
        %7286 = vmatprep.subr.bf16.mxu0 0
        %7287 = vmatpush1.bf16.xpose.msra.mxu0 0
        %7288 = vmatprep.mubr.bf16.mxu0 0
        %7289 = vmatmul.mubr.bf16.gmra.mrb[0].mxu0 %v7251
        %v7290 = vpop.f32.mrb[0].mxu0
        %v7291 = vadd.f32 0.0, %v7290
        %v7292 = vpop.f32.mrb[0].mxu0
        %v7293 = vpop.f32.mrb[0].mxu0
        %v7294 = vpop.f32.mrb[0].mxu0
        %7295 = vdwg.mxu0
        %7296 = vrot.lane.b32.xlu0 %v1240, 80
        %v7297 = vpop.permute.xlu0 %7296
        %7298 = vrot.lane.b32.xlu0 %v1256, 16
        %v7299 = vpop.permute.xlu0 %7298
        %v7301 = vsel %vm1305, %v7297, 0
        %v7304 = vsel %vm1305, %v7299, 0
        %7306 = vmatprep.subr.bf16.mxu0 0
        %7307 = vmatpush1.bf16.xpose.msra.mxu0 %v7304
        %7308 = vmatprep.subr.bf16.mxu0 0
        %7309 = vmatpush1.bf16.xpose.msra.mxu0 0
        %7310 = vmatprep.subr.bf16.mxu0 0
        %7311 = vmatpush1.bf16.xpose.msra.mxu0 0
        %7312 = vmatprep.subr.bf16.mxu0 0
        %7313 = vmatpush1.bf16.xpose.msra.mxu0 0
        %7314 = vmatprep.subr.bf16.mxu0 0
        %7315 = vmatpush1.bf16.xpose.msra.mxu0 0
        %7316 = vmatprep.subr.bf16.mxu0 0
        %7317 = vmatpush1.bf16.xpose.msra.mxu0 0
        %7318 = vmatprep.subr.bf16.mxu0 0
        %7319 = vmatpush1.bf16.xpose.msra.mxu0 0
        %7320 = vmatprep.subr.bf16.mxu0 0
        %7321 = vmatpush1.bf16.xpose.msra.mxu0 0
        %7322 = vmatprep.subr.bf16.mxu0 0
        %7323 = vmatpush1.bf16.xpose.msra.mxu0 0
        %7324 = vmatprep.subr.bf16.mxu0 0
        %7325 = vmatpush1.bf16.xpose.msra.mxu0 0
        %7326 = vmatprep.subr.bf16.mxu0 0
        %7327 = vmatpush1.bf16.xpose.msra.mxu0 0
        %7328 = vmatprep.subr.bf16.mxu0 0
        %7329 = vmatpush1.bf16.xpose.msra.mxu0 0
        %7330 = vmatprep.subr.bf16.mxu0 0
        %7331 = vmatpush1.bf16.xpose.msra.mxu0 0
        %7332 = vmatprep.subr.bf16.mxu0 0
        %7333 = vmatpush1.bf16.xpose.msra.mxu0 0
        %7334 = vmatprep.subr.bf16.mxu0 0
        %7335 = vmatpush1.bf16.xpose.msra.mxu0 0
        %7336 = vmatprep.subr.bf16.mxu0 0
        %7337 = vmatpush1.bf16.xpose.msra.mxu0 0
        %7338 = vmatprep.mubr.bf16.mxu0 0
        %7339 = vmatmul.mubr.bf16.gmra.mrb[0].mxu0 %v7301
        %v7340 = vpop.f32.mrb[0].mxu0
        %v7341 = vadd.f32 0.0, %v7340
        %v7342 = vpop.f32.mrb[0].mxu0
        %v7343 = vpop.f32.mrb[0].mxu0
        %v7344 = vpop.f32.mrb[0].mxu0
        %7345 = vdwg.mxu0
        %7346 = vrot.lane.b32.xlu0 %v1241, 80
        %v7347 = vpop.permute.xlu0 %7346
        %7348 = vrot.lane.b32.xlu0 %v1257, 16
        %v7349 = vpop.permute.xlu0 %7348
        %v7351 = vsel %vm1305, %v7347, 0
        %v7354 = vsel %vm1305, %v7349, 0
        %7356 = vmatprep.subr.bf16.mxu0 0
        %7357 = vmatpush1.bf16.xpose.msra.mxu0 %v7354
        %7358 = vmatprep.subr.bf16.mxu0 0
        %7359 = vmatpush1.bf16.xpose.msra.mxu0 0
        %7360 = vmatprep.subr.bf16.mxu0 0
        %7361 = vmatpush1.bf16.xpose.msra.mxu0 0
        %7362 = vmatprep.subr.bf16.mxu0 0
        %7363 = vmatpush1.bf16.xpose.msra.mxu0 0
        %7364 = vmatprep.subr.bf16.mxu0 0
        %7365 = vmatpush1.bf16.xpose.msra.mxu0 0
        %7366 = vmatprep.subr.bf16.mxu0 0
        %7367 = vmatpush1.bf16.xpose.msra.mxu0 0
        %7368 = vmatprep.subr.bf16.mxu0 0
        %7369 = vmatpush1.bf16.xpose.msra.mxu0 0
        %7370 = vmatprep.subr.bf16.mxu0 0
        %7371 = vmatpush1.bf16.xpose.msra.mxu0 0
        %7372 = vmatprep.subr.bf16.mxu0 0
        %7373 = vmatpush1.bf16.xpose.msra.mxu0 0
        %7374 = vmatprep.subr.bf16.mxu0 0
        %7375 = vmatpush1.bf16.xpose.msra.mxu0 0
        %7376 = vmatprep.subr.bf16.mxu0 0
        %7377 = vmatpush1.bf16.xpose.msra.mxu0 0
        %7378 = vmatprep.subr.bf16.mxu0 0
        %7379 = vmatpush1.bf16.xpose.msra.mxu0 0
        %7380 = vmatprep.subr.bf16.mxu0 0
        %7381 = vmatpush1.bf16.xpose.msra.mxu0 0
        %7382 = vmatprep.subr.bf16.mxu0 0
        %7383 = vmatpush1.bf16.xpose.msra.mxu0 0
        %7384 = vmatprep.subr.bf16.mxu0 0
        %7385 = vmatpush1.bf16.xpose.msra.mxu0 0
        %7386 = vmatprep.subr.bf16.mxu0 0
        %7387 = vmatpush1.bf16.xpose.msra.mxu0 0
        %7388 = vmatprep.mubr.bf16.mxu0 0
        %7389 = vmatmul.mubr.bf16.gmra.mrb[0].mxu0 %v7351
        %v7390 = vpop.f32.mrb[0].mxu0
        %v7391 = vadd.f32 0.0, %v7390
        %v7392 = vpop.f32.mrb[0].mxu0
        %v7393 = vpop.f32.mrb[0].mxu0
        %v7394 = vpop.f32.mrb[0].mxu0
        %7395 = vdwg.mxu0
        %7396 = vrot.lane.b32.xlu0 %v1242, 80
        %v7397 = vpop.permute.xlu0 %7396
        %7398 = vrot.lane.b32.xlu0 %v1258, 16
        %v7399 = vpop.permute.xlu0 %7398
        %v7401 = vsel %vm1305, %v7397, 0
        %v7404 = vsel %vm1305, %v7399, 0
        %7406 = vmatprep.subr.bf16.mxu0 0
        %7407 = vmatpush1.bf16.xpose.msra.mxu0 %v7404
        %7408 = vmatprep.subr.bf16.mxu0 0
        %7409 = vmatpush1.bf16.xpose.msra.mxu0 0
        %7410 = vmatprep.subr.bf16.mxu0 0
        %7411 = vmatpush1.bf16.xpose.msra.mxu0 0
        %7412 = vmatprep.subr.bf16.mxu0 0
        %7413 = vmatpush1.bf16.xpose.msra.mxu0 0
        %7414 = vmatprep.subr.bf16.mxu0 0
        %7415 = vmatpush1.bf16.xpose.msra.mxu0 0
        %7416 = vmatprep.subr.bf16.mxu0 0
        %7417 = vmatpush1.bf16.xpose.msra.mxu0 0
        %7418 = vmatprep.subr.bf16.mxu0 0
        %7419 = vmatpush1.bf16.xpose.msra.mxu0 0
        %7420 = vmatprep.subr.bf16.mxu0 0
        %7421 = vmatpush1.bf16.xpose.msra.mxu0 0
        %7422 = vmatprep.subr.bf16.mxu0 0
        %7423 = vmatpush1.bf16.xpose.msra.mxu0 0
        %7424 = vmatprep.subr.bf16.mxu0 0
        %7425 = vmatpush1.bf16.xpose.msra.mxu0 0
        %7426 = vmatprep.subr.bf16.mxu0 0
        %7427 = vmatpush1.bf16.xpose.msra.mxu0 0
        %7428 = vmatprep.subr.bf16.mxu0 0
        %7429 = vmatpush1.bf16.xpose.msra.mxu0 0
        %7430 = vmatprep.subr.bf16.mxu0 0
        %7431 = vmatpush1.bf16.xpose.msra.mxu0 0
        %7432 = vmatprep.subr.bf16.mxu0 0
        %7433 = vmatpush1.bf16.xpose.msra.mxu0 0
        %7434 = vmatprep.subr.bf16.mxu0 0
        %7435 = vmatpush1.bf16.xpose.msra.mxu0 0
        %7436 = vmatprep.subr.bf16.mxu0 0
        %7437 = vmatpush1.bf16.xpose.msra.mxu0 0
        %7438 = vmatprep.mubr.bf16.mxu0 0
        %7439 = vmatmul.mubr.bf16.gmra.mrb[0].mxu0 %v7401
        %v7440 = vpop.f32.mrb[0].mxu0
        %v7441 = vadd.f32 0.0, %v7440
        %v7442 = vpop.f32.mrb[0].mxu0
        %v7443 = vpop.f32.mrb[0].mxu0
        %v7444 = vpop.f32.mrb[0].mxu0
        %7445 = vdwg.mxu0
        %7446 = vrot.lane.b32.xlu0 %v1243, 80
        %v7447 = vpop.permute.xlu0 %7446
        %7448 = vrot.lane.b32.xlu0 %v1259, 16
        %v7449 = vpop.permute.xlu0 %7448
        %v7451 = vsel %vm1305, %v7447, 0
        %v7454 = vsel %vm1305, %v7449, 0
        %7456 = vmatprep.subr.bf16.mxu0 0
        %7457 = vmatpush1.bf16.xpose.msra.mxu0 %v7454
        %7458 = vmatprep.subr.bf16.mxu0 0
        %7459 = vmatpush1.bf16.xpose.msra.mxu0 0
        %7460 = vmatprep.subr.bf16.mxu0 0
        %7461 = vmatpush1.bf16.xpose.msra.mxu0 0
        %7462 = vmatprep.subr.bf16.mxu0 0
        %7463 = vmatpush1.bf16.xpose.msra.mxu0 0
        %7464 = vmatprep.subr.bf16.mxu0 0
        %7465 = vmatpush1.bf16.xpose.msra.mxu0 0
        %7466 = vmatprep.subr.bf16.mxu0 0
        %7467 = vmatpush1.bf16.xpose.msra.mxu0 0
        %7468 = vmatprep.subr.bf16.mxu0 0
        %7469 = vmatpush1.bf16.xpose.msra.mxu0 0
        %7470 = vmatprep.subr.bf16.mxu0 0
        %7471 = vmatpush1.bf16.xpose.msra.mxu0 0
        %7472 = vmatprep.subr.bf16.mxu0 0
        %7473 = vmatpush1.bf16.xpose.msra.mxu0 0
        %7474 = vmatprep.subr.bf16.mxu0 0
        %7475 = vmatpush1.bf16.xpose.msra.mxu0 0
        %7476 = vmatprep.subr.bf16.mxu0 0
        %7477 = vmatpush1.bf16.xpose.msra.mxu0 0
        %7478 = vmatprep.subr.bf16.mxu0 0
        %7479 = vmatpush1.bf16.xpose.msra.mxu0 0
        %7480 = vmatprep.subr.bf16.mxu0 0
        %7481 = vmatpush1.bf16.xpose.msra.mxu0 0
        %7482 = vmatprep.subr.bf16.mxu0 0
        %7483 = vmatpush1.bf16.xpose.msra.mxu0 0
        %7484 = vmatprep.subr.bf16.mxu0 0
        %7485 = vmatpush1.bf16.xpose.msra.mxu0 0
        %7486 = vmatprep.subr.bf16.mxu0 0
        %7487 = vmatpush1.bf16.xpose.msra.mxu0 0
        %7488 = vmatprep.mubr.bf16.mxu0 0
        %7489 = vmatmul.mubr.bf16.gmra.mrb[0].mxu0 %v7451
        %v7490 = vpop.f32.mrb[0].mxu0
        %v7491 = vadd.f32 0.0, %v7490
        %v7492 = vpop.f32.mrb[0].mxu0
        %v7493 = vpop.f32.mrb[0].mxu0
        %v7494 = vpop.f32.mrb[0].mxu0
        %7495 = vdwg.mxu0
        %7496 = vrot.lane.b32.xlu0 %v1244, 80
        %v7497 = vpop.permute.xlu0 %7496
        %7498 = vrot.lane.b32.xlu0 %v1260, 16
        %v7499 = vpop.permute.xlu0 %7498
        %v7501 = vsel %vm1305, %v7497, 0
        %v7504 = vsel %vm1305, %v7499, 0
        %7506 = vmatprep.subr.bf16.mxu0 0
        %7507 = vmatpush1.bf16.xpose.msra.mxu0 %v7504
        %7508 = vmatprep.subr.bf16.mxu0 0
        %7509 = vmatpush1.bf16.xpose.msra.mxu0 0
        %7510 = vmatprep.subr.bf16.mxu0 0
        %7511 = vmatpush1.bf16.xpose.msra.mxu0 0
        %7512 = vmatprep.subr.bf16.mxu0 0
        %7513 = vmatpush1.bf16.xpose.msra.mxu0 0
        %7514 = vmatprep.subr.bf16.mxu0 0
        %7515 = vmatpush1.bf16.xpose.msra.mxu0 0
        %7516 = vmatprep.subr.bf16.mxu0 0
        %7517 = vmatpush1.bf16.xpose.msra.mxu0 0
        %7518 = vmatprep.subr.bf16.mxu0 0
        %7519 = vmatpush1.bf16.xpose.msra.mxu0 0
        %7520 = vmatprep.subr.bf16.mxu0 0
        %7521 = vmatpush1.bf16.xpose.msra.mxu0 0
        %7522 = vmatprep.subr.bf16.mxu0 0
        %7523 = vmatpush1.bf16.xpose.msra.mxu0 0
        %7524 = vmatprep.subr.bf16.mxu0 0
        %7525 = vmatpush1.bf16.xpose.msra.mxu0 0
        %7526 = vmatprep.subr.bf16.mxu0 0
        %7527 = vmatpush1.bf16.xpose.msra.mxu0 0
        %7528 = vmatprep.subr.bf16.mxu0 0
        %7529 = vmatpush1.bf16.xpose.msra.mxu0 0
        %7530 = vmatprep.subr.bf16.mxu0 0
        %7531 = vmatpush1.bf16.xpose.msra.mxu0 0
        %7532 = vmatprep.subr.bf16.mxu0 0
        %7533 = vmatpush1.bf16.xpose.msra.mxu0 0
        %7534 = vmatprep.subr.bf16.mxu0 0
        %7535 = vmatpush1.bf16.xpose.msra.mxu0 0
        %7536 = vmatprep.subr.bf16.mxu0 0
        %7537 = vmatpush1.bf16.xpose.msra.mxu0 0
        %7538 = vmatprep.mubr.bf16.mxu0 0
        %7539 = vmatmul.mubr.bf16.gmra.mrb[0].mxu0 %v7501
        %v7540 = vpop.f32.mrb[0].mxu0
        %v7541 = vadd.f32 0.0, %v7540
        %v7542 = vpop.f32.mrb[0].mxu0
        %v7543 = vpop.f32.mrb[0].mxu0
        %v7544 = vpop.f32.mrb[0].mxu0
        %7545 = vdwg.mxu0
        %7546 = vrot.lane.b32.xlu0 %v1245, 80
        %v7547 = vpop.permute.xlu0 %7546
        %7548 = vrot.lane.b32.xlu0 %v1261, 16
        %v7549 = vpop.permute.xlu0 %7548
        %v7551 = vsel %vm1305, %v7547, 0
        %v7554 = vsel %vm1305, %v7549, 0
        %7556 = vmatprep.subr.bf16.mxu0 0
        %7557 = vmatpush1.bf16.xpose.msra.mxu0 %v7554
        %7558 = vmatprep.subr.bf16.mxu0 0
        %7559 = vmatpush1.bf16.xpose.msra.mxu0 0
        %7560 = vmatprep.subr.bf16.mxu0 0
        %7561 = vmatpush1.bf16.xpose.msra.mxu0 0
        %7562 = vmatprep.subr.bf16.mxu0 0
        %7563 = vmatpush1.bf16.xpose.msra.mxu0 0
        %7564 = vmatprep.subr.bf16.mxu0 0
        %7565 = vmatpush1.bf16.xpose.msra.mxu0 0
        %7566 = vmatprep.subr.bf16.mxu0 0
        %7567 = vmatpush1.bf16.xpose.msra.mxu0 0
        %7568 = vmatprep.subr.bf16.mxu0 0
        %7569 = vmatpush1.bf16.xpose.msra.mxu0 0
        %7570 = vmatprep.subr.bf16.mxu0 0
        %7571 = vmatpush1.bf16.xpose.msra.mxu0 0
        %7572 = vmatprep.subr.bf16.mxu0 0
        %7573 = vmatpush1.bf16.xpose.msra.mxu0 0
        %7574 = vmatprep.subr.bf16.mxu0 0
        %7575 = vmatpush1.bf16.xpose.msra.mxu0 0
        %7576 = vmatprep.subr.bf16.mxu0 0
        %7577 = vmatpush1.bf16.xpose.msra.mxu0 0
        %7578 = vmatprep.subr.bf16.mxu0 0
        %7579 = vmatpush1.bf16.xpose.msra.mxu0 0
        %7580 = vmatprep.subr.bf16.mxu0 0
        %7581 = vmatpush1.bf16.xpose.msra.mxu0 0
        %7582 = vmatprep.subr.bf16.mxu0 0
        %7583 = vmatpush1.bf16.xpose.msra.mxu0 0
        %7584 = vmatprep.subr.bf16.mxu0 0
        %7585 = vmatpush1.bf16.xpose.msra.mxu0 0
        %7586 = vmatprep.subr.bf16.mxu0 0
        %7587 = vmatpush1.bf16.xpose.msra.mxu0 0
        %7588 = vmatprep.mubr.bf16.mxu0 0
        %7589 = vmatmul.mubr.bf16.gmra.mrb[0].mxu0 %v7551
        %v7590 = vpop.f32.mrb[0].mxu0
        %v7591 = vadd.f32 0.0, %v7590
        %v7592 = vpop.f32.mrb[0].mxu0
        %v7593 = vpop.f32.mrb[0].mxu0
        %v7594 = vpop.f32.mrb[0].mxu0
        %7595 = vdwg.mxu0
        %7596 = vrot.lane.b32.xlu0 %v1246, 80
        %v7597 = vpop.permute.xlu0 %7596
        %7598 = vrot.lane.b32.xlu0 %v1262, 16
        %v7599 = vpop.permute.xlu0 %7598
        %v7601 = vsel %vm1305, %v7597, 0
        %v7604 = vsel %vm1305, %v7599, 0
        %7606 = vmatprep.subr.bf16.mxu0 0
        %7607 = vmatpush1.bf16.xpose.msra.mxu0 %v7604
        %7608 = vmatprep.subr.bf16.mxu0 0
        %7609 = vmatpush1.bf16.xpose.msra.mxu0 0
        %7610 = vmatprep.subr.bf16.mxu0 0
        %7611 = vmatpush1.bf16.xpose.msra.mxu0 0
        %7612 = vmatprep.subr.bf16.mxu0 0
        %7613 = vmatpush1.bf16.xpose.msra.mxu0 0
        %7614 = vmatprep.subr.bf16.mxu0 0
        %7615 = vmatpush1.bf16.xpose.msra.mxu0 0
        %7616 = vmatprep.subr.bf16.mxu0 0
        %7617 = vmatpush1.bf16.xpose.msra.mxu0 0
        %7618 = vmatprep.subr.bf16.mxu0 0
        %7619 = vmatpush1.bf16.xpose.msra.mxu0 0
        %7620 = vmatprep.subr.bf16.mxu0 0
        %7621 = vmatpush1.bf16.xpose.msra.mxu0 0
        %7622 = vmatprep.subr.bf16.mxu0 0
        %7623 = vmatpush1.bf16.xpose.msra.mxu0 0
        %7624 = vmatprep.subr.bf16.mxu0 0
        %7625 = vmatpush1.bf16.xpose.msra.mxu0 0
        %7626 = vmatprep.subr.bf16.mxu0 0
        %7627 = vmatpush1.bf16.xpose.msra.mxu0 0
        %7628 = vmatprep.subr.bf16.mxu0 0
        %7629 = vmatpush1.bf16.xpose.msra.mxu0 0
        %7630 = vmatprep.subr.bf16.mxu0 0
        %7631 = vmatpush1.bf16.xpose.msra.mxu0 0
        %7632 = vmatprep.subr.bf16.mxu0 0
        %7633 = vmatpush1.bf16.xpose.msra.mxu0 0
        %7634 = vmatprep.subr.bf16.mxu0 0
        %7635 = vmatpush1.bf16.xpose.msra.mxu0 0
        %7636 = vmatprep.subr.bf16.mxu0 0
        %7637 = vmatpush1.bf16.xpose.msra.mxu0 0
        %7638 = vmatprep.mubr.bf16.mxu0 0
        %7639 = vmatmul.mubr.bf16.gmra.mrb[0].mxu0 %v7601
        %v7640 = vpop.f32.mrb[0].mxu0
        %v7641 = vadd.f32 0.0, %v7640
        %v7642 = vpop.f32.mrb[0].mxu0
        %v7643 = vpop.f32.mrb[0].mxu0
        %v7644 = vpop.f32.mrb[0].mxu0
        %7645 = vdwg.mxu0
        %7646 = vrot.lane.b32.xlu0 %v1247, 80
        %v7647 = vpop.permute.xlu0 %7646
        %7648 = vrot.lane.b32.xlu0 %v1263, 16
        %v7649 = vpop.permute.xlu0 %7648
        %v7651 = vsel %vm1305, %v7647, 0
        %v7654 = vsel %vm1305, %v7649, 0
        %7656 = vmatprep.subr.bf16.mxu0 0
        %7657 = vmatpush1.bf16.xpose.msra.mxu0 %v7654
        %7658 = vmatprep.subr.bf16.mxu0 0
        %7659 = vmatpush1.bf16.xpose.msra.mxu0 0
        %7660 = vmatprep.subr.bf16.mxu0 0
        %7661 = vmatpush1.bf16.xpose.msra.mxu0 0
        %7662 = vmatprep.subr.bf16.mxu0 0
        %7663 = vmatpush1.bf16.xpose.msra.mxu0 0
        %7664 = vmatprep.subr.bf16.mxu0 0
        %7665 = vmatpush1.bf16.xpose.msra.mxu0 0
        %7666 = vmatprep.subr.bf16.mxu0 0
        %7667 = vmatpush1.bf16.xpose.msra.mxu0 0
        %7668 = vmatprep.subr.bf16.mxu0 0
        %7669 = vmatpush1.bf16.xpose.msra.mxu0 0
        %7670 = vmatprep.subr.bf16.mxu0 0
        %7671 = vmatpush1.bf16.xpose.msra.mxu0 0
        %7672 = vmatprep.subr.bf16.mxu0 0
        %7673 = vmatpush1.bf16.xpose.msra.mxu0 0
        %7674 = vmatprep.subr.bf16.mxu0 0
        %7675 = vmatpush1.bf16.xpose.msra.mxu0 0
        %7676 = vmatprep.subr.bf16.mxu0 0
        %7677 = vmatpush1.bf16.xpose.msra.mxu0 0
        %7678 = vmatprep.subr.bf16.mxu0 0
        %7679 = vmatpush1.bf16.xpose.msra.mxu0 0
        %7680 = vmatprep.subr.bf16.mxu0 0
        %7681 = vmatpush1.bf16.xpose.msra.mxu0 0
        %7682 = vmatprep.subr.bf16.mxu0 0
        %7683 = vmatpush1.bf16.xpose.msra.mxu0 0
        %7684 = vmatprep.subr.bf16.mxu0 0
        %7685 = vmatpush1.bf16.xpose.msra.mxu0 0
        %7686 = vmatprep.subr.bf16.mxu0 0
        %7687 = vmatpush1.bf16.xpose.msra.mxu0 0
        %7688 = vmatprep.mubr.bf16.mxu0 0
        %7689 = vmatmul.mubr.bf16.gmra.mrb[0].mxu0 %v7651
        %v7690 = vpop.f32.mrb[0].mxu0
        %v7691 = vadd.f32 0.0, %v7690
        %v7692 = vpop.f32.mrb[0].mxu0
        %v7693 = vpop.f32.mrb[0].mxu0
        %v7694 = vpop.f32.mrb[0].mxu0
        %7695 = vdwg.mxu0
        %7696 = vrot.lane.b32.xlu0 %v1248, 80
        %v7697 = vpop.permute.xlu0 %7696
        %7698 = vrot.lane.b32.xlu0 %v1264, 16
        %v7699 = vpop.permute.xlu0 %7698
        %v7701 = vsel %vm1305, %v7697, 0
        %v7704 = vsel %vm1305, %v7699, 0
        %7706 = vmatprep.subr.bf16.mxu0 0
        %7707 = vmatpush1.bf16.xpose.msra.mxu0 %v7704
        %7708 = vmatprep.subr.bf16.mxu0 0
        %7709 = vmatpush1.bf16.xpose.msra.mxu0 0
        %7710 = vmatprep.subr.bf16.mxu0 0
        %7711 = vmatpush1.bf16.xpose.msra.mxu0 0
        %7712 = vmatprep.subr.bf16.mxu0 0
        %7713 = vmatpush1.bf16.xpose.msra.mxu0 0
        %7714 = vmatprep.subr.bf16.mxu0 0
        %7715 = vmatpush1.bf16.xpose.msra.mxu0 0
        %7716 = vmatprep.subr.bf16.mxu0 0
        %7717 = vmatpush1.bf16.xpose.msra.mxu0 0
        %7718 = vmatprep.subr.bf16.mxu0 0
        %7719 = vmatpush1.bf16.xpose.msra.mxu0 0
        %7720 = vmatprep.subr.bf16.mxu0 0
        %7721 = vmatpush1.bf16.xpose.msra.mxu0 0
        %7722 = vmatprep.subr.bf16.mxu0 0
        %7723 = vmatpush1.bf16.xpose.msra.mxu0 0
        %7724 = vmatprep.subr.bf16.mxu0 0
        %7725 = vmatpush1.bf16.xpose.msra.mxu0 0
        %7726 = vmatprep.subr.bf16.mxu0 0
        %7727 = vmatpush1.bf16.xpose.msra.mxu0 0
        %7728 = vmatprep.subr.bf16.mxu0 0
        %7729 = vmatpush1.bf16.xpose.msra.mxu0 0
        %7730 = vmatprep.subr.bf16.mxu0 0
        %7731 = vmatpush1.bf16.xpose.msra.mxu0 0
        %7732 = vmatprep.subr.bf16.mxu0 0
        %7733 = vmatpush1.bf16.xpose.msra.mxu0 0
        %7734 = vmatprep.subr.bf16.mxu0 0
        %7735 = vmatpush1.bf16.xpose.msra.mxu0 0
        %7736 = vmatprep.subr.bf16.mxu0 0
        %7737 = vmatpush1.bf16.xpose.msra.mxu0 0
        %7738 = vmatprep.mubr.bf16.mxu0 0
        %7739 = vmatmul.mubr.bf16.gmra.mrb[0].mxu0 %v7701
        %v7740 = vpop.f32.mrb[0].mxu0
        %v7741 = vadd.f32 0.0, %v7740
        %v7742 = vpop.f32.mrb[0].mxu0
        %v7743 = vpop.f32.mrb[0].mxu0
        %v7744 = vpop.f32.mrb[0].mxu0
        %7745 = vdwg.mxu0
        %7746 = vrot.lane.b32.xlu0 %v1249, 80
        %v7747 = vpop.permute.xlu0 %7746
        %7748 = vrot.lane.b32.xlu0 %v1265, 16
        %v7749 = vpop.permute.xlu0 %7748
        %v7751 = vsel %vm1305, %v7747, 0
        %v7754 = vsel %vm1305, %v7749, 0
        %7756 = vmatprep.subr.bf16.mxu0 0
        %7757 = vmatpush1.bf16.xpose.msra.mxu0 %v7754
        %7758 = vmatprep.subr.bf16.mxu0 0
        %7759 = vmatpush1.bf16.xpose.msra.mxu0 0
        %7760 = vmatprep.subr.bf16.mxu0 0
        %7761 = vmatpush1.bf16.xpose.msra.mxu0 0
        %7762 = vmatprep.subr.bf16.mxu0 0
        %7763 = vmatpush1.bf16.xpose.msra.mxu0 0
        %7764 = vmatprep.subr.bf16.mxu0 0
        %7765 = vmatpush1.bf16.xpose.msra.mxu0 0
        %7766 = vmatprep.subr.bf16.mxu0 0
        %7767 = vmatpush1.bf16.xpose.msra.mxu0 0
        %7768 = vmatprep.subr.bf16.mxu0 0
        %7769 = vmatpush1.bf16.xpose.msra.mxu0 0
        %7770 = vmatprep.subr.bf16.mxu0 0
        %7771 = vmatpush1.bf16.xpose.msra.mxu0 0
        %7772 = vmatprep.subr.bf16.mxu0 0
        %7773 = vmatpush1.bf16.xpose.msra.mxu0 0
        %7774 = vmatprep.subr.bf16.mxu0 0
        %7775 = vmatpush1.bf16.xpose.msra.mxu0 0
        %7776 = vmatprep.subr.bf16.mxu0 0
        %7777 = vmatpush1.bf16.xpose.msra.mxu0 0
        %7778 = vmatprep.subr.bf16.mxu0 0
        %7779 = vmatpush1.bf16.xpose.msra.mxu0 0
        %7780 = vmatprep.subr.bf16.mxu0 0
        %7781 = vmatpush1.bf16.xpose.msra.mxu0 0
        %7782 = vmatprep.subr.bf16.mxu0 0
        %7783 = vmatpush1.bf16.xpose.msra.mxu0 0
        %7784 = vmatprep.subr.bf16.mxu0 0
        %7785 = vmatpush1.bf16.xpose.msra.mxu0 0
        %7786 = vmatprep.subr.bf16.mxu0 0
        %7787 = vmatpush1.bf16.xpose.msra.mxu0 0
        %7788 = vmatprep.mubr.bf16.mxu0 0
        %7789 = vmatmul.mubr.bf16.gmra.mrb[0].mxu0 %v7751
        %v7790 = vpop.f32.mrb[0].mxu0
        %v7791 = vadd.f32 0.0, %v7790
        %v7792 = vpop.f32.mrb[0].mxu0
        %v7793 = vpop.f32.mrb[0].mxu0
        %v7794 = vpop.f32.mrb[0].mxu0
        %7795 = vdwg.mxu0
        %7796 = vrot.lane.b32.xlu0 %v1250, 80
        %v7797 = vpop.permute.xlu0 %7796
        %7798 = vrot.lane.b32.xlu0 %v1266, 16
        %v7799 = vpop.permute.xlu0 %7798
        %v7801 = vsel %vm1305, %v7797, 0
        %v7804 = vsel %vm1305, %v7799, 0
        %7806 = vmatprep.subr.bf16.mxu0 0
        %7807 = vmatpush1.bf16.xpose.msra.mxu0 %v7804
        %7808 = vmatprep.subr.bf16.mxu0 0
        %7809 = vmatpush1.bf16.xpose.msra.mxu0 0
        %7810 = vmatprep.subr.bf16.mxu0 0
        %7811 = vmatpush1.bf16.xpose.msra.mxu0 0
        %7812 = vmatprep.subr.bf16.mxu0 0
        %7813 = vmatpush1.bf16.xpose.msra.mxu0 0
        %7814 = vmatprep.subr.bf16.mxu0 0
        %7815 = vmatpush1.bf16.xpose.msra.mxu0 0
        %7816 = vmatprep.subr.bf16.mxu0 0
        %7817 = vmatpush1.bf16.xpose.msra.mxu0 0
        %7818 = vmatprep.subr.bf16.mxu0 0
        %7819 = vmatpush1.bf16.xpose.msra.mxu0 0
        %7820 = vmatprep.subr.bf16.mxu0 0
        %7821 = vmatpush1.bf16.xpose.msra.mxu0 0
        %7822 = vmatprep.subr.bf16.mxu0 0
        %7823 = vmatpush1.bf16.xpose.msra.mxu0 0
        %7824 = vmatprep.subr.bf16.mxu0 0
        %7825 = vmatpush1.bf16.xpose.msra.mxu0 0
        %7826 = vmatprep.subr.bf16.mxu0 0
        %7827 = vmatpush1.bf16.xpose.msra.mxu0 0
        %7828 = vmatprep.subr.bf16.mxu0 0
        %7829 = vmatpush1.bf16.xpose.msra.mxu0 0
        %7830 = vmatprep.subr.bf16.mxu0 0
        %7831 = vmatpush1.bf16.xpose.msra.mxu0 0
        %7832 = vmatprep.subr.bf16.mxu0 0
        %7833 = vmatpush1.bf16.xpose.msra.mxu0 0
        %7834 = vmatprep.subr.bf16.mxu0 0
        %7835 = vmatpush1.bf16.xpose.msra.mxu0 0
        %7836 = vmatprep.subr.bf16.mxu0 0
        %7837 = vmatpush1.bf16.xpose.msra.mxu0 0
        %7838 = vmatprep.mubr.bf16.mxu0 0
        %7839 = vmatmul.mubr.bf16.gmra.mrb[0].mxu0 %v7801
        %v7840 = vpop.f32.mrb[0].mxu0
        %v7841 = vadd.f32 0.0, %v7840
        %v7842 = vpop.f32.mrb[0].mxu0
        %v7843 = vpop.f32.mrb[0].mxu0
        %v7844 = vpop.f32.mrb[0].mxu0
        %7845 = vdwg.mxu0
        %7846 = vrot.lane.b32.xlu0 %v1251, 80
        %v7847 = vpop.permute.xlu0 %7846
        %7848 = vrot.lane.b32.xlu0 %v1267, 16
        %v7849 = vpop.permute.xlu0 %7848
        %v7851 = vsel %vm1305, %v7847, 0
        %v7854 = vsel %vm1305, %v7849, 0
        %7856 = vmatprep.subr.bf16.mxu0 0
        %7857 = vmatpush1.bf16.xpose.msra.mxu0 %v7854
        %7858 = vmatprep.subr.bf16.mxu0 0
        %7859 = vmatpush1.bf16.xpose.msra.mxu0 0
        %7860 = vmatprep.subr.bf16.mxu0 0
        %7861 = vmatpush1.bf16.xpose.msra.mxu0 0
        %7862 = vmatprep.subr.bf16.mxu0 0
        %7863 = vmatpush1.bf16.xpose.msra.mxu0 0
        %7864 = vmatprep.subr.bf16.mxu0 0
        %7865 = vmatpush1.bf16.xpose.msra.mxu0 0
        %7866 = vmatprep.subr.bf16.mxu0 0
        %7867 = vmatpush1.bf16.xpose.msra.mxu0 0
        %7868 = vmatprep.subr.bf16.mxu0 0
        %7869 = vmatpush1.bf16.xpose.msra.mxu0 0
        %7870 = vmatprep.subr.bf16.mxu0 0
        %7871 = vmatpush1.bf16.xpose.msra.mxu0 0
        %7872 = vmatprep.subr.bf16.mxu0 0
        %7873 = vmatpush1.bf16.xpose.msra.mxu0 0
        %7874 = vmatprep.subr.bf16.mxu0 0
        %7875 = vmatpush1.bf16.xpose.msra.mxu0 0
        %7876 = vmatprep.subr.bf16.mxu0 0
        %7877 = vmatpush1.bf16.xpose.msra.mxu0 0
        %7878 = vmatprep.subr.bf16.mxu0 0
        %7879 = vmatpush1.bf16.xpose.msra.mxu0 0
        %7880 = vmatprep.subr.bf16.mxu0 0
        %7881 = vmatpush1.bf16.xpose.msra.mxu0 0
        %7882 = vmatprep.subr.bf16.mxu0 0
        %7883 = vmatpush1.bf16.xpose.msra.mxu0 0
        %7884 = vmatprep.subr.bf16.mxu0 0
        %7885 = vmatpush1.bf16.xpose.msra.mxu0 0
        %7886 = vmatprep.subr.bf16.mxu0 0
        %7887 = vmatpush1.bf16.xpose.msra.mxu0 0
        %7888 = vmatprep.mubr.bf16.mxu0 0
        %7889 = vmatmul.mubr.bf16.gmra.mrb[0].mxu0 %v7851
        %v7890 = vpop.f32.mrb[0].mxu0
        %v7891 = vadd.f32 0.0, %v7890
        %v7892 = vpop.f32.mrb[0].mxu0
        %v7893 = vpop.f32.mrb[0].mxu0
        %v7894 = vpop.f32.mrb[0].mxu0
        %7895 = vdwg.mxu0
        %7896 = vrot.lane.b32.xlu0 %v1252, 80
        %v7897 = vpop.permute.xlu0 %7896
        %7898 = vrot.lane.b32.xlu0 %v1268, 16
        %v7899 = vpop.permute.xlu0 %7898
        %v7901 = vsel %vm1305, %v7897, 0
        %v7904 = vsel %vm1305, %v7899, 0
        %7906 = vmatprep.subr.bf16.mxu0 0
        %7907 = vmatpush1.bf16.xpose.msra.mxu0 %v7904
        %7908 = vmatprep.subr.bf16.mxu0 0
        %7909 = vmatpush1.bf16.xpose.msra.mxu0 0
        %7910 = vmatprep.subr.bf16.mxu0 0
        %7911 = vmatpush1.bf16.xpose.msra.mxu0 0
        %7912 = vmatprep.subr.bf16.mxu0 0
        %7913 = vmatpush1.bf16.xpose.msra.mxu0 0
        %7914 = vmatprep.subr.bf16.mxu0 0
        %7915 = vmatpush1.bf16.xpose.msra.mxu0 0
        %7916 = vmatprep.subr.bf16.mxu0 0
        %7917 = vmatpush1.bf16.xpose.msra.mxu0 0
        %7918 = vmatprep.subr.bf16.mxu0 0
        %7919 = vmatpush1.bf16.xpose.msra.mxu0 0
        %7920 = vmatprep.subr.bf16.mxu0 0
        %7921 = vmatpush1.bf16.xpose.msra.mxu0 0
        %7922 = vmatprep.subr.bf16.mxu0 0
        %7923 = vmatpush1.bf16.xpose.msra.mxu0 0
        %7924 = vmatprep.subr.bf16.mxu0 0
        %7925 = vmatpush1.bf16.xpose.msra.mxu0 0
        %7926 = vmatprep.subr.bf16.mxu0 0
        %7927 = vmatpush1.bf16.xpose.msra.mxu0 0
        %7928 = vmatprep.subr.bf16.mxu0 0
        %7929 = vmatpush1.bf16.xpose.msra.mxu0 0
        %7930 = vmatprep.subr.bf16.mxu0 0
        %7931 = vmatpush1.bf16.xpose.msra.mxu0 0
        %7932 = vmatprep.subr.bf16.mxu0 0
        %7933 = vmatpush1.bf16.xpose.msra.mxu0 0
        %7934 = vmatprep.subr.bf16.mxu0 0
        %7935 = vmatpush1.bf16.xpose.msra.mxu0 0
        %7936 = vmatprep.subr.bf16.mxu0 0
        %7937 = vmatpush1.bf16.xpose.msra.mxu0 0
        %7938 = vmatprep.mubr.bf16.mxu0 0
        %7939 = vmatmul.mubr.bf16.gmra.mrb[0].mxu0 %v7901
        %v7940 = vpop.f32.mrb[0].mxu0
        %v7941 = vadd.f32 0.0, %v7940
        %v7942 = vpop.f32.mrb[0].mxu0
        %v7943 = vpop.f32.mrb[0].mxu0
        %v7944 = vpop.f32.mrb[0].mxu0
        %7945 = vdwg.mxu0
        %7946 = vrot.lane.b32.xlu0 %v1253, 80
        %v7947 = vpop.permute.xlu0 %7946
        %7948 = vrot.lane.b32.xlu0 %v1269, 16
        %v7949 = vpop.permute.xlu0 %7948
        %v7951 = vsel %vm1305, %v7947, 0
        %v7954 = vsel %vm1305, %v7949, 0
        %7956 = vmatprep.subr.bf16.mxu0 0
        %7957 = vmatpush1.bf16.xpose.msra.mxu0 %v7954
        %7958 = vmatprep.subr.bf16.mxu0 0
        %7959 = vmatpush1.bf16.xpose.msra.mxu0 0
        %7960 = vmatprep.subr.bf16.mxu0 0
        %7961 = vmatpush1.bf16.xpose.msra.mxu0 0
        %7962 = vmatprep.subr.bf16.mxu0 0
        %7963 = vmatpush1.bf16.xpose.msra.mxu0 0
        %7964 = vmatprep.subr.bf16.mxu0 0
        %7965 = vmatpush1.bf16.xpose.msra.mxu0 0
        %7966 = vmatprep.subr.bf16.mxu0 0
        %7967 = vmatpush1.bf16.xpose.msra.mxu0 0
        %7968 = vmatprep.subr.bf16.mxu0 0
        %7969 = vmatpush1.bf16.xpose.msra.mxu0 0
        %7970 = vmatprep.subr.bf16.mxu0 0
        %7971 = vmatpush1.bf16.xpose.msra.mxu0 0
        %7972 = vmatprep.subr.bf16.mxu0 0
        %7973 = vmatpush1.bf16.xpose.msra.mxu0 0
        %7974 = vmatprep.subr.bf16.mxu0 0
        %7975 = vmatpush1.bf16.xpose.msra.mxu0 0
        %7976 = vmatprep.subr.bf16.mxu0 0
        %7977 = vmatpush1.bf16.xpose.msra.mxu0 0
        %7978 = vmatprep.subr.bf16.mxu0 0
        %7979 = vmatpush1.bf16.xpose.msra.mxu0 0
        %7980 = vmatprep.subr.bf16.mxu0 0
        %7981 = vmatpush1.bf16.xpose.msra.mxu0 0
        %7982 = vmatprep.subr.bf16.mxu0 0
        %7983 = vmatpush1.bf16.xpose.msra.mxu0 0
        %7984 = vmatprep.subr.bf16.mxu0 0
        %7985 = vmatpush1.bf16.xpose.msra.mxu0 0
        %7986 = vmatprep.subr.bf16.mxu0 0
        %7987 = vmatpush1.bf16.xpose.msra.mxu0 0
        %7988 = vmatprep.mubr.bf16.mxu0 0
        %7989 = vmatmul.mubr.bf16.gmra.mrb[0].mxu0 %v7951
        %v7990 = vpop.f32.mrb[0].mxu0
        %v7991 = vadd.f32 0.0, %v7990
        %v7992 = vpop.f32.mrb[0].mxu0
        %v7993 = vpop.f32.mrb[0].mxu0
        %v7994 = vpop.f32.mrb[0].mxu0
        %7995 = vdwg.mxu0
        %v7996 = vsel %vm2087, %v7241, -inf
        %7997 = vmax.xlane.f32.xlu0 %v7996
        %v7998 = vpop.xlane.xlu0 %7997
        %v7999 = vsel %vm2087, %v7291, -inf
        %8000 = vmax.xlane.f32.xlu0 %v7999
        %v8001 = vpop.xlane.xlu0 %8000
        %v8002 = vsel %vm2087, %v7341, -inf
        %8003 = vmax.xlane.f32.xlu0 %v8002
        %v8004 = vpop.xlane.xlu0 %8003
        %v8005 = vsel %vm2087, %v7391, -inf
        %8006 = vmax.xlane.f32.xlu0 %v8005
        %v8007 = vpop.xlane.xlu0 %8006
        %v8008 = vsel %vm2087, %v7441, -inf
        %8009 = vmax.xlane.f32.xlu0 %v8008
        %v8010 = vpop.xlane.xlu0 %8009
        %v8011 = vsel %vm2087, %v7491, -inf
        %8012 = vmax.xlane.f32.xlu0 %v8011
        %v8013 = vpop.xlane.xlu0 %8012
        %v8014 = vsel %vm2087, %v7541, -inf
        %8015 = vmax.xlane.f32.xlu0 %v8014
        %v8016 = vpop.xlane.xlu0 %8015
        %v8017 = vsel %vm2087, %v7591, -inf
        %8018 = vmax.xlane.f32.xlu0 %v8017
        %v8019 = vpop.xlane.xlu0 %8018
        %v8020 = vsel %vm2087, %v7641, -inf
        %8021 = vmax.xlane.f32.xlu0 %v8020
        %v8022 = vpop.xlane.xlu0 %8021
        %v8023 = vsel %vm2087, %v7691, -inf
        %8024 = vmax.xlane.f32.xlu0 %v8023
        %v8025 = vpop.xlane.xlu0 %8024
        %v8026 = vsel %vm2087, %v7741, -inf
        %8027 = vmax.xlane.f32.xlu0 %v8026
        %v8028 = vpop.xlane.xlu0 %8027
        %v8029 = vsel %vm2087, %v7791, -inf
        %8030 = vmax.xlane.f32.xlu0 %v8029
        %v8031 = vpop.xlane.xlu0 %8030
        %v8032 = vsel %vm2087, %v7841, -inf
        %8033 = vmax.xlane.f32.xlu0 %v8032
        %v8034 = vpop.xlane.xlu0 %8033
        %v8035 = vsel %vm2087, %v7891, -inf
        %8036 = vmax.xlane.f32.xlu0 %v8035
        %v8037 = vpop.xlane.xlu0 %8036
        %v8038 = vsel %vm2087, %v7941, -inf
        %8039 = vmax.xlane.f32.xlu0 %v8038
        %v8040 = vpop.xlane.xlu0 %8039
        %v8041 = vsel %vm2087, %v7991, -inf
        %8042 = vmax.xlane.f32.xlu0 %v8041
        %v8043 = vpop.xlane.xlu0 %8042
        %v8044 = vsub.f32 %v7241, %v7998
        %v8045 = vsub.f32 %v7291, %v8001
        %v8046 = vsub.f32 %v7341, %v8004
        %v8047 = vsub.f32 %v7391, %v8007
        %v8048 = vsub.f32 %v7441, %v8010
        %v8049 = vsub.f32 %v7491, %v8013
        %v8050 = vsub.f32 %v7541, %v8016
        %v8051 = vsub.f32 %v7591, %v8019
        %v8052 = vsub.f32 %v7641, %v8022
        %v8053 = vsub.f32 %v7691, %v8025
        %v8054 = vsub.f32 %v7741, %v8028
        %v8055 = vsub.f32 %v7791, %v8031
        %v8056 = vsub.f32 %v7841, %v8034
        %v8057 = vsub.f32 %v7891, %v8037
        %v8058 = vsub.f32 %v7941, %v8040
        %v8059 = vsub.f32 %v7991, %v8043
        %v8060 = vmul.f32 %v8044, 1.442695
        %v8061 = vpow.pop %v8060
        %v8062 = vmul.f32 %v8045, 1.442695
        %v8063 = vpow.pop %v8062
        %v8064 = vmul.f32 %v8046, 1.442695
        %v8065 = vpow.pop %v8064
        %v8066 = vmul.f32 %v8047, 1.442695
        %v8067 = vpow.pop %v8066
        %v8068 = vmul.f32 %v8048, 1.442695
        %v8069 = vpow.pop %v8068
        %v8070 = vmul.f32 %v8049, 1.442695
        %v8071 = vpow.pop %v8070
        %v8072 = vmul.f32 %v8050, 1.442695
        %v8073 = vpow.pop %v8072
        %v8074 = vmul.f32 %v8051, 1.442695
        %v8075 = vpow.pop %v8074
        %v8076 = vmul.f32 %v8052, 1.442695
        %v8077 = vpow.pop %v8076
        %v8078 = vmul.f32 %v8053, 1.442695
        %v8079 = vpow.pop %v8078
        %v8080 = vmul.f32 %v8054, 1.442695
        %v8081 = vpow.pop %v8080
        %v8082 = vmul.f32 %v8055, 1.442695
        %v8083 = vpow.pop %v8082
        %v8084 = vmul.f32 %v8056, 1.442695
        %v8085 = vpow.pop %v8084
        %v8086 = vmul.f32 %v8057, 1.442695
        %v8087 = vpow.pop %v8086
        %v8088 = vmul.f32 %v8058, 1.442695
        %v8089 = vpow.pop %v8088
        %v8090 = vmul.f32 %v8059, 1.442695
        %v8091 = vpow.pop %v8090
        %v8092 = vsel %vm2087, %v8061, 0.0
        %8093 = vadd.xlane.f32.xlu0 %v8092
        %v8094 = vpop.xlane.xlu0 %8093
        %v8095 = vsel %vm2087, %v8063, 0.0
        %8096 = vadd.xlane.f32.xlu0 %v8095
        %v8097 = vpop.xlane.xlu0 %8096
        %v8098 = vsel %vm2087, %v8065, 0.0
        %8099 = vadd.xlane.f32.xlu0 %v8098
        %v8100 = vpop.xlane.xlu0 %8099
        %v8101 = vsel %vm2087, %v8067, 0.0
        %8102 = vadd.xlane.f32.xlu0 %v8101
        %v8103 = vpop.xlane.xlu0 %8102
        %v8104 = vsel %vm2087, %v8069, 0.0
        %8105 = vadd.xlane.f32.xlu0 %v8104
        %v8106 = vpop.xlane.xlu0 %8105
        %v8107 = vsel %vm2087, %v8071, 0.0
        %8108 = vadd.xlane.f32.xlu0 %v8107
        %v8109 = vpop.xlane.xlu0 %8108
        %v8110 = vsel %vm2087, %v8073, 0.0
        %8111 = vadd.xlane.f32.xlu0 %v8110
        %v8112 = vpop.xlane.xlu0 %8111
        %v8113 = vsel %vm2087, %v8075, 0.0
        %8114 = vadd.xlane.f32.xlu0 %v8113
        %v8115 = vpop.xlane.xlu0 %8114
        %v8116 = vsel %vm2087, %v8077, 0.0
        %8117 = vadd.xlane.f32.xlu0 %v8116
        %v8118 = vpop.xlane.xlu0 %8117
        %v8119 = vsel %vm2087, %v8079, 0.0
        %8120 = vadd.xlane.f32.xlu0 %v8119
        %v8121 = vpop.xlane.xlu0 %8120
        %v8122 = vsel %vm2087, %v8081, 0.0
        %8123 = vadd.xlane.f32.xlu0 %v8122
        %v8124 = vpop.xlane.xlu0 %8123
        %v8125 = vsel %vm2087, %v8083, 0.0
        %8126 = vadd.xlane.f32.xlu0 %v8125
        %v8127 = vpop.xlane.xlu0 %8126
        %v8128 = vsel %vm2087, %v8085, 0.0
        %8129 = vadd.xlane.f32.xlu0 %v8128
        %v8130 = vpop.xlane.xlu0 %8129
        %v8131 = vsel %vm2087, %v8087, 0.0
        %8132 = vadd.xlane.f32.xlu0 %v8131
        %v8133 = vpop.xlane.xlu0 %8132
        %v8134 = vsel %vm2087, %v8089, 0.0
        %8135 = vadd.xlane.f32.xlu0 %v8134
        %v8136 = vpop.xlane.xlu0 %8135
        %v8137 = vsel %vm2087, %v8091, 0.0
        %8138 = vadd.xlane.f32.xlu0 %v8137
        %v8139 = vpop.xlane.xlu0 %8138
        %v8140 = vrcp.pop %v8094
        %v8141 = vrcp.pop %v8097
        %v8142 = vrcp.pop %v8100
        %v8143 = vrcp.pop %v8103
        %v8144 = vrcp.pop %v8106
        %v8145 = vrcp.pop %v8109
        %v8146 = vrcp.pop %v8112
        %v8147 = vrcp.pop %v8115
        %v8148 = vrcp.pop %v8118
        %v8149 = vrcp.pop %v8121
        %v8150 = vrcp.pop %v8124
        %v8151 = vrcp.pop %v8127
        %v8152 = vrcp.pop %v8130
        %v8153 = vrcp.pop %v8133
        %v8154 = vrcp.pop %v8136
        %v8155 = vrcp.pop %v8139
        %v8156 = vmul.f32 %v8061, %v8140
        %v8157 = vmul.f32 %v8063, %v8141
        %v8158 = vmul.f32 %v8065, %v8142
        %v8159 = vmul.f32 %v8067, %v8143
        %v8160 = vmul.f32 %v8069, %v8144
        %v8161 = vmul.f32 %v8071, %v8145
        %v8162 = vmul.f32 %v8073, %v8146
        %v8163 = vmul.f32 %v8075, %v8147
        %v8164 = vmul.f32 %v8077, %v8148
        %v8165 = vmul.f32 %v8079, %v8149
        %v8166 = vmul.f32 %v8081, %v8150
        %v8167 = vmul.f32 %v8083, %v8151
        %v8168 = vmul.f32 %v8085, %v8152
        %v8169 = vmul.f32 %v8087, %v8153
        %v8170 = vmul.f32 %v8089, %v8154
        %v8171 = vmul.f32 %v8091, %v8155
        %v8172 = vpack.c.bf16 %v8156, %v8156
        %v8173 = vpack.c.bf16 %v8157, %v8157
        %v8174 = vpack.c.bf16 %v8158, %v8158
        %v8175 = vpack.c.bf16 %v8159, %v8159
        %v8176 = vpack.c.bf16 %v8160, %v8160
        %v8177 = vpack.c.bf16 %v8161, %v8161
        %v8178 = vpack.c.bf16 %v8162, %v8162
        %v8179 = vpack.c.bf16 %v8163, %v8163
        %v8180 = vpack.c.bf16 %v8164, %v8164
        %v8181 = vpack.c.bf16 %v8165, %v8165
        %v8182 = vpack.c.bf16 %v8166, %v8166
        %v8183 = vpack.c.bf16 %v8167, %v8167
        %v8184 = vpack.c.bf16 %v8168, %v8168
        %v8185 = vpack.c.bf16 %v8169, %v8169
        %v8186 = vpack.c.bf16 %v8170, %v8170
        %v8187 = vpack.c.bf16 %v8171, %v8171
        %8188 = vrot.lane.b32.xlu0 %v1270, 80
        %v8189 = vpop.permute.xlu0 %8188
        %8190 = vrot.lane.b32.xlu0 %v1271, 80
        %v8191 = vpop.permute.xlu0 %8190
        %8192 = vrot.lane.b32.xlu0 %v1272, 80
        %v8193 = vpop.permute.xlu0 %8192
        %8194 = vrot.lane.b32.xlu0 %v1273, 80
        %v8195 = vpop.permute.xlu0 %8194
        %8196 = vrot.lane.b32.xlu0 %v1274, 80
        %v8197 = vpop.permute.xlu0 %8196
        %8198 = vrot.lane.b32.xlu0 %v1275, 80
        %v8199 = vpop.permute.xlu0 %8198
        %8200 = vrot.lane.b32.xlu0 %v1276, 80
        %v8201 = vpop.permute.xlu0 %8200
        %8202 = vrot.lane.b32.xlu0 %v1277, 80
        %v8203 = vpop.permute.xlu0 %8202
        %8204 = vrot.lane.b32.xlu0 %v1278, 80
        %v8205 = vpop.permute.xlu0 %8204
        %8206 = vrot.lane.b32.xlu0 %v1279, 80
        %v8207 = vpop.permute.xlu0 %8206
        %8208 = vrot.lane.b32.xlu0 %v1280, 80
        %v8209 = vpop.permute.xlu0 %8208
        %8210 = vrot.lane.b32.xlu0 %v1281, 80
        %v8211 = vpop.permute.xlu0 %8210
        %8212 = vrot.lane.b32.xlu0 %v1282, 80
        %v8213 = vpop.permute.xlu0 %8212
        %8214 = vrot.lane.b32.xlu0 %v1283, 80
        %v8215 = vpop.permute.xlu0 %8214
        %8216 = vrot.lane.b32.xlu0 %v1284, 80
        %v8217 = vpop.permute.xlu0 %8216
        %8218 = vrot.lane.b32.xlu0 %v1285, 80
        %v8219 = vpop.permute.xlu0 %8218
        %8220 = vrot.lane.b32.xlu0 %v1286, 96
        %v8221 = vpop.permute.xlu0 %8220
        %8222 = vrot.lane.b32.xlu0 %v1287, 96
        %v8223 = vpop.permute.xlu0 %8222
        %8224 = vrot.lane.b32.xlu0 %v1288, 96
        %v8225 = vpop.permute.xlu0 %8224
        %8226 = vrot.lane.b32.xlu0 %v1289, 96
        %v8227 = vpop.permute.xlu0 %8226
        %8228 = vrot.lane.b32.xlu0 %v1290, 96
        %v8229 = vpop.permute.xlu0 %8228
        %8230 = vrot.lane.b32.xlu0 %v1291, 96
        %v8231 = vpop.permute.xlu0 %8230
        %8232 = vrot.lane.b32.xlu0 %v1292, 96
        %v8233 = vpop.permute.xlu0 %8232
        %8234 = vrot.lane.b32.xlu0 %v1293, 96
        %v8235 = vpop.permute.xlu0 %8234
        %8236 = vrot.lane.b32.xlu0 %v1294, 96
        %v8237 = vpop.permute.xlu0 %8236
        %8238 = vrot.lane.b32.xlu0 %v1295, 96
        %v8239 = vpop.permute.xlu0 %8238
        %8240 = vrot.lane.b32.xlu0 %v1296, 96
        %v8241 = vpop.permute.xlu0 %8240
        %8242 = vrot.lane.b32.xlu0 %v1297, 96
        %v8243 = vpop.permute.xlu0 %8242
        %8244 = vrot.lane.b32.xlu0 %v1298, 96
        %v8245 = vpop.permute.xlu0 %8244
        %8246 = vrot.lane.b32.xlu0 %v1299, 96
        %v8247 = vpop.permute.xlu0 %8246
        %8248 = vrot.lane.b32.xlu0 %v1300, 96
        %v8249 = vpop.permute.xlu0 %8248
        %8250 = vrot.lane.b32.xlu0 %v1301, 96
        %v8251 = vpop.permute.xlu0 %8250
        %v8254 = vsel %vm1305, %v8189, %v8221
        %v8257 = vsel %vm1305, %v8191, %v8223
        %v8260 = vsel %vm1305, %v8193, %v8225
        %v8263 = vsel %vm1305, %v8195, %v8227
        %v8266 = vsel %vm1305, %v8197, %v8229
        %v8269 = vsel %vm1305, %v8199, %v8231
        %v8272 = vsel %vm1305, %v8201, %v8233
        %v8275 = vsel %vm1305, %v8203, %v8235
        %v8278 = vsel %vm1305, %v8205, %v8237
        %v8281 = vsel %vm1305, %v8207, %v8239
        %v8284 = vsel %vm1305, %v8209, %v8241
        %v8287 = vsel %vm1305, %v8211, %v8243
        %v8290 = vsel %vm1305, %v8213, %v8245
        %v8293 = vsel %vm1305, %v8215, %v8247
        %v8296 = vsel %vm1305, %v8217, %v8249
        %v8299 = vsel %vm1305, %v8219, %v8251
        %v8301 = vsel %vm2087, %v8172, 0
        %v8303 = vsel %vm2379, %v8254, 0
        %8305 = vmatprep.subr.bf16.mxu0 0
        %8306 = vmatpush1.bf16.msra.mxu0 %v8303
        %8307 = vmatprep.subr.bf16.mxu0 0
        %8308 = vmatpush1.bf16.msra.mxu0 0
        %8309 = vmatprep.subr.bf16.mxu0 0
        %8310 = vmatpush1.bf16.msra.mxu0 0
        %8311 = vmatprep.subr.bf16.mxu0 0
        %8312 = vmatpush1.bf16.msra.mxu0 0
        %8313 = vmatprep.subr.bf16.mxu0 0
        %8314 = vmatpush1.bf16.msra.mxu0 0
        %8315 = vmatprep.subr.bf16.mxu0 0
        %8316 = vmatpush1.bf16.msra.mxu0 0
        %8317 = vmatprep.subr.bf16.mxu0 0
        %8318 = vmatpush1.bf16.msra.mxu0 0
        %8319 = vmatprep.subr.bf16.mxu0 0
        %8320 = vmatpush1.bf16.msra.mxu0 0
        %8321 = vmatprep.subr.bf16.mxu0 0
        %8322 = vmatpush1.bf16.msra.mxu0 0
        %8323 = vmatprep.subr.bf16.mxu0 0
        %8324 = vmatpush1.bf16.msra.mxu0 0
        %8325 = vmatprep.subr.bf16.mxu0 0
        %8326 = vmatpush1.bf16.msra.mxu0 0
        %8327 = vmatprep.subr.bf16.mxu0 0
        %8328 = vmatpush1.bf16.msra.mxu0 0
        %8329 = vmatprep.subr.bf16.mxu0 0
        %8330 = vmatpush1.bf16.msra.mxu0 0
        %8331 = vmatprep.subr.bf16.mxu0 0
        %8332 = vmatpush1.bf16.msra.mxu0 0
        %8333 = vmatprep.subr.bf16.mxu0 0
        %8334 = vmatpush1.bf16.msra.mxu0 0
        %8335 = vmatprep.subr.bf16.mxu0 0
        %8336 = vmatpush1.bf16.msra.mxu0 0
        %8337 = vmatprep.mubr.bf16.mxu0 0
        %8338 = vmatmul.mubr.bf16.gmra.mrb[0].mxu0 %v8301
        %v8339 = vpop.f32.mrb[0].mxu0
        %v8340 = vadd.f32 0.0, %v8339
        %v8341 = vpop.f32.mrb[0].mxu0
        %v8342 = vpop.f32.mrb[0].mxu0
        %v8343 = vpop.f32.mrb[0].mxu0
        %8344 = vdwg.mxu0
        %v8346 = vsel %vm2087, %v8173, 0
        %v8348 = vsel %vm2379, %v8257, 0
        %8350 = vmatprep.subr.bf16.mxu0 0
        %8351 = vmatpush1.bf16.msra.mxu0 %v8348
        %8352 = vmatprep.subr.bf16.mxu0 0
        %8353 = vmatpush1.bf16.msra.mxu0 0
        %8354 = vmatprep.subr.bf16.mxu0 0
        %8355 = vmatpush1.bf16.msra.mxu0 0
        %8356 = vmatprep.subr.bf16.mxu0 0
        %8357 = vmatpush1.bf16.msra.mxu0 0
        %8358 = vmatprep.subr.bf16.mxu0 0
        %8359 = vmatpush1.bf16.msra.mxu0 0
        %8360 = vmatprep.subr.bf16.mxu0 0
        %8361 = vmatpush1.bf16.msra.mxu0 0
        %8362 = vmatprep.subr.bf16.mxu0 0
        %8363 = vmatpush1.bf16.msra.mxu0 0
        %8364 = vmatprep.subr.bf16.mxu0 0
        %8365 = vmatpush1.bf16.msra.mxu0 0
        %8366 = vmatprep.subr.bf16.mxu0 0
        %8367 = vmatpush1.bf16.msra.mxu0 0
        %8368 = vmatprep.subr.bf16.mxu0 0
        %8369 = vmatpush1.bf16.msra.mxu0 0
        %8370 = vmatprep.subr.bf16.mxu0 0
        %8371 = vmatpush1.bf16.msra.mxu0 0
        %8372 = vmatprep.subr.bf16.mxu0 0
        %8373 = vmatpush1.bf16.msra.mxu0 0
        %8374 = vmatprep.subr.bf16.mxu0 0
        %8375 = vmatpush1.bf16.msra.mxu0 0
        %8376 = vmatprep.subr.bf16.mxu0 0
        %8377 = vmatpush1.bf16.msra.mxu0 0
        %8378 = vmatprep.subr.bf16.mxu0 0
        %8379 = vmatpush1.bf16.msra.mxu0 0
        %8380 = vmatprep.subr.bf16.mxu0 0
        %8381 = vmatpush1.bf16.msra.mxu0 0
        %8382 = vmatprep.mubr.bf16.mxu0 0
        %8383 = vmatmul.mubr.bf16.gmra.mrb[0].mxu0 %v8346
        %v8384 = vpop.f32.mrb[0].mxu0
        %v8385 = vadd.f32 0.0, %v8384
        %v8386 = vpop.f32.mrb[0].mxu0
        %v8387 = vpop.f32.mrb[0].mxu0
        %v8388 = vpop.f32.mrb[0].mxu0
        %8389 = vdwg.mxu0
        %v8391 = vsel %vm2087, %v8174, 0
        %v8393 = vsel %vm2379, %v8260, 0
        %8395 = vmatprep.subr.bf16.mxu0 0
        %8396 = vmatpush1.bf16.msra.mxu0 %v8393
        %8397 = vmatprep.subr.bf16.mxu0 0
        %8398 = vmatpush1.bf16.msra.mxu0 0
        %8399 = vmatprep.subr.bf16.mxu0 0
        %8400 = vmatpush1.bf16.msra.mxu0 0
        %8401 = vmatprep.subr.bf16.mxu0 0
        %8402 = vmatpush1.bf16.msra.mxu0 0
        %8403 = vmatprep.subr.bf16.mxu0 0
        %8404 = vmatpush1.bf16.msra.mxu0 0
        %8405 = vmatprep.subr.bf16.mxu0 0
        %8406 = vmatpush1.bf16.msra.mxu0 0
        %8407 = vmatprep.subr.bf16.mxu0 0
        %8408 = vmatpush1.bf16.msra.mxu0 0
        %8409 = vmatprep.subr.bf16.mxu0 0
        %8410 = vmatpush1.bf16.msra.mxu0 0
        %8411 = vmatprep.subr.bf16.mxu0 0
        %8412 = vmatpush1.bf16.msra.mxu0 0
        %8413 = vmatprep.subr.bf16.mxu0 0
        %8414 = vmatpush1.bf16.msra.mxu0 0
        %8415 = vmatprep.subr.bf16.mxu0 0
        %8416 = vmatpush1.bf16.msra.mxu0 0
        %8417 = vmatprep.subr.bf16.mxu0 0
        %8418 = vmatpush1.bf16.msra.mxu0 0
        %8419 = vmatprep.subr.bf16.mxu0 0
        %8420 = vmatpush1.bf16.msra.mxu0 0
        %8421 = vmatprep.subr.bf16.mxu0 0
        %8422 = vmatpush1.bf16.msra.mxu0 0
        %8423 = vmatprep.subr.bf16.mxu0 0
        %8424 = vmatpush1.bf16.msra.mxu0 0
        %8425 = vmatprep.subr.bf16.mxu0 0
        %8426 = vmatpush1.bf16.msra.mxu0 0
        %8427 = vmatprep.mubr.bf16.mxu0 0
        %8428 = vmatmul.mubr.bf16.gmra.mrb[0].mxu0 %v8391
        %v8429 = vpop.f32.mrb[0].mxu0
        %v8430 = vadd.f32 0.0, %v8429
        %v8431 = vpop.f32.mrb[0].mxu0
        %v8432 = vpop.f32.mrb[0].mxu0
        %v8433 = vpop.f32.mrb[0].mxu0
        %8434 = vdwg.mxu0
        %v8436 = vsel %vm2087, %v8175, 0
        %v8438 = vsel %vm2379, %v8263, 0
        %8440 = vmatprep.subr.bf16.mxu0 0
        %8441 = vmatpush1.bf16.msra.mxu0 %v8438
        %8442 = vmatprep.subr.bf16.mxu0 0
        %8443 = vmatpush1.bf16.msra.mxu0 0
        %8444 = vmatprep.subr.bf16.mxu0 0
        %8445 = vmatpush1.bf16.msra.mxu0 0
        %8446 = vmatprep.subr.bf16.mxu0 0
        %8447 = vmatpush1.bf16.msra.mxu0 0
        %8448 = vmatprep.subr.bf16.mxu0 0
        %8449 = vmatpush1.bf16.msra.mxu0 0
        %8450 = vmatprep.subr.bf16.mxu0 0
        %8451 = vmatpush1.bf16.msra.mxu0 0
        %8452 = vmatprep.subr.bf16.mxu0 0
        %8453 = vmatpush1.bf16.msra.mxu0 0
        %8454 = vmatprep.subr.bf16.mxu0 0
        %8455 = vmatpush1.bf16.msra.mxu0 0
        %8456 = vmatprep.subr.bf16.mxu0 0
        %8457 = vmatpush1.bf16.msra.mxu0 0
        %8458 = vmatprep.subr.bf16.mxu0 0
        %8459 = vmatpush1.bf16.msra.mxu0 0
        %8460 = vmatprep.subr.bf16.mxu0 0
        %8461 = vmatpush1.bf16.msra.mxu0 0
        %8462 = vmatprep.subr.bf16.mxu0 0
        %8463 = vmatpush1.bf16.msra.mxu0 0
        %8464 = vmatprep.subr.bf16.mxu0 0
        %8465 = vmatpush1.bf16.msra.mxu0 0
        %8466 = vmatprep.subr.bf16.mxu0 0
        %8467 = vmatpush1.bf16.msra.mxu0 0
        %8468 = vmatprep.subr.bf16.mxu0 0
        %8469 = vmatpush1.bf16.msra.mxu0 0
        %8470 = vmatprep.subr.bf16.mxu0 0
        %8471 = vmatpush1.bf16.msra.mxu0 0
        %8472 = vmatprep.mubr.bf16.mxu0 0
        %8473 = vmatmul.mubr.bf16.gmra.mrb[0].mxu0 %v8436
        %v8474 = vpop.f32.mrb[0].mxu0
        %v8475 = vadd.f32 0.0, %v8474
        %v8476 = vpop.f32.mrb[0].mxu0
        %v8477 = vpop.f32.mrb[0].mxu0
        %v8478 = vpop.f32.mrb[0].mxu0
        %8479 = vdwg.mxu0
        %v8481 = vsel %vm2087, %v8176, 0
        %v8483 = vsel %vm2379, %v8266, 0
        %8485 = vmatprep.subr.bf16.mxu0 0
        %8486 = vmatpush1.bf16.msra.mxu0 %v8483
        %8487 = vmatprep.subr.bf16.mxu0 0
        %8488 = vmatpush1.bf16.msra.mxu0 0
        %8489 = vmatprep.subr.bf16.mxu0 0
        %8490 = vmatpush1.bf16.msra.mxu0 0
        %8491 = vmatprep.subr.bf16.mxu0 0
        %8492 = vmatpush1.bf16.msra.mxu0 0
        %8493 = vmatprep.subr.bf16.mxu0 0
        %8494 = vmatpush1.bf16.msra.mxu0 0
        %8495 = vmatprep.subr.bf16.mxu0 0
        %8496 = vmatpush1.bf16.msra.mxu0 0
        %8497 = vmatprep.subr.bf16.mxu0 0
        %8498 = vmatpush1.bf16.msra.mxu0 0
        %8499 = vmatprep.subr.bf16.mxu0 0
        %8500 = vmatpush1.bf16.msra.mxu0 0
        %8501 = vmatprep.subr.bf16.mxu0 0
        %8502 = vmatpush1.bf16.msra.mxu0 0
        %8503 = vmatprep.subr.bf16.mxu0 0
        %8504 = vmatpush1.bf16.msra.mxu0 0
        %8505 = vmatprep.subr.bf16.mxu0 0
        %8506 = vmatpush1.bf16.msra.mxu0 0
        %8507 = vmatprep.subr.bf16.mxu0 0
        %8508 = vmatpush1.bf16.msra.mxu0 0
        %8509 = vmatprep.subr.bf16.mxu0 0
        %8510 = vmatpush1.bf16.msra.mxu0 0
        %8511 = vmatprep.subr.bf16.mxu0 0
        %8512 = vmatpush1.bf16.msra.mxu0 0
        %8513 = vmatprep.subr.bf16.mxu0 0
        %8514 = vmatpush1.bf16.msra.mxu0 0
        %8515 = vmatprep.subr.bf16.mxu0 0
        %8516 = vmatpush1.bf16.msra.mxu0 0
        %8517 = vmatprep.mubr.bf16.mxu0 0
        %8518 = vmatmul.mubr.bf16.gmra.mrb[0].mxu0 %v8481
        %v8519 = vpop.f32.mrb[0].mxu0
        %v8520 = vadd.f32 0.0, %v8519
        %v8521 = vpop.f32.mrb[0].mxu0
        %v8522 = vpop.f32.mrb[0].mxu0
        %v8523 = vpop.f32.mrb[0].mxu0
        %8524 = vdwg.mxu0
        %v8526 = vsel %vm2087, %v8177, 0
        %v8528 = vsel %vm2379, %v8269, 0
        %8530 = vmatprep.subr.bf16.mxu0 0
        %8531 = vmatpush1.bf16.msra.mxu0 %v8528
        %8532 = vmatprep.subr.bf16.mxu0 0
        %8533 = vmatpush1.bf16.msra.mxu0 0
        %8534 = vmatprep.subr.bf16.mxu0 0
        %8535 = vmatpush1.bf16.msra.mxu0 0
        %8536 = vmatprep.subr.bf16.mxu0 0
        %8537 = vmatpush1.bf16.msra.mxu0 0
        %8538 = vmatprep.subr.bf16.mxu0 0
        %8539 = vmatpush1.bf16.msra.mxu0 0
        %8540 = vmatprep.subr.bf16.mxu0 0
        %8541 = vmatpush1.bf16.msra.mxu0 0
        %8542 = vmatprep.subr.bf16.mxu0 0
        %8543 = vmatpush1.bf16.msra.mxu0 0
        %8544 = vmatprep.subr.bf16.mxu0 0
        %8545 = vmatpush1.bf16.msra.mxu0 0
        %8546 = vmatprep.subr.bf16.mxu0 0
        %8547 = vmatpush1.bf16.msra.mxu0 0
        %8548 = vmatprep.subr.bf16.mxu0 0
        %8549 = vmatpush1.bf16.msra.mxu0 0
        %8550 = vmatprep.subr.bf16.mxu0 0
        %8551 = vmatpush1.bf16.msra.mxu0 0
        %8552 = vmatprep.subr.bf16.mxu0 0
        %8553 = vmatpush1.bf16.msra.mxu0 0
        %8554 = vmatprep.subr.bf16.mxu0 0
        %8555 = vmatpush1.bf16.msra.mxu0 0
        %8556 = vmatprep.subr.bf16.mxu0 0
        %8557 = vmatpush1.bf16.msra.mxu0 0
        %8558 = vmatprep.subr.bf16.mxu0 0
        %8559 = vmatpush1.bf16.msra.mxu0 0
        %8560 = vmatprep.subr.bf16.mxu0 0
        %8561 = vmatpush1.bf16.msra.mxu0 0
        %8562 = vmatprep.mubr.bf16.mxu0 0
        %8563 = vmatmul.mubr.bf16.gmra.mrb[0].mxu0 %v8526
        %v8564 = vpop.f32.mrb[0].mxu0
        %v8565 = vadd.f32 0.0, %v8564
        %v8566 = vpop.f32.mrb[0].mxu0
        %v8567 = vpop.f32.mrb[0].mxu0
        %v8568 = vpop.f32.mrb[0].mxu0
        %8569 = vdwg.mxu0
        %v8571 = vsel %vm2087, %v8178, 0
        %v8573 = vsel %vm2379, %v8272, 0
        %8575 = vmatprep.subr.bf16.mxu0 0
        %8576 = vmatpush1.bf16.msra.mxu0 %v8573
        %8577 = vmatprep.subr.bf16.mxu0 0
        %8578 = vmatpush1.bf16.msra.mxu0 0
        %8579 = vmatprep.subr.bf16.mxu0 0
        %8580 = vmatpush1.bf16.msra.mxu0 0
        %8581 = vmatprep.subr.bf16.mxu0 0
        %8582 = vmatpush1.bf16.msra.mxu0 0
        %8583 = vmatprep.subr.bf16.mxu0 0
        %8584 = vmatpush1.bf16.msra.mxu0 0
        %8585 = vmatprep.subr.bf16.mxu0 0
        %8586 = vmatpush1.bf16.msra.mxu0 0
        %8587 = vmatprep.subr.bf16.mxu0 0
        %8588 = vmatpush1.bf16.msra.mxu0 0
        %8589 = vmatprep.subr.bf16.mxu0 0
        %8590 = vmatpush1.bf16.msra.mxu0 0
        %8591 = vmatprep.subr.bf16.mxu0 0
        %8592 = vmatpush1.bf16.msra.mxu0 0
        %8593 = vmatprep.subr.bf16.mxu0 0
        %8594 = vmatpush1.bf16.msra.mxu0 0
        %8595 = vmatprep.subr.bf16.mxu0 0
        %8596 = vmatpush1.bf16.msra.mxu0 0
        %8597 = vmatprep.subr.bf16.mxu0 0
        %8598 = vmatpush1.bf16.msra.mxu0 0
        %8599 = vmatprep.subr.bf16.mxu0 0
        %8600 = vmatpush1.bf16.msra.mxu0 0
        %8601 = vmatprep.subr.bf16.mxu0 0
        %8602 = vmatpush1.bf16.msra.mxu0 0
        %8603 = vmatprep.subr.bf16.mxu0 0
        %8604 = vmatpush1.bf16.msra.mxu0 0
        %8605 = vmatprep.subr.bf16.mxu0 0
        %8606 = vmatpush1.bf16.msra.mxu0 0
        %8607 = vmatprep.mubr.bf16.mxu0 0
        %8608 = vmatmul.mubr.bf16.gmra.mrb[0].mxu0 %v8571
        %v8609 = vpop.f32.mrb[0].mxu0
        %v8610 = vadd.f32 0.0, %v8609
        %v8611 = vpop.f32.mrb[0].mxu0
        %v8612 = vpop.f32.mrb[0].mxu0
        %v8613 = vpop.f32.mrb[0].mxu0
        %8614 = vdwg.mxu0
        %v8616 = vsel %vm2087, %v8179, 0
        %v8618 = vsel %vm2379, %v8275, 0
        %8620 = vmatprep.subr.bf16.mxu0 0
        %8621 = vmatpush1.bf16.msra.mxu0 %v8618
        %8622 = vmatprep.subr.bf16.mxu0 0
        %8623 = vmatpush1.bf16.msra.mxu0 0
        %8624 = vmatprep.subr.bf16.mxu0 0
        %8625 = vmatpush1.bf16.msra.mxu0 0
        %8626 = vmatprep.subr.bf16.mxu0 0
        %8627 = vmatpush1.bf16.msra.mxu0 0
        %8628 = vmatprep.subr.bf16.mxu0 0
        %8629 = vmatpush1.bf16.msra.mxu0 0
        %8630 = vmatprep.subr.bf16.mxu0 0
        %8631 = vmatpush1.bf16.msra.mxu0 0
        %8632 = vmatprep.subr.bf16.mxu0 0
        %8633 = vmatpush1.bf16.msra.mxu0 0
        %8634 = vmatprep.subr.bf16.mxu0 0
        %8635 = vmatpush1.bf16.msra.mxu0 0
        %8636 = vmatprep.subr.bf16.mxu0 0
        %8637 = vmatpush1.bf16.msra.mxu0 0
        %8638 = vmatprep.subr.bf16.mxu0 0
        %8639 = vmatpush1.bf16.msra.mxu0 0
        %8640 = vmatprep.subr.bf16.mxu0 0
        %8641 = vmatpush1.bf16.msra.mxu0 0
        %8642 = vmatprep.subr.bf16.mxu0 0
        %8643 = vmatpush1.bf16.msra.mxu0 0
        %8644 = vmatprep.subr.bf16.mxu0 0
        %8645 = vmatpush1.bf16.msra.mxu0 0
        %8646 = vmatprep.subr.bf16.mxu0 0
        %8647 = vmatpush1.bf16.msra.mxu0 0
        %8648 = vmatprep.subr.bf16.mxu0 0
        %8649 = vmatpush1.bf16.msra.mxu0 0
        %8650 = vmatprep.subr.bf16.mxu0 0
        %8651 = vmatpush1.bf16.msra.mxu0 0
        %8652 = vmatprep.mubr.bf16.mxu0 0
        %8653 = vmatmul.mubr.bf16.gmra.mrb[0].mxu0 %v8616
        %v8654 = vpop.f32.mrb[0].mxu0
        %v8655 = vadd.f32 0.0, %v8654
        %v8656 = vpop.f32.mrb[0].mxu0
        %v8657 = vpop.f32.mrb[0].mxu0
        %v8658 = vpop.f32.mrb[0].mxu0
        %8659 = vdwg.mxu0
        %v8661 = vsel %vm2087, %v8180, 0
        %v8663 = vsel %vm2379, %v8278, 0
        %8665 = vmatprep.subr.bf16.mxu0 0
        %8666 = vmatpush1.bf16.msra.mxu0 %v8663
        %8667 = vmatprep.subr.bf16.mxu0 0
        %8668 = vmatpush1.bf16.msra.mxu0 0
        %8669 = vmatprep.subr.bf16.mxu0 0
        %8670 = vmatpush1.bf16.msra.mxu0 0
        %8671 = vmatprep.subr.bf16.mxu0 0
        %8672 = vmatpush1.bf16.msra.mxu0 0
        %8673 = vmatprep.subr.bf16.mxu0 0
        %8674 = vmatpush1.bf16.msra.mxu0 0
        %8675 = vmatprep.subr.bf16.mxu0 0
        %8676 = vmatpush1.bf16.msra.mxu0 0
        %8677 = vmatprep.subr.bf16.mxu0 0
        %8678 = vmatpush1.bf16.msra.mxu0 0
        %8679 = vmatprep.subr.bf16.mxu0 0
        %8680 = vmatpush1.bf16.msra.mxu0 0
        %8681 = vmatprep.subr.bf16.mxu0 0
        %8682 = vmatpush1.bf16.msra.mxu0 0
        %8683 = vmatprep.subr.bf16.mxu0 0
        %8684 = vmatpush1.bf16.msra.mxu0 0
        %8685 = vmatprep.subr.bf16.mxu0 0
        %8686 = vmatpush1.bf16.msra.mxu0 0
        %8687 = vmatprep.subr.bf16.mxu0 0
        %8688 = vmatpush1.bf16.msra.mxu0 0
        %8689 = vmatprep.subr.bf16.mxu0 0
        %8690 = vmatpush1.bf16.msra.mxu0 0
        %8691 = vmatprep.subr.bf16.mxu0 0
        %8692 = vmatpush1.bf16.msra.mxu0 0
        %8693 = vmatprep.subr.bf16.mxu0 0
        %8694 = vmatpush1.bf16.msra.mxu0 0
        %8695 = vmatprep.subr.bf16.mxu0 0
        %8696 = vmatpush1.bf16.msra.mxu0 0
        %8697 = vmatprep.mubr.bf16.mxu0 0
        %8698 = vmatmul.mubr.bf16.gmra.mrb[0].mxu0 %v8661
        %v8699 = vpop.f32.mrb[0].mxu0
        %v8700 = vadd.f32 0.0, %v8699
        %v8701 = vpop.f32.mrb[0].mxu0
        %v8702 = vpop.f32.mrb[0].mxu0
        %v8703 = vpop.f32.mrb[0].mxu0
        %8704 = vdwg.mxu0
        %v8706 = vsel %vm2087, %v8181, 0
        %v8708 = vsel %vm2379, %v8281, 0
        %8710 = vmatprep.subr.bf16.mxu0 0
        %8711 = vmatpush1.bf16.msra.mxu0 %v8708
        %8712 = vmatprep.subr.bf16.mxu0 0
        %8713 = vmatpush1.bf16.msra.mxu0 0
        %8714 = vmatprep.subr.bf16.mxu0 0
        %8715 = vmatpush1.bf16.msra.mxu0 0
        %8716 = vmatprep.subr.bf16.mxu0 0
        %8717 = vmatpush1.bf16.msra.mxu0 0
        %8718 = vmatprep.subr.bf16.mxu0 0
        %8719 = vmatpush1.bf16.msra.mxu0 0
        %8720 = vmatprep.subr.bf16.mxu0 0
        %8721 = vmatpush1.bf16.msra.mxu0 0
        %8722 = vmatprep.subr.bf16.mxu0 0
        %8723 = vmatpush1.bf16.msra.mxu0 0
        %8724 = vmatprep.subr.bf16.mxu0 0
        %8725 = vmatpush1.bf16.msra.mxu0 0
        %8726 = vmatprep.subr.bf16.mxu0 0
        %8727 = vmatpush1.bf16.msra.mxu0 0
        %8728 = vmatprep.subr.bf16.mxu0 0
        %8729 = vmatpush1.bf16.msra.mxu0 0
        %8730 = vmatprep.subr.bf16.mxu0 0
        %8731 = vmatpush1.bf16.msra.mxu0 0
        %8732 = vmatprep.subr.bf16.mxu0 0
        %8733 = vmatpush1.bf16.msra.mxu0 0
        %8734 = vmatprep.subr.bf16.mxu0 0
        %8735 = vmatpush1.bf16.msra.mxu0 0
        %8736 = vmatprep.subr.bf16.mxu0 0
        %8737 = vmatpush1.bf16.msra.mxu0 0
        %8738 = vmatprep.subr.bf16.mxu0 0
        %8739 = vmatpush1.bf16.msra.mxu0 0
        %8740 = vmatprep.subr.bf16.mxu0 0
        %8741 = vmatpush1.bf16.msra.mxu0 0
        %8742 = vmatprep.mubr.bf16.mxu0 0
        %8743 = vmatmul.mubr.bf16.gmra.mrb[0].mxu0 %v8706
        %v8744 = vpop.f32.mrb[0].mxu0
        %v8745 = vadd.f32 0.0, %v8744
        %v8746 = vpop.f32.mrb[0].mxu0
        %v8747 = vpop.f32.mrb[0].mxu0
        %v8748 = vpop.f32.mrb[0].mxu0
        %8749 = vdwg.mxu0
        %v8751 = vsel %vm2087, %v8182, 0
        %v8753 = vsel %vm2379, %v8284, 0
        %8755 = vmatprep.subr.bf16.mxu0 0
        %8756 = vmatpush1.bf16.msra.mxu0 %v8753
        %8757 = vmatprep.subr.bf16.mxu0 0
        %8758 = vmatpush1.bf16.msra.mxu0 0
        %8759 = vmatprep.subr.bf16.mxu0 0
        %8760 = vmatpush1.bf16.msra.mxu0 0
        %8761 = vmatprep.subr.bf16.mxu0 0
        %8762 = vmatpush1.bf16.msra.mxu0 0
        %8763 = vmatprep.subr.bf16.mxu0 0
        %8764 = vmatpush1.bf16.msra.mxu0 0
        %8765 = vmatprep.subr.bf16.mxu0 0
        %8766 = vmatpush1.bf16.msra.mxu0 0
        %8767 = vmatprep.subr.bf16.mxu0 0
        %8768 = vmatpush1.bf16.msra.mxu0 0
        %8769 = vmatprep.subr.bf16.mxu0 0
        %8770 = vmatpush1.bf16.msra.mxu0 0
        %8771 = vmatprep.subr.bf16.mxu0 0
        %8772 = vmatpush1.bf16.msra.mxu0 0
        %8773 = vmatprep.subr.bf16.mxu0 0
        %8774 = vmatpush1.bf16.msra.mxu0 0
        %8775 = vmatprep.subr.bf16.mxu0 0
        %8776 = vmatpush1.bf16.msra.mxu0 0
        %8777 = vmatprep.subr.bf16.mxu0 0
        %8778 = vmatpush1.bf16.msra.mxu0 0
        %8779 = vmatprep.subr.bf16.mxu0 0
        %8780 = vmatpush1.bf16.msra.mxu0 0
        %8781 = vmatprep.subr.bf16.mxu0 0
        %8782 = vmatpush1.bf16.msra.mxu0 0
        %8783 = vmatprep.subr.bf16.mxu0 0
        %8784 = vmatpush1.bf16.msra.mxu0 0
        %8785 = vmatprep.subr.bf16.mxu0 0
        %8786 = vmatpush1.bf16.msra.mxu0 0
        %8787 = vmatprep.mubr.bf16.mxu0 0
        %8788 = vmatmul.mubr.bf16.gmra.mrb[0].mxu0 %v8751
        %v8789 = vpop.f32.mrb[0].mxu0
        %v8790 = vadd.f32 0.0, %v8789
        %v8791 = vpop.f32.mrb[0].mxu0
        %v8792 = vpop.f32.mrb[0].mxu0
        %v8793 = vpop.f32.mrb[0].mxu0
        %8794 = vdwg.mxu0
        %v8796 = vsel %vm2087, %v8183, 0
        %v8798 = vsel %vm2379, %v8287, 0
        %8800 = vmatprep.subr.bf16.mxu0 0
        %8801 = vmatpush1.bf16.msra.mxu0 %v8798
        %8802 = vmatprep.subr.bf16.mxu0 0
        %8803 = vmatpush1.bf16.msra.mxu0 0
        %8804 = vmatprep.subr.bf16.mxu0 0
        %8805 = vmatpush1.bf16.msra.mxu0 0
        %8806 = vmatprep.subr.bf16.mxu0 0
        %8807 = vmatpush1.bf16.msra.mxu0 0
        %8808 = vmatprep.subr.bf16.mxu0 0
        %8809 = vmatpush1.bf16.msra.mxu0 0
        %8810 = vmatprep.subr.bf16.mxu0 0
        %8811 = vmatpush1.bf16.msra.mxu0 0
        %8812 = vmatprep.subr.bf16.mxu0 0
        %8813 = vmatpush1.bf16.msra.mxu0 0
        %8814 = vmatprep.subr.bf16.mxu0 0
        %8815 = vmatpush1.bf16.msra.mxu0 0
        %8816 = vmatprep.subr.bf16.mxu0 0
        %8817 = vmatpush1.bf16.msra.mxu0 0
        %8818 = vmatprep.subr.bf16.mxu0 0
        %8819 = vmatpush1.bf16.msra.mxu0 0
        %8820 = vmatprep.subr.bf16.mxu0 0
        %8821 = vmatpush1.bf16.msra.mxu0 0
        %8822 = vmatprep.subr.bf16.mxu0 0
        %8823 = vmatpush1.bf16.msra.mxu0 0
        %8824 = vmatprep.subr.bf16.mxu0 0
        %8825 = vmatpush1.bf16.msra.mxu0 0
        %8826 = vmatprep.subr.bf16.mxu0 0
        %8827 = vmatpush1.bf16.msra.mxu0 0
        %8828 = vmatprep.subr.bf16.mxu0 0
        %8829 = vmatpush1.bf16.msra.mxu0 0
        %8830 = vmatprep.subr.bf16.mxu0 0
        %8831 = vmatpush1.bf16.msra.mxu0 0
        %8832 = vmatprep.mubr.bf16.mxu0 0
        %8833 = vmatmul.mubr.bf16.gmra.mrb[0].mxu0 %v8796
        %v8834 = vpop.f32.mrb[0].mxu0
        %v8835 = vadd.f32 0.0, %v8834
        %v8836 = vpop.f32.mrb[0].mxu0
        %v8837 = vpop.f32.mrb[0].mxu0
        %v8838 = vpop.f32.mrb[0].mxu0
        %8839 = vdwg.mxu0
        %v8841 = vsel %vm2087, %v8184, 0
        %v8843 = vsel %vm2379, %v8290, 0
        %8845 = vmatprep.subr.bf16.mxu0 0
        %8846 = vmatpush1.bf16.msra.mxu0 %v8843
        %8847 = vmatprep.subr.bf16.mxu0 0
        %8848 = vmatpush1.bf16.msra.mxu0 0
        %8849 = vmatprep.subr.bf16.mxu0 0
        %8850 = vmatpush1.bf16.msra.mxu0 0
        %8851 = vmatprep.subr.bf16.mxu0 0
        %8852 = vmatpush1.bf16.msra.mxu0 0
        %8853 = vmatprep.subr.bf16.mxu0 0
        %8854 = vmatpush1.bf16.msra.mxu0 0
        %8855 = vmatprep.subr.bf16.mxu0 0
        %8856 = vmatpush1.bf16.msra.mxu0 0
        %8857 = vmatprep.subr.bf16.mxu0 0
        %8858 = vmatpush1.bf16.msra.mxu0 0
        %8859 = vmatprep.subr.bf16.mxu0 0
        %8860 = vmatpush1.bf16.msra.mxu0 0
        %8861 = vmatprep.subr.bf16.mxu0 0
        %8862 = vmatpush1.bf16.msra.mxu0 0
        %8863 = vmatprep.subr.bf16.mxu0 0
        %8864 = vmatpush1.bf16.msra.mxu0 0
        %8865 = vmatprep.subr.bf16.mxu0 0
        %8866 = vmatpush1.bf16.msra.mxu0 0
        %8867 = vmatprep.subr.bf16.mxu0 0
        %8868 = vmatpush1.bf16.msra.mxu0 0
        %8869 = vmatprep.subr.bf16.mxu0 0
        %8870 = vmatpush1.bf16.msra.mxu0 0
        %8871 = vmatprep.subr.bf16.mxu0 0
        %8872 = vmatpush1.bf16.msra.mxu0 0
        %8873 = vmatprep.subr.bf16.mxu0 0
        %8874 = vmatpush1.bf16.msra.mxu0 0
        %8875 = vmatprep.subr.bf16.mxu0 0
        %8876 = vmatpush1.bf16.msra.mxu0 0
        %8877 = vmatprep.mubr.bf16.mxu0 0
        %8878 = vmatmul.mubr.bf16.gmra.mrb[0].mxu0 %v8841
        %v8879 = vpop.f32.mrb[0].mxu0
        %v8880 = vadd.f32 0.0, %v8879
        %v8881 = vpop.f32.mrb[0].mxu0
        %v8882 = vpop.f32.mrb[0].mxu0
        %v8883 = vpop.f32.mrb[0].mxu0
        %8884 = vdwg.mxu0
        %v8886 = vsel %vm2087, %v8185, 0
        %v8888 = vsel %vm2379, %v8293, 0
        %8890 = vmatprep.subr.bf16.mxu0 0
        %8891 = vmatpush1.bf16.msra.mxu0 %v8888
        %8892 = vmatprep.subr.bf16.mxu0 0
        %8893 = vmatpush1.bf16.msra.mxu0 0
        %8894 = vmatprep.subr.bf16.mxu0 0
        %8895 = vmatpush1.bf16.msra.mxu0 0
        %8896 = vmatprep.subr.bf16.mxu0 0
        %8897 = vmatpush1.bf16.msra.mxu0 0
        %8898 = vmatprep.subr.bf16.mxu0 0
        %8899 = vmatpush1.bf16.msra.mxu0 0
        %8900 = vmatprep.subr.bf16.mxu0 0
        %8901 = vmatpush1.bf16.msra.mxu0 0
        %8902 = vmatprep.subr.bf16.mxu0 0
        %8903 = vmatpush1.bf16.msra.mxu0 0
        %8904 = vmatprep.subr.bf16.mxu0 0
        %8905 = vmatpush1.bf16.msra.mxu0 0
        %8906 = vmatprep.subr.bf16.mxu0 0
        %8907 = vmatpush1.bf16.msra.mxu0 0
        %8908 = vmatprep.subr.bf16.mxu0 0
        %8909 = vmatpush1.bf16.msra.mxu0 0
        %8910 = vmatprep.subr.bf16.mxu0 0
        %8911 = vmatpush1.bf16.msra.mxu0 0
        %8912 = vmatprep.subr.bf16.mxu0 0
        %8913 = vmatpush1.bf16.msra.mxu0 0
        %8914 = vmatprep.subr.bf16.mxu0 0
        %8915 = vmatpush1.bf16.msra.mxu0 0
        %8916 = vmatprep.subr.bf16.mxu0 0
        %8917 = vmatpush1.bf16.msra.mxu0 0
        %8918 = vmatprep.subr.bf16.mxu0 0
        %8919 = vmatpush1.bf16.msra.mxu0 0
        %8920 = vmatprep.subr.bf16.mxu0 0
        %8921 = vmatpush1.bf16.msra.mxu0 0
        %8922 = vmatprep.mubr.bf16.mxu0 0
        %8923 = vmatmul.mubr.bf16.gmra.mrb[0].mxu0 %v8886
        %v8924 = vpop.f32.mrb[0].mxu0
        %v8925 = vadd.f32 0.0, %v8924
        %v8926 = vpop.f32.mrb[0].mxu0
        %v8927 = vpop.f32.mrb[0].mxu0
        %v8928 = vpop.f32.mrb[0].mxu0
        %8929 = vdwg.mxu0
        %v8931 = vsel %vm2087, %v8186, 0
        %v8933 = vsel %vm2379, %v8296, 0
        %8935 = vmatprep.subr.bf16.mxu0 0
        %8936 = vmatpush1.bf16.msra.mxu0 %v8933
        %8937 = vmatprep.subr.bf16.mxu0 0
        %8938 = vmatpush1.bf16.msra.mxu0 0
        %8939 = vmatprep.subr.bf16.mxu0 0
        %8940 = vmatpush1.bf16.msra.mxu0 0
        %8941 = vmatprep.subr.bf16.mxu0 0
        %8942 = vmatpush1.bf16.msra.mxu0 0
        %8943 = vmatprep.subr.bf16.mxu0 0
        %8944 = vmatpush1.bf16.msra.mxu0 0
        %8945 = vmatprep.subr.bf16.mxu0 0
        %8946 = vmatpush1.bf16.msra.mxu0 0
        %8947 = vmatprep.subr.bf16.mxu0 0
        %8948 = vmatpush1.bf16.msra.mxu0 0
        %8949 = vmatprep.subr.bf16.mxu0 0
        %8950 = vmatpush1.bf16.msra.mxu0 0
        %8951 = vmatprep.subr.bf16.mxu0 0
        %8952 = vmatpush1.bf16.msra.mxu0 0
        %8953 = vmatprep.subr.bf16.mxu0 0
        %8954 = vmatpush1.bf16.msra.mxu0 0
        %8955 = vmatprep.subr.bf16.mxu0 0
        %8956 = vmatpush1.bf16.msra.mxu0 0
        %8957 = vmatprep.subr.bf16.mxu0 0
        %8958 = vmatpush1.bf16.msra.mxu0 0
        %8959 = vmatprep.subr.bf16.mxu0 0
        %8960 = vmatpush1.bf16.msra.mxu0 0
        %8961 = vmatprep.subr.bf16.mxu0 0
        %8962 = vmatpush1.bf16.msra.mxu0 0
        %8963 = vmatprep.subr.bf16.mxu0 0
        %8964 = vmatpush1.bf16.msra.mxu0 0
        %8965 = vmatprep.subr.bf16.mxu0 0
        %8966 = vmatpush1.bf16.msra.mxu0 0
        %8967 = vmatprep.mubr.bf16.mxu0 0
        %8968 = vmatmul.mubr.bf16.gmra.mrb[0].mxu0 %v8931
        %v8969 = vpop.f32.mrb[0].mxu0
        %v8970 = vadd.f32 0.0, %v8969
        %v8971 = vpop.f32.mrb[0].mxu0
        %v8972 = vpop.f32.mrb[0].mxu0
        %v8973 = vpop.f32.mrb[0].mxu0
        %8974 = vdwg.mxu0
        %v8976 = vsel %vm2087, %v8187, 0
        %v8978 = vsel %vm2379, %v8299, 0
        %8980 = vmatprep.subr.bf16.mxu0 0
        %8981 = vmatpush1.bf16.msra.mxu0 %v8978
        %8982 = vmatprep.subr.bf16.mxu0 0
        %8983 = vmatpush1.bf16.msra.mxu0 0
        %8984 = vmatprep.subr.bf16.mxu0 0
        %8985 = vmatpush1.bf16.msra.mxu0 0
        %8986 = vmatprep.subr.bf16.mxu0 0
        %8987 = vmatpush1.bf16.msra.mxu0 0
        %8988 = vmatprep.subr.bf16.mxu0 0
        %8989 = vmatpush1.bf16.msra.mxu0 0
        %8990 = vmatprep.subr.bf16.mxu0 0
        %8991 = vmatpush1.bf16.msra.mxu0 0
        %8992 = vmatprep.subr.bf16.mxu0 0
        %8993 = vmatpush1.bf16.msra.mxu0 0
        %8994 = vmatprep.subr.bf16.mxu0 0
        %8995 = vmatpush1.bf16.msra.mxu0 0
        %8996 = vmatprep.subr.bf16.mxu0 0
        %8997 = vmatpush1.bf16.msra.mxu0 0
        %8998 = vmatprep.subr.bf16.mxu0 0
        %8999 = vmatpush1.bf16.msra.mxu0 0
        %9000 = vmatprep.subr.bf16.mxu0 0
        %9001 = vmatpush1.bf16.msra.mxu0 0
        %9002 = vmatprep.subr.bf16.mxu0 0
        %9003 = vmatpush1.bf16.msra.mxu0 0
        %9004 = vmatprep.subr.bf16.mxu0 0
        %9005 = vmatpush1.bf16.msra.mxu0 0
        %9006 = vmatprep.subr.bf16.mxu0 0
        %9007 = vmatpush1.bf16.msra.mxu0 0
        %9008 = vmatprep.subr.bf16.mxu0 0
        %9009 = vmatpush1.bf16.msra.mxu0 0
        %9010 = vmatprep.subr.bf16.mxu0 0
        %9011 = vmatpush1.bf16.msra.mxu0 0
        %9012 = vmatprep.mubr.bf16.mxu0 0
        %9013 = vmatmul.mubr.bf16.gmra.mrb[0].mxu0 %v8976
        %v9014 = vpop.f32.mrb[0].mxu0
        %v9015 = vadd.f32 0.0, %v9014
        %v9016 = vpop.f32.mrb[0].mxu0
        %v9017 = vpop.f32.mrb[0].mxu0
        %v9018 = vpop.f32.mrb[0].mxu0
        %9019 = vdwg.mxu0
        %v9020 = vld [vmem:[%s4 + $0x30] sm:$0xf]
        %v9021 = vld [vmem:[%s4 + $0x34] sm:$0xf]
        %v9022 = vld [vmem:[%s4 + $0x38] sm:$0xf]
        %v9023 = vld [vmem:[%s4 + $0x3c] sm:$0xf]
        %v9024 = vpack.c.bf16 %v8385, %v8340
        %v9025 = vpack.c.bf16 %v8475, %v8430
        %v9026 = vpack.c.bf16 %v8565, %v8520
        %v9027 = vpack.c.bf16 %v8655, %v8610
        %v9028 = vpack.c.bf16 %v8745, %v8700
        %v9029 = vpack.c.bf16 %v8835, %v8790
        %v9030 = vpack.c.bf16 %v8925, %v8880
        %v9031 = vpack.c.bf16 %v9015, %v8970
        %v9036 = vunpack.c.l.b16 %v9020
        %v9037 = vunpack.c.l.b16 %v9021
        %v9038 = vunpack.c.l.b16 %v9022
        %v9039 = vunpack.c.l.b16 %v9023
        %v9040 = vpack.c.b16 %v9037, %v9036
        %v9041 = vpack.c.b16 %v9039, %v9038
        %v9045 = vsel %vm388, %v9024, 0
        %v9048 = vsel %vm388, %v9025, 0
        %v9051 = vsel %vm388, %v9026, 0
        %v9054 = vsel %vm388, %v9027, 0
        %v9057 = vsel %vm388, %v9028, 0
        %v9060 = vsel %vm388, %v9029, 0
        %v9063 = vsel %vm388, %v9030, 0
        %v9066 = vsel %vm388, %v9031, 0
        %9068 = vmatprep.subr.bf16.mxu0 0
        %9069 = vmatpush1.bf16.msra.mxu0 %v9040
        %9070 = vmatprep.subr.bf16.mxu0 0
        %9071 = vmatpush1.bf16.msra.mxu0 %v9041
        %9072 = vmatprep.subr.bf16.mxu0 0
        %9073 = vmatpush1.bf16.msra.mxu0 0
        %9074 = vmatprep.subr.bf16.mxu0 0
        %9075 = vmatpush1.bf16.msra.mxu0 0
        %9076 = vmatprep.subr.bf16.mxu0 0
        %9077 = vmatpush1.bf16.msra.mxu0 0
        %9078 = vmatprep.subr.bf16.mxu0 0
        %9079 = vmatpush1.bf16.msra.mxu0 0
        %9080 = vmatprep.subr.bf16.mxu0 0
        %9081 = vmatpush1.bf16.msra.mxu0 0
        %9082 = vmatprep.subr.bf16.mxu0 0
        %9083 = vmatpush1.bf16.msra.mxu0 0
        %9084 = vmatprep.subr.bf16.mxu0 0
        %9085 = vmatpush1.bf16.msra.mxu0 0
        %9086 = vmatprep.subr.bf16.mxu0 0
        %9087 = vmatpush1.bf16.msra.mxu0 0
        %9088 = vmatprep.subr.bf16.mxu0 0
        %9089 = vmatpush1.bf16.msra.mxu0 0
        %9090 = vmatprep.subr.bf16.mxu0 0
        %9091 = vmatpush1.bf16.msra.mxu0 0
        %9092 = vmatprep.subr.bf16.mxu0 0
        %9093 = vmatpush1.bf16.msra.mxu0 0
        %9094 = vmatprep.subr.bf16.mxu0 0
        %9095 = vmatpush1.bf16.msra.mxu0 0
        %9096 = vmatprep.subr.bf16.mxu0 0
        %9097 = vmatpush1.bf16.msra.mxu0 0
        %9098 = vmatprep.subr.bf16.mxu0 0
        %9099 = vmatpush1.bf16.msra.mxu0 0
        %9100 = vmatprep.mubr.bf16.mxu0 0
        %9101 = vmatmul.mubr.bf16.gmra.mrb[0].mxu0 %v9045
        %v9102 = vpop.f32.mrb[0].mxu0
        %v9103 = vadd.f32 0.0, %v9102
        %v9104 = vpop.f32.mrb[0].mxu0
        %v9105 = vpop.f32.mrb[0].mxu0
        %v9106 = vadd.f32 0.0, %v9105
        %v9107 = vpop.f32.mrb[0].mxu0
        %9108 = vmatprep.mubr.bf16.mxu0 0
        %9109 = vmatmul.mubr.bf16.gmra.mrb[0].mxu0 %v9048
        %v9110 = vpop.f32.mrb[0].mxu0
        %v9111 = vadd.f32 0.0, %v9110
        %v9112 = vpop.f32.mrb[0].mxu0
        %v9113 = vpop.f32.mrb[0].mxu0
        %v9114 = vadd.f32 0.0, %v9113
        %v9115 = vpop.f32.mrb[0].mxu0
        %9116 = vmatprep.mubr.bf16.mxu0 0
        %9117 = vmatmul.mubr.bf16.gmra.mrb[0].mxu0 %v9051
        %v9118 = vpop.f32.mrb[0].mxu0
        %v9119 = vadd.f32 0.0, %v9118
        %v9120 = vpop.f32.mrb[0].mxu0
        %v9121 = vpop.f32.mrb[0].mxu0
        %v9122 = vadd.f32 0.0, %v9121
        %v9123 = vpop.f32.mrb[0].mxu0
        %9124 = vmatprep.mubr.bf16.mxu0 0
        %9125 = vmatmul.mubr.bf16.gmra.mrb[0].mxu0 %v9054
        %v9126 = vpop.f32.mrb[0].mxu0
        %v9127 = vadd.f32 0.0, %v9126
        %v9128 = vpop.f32.mrb[0].mxu0
        %v9129 = vpop.f32.mrb[0].mxu0
        %v9130 = vadd.f32 0.0, %v9129
        %v9131 = vpop.f32.mrb[0].mxu0
        %9132 = vmatprep.mubr.bf16.mxu0 0
        %9133 = vmatmul.mubr.bf16.gmra.mrb[0].mxu0 %v9057
        %v9134 = vpop.f32.mrb[0].mxu0
        %v9135 = vadd.f32 0.0, %v9134
        %v9136 = vpop.f32.mrb[0].mxu0
        %v9137 = vpop.f32.mrb[0].mxu0
        %v9138 = vadd.f32 0.0, %v9137
        %v9139 = vpop.f32.mrb[0].mxu0
        %9140 = vmatprep.mubr.bf16.mxu0 0
        %9141 = vmatmul.mubr.bf16.gmra.mrb[0].mxu0 %v9060
        %v9142 = vpop.f32.mrb[0].mxu0
        %v9143 = vadd.f32 0.0, %v9142
        %v9144 = vpop.f32.mrb[0].mxu0
        %v9145 = vpop.f32.mrb[0].mxu0
        %v9146 = vadd.f32 0.0, %v9145
        %v9147 = vpop.f32.mrb[0].mxu0
        %9148 = vmatprep.mubr.bf16.mxu0 0
        %9149 = vmatmul.mubr.bf16.gmra.mrb[0].mxu0 %v9063
        %v9150 = vpop.f32.mrb[0].mxu0
        %v9151 = vadd.f32 0.0, %v9150
        %v9152 = vpop.f32.mrb[0].mxu0
        %v9153 = vpop.f32.mrb[0].mxu0
        %v9154 = vadd.f32 0.0, %v9153
        %v9155 = vpop.f32.mrb[0].mxu0
        %9156 = vmatprep.mubr.bf16.mxu0 0
        %9157 = vmatmul.mubr.bf16.gmra.mrb[0].mxu0 %v9066
        %v9158 = vpop.f32.mrb[0].mxu0
        %v9159 = vadd.f32 0.0, %v9158
        %v9160 = vpop.f32.mrb[0].mxu0
        %v9161 = vpop.f32.mrb[0].mxu0
        %v9162 = vadd.f32 0.0, %v9161
        %v9163 = vpop.f32.mrb[0].mxu0
        %9164 = vdwg.mxu0
        %v9165 = vadd.f32 %v7180, %v9103
        %v9166 = vadd.f32 %v7181, %v9106
        %v9167 = vadd.f32 %v7182, %v9111
        %v9168 = vadd.f32 %v7183, %v9114
        %v9169 = vadd.f32 %v7184, %v9119
        %v9170 = vadd.f32 %v7185, %v9122
        %v9171 = vadd.f32 %v7186, %v9127
        %v9172 = vadd.f32 %v7187, %v9130
        %v9173 = vadd.f32 %v7188, %v9135
        %v9174 = vadd.f32 %v7189, %v9138
        %v9175 = vadd.f32 %v7190, %v9143
        %v9176 = vadd.f32 %v7191, %v9146
        %v9177 = vadd.f32 %v7192, %v9151
        %v9178 = vadd.f32 %v7193, %v9154
        %v9179 = vadd.f32 %v7194, %v9159
        %v9180 = vadd.f32 %v7195, %v9162
        %v9181 = vmul.f32 %v803, %v9165
        %v9182 = vmul.f32 %v804, %v9166
        %v9183 = vmul.f32 %v805, %v9167
        %v9184 = vmul.f32 %v806, %v9168
        %v9185 = vmul.f32 %v807, %v9169
        %v9186 = vmul.f32 %v808, %v9170
        %v9187 = vmul.f32 %v809, %v9171
        %v9188 = vmul.f32 %v810, %v9172
        %v9189 = vmul.f32 %v811, %v9173
        %v9190 = vmul.f32 %v812, %v9174
        %v9191 = vmul.f32 %v813, %v9175
        %v9192 = vmul.f32 %v814, %v9176
        %v9193 = vmul.f32 %v815, %v9177
        %v9194 = vmul.f32 %v816, %v9178
        %v9195 = vmul.f32 %v817, %v9179
        %v9196 = vmul.f32 %v818, %v9180
        %v9197 = vld [vmem:[%s5] sm:$0x1]
        %v9199 = vlaneseq
        %v9200 = vshrl.u32 %v9199, 7
        %v9201 = vsub.s32 0, %v9200
        %v9202 = vrot.slane %v9197, %v9201
        %v9204 = vadd.f32 %v9181, %v9202
        %v9205 = vadd.f32 %v9182, %v9202
        %v9206 = vadd.f32 %v9183, %v9202
        %v9207 = vadd.f32 %v9184, %v9202
        %v9208 = vadd.f32 %v9185, %v9202
        %v9209 = vadd.f32 %v9186, %v9202
        %v9210 = vadd.f32 %v9187, %v9202
        %v9211 = vadd.f32 %v9188, %v9202
        %v9212 = vadd.f32 %v9189, %v9202
        %v9213 = vadd.f32 %v9190, %v9202
        %v9214 = vadd.f32 %v9191, %v9202
        %v9215 = vadd.f32 %v9192, %v9202
        %v9216 = vadd.f32 %v9193, %v9202
        %v9217 = vadd.f32 %v9194, %v9202
        %v9218 = vadd.f32 %v9195, %v9202
        %v9219 = vadd.f32 %v9196, %v9202
        %9220 = vst.msk [vmem:[%s313] sm:$0xff] %vm825, %v9204
        %9221 = vst.msk [vmem:[%s313 + $0x8] sm:$0xff] %vm825, %v9205
        %9222 = vst.msk [vmem:[%s313 + $0x10] sm:$0xff] %vm825, %v9206
        %9223 = vst.msk [vmem:[%s313 + $0x18] sm:$0xff] %vm825, %v9207
        %9224 = vst.msk [vmem:[%s313 + $0x20] sm:$0xff] %vm825, %v9208
        %9225 = vst.msk [vmem:[%s313 + $0x28] sm:$0xff] %vm825, %v9209
        %9226 = vst.msk [vmem:[%s313 + $0x30] sm:$0xff] %vm825, %v9210
        %9227 = vst.msk [vmem:[%s313 + $0x38] sm:$0xff] %vm825, %v9211
        %9228 = vst.msk [vmem:[%s313 + $0x40] sm:$0xff] %vm825, %v9212
        %9229 = vst.msk [vmem:[%s313 + $0x48] sm:$0xff] %vm825, %v9213
        %9230 = vst.msk [vmem:[%s313 + $0x50] sm:$0xff] %vm825, %v9214
        %9231 = vst.msk [vmem:[%s313 + $0x58] sm:$0xff] %vm825, %v9215
        %9232 = vst.msk [vmem:[%s313 + $0x60] sm:$0xff] %vm825, %v9216
        %9233 = vst.msk [vmem:[%s313 + $0x68] sm:$0xff] %vm825, %v9217
        %9234 = vst.msk [vmem:[%s313 + $0x70] sm:$0xff] %vm825, %v9218
        %9235 = vst.msk [vmem:[%s313 + $0x78] sm:$0xff] %vm825, %v9219
        %s9236 = smul.u32 16, %s23
        %p9237 = scmp.lt.s32.totalorder %s9236, 31
        %s9238 = scalar_select %p9237, %s9236, 31
        %s9239 = smul.addr %s9238, 8
        %s9240 = scalar_lea.vmem %s6, %s9239
        // Predicated region
        $region53: #{tpu_custom_call.1} parent=43 // pred_check
          %p9241 = pneg %p177
        $region54: #{tpu_custom_call.1} parent=43 // pred_check_branch
          %9243 = sbr.rel (%p9241) target = $region56
        $region55: #{tpu_custom_call.1} parent=43 // pred_region
          %s9244 = smul.u32 16, %s23
        $region56: #{tpu_custom_call.1} parent=43 // pred_fallthru
          _
      $region44: #{tpu_custom_call.1} parent=5 // pred_fallthru
        _
      %p9245 = scmp.le.s32.totalorder 2, %s18
      // Predicated region
      $region57: #{tpu_custom_call.1} parent=5 // pred_check
        %p9246 = pneg %p9245
      $region58: #{tpu_custom_call.1} parent=5 // pred_check_branch
        %9248 = sbr.rel (%p9246) target = $region60
      $region59: #{tpu_custom_call.1} parent=5 // pred_region
        %s9249 = ssub.s32 %s18, 2
        // Predicated region
        $region61: #{tpu_custom_call.1} parent=59 // pred_check
          %p9250 = pneg %p183
        $region62: #{tpu_custom_call.1} parent=59 // pred_check_branch
          %9252 = sbr.rel (%p9250) target = $region64
        $region63: #{tpu_custom_call.1} parent=59 // pred_region
          %s9253 = smul.u32 16, %s24
          %p9254 = scmp.lt.s32.totalorder %s9253, 31
          %s9255 = scalar_select %p9254, %s9253, 31
          %s9256 = smul.addr %s9255, 8
          %s9257 = scalar_lea.vmem %s6, %s9256
        $region64: #{tpu_custom_call.1} parent=59 // pred_fallthru
          _
      $region60: #{tpu_custom_call.1} parent=5 // pred_fallthru
        _
    $region6: #{tpu_custom_call.1} parent=1 // loop_footer
      %s22 = sadd.s32 1, %s18
    $region7: #{tpu_custom_call.1} parent=1 // loop_footer_branch
      %17 = sbr.rel target = $region3
    $region8: #{tpu_custom_call.1} parent=1 // loop_exit
      _
    %9258 = vsyncpa [#allocation3], 1
    %s9259 = scalar_lea.sflag [#allocation3], 1
    %9260 = vsyncpa %s9259, 1
    %9261 = vsyncpa [#allocation5], 1
    %s9262 = scalar_lea.sflag [#allocation5], 1
    %9263 = vsyncpa %s9262, 1

</llo_original>
